<compile_context>
chip_gen: v7x
topology: tpu7x:2x2x1
jax: 0.10.0
libtpu: 0.0.40
codegen_flags: <defaults>
</compile_context>

<pallas_src>
import functools
import math

import jax
import jax.numpy as jnp
from jax.experimental import pallas as pl
from jax.experimental.pallas import tpu as pltpu

# ---- small, shape-consistent hyper-parameters --------------------------------------
VOCAB = 32
B = 2              # batch
S = 10             # input_ids length (includes the [CLS]/[SEP] slots)
T = S - 2          # inner length after last_hidden_state[:, 1:-1]
EMB = 128          # embedding_dim (BERT hidden size)
NUM_HEADS = 4
HEAD_DIM = EMB // NUM_HEADS
FFN = 256
NUM_BERT_LAYERS = 2
LSTM_H = 64        # LSTM hidden_size (bidirectional -> 2*LSTM_H == EMB features)
NUM_CLASS = 8


# ====================================================================================
# Pallas kernels
# ====================================================================================
def _layernorm(x, g, b):
    mu = jnp.mean(x, axis=-1, keepdims=True)
    var = jnp.mean((x - mu) * (x - mu), axis=-1, keepdims=True)
    return (x - mu) * jax.lax.rsqrt(var + 1e-12) * g + b


def bert_encoder_kernel(x_ref, addm_ref, embg_ref, embb_ref,
                        wqkv_ref, bqkv_ref, wo_ref, bo_ref,
                        ln1g_ref, ln1b_ref, w1_ref, b1_ref,
                        w2_ref, b2_ref, ln2g_ref, ln2b_ref,
                        o_ref, x_scr, *, bsz, slen, nheads):
    """One fused transformer encoder layer per grid step; residual stream in x_scr."""
    layer = pl.program_id(0)

    @pl.when(layer == 0)
    def _():
        # embedding layernorm folded into the first grid step
        x_scr[...] = _layernorm(x_ref[...], embg_ref[...], embb_ref[...])

    x = x_scr[...]                                   # [B*S, E] f32 residual stream
    emb = x.shape[-1]
    hd = emb // nheads

    # fused QKV projection: one [B*S, E] x [E, 3E] matmul
    # (1/sqrt(head_dim) softmax scale is folded into the Q columns of wqkv at init time)
    qkv = (jnp.dot(x.astype(jnp.bfloat16), wqkv_ref[...],
                   preferred_element_type=jnp.float32) + bqkv_ref[...])
    wo = wo_ref[...]                                 # [E, E] bf16

    # ---- all B*NH score matrices -> ONE masked softmax over a [B*NH*S, S] slab -------
    s_list = []
    for b in range(bsz):                             # B=2, unrolled
        r0, r1 = b * slen, (b + 1) * slen
        for h in range(nheads):                      # NH=4, unrolled
            q = qkv[r0:r1, h * hd:(h + 1) * hd].astype(jnp.bfloat16)
            k = qkv[r0:r1, emb + h * hd:emb + (h + 1) * hd].astype(jnp.bfloat16)
            s_list.append(jax.lax.dot_general(q, k, (((1,), (1,)), ((), ())),
                                              preferred_element_type=jnp.float32))
    s_slab = jnp.concatenate(s_list, axis=0) + addm_ref[...]        # [B*NH*S, S]
    mx = jnp.max(s_slab, axis=-1, keepdims=True)                    # one batched softmax
    p = jnp.exp(s_slab - mx)
    p = p * pl.reciprocal(jnp.sum(p, axis=-1, keepdims=True), approx=True)

    # ---- context + merged (K=emb) out-projection per batch row-block -----------------
    out_rows = []
    for b in range(bsz):
        r0, r1 = b * slen, (b + 1) * slen
        ctx_list = []
        for h in range(nheads):
            idx = b * nheads + h
            ph = p[idx * slen:(idx + 1) * slen, :].astype(jnp.bfloat16)          # [S, S]
            v = qkv[r0:r1, 2 * emb + h * hd:2 * emb + (h + 1) * hd].astype(jnp.bfloat16)
            ctx_list.append(jnp.dot(ph, v, preferred_element_type=jnp.float32))  # [S, hd]
        ctx_b = jnp.concatenate(ctx_list, axis=1).astype(jnp.bfloat16)           # [S, E]
        out_rows.append(jnp.dot(ctx_b, wo, preferred_element_type=jnp.float32))  # K=E dot
    attn = jnp.concatenate(out_rows, axis=0) + bo_ref[...]          # [B*S, E]

    h1 = _layernorm(x + attn, ln1g_ref[...], ln1b_ref[...])
    # TODO(synk): HF/PyTorch BERT uses exact (erf) GELU; tanh approximation used here.
    ff = jax.nn.gelu(jnp.dot(h1.astype(jnp.bfloat16), w1_ref[...],
                             preferred_element_type=jnp.float32) + b1_ref[...],
                     approximate=True)
    ff = (jnp.dot(ff.astype(jnp.bfloat16), w2_ref[...],
                  preferred_element_type=jnp.float32) + b2_ref[...])
    out = _layernorm(h1 + ff, ln2g_ref[...], ln2b_ref[...])

    x_scr[...] = out

    @pl.when(layer == pl.num_programs(0) - 1)       # only the last layer reaches HBM
    def _():
        o_ref[...] = out


def lstm_fc_viterbi_kernel(lens_ref, x_ref, wih_ref, whh_ref, b_ref,
                           fcw_ref, fcb_ref, trans_ref,
                           bp_ref, score_ref, x_scr,
                           *, bsz, t_len, hidden, nclass):
    """Both BiLSTM layers (grid) + fc + log_softmax + CRF Viterbi forward pass fused."""
    layer = pl.program_id(0)
    g4 = 4 * hidden                                  # 256 gates per direction
    h2 = 2 * hidden                                  # 128 combined hidden

    @pl.when(layer == 0)
    def _():
        x_scr[...] = x_ref[...]                      # layer-0 input = BERT features

    x = x_scr[...]                                   # [T*B, 2H] f32, time-major

    # combined x-gate precompute: one [T*B, 2H] x [2H, 8H] matmul (both directions)
    xg = (jnp.dot(x.astype(jnp.bfloat16), wih_ref[...],
                  preferred_element_type=jnp.float32) + b_ref[...])   # [T*B, 8H]
    whh = whh_ref[...]                               # [2H, 8H] bf16 block-diagonal

    def halfcell(gates, c):                          # PyTorch gate order i, f, g, o
        i_g = jax.nn.sigmoid(gates[:, 0 * hidden:1 * hidden])
        f_g = jax.nn.sigmoid(gates[:, 1 * hidden:2 * hidden])
        g_g = jnp.tanh(gates[:, 2 * hidden:3 * hidden])
        o_g = jax.nn.sigmoid(gates[:, 3 * hidden:4 * hidden])
        c2 = f_g * c + i_g * g_g
        return o_g * jnp.tanh(c2), c2

    h_cat = jnp.zeros((bsz, h2), jnp.float32)        # [h_fwd | h_bwd]
    c_f = jnp.zeros((bsz, hidden), jnp.float32)
    c_b = jnp.zeros((bsz, hidden), jnp.float32)
    fwd = [None] * t_len
    bwd = [None] * t_len
    for t in range(t_len):                           # T=8, unrolled; fwd@t, bwd@T-1-t
        tb = t_len - 1 - t
        # ONE block-diagonal recurrence matmul drives both directions
        g_hh = jnp.dot(h_cat.astype(jnp.bfloat16), whh,
                       preferred_element_type=jnp.float32)             # [B, 8H]
        gates_f = xg[t * bsz:(t + 1) * bsz, 0:g4] + g_hh[:, 0:g4]
        gates_b = xg[tb * bsz:(tb + 1) * bsz, g4:2 * g4] + g_hh[:, g4:2 * g4]
        h_f, c_f = halfcell(gates_f, c_f)
        h_b, c_b = halfcell(gates_b, c_b)
        fwd[t] = h_f
        bwd[tb] = h_b
        h_cat = jnp.concatenate([h_f, h_b], axis=1)
    # assemble the [T*B, 2H] output in registers; one lane-dense full-width store
    rows = [jnp.concatenate([fwd[t], bwd[t]], axis=1) for t in range(t_len)]
    y = jnp.concatenate(rows, axis=0)                # [T*B, 2H]
    x_scr[...] = y                                   # carry to next LSTM layer

    @pl.when(layer == pl.num_programs(0) - 1)
    def _():
        # fc (dropout = identity at inference) -> log_softmax -> Viterbi max-plus pass
        c = nclass
        logits = (jnp.dot(y.astype(jnp.bfloat16), fcw_ref[...],
                          preferred_element_type=jnp.float32) + fcb_ref[...])  # [T*B, C]
        mx = jnp.max(logits, axis=-1, keepdims=True)
        z = logits - mx
        lg = z - jnp.log(jnp.sum(jnp.exp(z), axis=-1, keepdims=True))  # log_softmax
        trans = trans_ref[...]                        # [C, C] (from, to)

        ri = jax.lax.broadcasted_iota(jnp.int32, (c, c), 0)            # 'from' index
        ci = jax.lax.broadcasted_iota(jnp.int32, (c, c), 1)
        eye = (ri == ci).astype(jnp.float32)
        ri_f = ri.astype(jnp.float32)
        iota_row = jax.lax.broadcasted_iota(jnp.int32, (1, c), 1)

        bp_all, score_all = [], []
        for b in range(bsz):                         # B=2, unrolled
            length = lens_ref[b]                     # SMEM scalar (prefetched)
            vrow = lg[b:b + 1, :]                    # t=0 emissions (time-major)
            bp_rows = [iota_row]
            for t in range(1, t_len):
                emit = lg[t * bsz + b:t * bsz + b + 1, :]              # [1, C]
                # row -> column broadcast with a VPU mul + lane reduce (no MXU matmul)
                vcol = jnp.sum(eye * vrow, axis=1, keepdims=True)      # [C,1], =vrow[i]
                smat = vcol + trans + emit                             # [C, C]
                best = jnp.max(smat, axis=0, keepdims=True)            # [1, C]
                cand = jnp.where(smat >= best, ri_f, float(c))
                bidx = jnp.min(cand, axis=0, keepdims=True).astype(jnp.int32)
                valid = t < length
                vrow = jnp.where(valid, best, vrow)                    # carry past seq end
                bp_rows.append(jnp.where(valid, bidx, iota_row))       # identity bp if pad
            bp_all.append(jnp.concatenate(bp_rows, axis=0)[None])      # [1, T, C]
            score_all.append(vrow)                                     # [1, C]
        bp_ref[...] = jnp.concatenate(bp_all, axis=0)
        score_ref[...] = jnp.concatenate(score_all, axis=0)


# ====================================================================================
# Wrappers (pallas_call setup) + JAX glue
# ====================================================================================
def bert_encoder(params, input_ids, addm_slab):
    # TODO(synk): pretrained BertModel replaced by a deterministic synthetic mini-BERT
    # (embeddings + LN + transformer layers with masked self-attention + GELU FFN).
    bsz, slen = input_ids.shape
    x = params["word_emb"][input_ids] + params["pos_emb"][None, :slen, :]
    x = x.reshape(bsz * slen, EMB)
    bp = params["bert"]
    n_layers = bp["wqkv"].shape[0]
    const2 = lambda l: (0, 0)
    stk3 = lambda l: (l, 0, 0)
    return pl.pallas_call(
        functools.partial(bert_encoder_kernel, bsz=bsz, slen=slen, nheads=NUM_HEADS),
        out_shape=jax.ShapeDtypeStruct((bsz * slen, EMB), jnp.float32),
        grid=(n_layers,),
        in_specs=[
            pl.BlockSpec((bsz * slen, EMB), const2),             # embeddings
            pl.BlockSpec((bsz * NUM_HEADS * slen, slen), const2),  # additive mask slab
            pl.BlockSpec((1, EMB), const2),                      # emb layernorm gamma
            pl.BlockSpec((1, EMB), const2),                      # emb layernorm beta
            pl.BlockSpec((None, EMB, 3 * EMB), stk3),            # wqkv (stacked over layers)
            pl.BlockSpec((None, 1, 3 * EMB), stk3),              # bqkv
            pl.BlockSpec((None, EMB, EMB), stk3),                # wo
            pl.BlockSpec((None, 1, EMB), stk3),                  # bo
            pl.BlockSpec((None, 1, EMB), stk3),                  # ln1 gamma
            pl.BlockSpec((None, 1, EMB), stk3),                  # ln1 beta
            pl.BlockSpec((None, EMB, FFN), stk3),                # w1
            pl.BlockSpec((None, 1, FFN), stk3),                  # b1
            pl.BlockSpec((None, FFN, EMB), stk3),                # w2
            pl.BlockSpec((None, 1, EMB), stk3),                  # b2
            pl.BlockSpec((None, 1, EMB), stk3),                  # ln2 gamma
            pl.BlockSpec((None, 1, EMB), stk3),                  # ln2 beta
        ],
        out_specs=pl.BlockSpec((bsz * slen, EMB), const2),
        scratch_shapes=[pltpu.VMEM((bsz * slen, EMB), jnp.float32)],  # residual carry
        compiler_params=pltpu.CompilerParams(dimension_semantics=("arbitrary",)),
    )(x, addm_slab, params["emb_ln_g"], params["emb_ln_b"],
      bp["wqkv"], bp["bqkv"], bp["wo"], bp["bo"], bp["ln1_g"], bp["ln1_b"],
      bp["w1"], bp["b1"], bp["w2"], bp["b2"], bp["ln2_g"], bp["ln2_b"])


def lstm_fc_viterbi(params, x_tm, lens, bsz, t_len):
    # x_tm: time-major [T*B, 2H]; returns (backpointers [B,T,C], final scores [B,C])
    lp = params["lstm"]
    n_layers = lp["w_ih"].shape[0]
    dim = x_tm.shape[-1]                                        # 2*LSTM_H == EMB == 128
    nclass = NUM_CLASS
    const2 = lambda l, lens_ref: (0, 0)
    stk3 = lambda l, lens_ref: (l, 0, 0)
    return pl.pallas_call(
        functools.partial(lstm_fc_viterbi_kernel, bsz=bsz, t_len=t_len,
                          hidden=LSTM_H, nclass=nclass),
        out_shape=(jax.ShapeDtypeStruct((bsz, t_len, nclass), jnp.int32),
                   jax.ShapeDtypeStruct((bsz, nclass), jnp.float32)),
        grid_spec=pltpu.PrefetchScalarGridSpec(
            num_scalar_prefetch=1,
            grid=(n_layers,),
            in_specs=[
                pl.BlockSpec((t_len * bsz, dim), const2),        # BERT features (layer-0 in)
                pl.BlockSpec((None, dim, 8 * LSTM_H), stk3),     # [W_ih_f|W_ih_b] stacked
                pl.BlockSpec((None, dim, 8 * LSTM_H), stk3),     # block-diag W_hh stacked
                pl.BlockSpec((None, 1, 8 * LSTM_H), stk3),       # combined bias stacked
                pl.BlockSpec((dim, nclass), const2),             # fc weight (bf16)
                pl.BlockSpec((1, nclass), const2),               # fc bias
                pl.BlockSpec((nclass, nclass), const2),          # CRF transitions
            ],
            out_specs=[pl.BlockSpec((bsz, t_len, nclass), lambda l, lens_ref: (0, 0, 0)),
                       pl.BlockSpec((bsz, nclass), const2)],
            scratch_shapes=[pltpu.VMEM((t_len * bsz, dim), jnp.float32)],  # activation carry
        ),
        compiler_params=pltpu.CompilerParams(dimension_semantics=("arbitrary",)),
    )(lens, x_tm, lp["w_ih"], lp["w_hh"], lp["b"],
      params["fc_w"], params["fc_b"], params["trans"])


def viterbi_backtrack(bp, final_scores, lens):
    # bp: [B, T, C] int32 backpointers; final_scores: [B, C]; lens: [B]
    last_tag = jnp.argmax(final_scores, axis=-1).astype(jnp.int32)

    def single(bp_b, last):
        def step(tag, bp_t):
            return bp_t[tag], tag
        first, rest = jax.lax.scan(step, last, bp_b[1:], reverse=True)
        return jnp.concatenate([first[None], rest])

    tags = jax.vmap(single)(bp, last_tag)                            # [B, T]
    t_len = bp.shape[1]
    valid = jnp.arange(t_len)[None, :] < lens[:, None]
    return jnp.where(valid, tags, 0)


def forward(params, input_ids, input_len):
    bsz, slen = input_ids.shape
    attn_mask = (jnp.arange(slen)[None, :] < input_len[:, None]).astype(jnp.float32)
    addm = (attn_mask - 1.0) * 1e9                                   # 0 valid / -1e9 padded
    # pre-expanded mask slab matching the in-kernel [B*NH*S, S] score slab layout
    addm_slab = jnp.repeat(addm, NUM_HEADS * slen, axis=0)
    hs = bert_encoder(params, input_ids, addm_slab)                  # frozen / no-grad BERT
    hs = hs.reshape(bsz, slen, EMB)
    x = hs[:, 1:-1, :]                                               # first_bpe_state [B,T,E]
    t_len = x.shape[1]
    x_tm = jnp.transpose(x, (1, 0, 2)).reshape(t_len * bsz, EMB)     # time-major for LSTM
    lens2 = jnp.clip(input_len - 2, 0, t_len).astype(jnp.int32)      # seq_len_to_mask(len-2)
    bp, final_scores = lstm_fc_viterbi(params, x_tm, lens2, bsz, t_len)
    pred = viterbi_backtrack(bp, final_scores, lens2)
    # TODO(synk): training branch (CRF negative log-likelihood loss when target is given)
    # is not implemented; this reproduces the target=None viterbi_decode path.
    return {"pred": pred}


def init_params(key):
    kit = iter(jax.random.split(key, 64))

    def nrm(shape, scale=0.02, dtype=jnp.float32):
        return (scale * jax.random.normal(next(kit), shape, dtype=jnp.float32)).astype(dtype)

    n_layers = NUM_BERT_LAYERS
    # fold the 1/sqrt(head_dim) softmax scale into the Q columns of wqkv (and its bias slot).
    wqkv_f = 0.02 * jax.random.normal(next(kit), (n_layers, EMB, 3 * EMB), jnp.float32)
    wqkv_f = wqkv_f.at[:, :, :EMB].multiply(1.0 / math.sqrt(HEAD_DIM))
    params = {
        "word_emb": nrm((VOCAB, EMB)),
        "pos_emb": nrm((S, EMB)),
        "emb_ln_g": jnp.ones((1, EMB), jnp.float32),
        "emb_ln_b": jnp.zeros((1, EMB), jnp.float32),
        "bert": {
            "wqkv": wqkv_f.astype(jnp.bfloat16),                     # [Wq*scale|Wk|Wv]^T
            "bqkv": jnp.zeros((n_layers, 1, 3 * EMB), jnp.float32),  # Q-part scale folded too
            "wo": nrm((n_layers, EMB, EMB), dtype=jnp.bfloat16),
            "bo": jnp.zeros((n_layers, 1, EMB), jnp.float32),
            "ln1_g": jnp.ones((n_layers, 1, EMB), jnp.float32),
            "ln1_b": jnp.zeros((n_layers, 1, EMB), jnp.float32),
            "w1": nrm((n_layers, EMB, FFN), dtype=jnp.bfloat16),
            "b1": jnp.zeros((n_layers, 1, FFN), jnp.float32),
            "w2": nrm((n_layers, FFN, EMB), dtype=jnp.bfloat16),
            "b2": jnp.zeros((n_layers, 1, EMB), jnp.float32),
            "ln2_g": jnp.ones((n_layers, 1, EMB), jnp.float32),
            "ln2_b": jnp.zeros((n_layers, 1, EMB), jnp.float32),
        },
    }

    # 2-layer bidirectional LSTM, combined layouts:
    #   w_ih: [W_ih_fwd | W_ih_bwd]            -> [Din, 8H]
    #   w_hh: block-diag([W_hh_fwd, W_hh_bwd]) -> [2H, 8H]   (rows = [h_fwd | h_bwd])
    #   b   : [b_fwd | b_bwd]                  -> [1, 8H]    (b_ih + b_hh merged)
    def make_bilstm_layer(in_dim, hidden):
        sc = 1.0 / math.sqrt(hidden)
        g4 = 4 * hidden
        w_ih_f = nrm((in_dim, g4), sc)
        w_ih_b = nrm((in_dim, g4), sc)
        w_hh_f = nrm((hidden, g4), sc)
        w_hh_b = nrm((hidden, g4), sc)
        b_f = nrm((1, g4), sc)
        b_b = nrm((1, g4), sc)
        w_ih_cat = jnp.concatenate([w_ih_f, w_ih_b], axis=1)
        b_cat = jnp.concatenate([b_f, b_b], axis=1)
        z = jnp.zeros((hidden, g4), jnp.float32)
        w_hh_block = jnp.concatenate(
            [jnp.concatenate([w_hh_f, z], axis=1),
             jnp.concatenate([z, w_hh_b], axis=1)], axis=0)
        return (w_ih_cat.astype(jnp.bfloat16), w_hh_block.astype(jnp.bfloat16), b_cat)

    layers = [make_bilstm_layer(EMB, LSTM_H), make_bilstm_layer(2 * LSTM_H, LSTM_H)]
    params["lstm"] = {
        "w_ih": jnp.stack([l[0] for l in layers]),                   # [2, 128, 512] bf16
        "w_hh": jnp.stack([l[1] for l in layers]),                   # [2, 128, 512] bf16
        "b": jnp.stack([l[2] for l in layers]),                      # [2, 1, 512] f32
    }
    params["fc_w"] = nrm((2 * LSTM_H, NUM_CLASS), dtype=jnp.bfloat16)
    params["fc_b"] = jnp.zeros((1, NUM_CLASS), jnp.float32)
    params["trans"] = nrm((NUM_CLASS, NUM_CLASS), 0.1)               # CRF transitions [from,to]
    return params


if __name__ == "__main__":
    key = jax.random.PRNGKey(0)
    pkey, ikey = jax.random.split(key)
    params = init_params(pkey)
    input_ids = jax.random.randint(ikey, (B, S), 0, VOCAB, dtype=jnp.int32)
    input_len = jnp.array([S, S - 2], dtype=jnp.int32)               # variable-length batch

    fwd = jax.jit(forward)
    out = fwd(params, input_ids, input_len)
    pred = jax.block_until_ready(out["pred"])
    assert pred.shape == (B, T) and pred.dtype == jnp.int32
    print("KERNEL_OK")
</pallas_src>

<mosaic_0001>
module attributes {stable_mosaic.version = 11 : i64} {
  func.func @bert_encoder_kernel(%arg0: i32, %arg1: memref<20x128xf32, #tpu.memory_space<vmem>>, %arg2: memref<80x10xf32, #tpu.memory_space<vmem>>, %arg3: memref<1x128xf32, #tpu.memory_space<vmem>>, %arg4: memref<1x128xf32, #tpu.memory_space<vmem>>, %arg5: memref<1x128x384xbf16, #tpu.memory_space<vmem>>, %arg6: memref<1x1x384xf32, #tpu.memory_space<vmem>>, %arg7: memref<1x128x128xbf16, #tpu.memory_space<vmem>>, %arg8: memref<1x1x128xf32, #tpu.memory_space<vmem>>, %arg9: memref<1x1x128xf32, #tpu.memory_space<vmem>>, %arg10: memref<1x1x128xf32, #tpu.memory_space<vmem>>, %arg11: memref<1x128x256xbf16, #tpu.memory_space<vmem>>, %arg12: memref<1x1x256xf32, #tpu.memory_space<vmem>>, %arg13: memref<1x256x128xbf16, #tpu.memory_space<vmem>>, %arg14: memref<1x1x128xf32, #tpu.memory_space<vmem>>, %arg15: memref<1x1x128xf32, #tpu.memory_space<vmem>>, %arg16: memref<1x1x128xf32, #tpu.memory_space<vmem>>, %arg17: memref<20x128xf32, #tpu.memory_space<vmem>>, %arg18: memref<20x128xf32, #tpu.memory_space<vmem>>) attributes {dimension_semantics = [#tpu.dimension_semantics<arbitrary>], iteration_bounds = array<i64: 2>, scalar_prefetch = 0 : i64, scratch_operands = 1 : i64, tpu.core_type = #tpu.core_type<tc>, window_params = [{pipeline_mode = #tpu.pipeline_mode<synchronous>, transform_indices = @transform_0, window_bounds = array<i64: 20, 128>}, {pipeline_mode = #tpu.pipeline_mode<synchronous>, transform_indices = @transform_1, window_bounds = array<i64: 80, 10>}, {pipeline_mode = #tpu.pipeline_mode<synchronous>, transform_indices = @transform_2, window_bounds = array<i64: 1, 128>}, {pipeline_mode = #tpu.pipeline_mode<synchronous>, transform_indices = @transform_3, window_bounds = array<i64: 1, 128>}, {transform_indices = @transform_4, window_bounds = array<i64: 1, 128, 384>}, {transform_indices = @transform_5, window_bounds = array<i64: 1, 1, 384>}, {transform_indices = @transform_6, window_bounds = array<i64: 1, 128, 128>}, {transform_indices = @transform_7, window_bounds = array<i64: 1, 1, 128>}, {transform_indices = @transform_8, window_bounds = array<i64: 1, 1, 128>}, {transform_indices = @transform_9, window_bounds = array<i64: 1, 1, 128>}, {transform_indices = @transform_10, window_bounds = array<i64: 1, 128, 256>}, {transform_indices = @transform_11, window_bounds = array<i64: 1, 1, 256>}, {transform_indices = @transform_12, window_bounds = array<i64: 1, 256, 128>}, {transform_indices = @transform_13, window_bounds = array<i64: 1, 1, 128>}, {transform_indices = @transform_14, window_bounds = array<i64: 1, 1, 128>}, {transform_indices = @transform_15, window_bounds = array<i64: 1, 1, 128>}, {pipeline_mode = #tpu.pipeline_mode<synchronous>, transform_indices = @transform_16, window_bounds = array<i64: 20, 128>}]} {
    %c0_i32 = arith.constant 0 : i32
    %0 = arith.cmpi eq, %arg0, %c0_i32 : i32
    %1 = arith.extui %0 : i1 to i32
    %c0_i32_0 = arith.constant 0 : i32
    %2 = arith.cmpi ne, %1, %c0_i32_0 : i32
    scf.if %2 {
      %c0_79 = arith.constant 0 : index
      %c0_80 = arith.constant 0 : index
      %209 = vector.load %arg1[%c0_79, %c0_80] : memref<20x128xf32, #tpu.memory_space<vmem>>, vector<20x128xf32>
      %c0_81 = arith.constant 0 : index
      %c0_82 = arith.constant 0 : index
      %210 = vector.load %arg3[%c0_81, %c0_82] : memref<1x128xf32, #tpu.memory_space<vmem>>, vector<1x128xf32>
      %c0_83 = arith.constant 0 : index
      %c0_84 = arith.constant 0 : index
      %211 = vector.load %arg4[%c0_83, %c0_84] : memref<1x128xf32, #tpu.memory_space<vmem>>, vector<1x128xf32>
      %cst_85 = arith.constant dense<0.000000e+00> : vector<20xf32>
      %212 = vector.multi_reduction <add>, %209, %cst_85 [1] : vector<20x128xf32> to vector<20xf32>
      %213 = vector.shape_cast %212 : vector<20xf32> to vector<20x1xf32>
      %cst_86 = arith.constant 1.280000e+02 : f32
      %214 = vector.broadcast %cst_86 : f32 to vector<20x1xf32>
      %215 = arith.divf %213, %214 : vector<20x1xf32>
      %216 = vector.broadcast %215 : vector<20x1xf32> to vector<20x128xf32>
      %217 = arith.subf %209, %216 : vector<20x128xf32>
      %218 = vector.broadcast %215 : vector<20x1xf32> to vector<20x128xf32>
      %219 = arith.subf %209, %218 : vector<20x128xf32>
      %220 = arith.mulf %217, %219 : vector<20x128xf32>
      %cst_87 = arith.constant dense<0.000000e+00> : vector<20xf32>
      %221 = vector.multi_reduction <add>, %220, %cst_87 [1] : vector<20x128xf32> to vector<20xf32>
      %222 = vector.shape_cast %221 : vector<20xf32> to vector<20x1xf32>
      %cst_88 = arith.constant 1.280000e+02 : f32
      %223 = vector.broadcast %cst_88 : f32 to vector<20x1xf32>
      %224 = arith.divf %222, %223 : vector<20x1xf32>
      %225 = vector.broadcast %215 : vector<20x1xf32> to vector<20x128xf32>
      %226 = arith.subf %209, %225 : vector<20x128xf32>
      %cst_89 = arith.constant 9.99999996E-13 : f32
      %227 = vector.broadcast %cst_89 : f32 to vector<20x1xf32>
      %228 = arith.addf %224, %227 : vector<20x1xf32>
      %229 = math.rsqrt %228 : vector<20x1xf32>
      %230 = vector.broadcast %229 : vector<20x1xf32> to vector<20x128xf32>
      %231 = arith.mulf %226, %230 : vector<20x128xf32>
      %232 = vector.broadcast %210 : vector<1x128xf32> to vector<20x128xf32>
      %233 = arith.mulf %231, %232 : vector<20x128xf32>
      %234 = vector.broadcast %211 : vector<1x128xf32> to vector<20x128xf32>
      %235 = arith.addf %233, %234 : vector<20x128xf32>
      %c0_90 = arith.constant 0 : index
      %c0_91 = arith.constant 0 : index
      %236 = vector.load %arg18[%c0_90, %c0_91] : memref<20x128xf32, #tpu.memory_space<vmem>>, vector<20x128xf32>
      tpu.vector_store %arg18[%c0_90, %c0_91], %235 {strides = array<i32>} : memref<20x128xf32, #tpu.memory_space<vmem>>, vector<20x128xf32>,
    } else {
    }
    %c0 = arith.constant 0 : index
    %c0_1 = arith.constant 0 : index
    %3 = vector.load %arg18[%c0, %c0_1] : memref<20x128xf32, #tpu.memory_space<vmem>>, vector<20x128xf32>
    %4 = arith.truncf %3 : vector<20x128xf32> to vector<20x128xbf16>
    %c0_2 = arith.constant 0 : index
    %c0_3 = arith.constant 0 : index
    %c0_4 = arith.constant 0 : index
    %5 = vector.load %arg5[%c0_2, %c0_3, %c0_4] : memref<1x128x384xbf16, #tpu.memory_space<vmem>>, vector<1x128x384xbf16>
    %6 = vector.shape_cast %5 : vector<1x128x384xbf16> to vector<128x384xbf16>
    %cst = arith.constant dense<0.000000e+00> : vector<20x384xf32>
    %7 = tpu.matmul %4, %6, %cst {dimension_numbers = #tpu.dot_dimension_numbers<[1], [0], [0], [1], [0, 0, 1, 1], [], []>} : vector<20x128xbf16>, vector<128x384xbf16>, vector<20x384xf32> -> vector<20x384xf32>
    %c0_5 = arith.constant 0 : index
    %c0_6 = arith.constant 0 : index
    %c0_7 = arith.constant 0 : index
    %8 = vector.load %arg6[%c0_5, %c0_6, %c0_7] : memref<1x1x384xf32, #tpu.memory_space<vmem>>, vector<1x1x384xf32>
    %9 = vector.shape_cast %8 : vector<1x1x384xf32> to vector<1x384xf32>
    %10 = vector.broadcast %9 : vector<1x384xf32> to vector<20x384xf32>
    %11 = arith.addf %7, %10 : vector<20x384xf32>
    %c0_8 = arith.constant 0 : index
    %c0_9 = arith.constant 0 : index
    %c0_10 = arith.constant 0 : index
    %12 = vector.load %arg7[%c0_8, %c0_9, %c0_10] : memref<1x128x128xbf16, #tpu.memory_space<vmem>>, vector<1x128x128xbf16>
    %13 = vector.shape_cast %12 : vector<1x128x128xbf16> to vector<128x128xbf16>
    %14 = vector.extract_strided_slice %11 {offsets = [0, 0], sizes = [10, 32], strides = [1, 1]} : vector<20x384xf32> to vector<10x32xf32>
    %15 = arith.truncf %14 : vector<10x32xf32> to vector<10x32xbf16>
    %16 = vector.extract_strided_slice %11 {offsets = [0, 128], sizes = [10, 32], strides = [1, 1]} : vector<20x384xf32> to vector<10x32xf32>
    %17 = arith.truncf %16 : vector<10x32xf32> to vector<10x32xbf16>
    %cst_11 = arith.constant dense<0.000000e+00> : vector<10x10xf32>
    %18 = tpu.matmul %15, %17, %cst_11 {dimension_numbers = #tpu.dot_dimension_numbers<[1], [1], [0], [0], [0, 0, 1, 0], [], []>} : vector<10x32xbf16>, vector<10x32xbf16>, vector<10x10xf32> -> vector<10x10xf32>
    %19 = vector.extract_strided_slice %11 {offsets = [0, 32], sizes = [10, 32], strides = [1, 1]} : vector<20x384xf32> to vector<10x32xf32>
    %20 = arith.truncf %19 : vector<10x32xf32> to vector<10x32xbf16>
    %21 = vector.extract_strided_slice %11 {offsets = [0, 160], sizes = [10, 32], strides = [1, 1]} : vector<20x384xf32> to vector<10x32xf32>
    %22 = arith.truncf %21 : vector<10x32xf32> to vector<10x32xbf16>
    %cst_12 = arith.constant dense<0.000000e+00> : vector<10x10xf32>
    %23 = tpu.matmul %20, %22, %cst_12 {dimension_numbers = #tpu.dot_dimension_numbers<[1], [1], [0], [0], [0, 0, 1, 0], [], []>} : vector<10x32xbf16>, vector<10x32xbf16>, vector<10x10xf32> -> vector<10x10xf32>
    %24 = vector.extract_strided_slice %11 {offsets = [0, 64], sizes = [10, 32], strides = [1, 1]} : vector<20x384xf32> to vector<10x32xf32>
    %25 = arith.truncf %24 : vector<10x32xf32> to vector<10x32xbf16>
    %26 = vector.extract_strided_slice %11 {offsets = [0, 192], sizes = [10, 32], strides = [1, 1]} : vector<20x384xf32> to vector<10x32xf32>
    %27 = arith.truncf %26 : vector<10x32xf32> to vector<10x32xbf16>
    %cst_13 = arith.constant dense<0.000000e+00> : vector<10x10xf32>
    %28 = tpu.matmul %25, %27, %cst_13 {dimension_numbers = #tpu.dot_dimension_numbers<[1], [1], [0], [0], [0, 0, 1, 0], [], []>} : vector<10x32xbf16>, vector<10x32xbf16>, vector<10x10xf32> -> vector<10x10xf32>
    %29 = vector.extract_strided_slice %11 {offsets = [0, 96], sizes = [10, 32], strides = [1, 1]} : vector<20x384xf32> to vector<10x32xf32>
    %30 = arith.truncf %29 : vector<10x32xf32> to vector<10x32xbf16>
    %31 = vector.extract_strided_slice %11 {offsets = [0, 224], sizes = [10, 32], strides = [1, 1]} : vector<20x384xf32> to vector<10x32xf32>
    %32 = arith.truncf %31 : vector<10x32xf32> to vector<10x32xbf16>
    %cst_14 = arith.constant dense<0.000000e+00> : vector<10x10xf32>
    %33 = tpu.matmul %30, %32, %cst_14 {dimension_numbers = #tpu.dot_dimension_numbers<[1], [1], [0], [0], [0, 0, 1, 0], [], []>} : vector<10x32xbf16>, vector<10x32xbf16>, vector<10x10xf32> -> vector<10x10xf32>
    %34 = vector.extract_strided_slice %11 {offsets = [10, 0], sizes = [10, 32], strides = [1, 1]} : vector<20x384xf32> to vector<10x32xf32>
    %35 = arith.truncf %34 : vector<10x32xf32> to vector<10x32xbf16>
    %36 = vector.extract_strided_slice %11 {offsets = [10, 128], sizes = [10, 32], strides = [1, 1]} : vector<20x384xf32> to vector<10x32xf32>
    %37 = arith.truncf %36 : vector<10x32xf32> to vector<10x32xbf16>
    %cst_15 = arith.constant dense<0.000000e+00> : vector<10x10xf32>
    %38 = tpu.matmul %35, %37, %cst_15 {dimension_numbers = #tpu.dot_dimension_numbers<[1], [1], [0], [0], [0, 0, 1, 0], [], []>} : vector<10x32xbf16>, vector<10x32xbf16>, vector<10x10xf32> -> vector<10x10xf32>
    %39 = vector.extract_strided_slice %11 {offsets = [10, 32], sizes = [10, 32], strides = [1, 1]} : vector<20x384xf32> to vector<10x32xf32>
    %40 = arith.truncf %39 : vector<10x32xf32> to vector<10x32xbf16>
    %41 = vector.extract_strided_slice %11 {offsets = [10, 160], sizes = [10, 32], strides = [1, 1]} : vector<20x384xf32> to vector<10x32xf32>
    %42 = arith.truncf %41 : vector<10x32xf32> to vector<10x32xbf16>
    %cst_16 = arith.constant dense<0.000000e+00> : vector<10x10xf32>
    %43 = tpu.matmul %40, %42, %cst_16 {dimension_numbers = #tpu.dot_dimension_numbers<[1], [1], [0], [0], [0, 0, 1, 0], [], []>} : vector<10x32xbf16>, vector<10x32xbf16>, vector<10x10xf32> -> vector<10x10xf32>
    %44 = vector.extract_strided_slice %11 {offsets = [10, 64], sizes = [10, 32], strides = [1, 1]} : vector<20x384xf32> to vector<10x32xf32>
    %45 = arith.truncf %44 : vector<10x32xf32> to vector<10x32xbf16>
    %46 = vector.extract_strided_slice %11 {offsets = [10, 192], sizes = [10, 32], strides = [1, 1]} : vector<20x384xf32> to vector<10x32xf32>
    %47 = arith.truncf %46 : vector<10x32xf32> to vector<10x32xbf16>
    %cst_17 = arith.constant dense<0.000000e+00> : vector<10x10xf32>
    %48 = tpu.matmul %45, %47, %cst_17 {dimension_numbers = #tpu.dot_dimension_numbers<[1], [1], [0], [0], [0, 0, 1, 0], [], []>} : vector<10x32xbf16>, vector<10x32xbf16>, vector<10x10xf32> -> vector<10x10xf32>
    %49 = vector.extract_strided_slice %11 {offsets = [10, 96], sizes = [10, 32], strides = [1, 1]} : vector<20x384xf32> to vector<10x32xf32>
    %50 = arith.truncf %49 : vector<10x32xf32> to vector<10x32xbf16>
    %51 = vector.extract_strided_slice %11 {offsets = [10, 224], sizes = [10, 32], strides = [1, 1]} : vector<20x384xf32> to vector<10x32xf32>
    %52 = arith.truncf %51 : vector<10x32xf32> to vector<10x32xbf16>
    %cst_18 = arith.constant dense<0.000000e+00> : vector<10x10xf32>
    %53 = tpu.matmul %50, %52, %cst_18 {dimension_numbers = #tpu.dot_dimension_numbers<[1], [1], [0], [0], [0, 0, 1, 0], [], []>} : vector<10x32xbf16>, vector<10x32xbf16>, vector<10x10xf32> -> vector<10x10xf32>
    %54 = tpu.concatenate %18, %23, %28, %33, %38, %43, %48, %53 in 0 : vector<10x10xf32>, vector<10x10xf32>, vector<10x10xf32>, vector<10x10xf32>, vector<10x10xf32>, vector<10x10xf32>, vector<10x10xf32>, vector<10x10xf32> -> vector<80x10xf32>
    %c0_19 = arith.constant 0 : index
    %c0_20 = arith.constant 0 : index
    %55 = vector.load %arg2[%c0_19, %c0_20] : memref<80x10xf32, #tpu.memory_space<vmem>>, vector<80x10xf32>
    %56 = arith.addf %54, %55 : vector<80x10xf32>
    %cst_21 = arith.constant dense<0xFF800000> : vector<80xf32>
    %57 = vector.multi_reduction <maximumf>, %56, %cst_21 [1] : vector<80x10xf32> to vector<80xf32>
    %58 = vector.shape_cast %57 : vector<80xf32> to vector<80x1xf32>
    %59 = vector.broadcast %58 : vector<80x1xf32> to vector<80x10xf32>
    %60 = arith.subf %56, %59 : vector<80x10xf32>
    %61 = math.exp %60 : vector<80x10xf32>
    %cst_22 = arith.constant dense<0.000000e+00> : vector<80xf32>
    %62 = vector.multi_reduction <add>, %61, %cst_22 [1] : vector<80x10xf32> to vector<80xf32>
    %63 = vector.shape_cast %62 : vector<80xf32> to vector<80x1xf32>
    %64 = tpu.reciprocal %63 {approx = true} : vector<80x1xf32> -> vector<80x1xf32>
    %65 = vector.broadcast %64 : vector<80x1xf32> to vector<80x10xf32>
    %66 = arith.mulf %61, %65 : vector<80x10xf32>
    %67 = vector.extract_strided_slice %66 {offsets = [0, 0], sizes = [10, 10], strides = [1, 1]} : vector<80x10xf32> to vector<10x10xf32>
    %68 = arith.truncf %67 : vector<10x10xf32> to vector<10x10xbf16>
    %69 = vector.extract_strided_slice %11 {offsets = [0, 256], sizes = [10, 32], strides = [1, 1]} : vector<20x384xf32> to vector<10x32xf32>
    %70 = arith.truncf %69 : vector<10x32xf32> to vector<10x32xbf16>
    %cst_23 = arith.constant dense<0.000000e+00> : vector<10x32xf32>
    %71 = tpu.matmul %68, %70, %cst_23 {dimension_numbers = #tpu.dot_dimension_numbers<[1], [0], [0], [1], [0, 0, 1, 1], [], []>} : vector<10x10xbf16>, vector<10x32xbf16>, vector<10x32xf32> -> vector<10x32xf32>
    %72 = vector.extract_strided_slice %66 {offsets = [10, 0], sizes = [10, 10], strides = [1, 1]} : vector<80x10xf32> to vector<10x10xf32>
    %73 = arith.truncf %72 : vector<10x10xf32> to vector<10x10xbf16>
    %74 = vector.extract_strided_slice %11 {offsets = [0, 288], sizes = [10, 32], strides = [1, 1]} : vector<20x384xf32> to vector<10x32xf32>
    %75 = arith.truncf %74 : vector<10x32xf32> to vector<10x32xbf16>
    %cst_24 = arith.constant dense<0.000000e+00> : vector<10x32xf32>
    %76 = tpu.matmul %73, %75, %cst_24 {dimension_numbers = #tpu.dot_dimension_numbers<[1], [0], [0], [1], [0, 0, 1, 1], [], []>} : vector<10x10xbf16>, vector<10x32xbf16>, vector<10x32xf32> -> vector<10x32xf32>
    %77 = vector.extract_strided_slice %66 {offsets = [20, 0], sizes = [10, 10], strides = [1, 1]} : vector<80x10xf32> to vector<10x10xf32>
    %78 = arith.truncf %77 : vector<10x10xf32> to vector<10x10xbf16>
    %79 = vector.extract_strided_slice %11 {offsets = [0, 320], sizes = [10, 32], strides = [1, 1]} : vector<20x384xf32> to vector<10x32xf32>
    %80 = arith.truncf %79 : vector<10x32xf32> to vector<10x32xbf16>
    %cst_25 = arith.constant dense<0.000000e+00> : vector<10x32xf32>
    %81 = tpu.matmul %78, %80, %cst_25 {dimension_numbers = #tpu.dot_dimension_numbers<[1], [0], [0], [1], [0, 0, 1, 1], [], []>} : vector<10x10xbf16>, vector<10x32xbf16>, vector<10x32xf32> -> vector<10x32xf32>
    %82 = vector.extract_strided_slice %66 {offsets = [30, 0], sizes = [10, 10], strides = [1, 1]} : vector<80x10xf32> to vector<10x10xf32>
    %83 = arith.truncf %82 : vector<10x10xf32> to vector<10x10xbf16>
    %84 = vector.extract_strided_slice %11 {offsets = [0, 352], sizes = [10, 32], strides = [1, 1]} : vector<20x384xf32> to vector<10x32xf32>
    %85 = arith.truncf %84 : vector<10x32xf32> to vector<10x32xbf16>
    %cst_26 = arith.constant dense<0.000000e+00> : vector<10x32xf32>
    %86 = tpu.matmul %83, %85, %cst_26 {dimension_numbers = #tpu.dot_dimension_numbers<[1], [0], [0], [1], [0, 0, 1, 1], [], []>} : vector<10x10xbf16>, vector<10x32xbf16>, vector<10x32xf32> -> vector<10x32xf32>
    %87 = tpu.concatenate %71, %76, %81, %86 in 1 : vector<10x32xf32>, vector<10x32xf32>, vector<10x32xf32>, vector<10x32xf32> -> vector<10x128xf32>
    %88 = arith.truncf %87 : vector<10x128xf32> to vector<10x128xbf16>
    %cst_27 = arith.constant dense<0.000000e+00> : vector<10x128xf32>
    %89 = tpu.matmul %88, %13, %cst_27 {dimension_numbers = #tpu.dot_dimension_numbers<[1], [0], [0], [1], [0, 0, 1, 1], [], []>} : vector<10x128xbf16>, vector<128x128xbf16>, vector<10x128xf32> -> vector<10x128xf32>
    %90 = vector.extract_strided_slice %66 {offsets = [40, 0], sizes = [10, 10], strides = [1, 1]} : vector<80x10xf32> to vector<10x10xf32>
    %91 = arith.truncf %90 : vector<10x10xf32> to vector<10x10xbf16>
    %92 = vector.extract_strided_slice %11 {offsets = [10, 256], sizes = [10, 32], strides = [1, 1]} : vector<20x384xf32> to vector<10x32xf32>
    %93 = arith.truncf %92 : vector<10x32xf32> to vector<10x32xbf16>
    %cst_28 = arith.constant dense<0.000000e+00> : vector<10x32xf32>
    %94 = tpu.matmul %91, %93, %cst_28 {dimension_numbers = #tpu.dot_dimension_numbers<[1], [0], [0], [1], [0, 0, 1, 1], [], []>} : vector<10x10xbf16>, vector<10x32xbf16>, vector<10x32xf32> -> vector<10x32xf32>
    %95 = vector.extract_strided_slice %66 {offsets = [50, 0], sizes = [10, 10], strides = [1, 1]} : vector<80x10xf32> to vector<10x10xf32>
    %96 = arith.truncf %95 : vector<10x10xf32> to vector<10x10xbf16>
    %97 = vector.extract_strided_slice %11 {offsets = [10, 288], sizes = [10, 32], strides = [1, 1]} : vector<20x384xf32> to vector<10x32xf32>
    %98 = arith.truncf %97 : vector<10x32xf32> to vector<10x32xbf16>
    %cst_29 = arith.constant dense<0.000000e+00> : vector<10x32xf32>
    %99 = tpu.matmul %96, %98, %cst_29 {dimension_numbers = #tpu.dot_dimension_numbers<[1], [0], [0], [1], [0, 0, 1, 1], [], []>} : vector<10x10xbf16>, vector<10x32xbf16>, vector<10x32xf32> -> vector<10x32xf32>
    %100 = vector.extract_strided_slice %66 {offsets = [60, 0], sizes = [10, 10], strides = [1, 1]} : vector<80x10xf32> to vector<10x10xf32>
    %101 = arith.truncf %100 : vector<10x10xf32> to vector<10x10xbf16>
    %102 = vector.extract_strided_slice %11 {offsets = [10, 320], sizes = [10, 32], strides = [1, 1]} : vector<20x384xf32> to vector<10x32xf32>
    %103 = arith.truncf %102 : vector<10x32xf32> to vector<10x32xbf16>
    %cst_30 = arith.constant dense<0.000000e+00> : vector<10x32xf32>
    %104 = tpu.matmul %101, %103, %cst_30 {dimension_numbers = #tpu.dot_dimension_numbers<[1], [0], [0], [1], [0, 0, 1, 1], [], []>} : vector<10x10xbf16>, vector<10x32xbf16>, vector<10x32xf32> -> vector<10x32xf32>
    %105 = vector.extract_strided_slice %66 {offsets = [70, 0], sizes = [10, 10], strides = [1, 1]} : vector<80x10xf32> to vector<10x10xf32>
    %106 = arith.truncf %105 : vector<10x10xf32> to vector<10x10xbf16>
    %107 = vector.extract_strided_slice %11 {offsets = [10, 352], sizes = [10, 32], strides = [1, 1]} : vector<20x384xf32> to vector<10x32xf32>
    %108 = arith.truncf %107 : vector<10x32xf32> to vector<10x32xbf16>
    %cst_31 = arith.constant dense<0.000000e+00> : vector<10x32xf32>
    %109 = tpu.matmul %106, %108, %cst_31 {dimension_numbers = #tpu.dot_dimension_numbers<[1], [0], [0], [1], [0, 0, 1, 1], [], []>} : vector<10x10xbf16>, vector<10x32xbf16>, vector<10x32xf32> -> vector<10x32xf32>
    %110 = tpu.concatenate %94, %99, %104, %109 in 1 : vector<10x32xf32>, vector<10x32xf32>, vector<10x32xf32>, vector<10x32xf32> -> vector<10x128xf32>
    %111 = arith.truncf %110 : vector<10x128xf32> to vector<10x128xbf16>
    %cst_32 = arith.constant dense<0.000000e+00> : vector<10x128xf32>
    %112 = tpu.matmul %111, %13, %cst_32 {dimension_numbers = #tpu.dot_dimension_numbers<[1], [0], [0], [1], [0, 0, 1, 1], [], []>} : vector<10x128xbf16>, vector<128x128xbf16>, vector<10x128xf32> -> vector<10x128xf32>
    %113 = tpu.concatenate %89, %112 in 0 : vector<10x128xf32>, vector<10x128xf32> -> vector<20x128xf32>
    %c0_33 = arith.constant 0 : index
    %c0_34 = arith.constant 0 : index
    %c0_35 = arith.constant 0 : index
    %114 = vector.load %arg8[%c0_33, %c0_34, %c0_35] : memref<1x1x128xf32, #tpu.memory_space<vmem>>, vector<1x1x128xf32>
    %115 = vector.shape_cast %114 : vector<1x1x128xf32> to vector<1x128xf32>
    %116 = vector.broadcast %115 : vector<1x128xf32> to vector<20x128xf32>
    %117 = arith.addf %113, %116 : vector<20x128xf32>
    %118 = arith.addf %3, %117 : vector<20x128xf32>
    %c0_36 = arith.constant 0 : index
    %c0_37 = arith.constant 0 : index
    %c0_38 = arith.constant 0 : index
    %119 = vector.load %arg9[%c0_36, %c0_37, %c0_38] : memref<1x1x128xf32, #tpu.memory_space<vmem>>, vector<1x1x128xf32>
    %120 = vector.shape_cast %119 : vector<1x1x128xf32> to vector<1x128xf32>
    %c0_39 = arith.constant 0 : index
    %c0_40 = arith.constant 0 : index
    %c0_41 = arith.constant 0 : index
    %121 = vector.load %arg10[%c0_39, %c0_40, %c0_41] : memref<1x1x128xf32, #tpu.memory_space<vmem>>, vector<1x1x128xf32>
    %122 = vector.shape_cast %121 : vector<1x1x128xf32> to vector<1x128xf32>
    %cst_42 = arith.constant dense<0.000000e+00> : vector<20xf32>
    %123 = vector.multi_reduction <add>, %118, %cst_42 [1] : vector<20x128xf32> to vector<20xf32>
    %124 = vector.shape_cast %123 : vector<20xf32> to vector<20x1xf32>
    %cst_43 = arith.constant 1.280000e+02 : f32
    %125 = vector.broadcast %cst_43 : f32 to vector<20x1xf32>
    %126 = arith.divf %124, %125 : vector<20x1xf32>
    %127 = vector.broadcast %126 : vector<20x1xf32> to vector<20x128xf32>
    %128 = arith.subf %118, %127 : vector<20x128xf32>
    %129 = vector.broadcast %126 : vector<20x1xf32> to vector<20x128xf32>
    %130 = arith.subf %118, %129 : vector<20x128xf32>
    %131 = arith.mulf %128, %130 : vector<20x128xf32>
    %cst_44 = arith.constant dense<0.000000e+00> : vector<20xf32>
    %132 = vector.multi_reduction <add>, %131, %cst_44 [1] : vector<20x128xf32> to vector<20xf32>
    %133 = vector.shape_cast %132 : vector<20xf32> to vector<20x1xf32>
    %cst_45 = arith.constant 1.280000e+02 : f32
    %134 = vector.broadcast %cst_45 : f32 to vector<20x1xf32>
    %135 = arith.divf %133, %134 : vector<20x1xf32>
    %136 = vector.broadcast %126 : vector<20x1xf32> to vector<20x128xf32>
    %137 = arith.subf %118, %136 : vector<20x128xf32>
    %cst_46 = arith.constant 9.99999996E-13 : f32
    %138 = vector.broadcast %cst_46 : f32 to vector<20x1xf32>
    %139 = arith.addf %135, %138 : vector<20x1xf32>
    %140 = math.rsqrt %139 : vector<20x1xf32>
    %141 = vector.broadcast %140 : vector<20x1xf32> to vector<20x128xf32>
    %142 = arith.mulf %137, %141 : vector<20x128xf32>
    %143 = vector.broadcast %120 : vector<1x128xf32> to vector<20x128xf32>
    %144 = arith.mulf %142, %143 : vector<20x128xf32>
    %145 = vector.broadcast %122 : vector<1x128xf32> to vector<20x128xf32>
    %146 = arith.addf %144, %145 : vector<20x128xf32>
    %147 = arith.truncf %146 : vector<20x128xf32> to vector<20x128xbf16>
    %c0_47 = arith.constant 0 : index
    %c0_48 = arith.constant 0 : index
    %c0_49 = arith.constant 0 : index
    %148 = vector.load %arg11[%c0_47, %c0_48, %c0_49] : memref<1x128x256xbf16, #tpu.memory_space<vmem>>, vector<1x128x256xbf16>
    %149 = vector.shape_cast %148 : vector<1x128x256xbf16> to vector<128x256xbf16>
    %cst_50 = arith.constant dense<0.000000e+00> : vector<20x256xf32>
    %150 = tpu.matmul %147, %149, %cst_50 {dimension_numbers = #tpu.dot_dimension_numbers<[1], [0], [0], [1], [0, 0, 1, 1], [], []>} : vector<20x128xbf16>, vector<128x256xbf16>, vector<20x256xf32> -> vector<20x256xf32>
    %c0_51 = arith.constant 0 : index
    %c0_52 = arith.constant 0 : index
    %c0_53 = arith.constant 0 : index
    %151 = vector.load %arg12[%c0_51, %c0_52, %c0_53] : memref<1x1x256xf32, #tpu.memory_space<vmem>>, vector<1x1x256xf32>
    %152 = vector.shape_cast %151 : vector<1x1x256xf32> to vector<1x256xf32>
    %153 = vector.broadcast %152 : vector<1x256xf32> to vector<20x256xf32>
    %154 = arith.addf %150, %153 : vector<20x256xf32>
    %155 = arith.mulf %154, %154 : vector<20x256xf32>
    %156 = arith.mulf %154, %155 : vector<20x256xf32>
    %cst_54 = arith.constant 4.471500e-02 : f32
    %157 = vector.broadcast %cst_54 : f32 to vector<20x256xf32>
    %158 = arith.mulf %157, %156 : vector<20x256xf32>
    %159 = arith.addf %154, %158 : vector<20x256xf32>
    %cst_55 = arith.constant 0.797884583 : f32
    %160 = vector.broadcast %cst_55 : f32 to vector<20x256xf32>
    %161 = arith.mulf %160, %159 : vector<20x256xf32>
    %162 = math.tanh %161 : vector<20x256xf32>
    %cst_56 = arith.constant 1.000000e+00 : f32
    %163 = vector.broadcast %cst_56 : f32 to vector<20x256xf32>
    %164 = arith.addf %163, %162 : vector<20x256xf32>
    %cst_57 = arith.constant 5.000000e-01 : f32
    %165 = vector.broadcast %cst_57 : f32 to vector<20x256xf32>
    %166 = arith.mulf %165, %164 : vector<20x256xf32>
    %167 = arith.mulf %154, %166 : vector<20x256xf32>
    %168 = arith.truncf %167 : vector<20x256xf32> to vector<20x256xbf16>
    %c0_58 = arith.constant 0 : index
    %c0_59 = arith.constant 0 : index
    %c0_60 = arith.constant 0 : index
    %169 = vector.load %arg13[%c0_58, %c0_59, %c0_60] : memref<1x256x128xbf16, #tpu.memory_space<vmem>>, vector<1x256x128xbf16>
    %170 = vector.shape_cast %169 : vector<1x256x128xbf16> to vector<256x128xbf16>
    %cst_61 = arith.constant dense<0.000000e+00> : vector<20x128xf32>
    %171 = tpu.matmul %168, %170, %cst_61 {dimension_numbers = #tpu.dot_dimension_numbers<[1], [0], [0], [1], [0, 0, 1, 1], [], []>} : vector<20x256xbf16>, vector<256x128xbf16>, vector<20x128xf32> -> vector<20x128xf32>
    %c0_62 = arith.constant 0 : index
    %c0_63 = arith.constant 0 : index
    %c0_64 = arith.constant 0 : index
    %172 = vector.load %arg14[%c0_62, %c0_63, %c0_64] : memref<1x1x128xf32, #tpu.memory_space<vmem>>, vector<1x1x128xf32>
    %173 = vector.shape_cast %172 : vector<1x1x128xf32> to vector<1x128xf32>
    %174 = vector.broadcast %173 : vector<1x128xf32> to vector<20x128xf32>
    %175 = arith.addf %171, %174 : vector<20x128xf32>
    %176 = arith.addf %146, %175 : vector<20x128xf32>
    %c0_65 = arith.constant 0 : index
    %c0_66 = arith.constant 0 : index
    %c0_67 = arith.constant 0 : index
    %177 = vector.load %arg15[%c0_65, %c0_66, %c0_67] : memref<1x1x128xf32, #tpu.memory_space<vmem>>, vector<1x1x128xf32>
    %178 = vector.shape_cast %177 : vector<1x1x128xf32> to vector<1x128xf32>
    %c0_68 = arith.constant 0 : index
    %c0_69 = arith.constant 0 : index
    %c0_70 = arith.constant 0 : index
    %179 = vector.load %arg16[%c0_68, %c0_69, %c0_70] : memref<1x1x128xf32, #tpu.memory_space<vmem>>, vector<1x1x128xf32>
    %180 = vector.shape_cast %179 : vector<1x1x128xf32> to vector<1x128xf32>
    %cst_71 = arith.constant dense<0.000000e+00> : vector<20xf32>
    %181 = vector.multi_reduction <add>, %176, %cst_71 [1] : vector<20x128xf32> to vector<20xf32>
    %182 = vector.shape_cast %181 : vector<20xf32> to vector<20x1xf32>
    %cst_72 = arith.constant 1.280000e+02 : f32
    %183 = vector.broadcast %cst_72 : f32 to vector<20x1xf32>
    %184 = arith.divf %182, %183 : vector<20x1xf32>
    %185 = vector.broadcast %184 : vector<20x1xf32> to vector<20x128xf32>
    %186 = arith.subf %176, %185 : vector<20x128xf32>
    %187 = vector.broadcast %184 : vector<20x1xf32> to vector<20x128xf32>
    %188 = arith.subf %176, %187 : vector<20x128xf32>
    %189 = arith.mulf %186, %188 : vector<20x128xf32>
    %cst_73 = arith.constant dense<0.000000e+00> : vector<20xf32>
    %190 = vector.multi_reduction <add>, %189, %cst_73 [1] : vector<20x128xf32> to vector<20xf32>
    %191 = vector.shape_cast %190 : vector<20xf32> to vector<20x1xf32>
    %cst_74 = arith.constant 1.280000e+02 : f32
    %192 = vector.broadcast %cst_74 : f32 to vector<20x1xf32>
    %193 = arith.divf %191, %192 : vector<20x1xf32>
    %194 = vector.broadcast %184 : vector<20x1xf32> to vector<20x128xf32>
    %195 = arith.subf %176, %194 : vector<20x128xf32>
    %cst_75 = arith.constant 9.99999996E-13 : f32
    %196 = vector.broadcast %cst_75 : f32 to vector<20x1xf32>
    %197 = arith.addf %193, %196 : vector<20x1xf32>
    %198 = math.rsqrt %197 : vector<20x1xf32>
    %199 = vector.broadcast %198 : vector<20x1xf32> to vector<20x128xf32>
    %200 = arith.mulf %195, %199 : vector<20x128xf32>
    %201 = vector.broadcast %178 : vector<1x128xf32> to vector<20x128xf32>
    %202 = arith.mulf %200, %201 : vector<20x128xf32>
    %203 = vector.broadcast %180 : vector<1x128xf32> to vector<20x128xf32>
    %204 = arith.addf %202, %203 : vector<20x128xf32>
    %c0_76 = arith.constant 0 : index
    %c0_77 = arith.constant 0 : index
    %205 = vector.load %arg18[%c0_76, %c0_77] : memref<20x128xf32, #tpu.memory_space<vmem>>, vector<20x128xf32>
    tpu.vector_store %arg18[%c0_76, %c0_77], %204 {strides = array<i32>} : memref<20x128xf32, #tpu.memory_space<vmem>>, vector<20x128xf32>,
    %c1_i32 = arith.constant 1 : i32
    %206 = arith.cmpi eq, %arg0, %c1_i32 : i32
    %207 = arith.extui %206 : i1 to i32
    %c0_i32_78 = arith.constant 0 : i32
    %208 = arith.cmpi ne, %207, %c0_i32_78 : i32
    scf.if %208 {
      %c0_79 = arith.constant 0 : index
      %c0_80 = arith.constant 0 : index
      %209 = vector.load %arg17[%c0_79, %c0_80] : memref<20x128xf32, #tpu.memory_space<vmem>>, vector<20x128xf32>
      tpu.vector_store %arg17[%c0_79, %c0_80], %204 {strides = array<i32>} : memref<20x128xf32, #tpu.memory_space<vmem>>, vector<20x128xf32>,
    } else {
    }
    return
  }
  func.func @transform_0(%arg0: i32) -> (i32, i32) {
    %c0_i32 = arith.constant 0 : i32
    %c0_i32_0 = arith.constant 0 : i32
    %c0_i32_1 = arith.constant 0 : i32
    return %c0_i32, %c0_i32_0 : i32, i32
  }
  func.func @transform_1(%arg0: i32) -> (i32, i32) {
    %c0_i32 = arith.constant 0 : i32
    %c0_i32_0 = arith.constant 0 : i32
    %c0_i32_1 = arith.constant 0 : i32
    return %c0_i32, %c0_i32_0 : i32, i32
  }
  func.func @transform_2(%arg0: i32) -> (i32, i32) {
    %c0_i32 = arith.constant 0 : i32
    %c0_i32_0 = arith.constant 0 : i32
    %c0_i32_1 = arith.constant 0 : i32
    return %c0_i32, %c0_i32_0 : i32, i32
  }
  func.func @transform_3(%arg0: i32) -> (i32, i32) {
    %c0_i32 = arith.constant 0 : i32
    %c0_i32_0 = arith.constant 0 : i32
    %c0_i32_1 = arith.constant 0 : i32
    return %c0_i32, %c0_i32_0 : i32, i32
  }
  func.func @transform_4(%arg0: i32) -> (i32, i32, i32) {
    %c0_i32 = arith.constant 0 : i32
    %c0_i32_0 = arith.constant 0 : i32
    %c0_i32_1 = arith.constant 0 : i32
    return %arg0, %c0_i32, %c0_i32_0 : i32, i32, i32
  }
  func.func @transform_5(%arg0: i32) -> (i32, i32, i32) {
    %c0_i32 = arith.constant 0 : i32
    %c0_i32_0 = arith.constant 0 : i32
    %c0_i32_1 = arith.constant 0 : i32
    return %arg0, %c0_i32, %c0_i32_0 : i32, i32, i32
  }
  func.func @transform_6(%arg0: i32) -> (i32, i32, i32) {
    %c0_i32 = arith.constant 0 : i32
    %c0_i32_0 = arith.constant 0 : i32
    %c0_i32_1 = arith.constant 0 : i32
    return %arg0, %c0_i32, %c0_i32_0 : i32, i32, i32
  }
  func.func @transform_7(%arg0: i32) -> (i32, i32, i32) {
    %c0_i32 = arith.constant 0 : i32
    %c0_i32_0 = arith.constant 0 : i32
    %c0_i32_1 = arith.constant 0 : i32
    return %arg0, %c0_i32, %c0_i32_0 : i32, i32, i32
  }
  func.func @transform_8(%arg0: i32) -> (i32, i32, i32) {
    %c0_i32 = arith.constant 0 : i32
    %c0_i32_0 = arith.constant 0 : i32
    %c0_i32_1 = arith.constant 0 : i32
    return %arg0, %c0_i32, %c0_i32_0 : i32, i32, i32
  }
  func.func @transform_9(%arg0: i32) -> (i32, i32, i32) {
    %c0_i32 = arith.constant 0 : i32
    %c0_i32_0 = arith.constant 0 : i32
    %c0_i32_1 = arith.constant 0 : i32
    return %arg0, %c0_i32, %c0_i32_0 : i32, i32, i32
  }
  func.func @transform_10(%arg0: i32) -> (i32, i32, i32) {
    %c0_i32 = arith.constant 0 : i32
    %c0_i32_0 = arith.constant 0 : i32
    %c0_i32_1 = arith.constant 0 : i32
    return %arg0, %c0_i32, %c0_i32_0 : i32, i32, i32
  }
  func.func @transform_11(%arg0: i32) -> (i32, i32, i32) {
    %c0_i32 = arith.constant 0 : i32
    %c0_i32_0 = arith.constant 0 : i32
    %c0_i32_1 = arith.constant 0 : i32
    return %arg0, %c0_i32, %c0_i32_0 : i32, i32, i32
  }
  func.func @transform_12(%arg0: i32) -> (i32, i32, i32) {
    %c0_i32 = arith.constant 0 : i32
    %c0_i32_0 = arith.constant 0 : i32
    %c0_i32_1 = arith.constant 0 : i32
    return %arg0, %c0_i32, %c0_i32_0 : i32, i32, i32
  }
  func.func @transform_13(%arg0: i32) -> (i32, i32, i32) {
    %c0_i32 = arith.constant 0 : i32
    %c0_i32_0 = arith.constant 0 : i32
    %c0_i32_1 = arith.constant 0 : i32
    return %arg0, %c0_i32, %c0_i32_0 : i32, i32, i32
  }
  func.func @transform_14(%arg0: i32) -> (i32, i32, i32) {
    %c0_i32 = arith.constant 0 : i32
    %c0_i32_0 = arith.constant 0 : i32
    %c0_i32_1 = arith.constant 0 : i32
    return %arg0, %c0_i32, %c0_i32_0 : i32, i32, i32
  }
  func.func @transform_15(%arg0: i32) -> (i32, i32, i32) {
    %c0_i32 = arith.constant 0 : i32
    %c0_i32_0 = arith.constant 0 : i32
    %c0_i32_1 = arith.constant 0 : i32
    return %arg0, %c0_i32, %c0_i32_0 : i32, i32, i32
  }
  func.func @transform_16(%arg0: i32) -> (i32, i32) {
    %c0_i32 = arith.constant 0 : i32
    %c0_i32_0 = arith.constant 0 : i32
    %c0_i32_1 = arith.constant 0 : i32
    return %c0_i32, %c0_i32_0 : i32, i32
  }
}

module attributes {stable_mosaic.version = 11 : i64} {
  func.func @lstm_fc_viterbi_kernel(%arg0: i32, %arg1: memref<2xi32, #tpu.memory_space<smem>>, %arg2: memref<16x128xf32, #tpu.memory_space<vmem>>, %arg3: memref<1x128x512xbf16, #tpu.memory_space<vmem>>, %arg4: memref<1x128x512xbf16, #tpu.memory_space<vmem>>, %arg5: memref<1x1x512xf32, #tpu.memory_space<vmem>>, %arg6: memref<128x8xbf16, #tpu.memory_space<vmem>>, %arg7: memref<1x8xf32, #tpu.memory_space<vmem>>, %arg8: memref<8x8xf32, #tpu.memory_space<vmem>>, %arg9: memref<2x8x8xi32, #tpu.memory_space<vmem>>, %arg10: memref<2x8xf32, #tpu.memory_space<vmem>>, %arg11: memref<16x128xf32, #tpu.memory_space<vmem>>) attributes {dimension_semantics = [#tpu.dimension_semantics<arbitrary>], iteration_bounds = array<i64: 2>, scalar_prefetch = 1 : i64, scratch_operands = 1 : i64, tpu.core_type = #tpu.core_type<tc>, window_params = [{pipeline_mode = #tpu.pipeline_mode<synchronous>, transform_indices = @transform_0, window_bounds = array<i64: 16, 128>}, {transform_indices = @transform_1, window_bounds = array<i64: 1, 128, 512>}, {transform_indices = @transform_2, window_bounds = array<i64: 1, 128, 512>}, {transform_indices = @transform_3, window_bounds = array<i64: 1, 1, 512>}, {pipeline_mode = #tpu.pipeline_mode<synchronous>, transform_indices = @transform_4, window_bounds = array<i64: 128, 8>}, {pipeline_mode = #tpu.pipeline_mode<synchronous>, transform_indices = @transform_5, window_bounds = array<i64: 1, 8>}, {pipeline_mode = #tpu.pipeline_mode<synchronous>, transform_indices = @transform_6, window_bounds = array<i64: 8, 8>}, {pipeline_mode = #tpu.pipeline_mode<synchronous>, transform_indices = @transform_7, window_bounds = array<i64: 2, 8, 8>}, {pipeline_mode = #tpu.pipeline_mode<synchronous>, transform_indices = @transform_8, window_bounds = array<i64: 2, 8>}]} {
    %c0_i32 = arith.constant 0 : i32
    %0 = arith.cmpi eq, %arg0, %c0_i32 : i32
    %1 = arith.extui %0 : i1 to i32
    %c0_i32_0 = arith.constant 0 : i32
    %2 = arith.cmpi ne, %1, %c0_i32_0 : i32
    scf.if %2 {
      %c0_73 = arith.constant 0 : index
      %c0_74 = arith.constant 0 : index
      %501 = vector.load %arg2[%c0_73, %c0_74] : memref<16x128xf32, #tpu.memory_space<vmem>>, vector<16x128xf32>
      %c0_75 = arith.constant 0 : index
      %c0_76 = arith.constant 0 : index
      %502 = vector.load %arg11[%c0_75, %c0_76] : memref<16x128xf32, #tpu.memory_space<vmem>>, vector<16x128xf32>
      tpu.vector_store %arg11[%c0_75, %c0_76], %501 {strides = array<i32>} : memref<16x128xf32, #tpu.memory_space<vmem>>, vector<16x128xf32>,
    } else {
    }
    %c0 = arith.constant 0 : index
    %c0_1 = arith.constant 0 : index
    %3 = vector.load %arg11[%c0, %c0_1] : memref<16x128xf32, #tpu.memory_space<vmem>>, vector<16x128xf32>
    %4 = arith.truncf %3 : vector<16x128xf32> to vector<16x128xbf16>
    %c0_2 = arith.constant 0 : index
    %c0_3 = arith.constant 0 : index
    %c0_4 = arith.constant 0 : index
    %5 = vector.load %arg3[%c0_2, %c0_3, %c0_4] : memref<1x128x512xbf16, #tpu.memory_space<vmem>>, vector<1x128x512xbf16>
    %6 = vector.shape_cast %5 : vector<1x128x512xbf16> to vector<128x512xbf16>
    %cst = arith.constant dense<0.000000e+00> : vector<16x512xf32>
    %7 = tpu.matmul %4, %6, %cst {dimension_numbers = #tpu.dot_dimension_numbers<[1], [0], [0], [1], [0, 0, 1, 1], [], []>} : vector<16x128xbf16>, vector<128x512xbf16>, vector<16x512xf32> -> vector<16x512xf32>
    %c0_5 = arith.constant 0 : index
    %c0_6 = arith.constant 0 : index
    %c0_7 = arith.constant 0 : index
    %8 = vector.load %arg5[%c0_5, %c0_6, %c0_7] : memref<1x1x512xf32, #tpu.memory_space<vmem>>, vector<1x1x512xf32>
    %9 = vector.shape_cast %8 : vector<1x1x512xf32> to vector<1x512xf32>
    %10 = vector.broadcast %9 : vector<1x512xf32> to vector<16x512xf32>
    %11 = arith.addf %7, %10 : vector<16x512xf32>
    %c0_8 = arith.constant 0 : index
    %c0_9 = arith.constant 0 : index
    %c0_10 = arith.constant 0 : index
    %12 = vector.load %arg4[%c0_8, %c0_9, %c0_10] : memref<1x128x512xbf16, #tpu.memory_space<vmem>>, vector<1x128x512xbf16>
    %13 = vector.shape_cast %12 : vector<1x128x512xbf16> to vector<128x512xbf16>
    %cst_11 = arith.constant 0.000000e+00 : f32
    %14 = vector.broadcast %cst_11 : f32 to vector<2x128xf32>
    %cst_12 = arith.constant 0.000000e+00 : f32
    %15 = vector.broadcast %cst_12 : f32 to vector<2x64xf32>
    %cst_13 = arith.constant 0.000000e+00 : f32
    %16 = vector.broadcast %cst_13 : f32 to vector<2x64xf32>
    %17 = arith.truncf %14 : vector<2x128xf32> to vector<2x128xbf16>
    %cst_14 = arith.constant dense<0.000000e+00> : vector<2x512xf32>
    %18 = tpu.matmul %17, %13, %cst_14 {dimension_numbers = #tpu.dot_dimension_numbers<[1], [0], [0], [1], [0, 0, 1, 1], [], []>} : vector<2x128xbf16>, vector<128x512xbf16>, vector<2x512xf32> -> vector<2x512xf32>
    %19 = vector.extract_strided_slice %11 {offsets = [0, 0], sizes = [2, 256], strides = [1, 1]} : vector<16x512xf32> to vector<2x256xf32>
    %20 = vector.extract_strided_slice %18 {offsets = [0, 0], sizes = [2, 256], strides = [1, 1]} : vector<2x512xf32> to vector<2x256xf32>
    %21 = arith.addf %19, %20 : vector<2x256xf32>
    %22 = vector.extract_strided_slice %11 {offsets = [14, 256], sizes = [2, 256], strides = [1, 1]} : vector<16x512xf32> to vector<2x256xf32>
    %23 = vector.extract_strided_slice %18 {offsets = [0, 256], sizes = [2, 256], strides = [1, 1]} : vector<2x512xf32> to vector<2x256xf32>
    %24 = arith.addf %22, %23 : vector<2x256xf32>
    %25 = vector.extract_strided_slice %21 {offsets = [0, 0], sizes = [2, 64], strides = [1, 1]} : vector<2x256xf32> to vector<2x64xf32>
    %26 = arith.negf %25 : vector<2x64xf32>
    %27 = math.exp %26 : vector<2x64xf32>
    %cst_15 = arith.constant 1.000000e+00 : f32
    %28 = vector.broadcast %cst_15 : f32 to vector<2x64xf32>
    %29 = arith.addf %28, %27 : vector<2x64xf32>
    %30 = arith.divf %28, %29 : vector<2x64xf32>
    %31 = vector.extract_strided_slice %21 {offsets = [0, 64], sizes = [2, 64], strides = [1, 1]} : vector<2x256xf32> to vector<2x64xf32>
    %32 = arith.negf %31 : vector<2x64xf32>
    %33 = math.exp %32 : vector<2x64xf32>
    %cst_16 = arith.constant 1.000000e+00 : f32
    %34 = vector.broadcast %cst_16 : f32 to vector<2x64xf32>
    %35 = arith.addf %34, %33 : vector<2x64xf32>
    %36 = arith.divf %34, %35 : vector<2x64xf32>
    %37 = vector.extract_strided_slice %21 {offsets = [0, 128], sizes = [2, 64], strides = [1, 1]} : vector<2x256xf32> to vector<2x64xf32>
    %38 = math.tanh %37 : vector<2x64xf32>
    %39 = vector.extract_strided_slice %21 {offsets = [0, 192], sizes = [2, 64], strides = [1, 1]} : vector<2x256xf32> to vector<2x64xf32>
    %40 = arith.negf %39 : vector<2x64xf32>
    %41 = math.exp %40 : vector<2x64xf32>
    %cst_17 = arith.constant 1.000000e+00 : f32
    %42 = vector.broadcast %cst_17 : f32 to vector<2x64xf32>
    %43 = arith.addf %42, %41 : vector<2x64xf32>
    %44 = arith.divf %42, %43 : vector<2x64xf32>
    %45 = arith.mulf %36, %15 : vector<2x64xf32>
    %46 = arith.mulf %30, %38 : vector<2x64xf32>
    %47 = arith.addf %45, %46 : vector<2x64xf32>
    %48 = math.tanh %47 : vector<2x64xf32>
    %49 = arith.mulf %44, %48 : vector<2x64xf32>
    %50 = vector.extract_strided_slice %24 {offsets = [0, 0], sizes = [2, 64], strides = [1, 1]} : vector<2x256xf32> to vector<2x64xf32>
    %51 = arith.negf %50 : vector<2x64xf32>
    %52 = math.exp %51 : vector<2x64xf32>
    %cst_18 = arith.constant 1.000000e+00 : f32
    %53 = vector.broadcast %cst_18 : f32 to vector<2x64xf32>
    %54 = arith.addf %53, %52 : vector<2x64xf32>
    %55 = arith.divf %53, %54 : vector<2x64xf32>
    %56 = vector.extract_strided_slice %24 {offsets = [0, 64], sizes = [2, 64], strides = [1, 1]} : vector<2x256xf32> to vector<2x64xf32>
    %57 = arith.negf %56 : vector<2x64xf32>
    %58 = math.exp %57 : vector<2x64xf32>
    %cst_19 = arith.constant 1.000000e+00 : f32
    %59 = vector.broadcast %cst_19 : f32 to vector<2x64xf32>
    %60 = arith.addf %59, %58 : vector<2x64xf32>
    %61 = arith.divf %59, %60 : vector<2x64xf32>
    %62 = vector.extract_strided_slice %24 {offsets = [0, 128], sizes = [2, 64], strides = [1, 1]} : vector<2x256xf32> to vector<2x64xf32>
    %63 = math.tanh %62 : vector<2x64xf32>
    %64 = vector.extract_strided_slice %24 {offsets = [0, 192], sizes = [2, 64], strides = [1, 1]} : vector<2x256xf32> to vector<2x64xf32>
    %65 = arith.negf %64 : vector<2x64xf32>
    %66 = math.exp %65 : vector<2x64xf32>
    %cst_20 = arith.constant 1.000000e+00 : f32
    %67 = vector.broadcast %cst_20 : f32 to vector<2x64xf32>
    %68 = arith.addf %67, %66 : vector<2x64xf32>
    %69 = arith.divf %67, %68 : vector<2x64xf32>
    %70 = arith.mulf %61, %16 : vector<2x64xf32>
    %71 = arith.mulf %55, %63 : vector<2x64xf32>
    %72 = arith.addf %70, %71 : vector<2x64xf32>
    %73 = math.tanh %72 : vector<2x64xf32>
    %74 = arith.mulf %69, %73 : vector<2x64xf32>
    %75 = tpu.concatenate %49, %74 in 1 : vector<2x64xf32>, vector<2x64xf32> -> vector<2x128xf32>
    %76 = arith.truncf %75 : vector<2x128xf32> to vector<2x128xbf16>
    %cst_21 = arith.constant dense<0.000000e+00> : vector<2x512xf32>
    %77 = tpu.matmul %76, %13, %cst_21 {dimension_numbers = #tpu.dot_dimension_numbers<[1], [0], [0], [1], [0, 0, 1, 1], [], []>} : vector<2x128xbf16>, vector<128x512xbf16>, vector<2x512xf32> -> vector<2x512xf32>
    %78 = vector.extract_strided_slice %11 {offsets = [2, 0], sizes = [2, 256], strides = [1, 1]} : vector<16x512xf32> to vector<2x256xf32>
    %79 = vector.extract_strided_slice %77 {offsets = [0, 0], sizes = [2, 256], strides = [1, 1]} : vector<2x512xf32> to vector<2x256xf32>
    %80 = arith.addf %78, %79 : vector<2x256xf32>
    %81 = vector.extract_strided_slice %11 {offsets = [12, 256], sizes = [2, 256], strides = [1, 1]} : vector<16x512xf32> to vector<2x256xf32>
    %82 = vector.extract_strided_slice %77 {offsets = [0, 256], sizes = [2, 256], strides = [1, 1]} : vector<2x512xf32> to vector<2x256xf32>
    %83 = arith.addf %81, %82 : vector<2x256xf32>
    %84 = vector.extract_strided_slice %80 {offsets = [0, 0], sizes = [2, 64], strides = [1, 1]} : vector<2x256xf32> to vector<2x64xf32>
    %85 = arith.negf %84 : vector<2x64xf32>
    %86 = math.exp %85 : vector<2x64xf32>
    %cst_22 = arith.constant 1.000000e+00 : f32
    %87 = vector.broadcast %cst_22 : f32 to vector<2x64xf32>
    %88 = arith.addf %87, %86 : vector<2x64xf32>
    %89 = arith.divf %87, %88 : vector<2x64xf32>
    %90 = vector.extract_strided_slice %80 {offsets = [0, 64], sizes = [2, 64], strides = [1, 1]} : vector<2x256xf32> to vector<2x64xf32>
    %91 = arith.negf %90 : vector<2x64xf32>
    %92 = math.exp %91 : vector<2x64xf32>
    %cst_23 = arith.constant 1.000000e+00 : f32
    %93 = vector.broadcast %cst_23 : f32 to vector<2x64xf32>
    %94 = arith.addf %93, %92 : vector<2x64xf32>
    %95 = arith.divf %93, %94 : vector<2x64xf32>
    %96 = vector.extract_strided_slice %80 {offsets = [0, 128], sizes = [2, 64], strides = [1, 1]} : vector<2x256xf32> to vector<2x64xf32>
    %97 = math.tanh %96 : vector<2x64xf32>
    %98 = vector.extract_strided_slice %80 {offsets = [0, 192], sizes = [2, 64], strides = [1, 1]} : vector<2x256xf32> to vector<2x64xf32>
    %99 = arith.negf %98 : vector<2x64xf32>
    %100 = math.exp %99 : vector<2x64xf32>
    %cst_24 = arith.constant 1.000000e+00 : f32
    %101 = vector.broadcast %cst_24 : f32 to vector<2x64xf32>
    %102 = arith.addf %101, %100 : vector<2x64xf32>
    %103 = arith.divf %101, %102 : vector<2x64xf32>
    %104 = arith.mulf %95, %47 : vector<2x64xf32>
    %105 = arith.mulf %89, %97 : vector<2x64xf32>
    %106 = arith.addf %104, %105 : vector<2x64xf32>
    %107 = math.tanh %106 : vector<2x64xf32>
    %108 = arith.mulf %103, %107 : vector<2x64xf32>
    %109 = vector.extract_strided_slice %83 {offsets = [0, 0], sizes = [2, 64], strides = [1, 1]} : vector<2x256xf32> to vector<2x64xf32>
    %110 = arith.negf %109 : vector<2x64xf32>
    %111 = math.exp %110 : vector<2x64xf32>
    %cst_25 = arith.constant 1.000000e+00 : f32
    %112 = vector.broadcast %cst_25 : f32 to vector<2x64xf32>
    %113 = arith.addf %112, %111 : vector<2x64xf32>
    %114 = arith.divf %112, %113 : vector<2x64xf32>
    %115 = vector.extract_strided_slice %83 {offsets = [0, 64], sizes = [2, 64], strides = [1, 1]} : vector<2x256xf32> to vector<2x64xf32>
    %116 = arith.negf %115 : vector<2x64xf32>
    %117 = math.exp %116 : vector<2x64xf32>
    %cst_26 = arith.constant 1.000000e+00 : f32
    %118 = vector.broadcast %cst_26 : f32 to vector<2x64xf32>
    %119 = arith.addf %118, %117 : vector<2x64xf32>
    %120 = arith.divf %118, %119 : vector<2x64xf32>
    %121 = vector.extract_strided_slice %83 {offsets = [0, 128], sizes = [2, 64], strides = [1, 1]} : vector<2x256xf32> to vector<2x64xf32>
    %122 = math.tanh %121 : vector<2x64xf32>
    %123 = vector.extract_strided_slice %83 {offsets = [0, 192], sizes = [2, 64], strides = [1, 1]} : vector<2x256xf32> to vector<2x64xf32>
    %124 = arith.negf %123 : vector<2x64xf32>
    %125 = math.exp %124 : vector<2x64xf32>
    %cst_27 = arith.constant 1.000000e+00 : f32
    %126 = vector.broadcast %cst_27 : f32 to vector<2x64xf32>
    %127 = arith.addf %126, %125 : vector<2x64xf32>
    %128 = arith.divf %126, %127 : vector<2x64xf32>
    %129 = arith.mulf %120, %72 : vector<2x64xf32>
    %130 = arith.mulf %114, %122 : vector<2x64xf32>
    %131 = arith.addf %129, %130 : vector<2x64xf32>
    %132 = math.tanh %131 : vector<2x64xf32>
    %133 = arith.mulf %128, %132 : vector<2x64xf32>
    %134 = tpu.concatenate %108, %133 in 1 : vector<2x64xf32>, vector<2x64xf32> -> vector<2x128xf32>
    %135 = arith.truncf %134 : vector<2x128xf32> to vector<2x128xbf16>
    %cst_28 = arith.constant dense<0.000000e+00> : vector<2x512xf32>
    %136 = tpu.matmul %135, %13, %cst_28 {dimension_numbers = #tpu.dot_dimension_numbers<[1], [0], [0], [1], [0, 0, 1, 1], [], []>} : vector<2x128xbf16>, vector<128x512xbf16>, vector<2x512xf32> -> vector<2x512xf32>
    %137 = vector.extract_strided_slice %11 {offsets = [4, 0], sizes = [2, 256], strides = [1, 1]} : vector<16x512xf32> to vector<2x256xf32>
    %138 = vector.extract_strided_slice %136 {offsets = [0, 0], sizes = [2, 256], strides = [1, 1]} : vector<2x512xf32> to vector<2x256xf32>
    %139 = arith.addf %137, %138 : vector<2x256xf32>
    %140 = vector.extract_strided_slice %11 {offsets = [10, 256], sizes = [2, 256], strides = [1, 1]} : vector<16x512xf32> to vector<2x256xf32>
    %141 = vector.extract_strided_slice %136 {offsets = [0, 256], sizes = [2, 256], strides = [1, 1]} : vector<2x512xf32> to vector<2x256xf32>
    %142 = arith.addf %140, %141 : vector<2x256xf32>
    %143 = vector.extract_strided_slice %139 {offsets = [0, 0], sizes = [2, 64], strides = [1, 1]} : vector<2x256xf32> to vector<2x64xf32>
    %144 = arith.negf %143 : vector<2x64xf32>
    %145 = math.exp %144 : vector<2x64xf32>
    %cst_29 = arith.constant 1.000000e+00 : f32
    %146 = vector.broadcast %cst_29 : f32 to vector<2x64xf32>
    %147 = arith.addf %146, %145 : vector<2x64xf32>
    %148 = arith.divf %146, %147 : vector<2x64xf32>
    %149 = vector.extract_strided_slice %139 {offsets = [0, 64], sizes = [2, 64], strides = [1, 1]} : vector<2x256xf32> to vector<2x64xf32>
    %150 = arith.negf %149 : vector<2x64xf32>
    %151 = math.exp %150 : vector<2x64xf32>
    %cst_30 = arith.constant 1.000000e+00 : f32
    %152 = vector.broadcast %cst_30 : f32 to vector<2x64xf32>
    %153 = arith.addf %152, %151 : vector<2x64xf32>
    %154 = arith.divf %152, %153 : vector<2x64xf32>
    %155 = vector.extract_strided_slice %139 {offsets = [0, 128], sizes = [2, 64], strides = [1, 1]} : vector<2x256xf32> to vector<2x64xf32>
    %156 = math.tanh %155 : vector<2x64xf32>
    %157 = vector.extract_strided_slice %139 {offsets = [0, 192], sizes = [2, 64], strides = [1, 1]} : vector<2x256xf32> to vector<2x64xf32>
    %158 = arith.negf %157 : vector<2x64xf32>
    %159 = math.exp %158 : vector<2x64xf32>
    %cst_31 = arith.constant 1.000000e+00 : f32
    %160 = vector.broadcast %cst_31 : f32 to vector<2x64xf32>
    %161 = arith.addf %160, %159 : vector<2x64xf32>
    %162 = arith.divf %160, %161 : vector<2x64xf32>
    %163 = arith.mulf %154, %106 : vector<2x64xf32>
    %164 = arith.mulf %148, %156 : vector<2x64xf32>
    %165 = arith.addf %163, %164 : vector<2x64xf32>
    %166 = math.tanh %165 : vector<2x64xf32>
    %167 = arith.mulf %162, %166 : vector<2x64xf32>
    %168 = vector.extract_strided_slice %142 {offsets = [0, 0], sizes = [2, 64], strides = [1, 1]} : vector<2x256xf32> to vector<2x64xf32>
    %169 = arith.negf %168 : vector<2x64xf32>
    %170 = math.exp %169 : vector<2x64xf32>
    %cst_32 = arith.constant 1.000000e+00 : f32
    %171 = vector.broadcast %cst_32 : f32 to vector<2x64xf32>
    %172 = arith.addf %171, %170 : vector<2x64xf32>
    %173 = arith.divf %171, %172 : vector<2x64xf32>
    %174 = vector.extract_strided_slice %142 {offsets = [0, 64], sizes = [2, 64], strides = [1, 1]} : vector<2x256xf32> to vector<2x64xf32>
    %175 = arith.negf %174 : vector<2x64xf32>
    %176 = math.exp %175 : vector<2x64xf32>
    %cst_33 = arith.constant 1.000000e+00 : f32
    %177 = vector.broadcast %cst_33 : f32 to vector<2x64xf32>
    %178 = arith.addf %177, %176 : vector<2x64xf32>
    %179 = arith.divf %177, %178 : vector<2x64xf32>
    %180 = vector.extract_strided_slice %142 {offsets = [0, 128], sizes = [2, 64], strides = [1, 1]} : vector<2x256xf32> to vector<2x64xf32>
    %181 = math.tanh %180 : vector<2x64xf32>
    %182 = vector.extract_strided_slice %142 {offsets = [0, 192], sizes = [2, 64], strides = [1, 1]} : vector<2x256xf32> to vector<2x64xf32>
    %183 = arith.negf %182 : vector<2x64xf32>
    %184 = math.exp %183 : vector<2x64xf32>
    %cst_34 = arith.constant 1.000000e+00 : f32
    %185 = vector.broadcast %cst_34 : f32 to vector<2x64xf32>
    %186 = arith.addf %185, %184 : vector<2x64xf32>
    %187 = arith.divf %185, %186 : vector<2x64xf32>
    %188 = arith.mulf %179, %131 : vector<2x64xf32>
    %189 = arith.mulf %173, %181 : vector<2x64xf32>
    %190 = arith.addf %188, %189 : vector<2x64xf32>
    %191 = math.tanh %190 : vector<2x64xf32>
    %192 = arith.mulf %187, %191 : vector<2x64xf32>
    %193 = tpu.concatenate %167, %192 in 1 : vector<2x64xf32>, vector<2x64xf32> -> vector<2x128xf32>
    %194 = arith.truncf %193 : vector<2x128xf32> to vector<2x128xbf16>
    %cst_35 = arith.constant dense<0.000000e+00> : vector<2x512xf32>
    %195 = tpu.matmul %194, %13, %cst_35 {dimension_numbers = #tpu.dot_dimension_numbers<[1], [0], [0], [1], [0, 0, 1, 1], [], []>} : vector<2x128xbf16>, vector<128x512xbf16>, vector<2x512xf32> -> vector<2x512xf32>
    %196 = vector.extract_strided_slice %11 {offsets = [6, 0], sizes = [2, 256], strides = [1, 1]} : vector<16x512xf32> to vector<2x256xf32>
    %197 = vector.extract_strided_slice %195 {offsets = [0, 0], sizes = [2, 256], strides = [1, 1]} : vector<2x512xf32> to vector<2x256xf32>
    %198 = arith.addf %196, %197 : vector<2x256xf32>
    %199 = vector.extract_strided_slice %11 {offsets = [8, 256], sizes = [2, 256], strides = [1, 1]} : vector<16x512xf32> to vector<2x256xf32>
    %200 = vector.extract_strided_slice %195 {offsets = [0, 256], sizes = [2, 256], strides = [1, 1]} : vector<2x512xf32> to vector<2x256xf32>
    %201 = arith.addf %199, %200 : vector<2x256xf32>
    %202 = vector.extract_strided_slice %198 {offsets = [0, 0], sizes = [2, 64], strides = [1, 1]} : vector<2x256xf32> to vector<2x64xf32>
    %203 = arith.negf %202 : vector<2x64xf32>
    %204 = math.exp %203 : vector<2x64xf32>
    %cst_36 = arith.constant 1.000000e+00 : f32
    %205 = vector.broadcast %cst_36 : f32 to vector<2x64xf32>
    %206 = arith.addf %205, %204 : vector<2x64xf32>
    %207 = arith.divf %205, %206 : vector<2x64xf32>
    %208 = vector.extract_strided_slice %198 {offsets = [0, 64], sizes = [2, 64], strides = [1, 1]} : vector<2x256xf32> to vector<2x64xf32>
    %209 = arith.negf %208 : vector<2x64xf32>
    %210 = math.exp %209 : vector<2x64xf32>
    %cst_37 = arith.constant 1.000000e+00 : f32
    %211 = vector.broadcast %cst_37 : f32 to vector<2x64xf32>
    %212 = arith.addf %211, %210 : vector<2x64xf32>
    %213 = arith.divf %211, %212 : vector<2x64xf32>
    %214 = vector.extract_strided_slice %198 {offsets = [0, 128], sizes = [2, 64], strides = [1, 1]} : vector<2x256xf32> to vector<2x64xf32>
    %215 = math.tanh %214 : vector<2x64xf32>
    %216 = vector.extract_strided_slice %198 {offsets = [0, 192], sizes = [2, 64], strides = [1, 1]} : vector<2x256xf32> to vector<2x64xf32>
    %217 = arith.negf %216 : vector<2x64xf32>
    %218 = math.exp %217 : vector<2x64xf32>
    %cst_38 = arith.constant 1.000000e+00 : f32
    %219 = vector.broadcast %cst_38 : f32 to vector<2x64xf32>
    %220 = arith.addf %219, %218 : vector<2x64xf32>
    %221 = arith.divf %219, %220 : vector<2x64xf32>
    %222 = arith.mulf %213, %165 : vector<2x64xf32>
    %223 = arith.mulf %207, %215 : vector<2x64xf32>
    %224 = arith.addf %222, %223 : vector<2x64xf32>
    %225 = math.tanh %224 : vector<2x64xf32>
    %226 = arith.mulf %221, %225 : vector<2x64xf32>
    %227 = vector.extract_strided_slice %201 {offsets = [0, 0], sizes = [2, 64], strides = [1, 1]} : vector<2x256xf32> to vector<2x64xf32>
    %228 = arith.negf %227 : vector<2x64xf32>
    %229 = math.exp %228 : vector<2x64xf32>
    %cst_39 = arith.constant 1.000000e+00 : f32
    %230 = vector.broadcast %cst_39 : f32 to vector<2x64xf32>
    %231 = arith.addf %230, %229 : vector<2x64xf32>
    %232 = arith.divf %230, %231 : vector<2x64xf32>
    %233 = vector.extract_strided_slice %201 {offsets = [0, 64], sizes = [2, 64], strides = [1, 1]} : vector<2x256xf32> to vector<2x64xf32>
    %234 = arith.negf %233 : vector<2x64xf32>
    %235 = math.exp %234 : vector<2x64xf32>
    %cst_40 = arith.constant 1.000000e+00 : f32
    %236 = vector.broadcast %cst_40 : f32 to vector<2x64xf32>
    %237 = arith.addf %236, %235 : vector<2x64xf32>
    %238 = arith.divf %236, %237 : vector<2x64xf32>
    %239 = vector.extract_strided_slice %201 {offsets = [0, 128], sizes = [2, 64], strides = [1, 1]} : vector<2x256xf32> to vector<2x64xf32>
    %240 = math.tanh %239 : vector<2x64xf32>
    %241 = vector.extract_strided_slice %201 {offsets = [0, 192], sizes = [2, 64], strides = [1, 1]} : vector<2x256xf32> to vector<2x64xf32>
    %242 = arith.negf %241 : vector<2x64xf32>
    %243 = math.exp %242 : vector<2x64xf32>
    %cst_41 = arith.constant 1.000000e+00 : f32
    %244 = vector.broadcast %cst_41 : f32 to vector<2x64xf32>
    %245 = arith.addf %244, %243 : vector<2x64xf32>
    %246 = arith.divf %244, %245 : vector<2x64xf32>
    %247 = arith.mulf %238, %190 : vector<2x64xf32>
    %248 = arith.mulf %232, %240 : vector<2x64xf32>
    %249 = arith.addf %247, %248 : vector<2x64xf32>
    %250 = math.tanh %249 : vector<2x64xf32>
    %251 = arith.mulf %246, %250 : vector<2x64xf32>
    %252 = tpu.concatenate %226, %251 in 1 : vector<2x64xf32>, vector<2x64xf32> -> vector<2x128xf32>
    %253 = arith.truncf %252 : vector<2x128xf32> to vector<2x128xbf16>
    %cst_42 = arith.constant dense<0.000000e+00> : vector<2x512xf32>
    %254 = tpu.matmul %253, %13, %cst_42 {dimension_numbers = #tpu.dot_dimension_numbers<[1], [0], [0], [1], [0, 0, 1, 1], [], []>} : vector<2x128xbf16>, vector<128x512xbf16>, vector<2x512xf32> -> vector<2x512xf32>
    %255 = vector.extract_strided_slice %11 {offsets = [8, 0], sizes = [2, 256], strides = [1, 1]} : vector<16x512xf32> to vector<2x256xf32>
    %256 = vector.extract_strided_slice %254 {offsets = [0, 0], sizes = [2, 256], strides = [1, 1]} : vector<2x512xf32> to vector<2x256xf32>
    %257 = arith.addf %255, %256 : vector<2x256xf32>
    %258 = vector.extract_strided_slice %11 {offsets = [6, 256], sizes = [2, 256], strides = [1, 1]} : vector<16x512xf32> to vector<2x256xf32>
    %259 = vector.extract_strided_slice %254 {offsets = [0, 256], sizes = [2, 256], strides = [1, 1]} : vector<2x512xf32> to vector<2x256xf32>
    %260 = arith.addf %258, %259 : vector<2x256xf32>
    %261 = vector.extract_strided_slice %257 {offsets = [0, 0], sizes = [2, 64], strides = [1, 1]} : vector<2x256xf32> to vector<2x64xf32>
    %262 = arith.negf %261 : vector<2x64xf32>
    %263 = math.exp %262 : vector<2x64xf32>
    %cst_43 = arith.constant 1.000000e+00 : f32
    %264 = vector.broadcast %cst_43 : f32 to vector<2x64xf32>
    %265 = arith.addf %264, %263 : vector<2x64xf32>
    %266 = arith.divf %264, %265 : vector<2x64xf32>
    %267 = vector.extract_strided_slice %257 {offsets = [0, 64], sizes = [2, 64], strides = [1, 1]} : vector<2x256xf32> to vector<2x64xf32>
    %268 = arith.negf %267 : vector<2x64xf32>
    %269 = math.exp %268 : vector<2x64xf32>
    %cst_44 = arith.constant 1.000000e+00 : f32
    %270 = vector.broadcast %cst_44 : f32 to vector<2x64xf32>
    %271 = arith.addf %270, %269 : vector<2x64xf32>
    %272 = arith.divf %270, %271 : vector<2x64xf32>
    %273 = vector.extract_strided_slice %257 {offsets = [0, 128], sizes = [2, 64], strides = [1, 1]} : vector<2x256xf32> to vector<2x64xf32>
    %274 = math.tanh %273 : vector<2x64xf32>
    %275 = vector.extract_strided_slice %257 {offsets = [0, 192], sizes = [2, 64], strides = [1, 1]} : vector<2x256xf32> to vector<2x64xf32>
    %276 = arith.negf %275 : vector<2x64xf32>
    %277 = math.exp %276 : vector<2x64xf32>
    %cst_45 = arith.constant 1.000000e+00 : f32
    %278 = vector.broadcast %cst_45 : f32 to vector<2x64xf32>
    %279 = arith.addf %278, %277 : vector<2x64xf32>
    %280 = arith.divf %278, %279 : vector<2x64xf32>
    %281 = arith.mulf %272, %224 : vector<2x64xf32>
    %282 = arith.mulf %266, %274 : vector<2x64xf32>
    %283 = arith.addf %281, %282 : vector<2x64xf32>
    %284 = math.tanh %283 : vector<2x64xf32>
    %285 = arith.mulf %280, %284 : vector<2x64xf32>
    %286 = vector.extract_strided_slice %260 {offsets = [0, 0], sizes = [2, 64], strides = [1, 1]} : vector<2x256xf32> to vector<2x64xf32>
    %287 = arith.negf %286 : vector<2x64xf32>
    %288 = math.exp %287 : vector<2x64xf32>
    %cst_46 = arith.constant 1.000000e+00 : f32
    %289 = vector.broadcast %cst_46 : f32 to vector<2x64xf32>
    %290 = arith.addf %289, %288 : vector<2x64xf32>
    %291 = arith.divf %289, %290 : vector<2x64xf32>
    %292 = vector.extract_strided_slice %260 {offsets = [0, 64], sizes = [2, 64], strides = [1, 1]} : vector<2x256xf32> to vector<2x64xf32>
    %293 = arith.negf %292 : vector<2x64xf32>
    %294 = math.exp %293 : vector<2x64xf32>
    %cst_47 = arith.constant 1.000000e+00 : f32
    %295 = vector.broadcast %cst_47 : f32 to vector<2x64xf32>
    %296 = arith.addf %295, %294 : vector<2x64xf32>
    %297 = arith.divf %295, %296 : vector<2x64xf32>
    %298 = vector.extract_strided_slice %260 {offsets = [0, 128], sizes = [2, 64], strides = [1, 1]} : vector<2x256xf32> to vector<2x64xf32>
    %299 = math.tanh %298 : vector<2x64xf32>
    %300 = vector.extract_strided_slice %260 {offsets = [0, 192], sizes = [2, 64], strides = [1, 1]} : vector<2x256xf32> to vector<2x64xf32>
    %301 = arith.negf %300 : vector<2x64xf32>
    %302 = math.exp %301 : vector<2x64xf32>
    %cst_48 = arith.constant 1.000000e+00 : f32
    %303 = vector.broadcast %cst_48 : f32 to vector<2x64xf32>
    %304 = arith.addf %303, %302 : vector<2x64xf32>
    %305 = arith.divf %303, %304 : vector<2x64xf32>
    %306 = arith.mulf %297, %249 : vector<2x64xf32>
    %307 = arith.mulf %291, %299 : vector<2x64xf32>
    %308 = arith.addf %306, %307 : vector<2x64xf32>
    %309 = math.tanh %308 : vector<2x64xf32>
    %310 = arith.mulf %305, %309 : vector<2x64xf32>
    %311 = tpu.concatenate %285, %310 in 1 : vector<2x64xf32>, vector<2x64xf32> -> vector<2x128xf32>
    %312 = arith.truncf %311 : vector<2x128xf32> to vector<2x128xbf16>
    %cst_49 = arith.constant dense<0.000000e+00> : vector<2x512xf32>
    %313 = tpu.matmul %312, %13, %cst_49 {dimension_numbers = #tpu.dot_dimension_numbers<[1], [0], [0], [1], [0, 0, 1, 1], [], []>} : vector<2x128xbf16>, vector<128x512xbf16>, vector<2x512xf32> -> vector<2x512xf32>
    %314 = vector.extract_strided_slice %11 {offsets = [10, 0], sizes = [2, 256], strides = [1, 1]} : vector<16x512xf32> to vector<2x256xf32>
    %315 = vector.extract_strided_slice %313 {offsets = [0, 0], sizes = [2, 256], strides = [1, 1]} : vector<2x512xf32> to vector<2x256xf32>
    %316 = arith.addf %314, %315 : vector<2x256xf32>
    %317 = vector.extract_strided_slice %11 {offsets = [4, 256], sizes = [2, 256], strides = [1, 1]} : vector<16x512xf32> to vector<2x256xf32>
    %318 = vector.extract_strided_slice %313 {offsets = [0, 256], sizes = [2, 256], strides = [1, 1]} : vector<2x512xf32> to vector<2x256xf32>
    %319 = arith.addf %317, %318 : vector<2x256xf32>
    %320 = vector.extract_strided_slice %316 {offsets = [0, 0], sizes = [2, 64], strides = [1, 1]} : vector<2x256xf32> to vector<2x64xf32>
    %321 = arith.negf %320 : vector<2x64xf32>
    %322 = math.exp %321 : vector<2x64xf32>
    %cst_50 = arith.constant 1.000000e+00 : f32
    %323 = vector.broadcast %cst_50 : f32 to vector<2x64xf32>
    %324 = arith.addf %323, %322 : vector<2x64xf32>
    %325 = arith.divf %323, %324 : vector<2x64xf32>
    %326 = vector.extract_strided_slice %316 {offsets = [0, 64], sizes = [2, 64], strides = [1, 1]} : vector<2x256xf32> to vector<2x64xf32>
    %327 = arith.negf %326 : vector<2x64xf32>
    %328 = math.exp %327 : vector<2x64xf32>
    %cst_51 = arith.constant 1.000000e+00 : f32
    %329 = vector.broadcast %cst_51 : f32 to vector<2x64xf32>
    %330 = arith.addf %329, %328 : vector<2x64xf32>
    %331 = arith.divf %329, %330 : vector<2x64xf32>
    %332 = vector.extract_strided_slice %316 {offsets = [0, 128], sizes = [2, 64], strides = [1, 1]} : vector<2x256xf32> to vector<2x64xf32>
    %333 = math.tanh %332 : vector<2x64xf32>
    %334 = vector.extract_strided_slice %316 {offsets = [0, 192], sizes = [2, 64], strides = [1, 1]} : vector<2x256xf32> to vector<2x64xf32>
    %335 = arith.negf %334 : vector<2x64xf32>
    %336 = math.exp %335 : vector<2x64xf32>
    %cst_52 = arith.constant 1.000000e+00 : f32
    %337 = vector.broadcast %cst_52 : f32 to vector<2x64xf32>
    %338 = arith.addf %337, %336 : vector<2x64xf32>
    %339 = arith.divf %337, %338 : vector<2x64xf32>
    %340 = arith.mulf %331, %283 : vector<2x64xf32>
    %341 = arith.mulf %325, %333 : vector<2x64xf32>
    %342 = arith.addf %340, %341 : vector<2x64xf32>
    %343 = math.tanh %342 : vector<2x64xf32>
    %344 = arith.mulf %339, %343 : vector<2x64xf32>
    %345 = vector.extract_strided_slice %319 {offsets = [0, 0], sizes = [2, 64], strides = [1, 1]} : vector<2x256xf32> to vector<2x64xf32>
    %346 = arith.negf %345 : vector<2x64xf32>
    %347 = math.exp %346 : vector<2x64xf32>
    %cst_53 = arith.constant 1.000000e+00 : f32
    %348 = vector.broadcast %cst_53 : f32 to vector<2x64xf32>
    %349 = arith.addf %348, %347 : vector<2x64xf32>
    %350 = arith.divf %348, %349 : vector<2x64xf32>
    %351 = vector.extract_strided_slice %319 {offsets = [0, 64], sizes = [2, 64], strides = [1, 1]} : vector<2x256xf32> to vector<2x64xf32>
    %352 = arith.negf %351 : vector<2x64xf32>
    %353 = math.exp %352 : vector<2x64xf32>
    %cst_54 = arith.constant 1.000000e+00 : f32
    %354 = vector.broadcast %cst_54 : f32 to vector<2x64xf32>
    %355 = arith.addf %354, %353 : vector<2x64xf32>
    %356 = arith.divf %354, %355 : vector<2x64xf32>
    %357 = vector.extract_strided_slice %319 {offsets = [0, 128], sizes = [2, 64], strides = [1, 1]} : vector<2x256xf32> to vector<2x64xf32>
    %358 = math.tanh %357 : vector<2x64xf32>
    %359 = vector.extract_strided_slice %319 {offsets = [0, 192], sizes = [2, 64], strides = [1, 1]} : vector<2x256xf32> to vector<2x64xf32>
    %360 = arith.negf %359 : vector<2x64xf32>
    %361 = math.exp %360 : vector<2x64xf32>
    %cst_55 = arith.constant 1.000000e+00 : f32
    %362 = vector.broadcast %cst_55 : f32 to vector<2x64xf32>
    %363 = arith.addf %362, %361 : vector<2x64xf32>
    %364 = arith.divf %362, %363 : vector<2x64xf32>
    %365 = arith.mulf %356, %308 : vector<2x64xf32>
    %366 = arith.mulf %350, %358 : vector<2x64xf32>
    %367 = arith.addf %365, %366 : vector<2x64xf32>
    %368 = math.tanh %367 : vector<2x64xf32>
    %369 = arith.mulf %364, %368 : vector<2x64xf32>
    %370 = tpu.concatenate %344, %369 in 1 : vector<2x64xf32>, vector<2x64xf32> -> vector<2x128xf32>
    %371 = arith.truncf %370 : vector<2x128xf32> to vector<2x128xbf16>
    %cst_56 = arith.constant dense<0.000000e+00> : vector<2x512xf32>
    %372 = tpu.matmul %371, %13, %cst_56 {dimension_numbers = #tpu.dot_dimension_numbers<[1], [0], [0], [1], [0, 0, 1, 1], [], []>} : vector<2x128xbf16>, vector<128x512xbf16>, vector<2x512xf32> -> vector<2x512xf32>
    %373 = vector.extract_strided_slice %11 {offsets = [12, 0], sizes = [2, 256], strides = [1, 1]} : vector<16x512xf32> to vector<2x256xf32>
    %374 = vector.extract_strided_slice %372 {offsets = [0, 0], sizes = [2, 256], strides = [1, 1]} : vector<2x512xf32> to vector<2x256xf32>
    %375 = arith.addf %373, %374 : vector<2x256xf32>
    %376 = vector.extract_strided_slice %11 {offsets = [2, 256], sizes = [2, 256], strides = [1, 1]} : vector<16x512xf32> to vector<2x256xf32>
    %377 = vector.extract_strided_slice %372 {offsets = [0, 256], sizes = [2, 256], strides = [1, 1]} : vector<2x512xf32> to vector<2x256xf32>
    %378 = arith.addf %376, %377 : vector<2x256xf32>
    %379 = vector.extract_strided_slice %375 {offsets = [0, 0], sizes = [2, 64], strides = [1, 1]} : vector<2x256xf32> to vector<2x64xf32>
    %380 = arith.negf %379 : vector<2x64xf32>
    %381 = math.exp %380 : vector<2x64xf32>
    %cst_57 = arith.constant 1.000000e+00 : f32
    %382 = vector.broadcast %cst_57 : f32 to vector<2x64xf32>
    %383 = arith.addf %382, %381 : vector<2x64xf32>
    %384 = arith.divf %382, %383 : vector<2x64xf32>
    %385 = vector.extract_strided_slice %375 {offsets = [0, 64], sizes = [2, 64], strides = [1, 1]} : vector<2x256xf32> to vector<2x64xf32>
    %386 = arith.negf %385 : vector<2x64xf32>
    %387 = math.exp %386 : vector<2x64xf32>
    %cst_58 = arith.constant 1.000000e+00 : f32
    %388 = vector.broadcast %cst_58 : f32 to vector<2x64xf32>
    %389 = arith.addf %388, %387 : vector<2x64xf32>
    %390 = arith.divf %388, %389 : vector<2x64xf32>
    %391 = vector.extract_strided_slice %375 {offsets = [0, 128], sizes = [2, 64], strides = [1, 1]} : vector<2x256xf32> to vector<2x64xf32>
    %392 = math.tanh %391 : vector<2x64xf32>
    %393 = vector.extract_strided_slice %375 {offsets = [0, 192], sizes = [2, 64], strides = [1, 1]} : vector<2x256xf32> to vector<2x64xf32>
    %394 = arith.negf %393 : vector<2x64xf32>
    %395 = math.exp %394 : vector<2x64xf32>
    %cst_59 = arith.constant 1.000000e+00 : f32
    %396 = vector.broadcast %cst_59 : f32 to vector<2x64xf32>
    %397 = arith.addf %396, %395 : vector<2x64xf32>
    %398 = arith.divf %396, %397 : vector<2x64xf32>
    %399 = arith.mulf %390, %342 : vector<2x64xf32>
    %400 = arith.mulf %384, %392 : vector<2x64xf32>
    %401 = arith.addf %399, %400 : vector<2x64xf32>
    %402 = math.tanh %401 : vector<2x64xf32>
    %403 = arith.mulf %398, %402 : vector<2x64xf32>
    %404 = vector.extract_strided_slice %378 {offsets = [0, 0], sizes = [2, 64], strides = [1, 1]} : vector<2x256xf32> to vector<2x64xf32>
    %405 = arith.negf %404 : vector<2x64xf32>
    %406 = math.exp %405 : vector<2x64xf32>
    %cst_60 = arith.constant 1.000000e+00 : f32
    %407 = vector.broadcast %cst_60 : f32 to vector<2x64xf32>
    %408 = arith.addf %407, %406 : vector<2x64xf32>
    %409 = arith.divf %407, %408 : vector<2x64xf32>
    %410 = vector.extract_strided_slice %378 {offsets = [0, 64], sizes = [2, 64], strides = [1, 1]} : vector<2x256xf32> to vector<2x64xf32>
    %411 = arith.negf %410 : vector<2x64xf32>
    %412 = math.exp %411 : vector<2x64xf32>
    %cst_61 = arith.constant 1.000000e+00 : f32
    %413 = vector.broadcast %cst_61 : f32 to vector<2x64xf32>
    %414 = arith.addf %413, %412 : vector<2x64xf32>
    %415 = arith.divf %413, %414 : vector<2x64xf32>
    %416 = vector.extract_strided_slice %378 {offsets = [0, 128], sizes = [2, 64], strides = [1, 1]} : vector<2x256xf32> to vector<2x64xf32>
    %417 = math.tanh %416 : vector<2x64xf32>
    %418 = vector.extract_strided_slice %378 {offsets = [0, 192], sizes = [2, 64], strides = [1, 1]} : vector<2x256xf32> to vector<2x64xf32>
    %419 = arith.negf %418 : vector<2x64xf32>
    %420 = math.exp %419 : vector<2x64xf32>
    %cst_62 = arith.constant 1.000000e+00 : f32
    %421 = vector.broadcast %cst_62 : f32 to vector<2x64xf32>
    %422 = arith.addf %421, %420 : vector<2x64xf32>
    %423 = arith.divf %421, %422 : vector<2x64xf32>
    %424 = arith.mulf %415, %367 : vector<2x64xf32>
    %425 = arith.mulf %409, %417 : vector<2x64xf32>
    %426 = arith.addf %424, %425 : vector<2x64xf32>
    %427 = math.tanh %426 : vector<2x64xf32>
    %428 = arith.mulf %423, %427 : vector<2x64xf32>
    %429 = tpu.concatenate %403, %428 in 1 : vector<2x64xf32>, vector<2x64xf32> -> vector<2x128xf32>
    %430 = arith.truncf %429 : vector<2x128xf32> to vector<2x128xbf16>
    %cst_63 = arith.constant dense<0.000000e+00> : vector<2x512xf32>
    %431 = tpu.matmul %430, %13, %cst_63 {dimension_numbers = #tpu.dot_dimension_numbers<[1], [0], [0], [1], [0, 0, 1, 1], [], []>} : vector<2x128xbf16>, vector<128x512xbf16>, vector<2x512xf32> -> vector<2x512xf32>
    %432 = vector.extract_strided_slice %11 {offsets = [14, 0], sizes = [2, 256], strides = [1, 1]} : vector<16x512xf32> to vector<2x256xf32>
    %433 = vector.extract_strided_slice %431 {offsets = [0, 0], sizes = [2, 256], strides = [1, 1]} : vector<2x512xf32> to vector<2x256xf32>
    %434 = arith.addf %432, %433 : vector<2x256xf32>
    %435 = vector.extract_strided_slice %11 {offsets = [0, 256], sizes = [2, 256], strides = [1, 1]} : vector<16x512xf32> to vector<2x256xf32>
    %436 = vector.extract_strided_slice %431 {offsets = [0, 256], sizes = [2, 256], strides = [1, 1]} : vector<2x512xf32> to vector<2x256xf32>
    %437 = arith.addf %435, %436 : vector<2x256xf32>
    %438 = vector.extract_strided_slice %434 {offsets = [0, 0], sizes = [2, 64], strides = [1, 1]} : vector<2x256xf32> to vector<2x64xf32>
    %439 = arith.negf %438 : vector<2x64xf32>
    %440 = math.exp %439 : vector<2x64xf32>
    %cst_64 = arith.constant 1.000000e+00 : f32
    %441 = vector.broadcast %cst_64 : f32 to vector<2x64xf32>
    %442 = arith.addf %441, %440 : vector<2x64xf32>
    %443 = arith.divf %441, %442 : vector<2x64xf32>
    %444 = vector.extract_strided_slice %434 {offsets = [0, 64], sizes = [2, 64], strides = [1, 1]} : vector<2x256xf32> to vector<2x64xf32>
    %445 = arith.negf %444 : vector<2x64xf32>
    %446 = math.exp %445 : vector<2x64xf32>
    %cst_65 = arith.constant 1.000000e+00 : f32
    %447 = vector.broadcast %cst_65 : f32 to vector<2x64xf32>
    %448 = arith.addf %447, %446 : vector<2x64xf32>
    %449 = arith.divf %447, %448 : vector<2x64xf32>
    %450 = vector.extract_strided_slice %434 {offsets = [0, 128], sizes = [2, 64], strides = [1, 1]} : vector<2x256xf32> to vector<2x64xf32>
    %451 = math.tanh %450 : vector<2x64xf32>
    %452 = vector.extract_strided_slice %434 {offsets = [0, 192], sizes = [2, 64], strides = [1, 1]} : vector<2x256xf32> to vector<2x64xf32>
    %453 = arith.negf %452 : vector<2x64xf32>
    %454 = math.exp %453 : vector<2x64xf32>
    %cst_66 = arith.constant 1.000000e+00 : f32
    %455 = vector.broadcast %cst_66 : f32 to vector<2x64xf32>
    %456 = arith.addf %455, %454 : vector<2x64xf32>
    %457 = arith.divf %455, %456 : vector<2x64xf32>
    %458 = arith.mulf %449, %401 : vector<2x64xf32>
    %459 = arith.mulf %443, %451 : vector<2x64xf32>
    %460 = arith.addf %458, %459 : vector<2x64xf32>
    %461 = math.tanh %460 : vector<2x64xf32>
    %462 = arith.mulf %457, %461 : vector<2x64xf32>
    %463 = vector.extract_strided_slice %437 {offsets = [0, 0], sizes = [2, 64], strides = [1, 1]} : vector<2x256xf32> to vector<2x64xf32>
    %464 = arith.negf %463 : vector<2x64xf32>
    %465 = math.exp %464 : vector<2x64xf32>
    %cst_67 = arith.constant 1.000000e+00 : f32
    %466 = vector.broadcast %cst_67 : f32 to vector<2x64xf32>
    %467 = arith.addf %466, %465 : vector<2x64xf32>
    %468 = arith.divf %466, %467 : vector<2x64xf32>
    %469 = vector.extract_strided_slice %437 {offsets = [0, 64], sizes = [2, 64], strides = [1, 1]} : vector<2x256xf32> to vector<2x64xf32>
    %470 = arith.negf %469 : vector<2x64xf32>
    %471 = math.exp %470 : vector<2x64xf32>
    %cst_68 = arith.constant 1.000000e+00 : f32
    %472 = vector.broadcast %cst_68 : f32 to vector<2x64xf32>
    %473 = arith.addf %472, %471 : vector<2x64xf32>
    %474 = arith.divf %472, %473 : vector<2x64xf32>
    %475 = vector.extract_strided_slice %437 {offsets = [0, 128], sizes = [2, 64], strides = [1, 1]} : vector<2x256xf32> to vector<2x64xf32>
    %476 = math.tanh %475 : vector<2x64xf32>
    %477 = vector.extract_strided_slice %437 {offsets = [0, 192], sizes = [2, 64], strides = [1, 1]} : vector<2x256xf32> to vector<2x64xf32>
    %478 = arith.negf %477 : vector<2x64xf32>
    %479 = math.exp %478 : vector<2x64xf32>
    %cst_69 = arith.constant 1.000000e+00 : f32
    %480 = vector.broadcast %cst_69 : f32 to vector<2x64xf32>
    %481 = arith.addf %480, %479 : vector<2x64xf32>
    %482 = arith.divf %480, %481 : vector<2x64xf32>
    %483 = arith.mulf %474, %426 : vector<2x64xf32>
    %484 = arith.mulf %468, %476 : vector<2x64xf32>
    %485 = arith.addf %483, %484 : vector<2x64xf32>
    %486 = math.tanh %485 : vector<2x64xf32>
    %487 = arith.mulf %482, %486 : vector<2x64xf32>
    %488 = tpu.concatenate %49, %487 in 1 : vector<2x64xf32>, vector<2x64xf32> -> vector<2x128xf32>
    %489 = tpu.concatenate %108, %428 in 1 : vector<2x64xf32>, vector<2x64xf32> -> vector<2x128xf32>
    %490 = tpu.concatenate %167, %369 in 1 : vector<2x64xf32>, vector<2x64xf32> -> vector<2x128xf32>
    %491 = tpu.concatenate %226, %310 in 1 : vector<2x64xf32>, vector<2x64xf32> -> vector<2x128xf32>
    %492 = tpu.concatenate %285, %251 in 1 : vector<2x64xf32>, vector<2x64xf32> -> vector<2x128xf32>
    %493 = tpu.concatenate %344, %192 in 1 : vector<2x64xf32>, vector<2x64xf32> -> vector<2x128xf32>
    %494 = tpu.concatenate %403, %133 in 1 : vector<2x64xf32>, vector<2x64xf32> -> vector<2x128xf32>
    %495 = tpu.concatenate %462, %74 in 1 : vector<2x64xf32>, vector<2x64xf32> -> vector<2x128xf32>
    %496 = tpu.concatenate %488, %489, %490, %491, %492, %493, %494, %495 in 0 : vector<2x128xf32>, vector<2x128xf32>, vector<2x128xf32>, vector<2x128xf32>, vector<2x128xf32>, vector<2x128xf32>, vector<2x128xf32>, vector<2x128xf32> -> vector<16x128xf32>
    %c0_70 = arith.constant 0 : index
    %c0_71 = arith.constant 0 : index
    %497 = vector.load %arg11[%c0_70, %c0_71] : memref<16x128xf32, #tpu.memory_space<vmem>>, vector<16x128xf32>
    tpu.vector_store %arg11[%c0_70, %c0_71], %496 {strides = array<i32>} : memref<16x128xf32, #tpu.memory_space<vmem>>, vector<16x128xf32>,
    %c1_i32 = arith.constant 1 : i32
    %498 = arith.cmpi eq, %arg0, %c1_i32 : i32
    %499 = arith.extui %498 : i1 to i32
    %c0_i32_72 = arith.constant 0 : i32
    %500 = arith.cmpi ne, %499, %c0_i32_72 : i32
    scf.if %500 {
      %501 = arith.truncf %496 : vector<16x128xf32> to vector<16x128xbf16>
      %c0_73 = arith.constant 0 : index
      %c0_74 = arith.constant 0 : index
      %502 = vector.load %arg6[%c0_73, %c0_74] : memref<128x8xbf16, #tpu.memory_space<vmem>>, vector<128x8xbf16>
      %cst_75 = arith.constant dense<0.000000e+00> : vector<16x8xf32>
      %503 = tpu.matmul %501, %502, %cst_75 {dimension_numbers = #tpu.dot_dimension_numbers<[1], [0], [0], [1], [0, 0, 1, 1], [], []>} : vector<16x128xbf16>, vector<128x8xbf16>, vector<16x8xf32> -> vector<16x8xf32>
      %c0_76 = arith.constant 0 : index
      %c0_77 = arith.constant 0 : index
      %504 = vector.load %arg7[%c0_76, %c0_77] : memref<1x8xf32, #tpu.memory_space<vmem>>, vector<1x8xf32>
      %505 = vector.broadcast %504 : vector<1x8xf32> to vector<16x8xf32>
      %506 = arith.addf %503, %505 : vector<16x8xf32>
      %cst_78 = arith.constant dense<0xFF800000> : vector<16xf32>
      %507 = vector.multi_reduction <maximumf>, %506, %cst_78 [1] : vector<16x8xf32> to vector<16xf32>
      %508 = vector.shape_cast %507 : vector<16xf32> to vector<16x1xf32>
      %509 = vector.broadcast %508 : vector<16x1xf32> to vector<16x8xf32>
      %510 = arith.subf %506, %509 : vector<16x8xf32>
      %511 = math.exp %510 : vector<16x8xf32>
      %cst_79 = arith.constant dense<0.000000e+00> : vector<16xf32>
      %512 = vector.multi_reduction <add>, %511, %cst_79 [1] : vector<16x8xf32> to vector<16xf32>
      %513 = vector.shape_cast %512 : vector<16xf32> to vector<16x1xf32>
      %514 = math.log %513 : vector<16x1xf32>
      %515 = vector.broadcast %514 : vector<16x1xf32> to vector<16x8xf32>
      %516 = arith.subf %510, %515 : vector<16x8xf32>
      %c0_80 = arith.constant 0 : index
      %c0_81 = arith.constant 0 : index
      %517 = vector.load %arg8[%c0_80, %c0_81] : memref<8x8xf32, #tpu.memory_space<vmem>>, vector<8x8xf32>
      %518 = tpu.iota {dimensions = array<i32: 0>} : vector<8x8xi32>
      %519 = tpu.iota {dimensions = array<i32: 1>} : vector<8x8xi32>
      %520 = arith.cmpi eq, %518, %519 : vector<8x8xi32>
      %521 = arith.extui %520 : vector<8x8xi1> to vector<8x8xi32>
      %522 = arith.sitofp %521 : vector<8x8xi32> to vector<8x8xf32>
      %523 = arith.sitofp %518 : vector<8x8xi32> to vector<8x8xf32>
      %524 = tpu.iota {dimensions = array<i32: 1>} : vector<1x8xi32>
      %c0_82 = arith.constant 0 : index
      %525 = memref.load %arg1[%c0_82] : memref<2xi32, #tpu.memory_space<smem>>
      %526 = vector.extract_strided_slice %516 {offsets = [0, 0], sizes = [1, 8], strides = [1, 1]} : vector<16x8xf32> to vector<1x8xf32>
      %527 = vector.extract_strided_slice %516 {offsets = [2, 0], sizes = [1, 8], strides = [1, 1]} : vector<16x8xf32> to vector<1x8xf32>
      %528 = vector.broadcast %526 : vector<1x8xf32> to vector<8x8xf32>
      %529 = arith.mulf %522, %528 : vector<8x8xf32>
      %cst_83 = arith.constant dense<0.000000e+00> : vector<8xf32>
      %530 = vector.multi_reduction <add>, %529, %cst_83 [1] : vector<8x8xf32> to vector<8xf32>
      %531 = vector.shape_cast %530 : vector<8xf32> to vector<8x1xf32>
      %532 = vector.broadcast %531 : vector<8x1xf32> to vector<8x8xf32>
      %533 = arith.addf %532, %517 : vector<8x8xf32>
      %534 = vector.broadcast %527 : vector<1x8xf32> to vector<8x8xf32>
      %535 = arith.addf %533, %534 : vector<8x8xf32>
      %cst_84 = arith.constant dense<0xFF800000> : vector<8xf32>
      %536 = vector.multi_reduction <maximumf>, %535, %cst_84 [0] : vector<8x8xf32> to vector<8xf32>
      %537 = vector.shape_cast %536 : vector<8xf32> to vector<1x8xf32>
      %538 = vector.broadcast %537 : vector<1x8xf32> to vector<8x8xf32>
      %539 = arith.cmpf oge, %535, %538 : vector<8x8xf32>
      %cst_85 = arith.constant 8.000000e+00 : f32
      %540 = vector.broadcast %cst_85 : f32 to vector<8x8xf32>
      %541 = arith.select %539, %523, %540 : vector<8x8xi1>, vector<8x8xf32>
      %cst_86 = arith.constant dense<0x7F800000> : vector<8xf32>
      %542 = vector.multi_reduction <minimumf>, %541, %cst_86 [0] : vector<8x8xf32> to vector<8xf32>
      %543 = vector.shape_cast %542 : vector<8xf32> to vector<1x8xf32>
      %544 = arith.fptosi %543 : vector<1x8xf32> to vector<1x8xi32>
      %c1_i32_87 = arith.constant 1 : i32
      %545 = arith.cmpi sgt, %525, %c1_i32_87 : i32
      %546 = arith.select %545, %537, %526 : vector<1x8xf32>
      %547 = arith.select %545, %544, %524 : vector<1x8xi32>
      %548 = vector.extract_strided_slice %516 {offsets = [4, 0], sizes = [1, 8], strides = [1, 1]} : vector<16x8xf32> to vector<1x8xf32>
      %549 = vector.broadcast %546 : vector<1x8xf32> to vector<8x8xf32>
      %550 = arith.mulf %522, %549 : vector<8x8xf32>
      %cst_88 = arith.constant dense<0.000000e+00> : vector<8xf32>
      %551 = vector.multi_reduction <add>, %550, %cst_88 [1] : vector<8x8xf32> to vector<8xf32>
      %552 = vector.shape_cast %551 : vector<8xf32> to vector<8x1xf32>
      %553 = vector.broadcast %552 : vector<8x1xf32> to vector<8x8xf32>
      %554 = arith.addf %553, %517 : vector<8x8xf32>
      %555 = vector.broadcast %548 : vector<1x8xf32> to vector<8x8xf32>
      %556 = arith.addf %554, %555 : vector<8x8xf32>
      %cst_89 = arith.constant dense<0xFF800000> : vector<8xf32>
      %557 = vector.multi_reduction <maximumf>, %556, %cst_89 [0] : vector<8x8xf32> to vector<8xf32>
      %558 = vector.shape_cast %557 : vector<8xf32> to vector<1x8xf32>
      %559 = vector.broadcast %558 : vector<1x8xf32> to vector<8x8xf32>
      %560 = arith.cmpf oge, %556, %559 : vector<8x8xf32>
      %cst_90 = arith.constant 8.000000e+00 : f32
      %561 = vector.broadcast %cst_90 : f32 to vector<8x8xf32>
      %562 = arith.select %560, %523, %561 : vector<8x8xi1>, vector<8x8xf32>
      %cst_91 = arith.constant dense<0x7F800000> : vector<8xf32>
      %563 = vector.multi_reduction <minimumf>, %562, %cst_91 [0] : vector<8x8xf32> to vector<8xf32>
      %564 = vector.shape_cast %563 : vector<8xf32> to vector<1x8xf32>
      %565 = arith.fptosi %564 : vector<1x8xf32> to vector<1x8xi32>
      %c2_i32 = arith.constant 2 : i32
      %566 = arith.cmpi sgt, %525, %c2_i32 : i32
      %567 = arith.select %566, %558, %546 : vector<1x8xf32>
      %568 = arith.select %566, %565, %524 : vector<1x8xi32>
      %569 = vector.extract_strided_slice %516 {offsets = [6, 0], sizes = [1, 8], strides = [1, 1]} : vector<16x8xf32> to vector<1x8xf32>
      %570 = vector.broadcast %567 : vector<1x8xf32> to vector<8x8xf32>
      %571 = arith.mulf %522, %570 : vector<8x8xf32>
      %cst_92 = arith.constant dense<0.000000e+00> : vector<8xf32>
      %572 = vector.multi_reduction <add>, %571, %cst_92 [1] : vector<8x8xf32> to vector<8xf32>
      %573 = vector.shape_cast %572 : vector<8xf32> to vector<8x1xf32>
      %574 = vector.broadcast %573 : vector<8x1xf32> to vector<8x8xf32>
      %575 = arith.addf %574, %517 : vector<8x8xf32>
      %576 = vector.broadcast %569 : vector<1x8xf32> to vector<8x8xf32>
      %577 = arith.addf %575, %576 : vector<8x8xf32>
      %cst_93 = arith.constant dense<0xFF800000> : vector<8xf32>
      %578 = vector.multi_reduction <maximumf>, %577, %cst_93 [0] : vector<8x8xf32> to vector<8xf32>
      %579 = vector.shape_cast %578 : vector<8xf32> to vector<1x8xf32>
      %580 = vector.broadcast %579 : vector<1x8xf32> to vector<8x8xf32>
      %581 = arith.cmpf oge, %577, %580 : vector<8x8xf32>
      %cst_94 = arith.constant 8.000000e+00 : f32
      %582 = vector.broadcast %cst_94 : f32 to vector<8x8xf32>
      %583 = arith.select %581, %523, %582 : vector<8x8xi1>, vector<8x8xf32>
      %cst_95 = arith.constant dense<0x7F800000> : vector<8xf32>
      %584 = vector.multi_reduction <minimumf>, %583, %cst_95 [0] : vector<8x8xf32> to vector<8xf32>
      %585 = vector.shape_cast %584 : vector<8xf32> to vector<1x8xf32>
      %586 = arith.fptosi %585 : vector<1x8xf32> to vector<1x8xi32>
      %c3_i32 = arith.constant 3 : i32
      %587 = arith.cmpi sgt, %525, %c3_i32 : i32
      %588 = arith.select %587, %579, %567 : vector<1x8xf32>
      %589 = arith.select %587, %586, %524 : vector<1x8xi32>
      %590 = vector.extract_strided_slice %516 {offsets = [8, 0], sizes = [1, 8], strides = [1, 1]} : vector<16x8xf32> to vector<1x8xf32>
      %591 = vector.broadcast %588 : vector<1x8xf32> to vector<8x8xf32>
      %592 = arith.mulf %522, %591 : vector<8x8xf32>
      %cst_96 = arith.constant dense<0.000000e+00> : vector<8xf32>
      %593 = vector.multi_reduction <add>, %592, %cst_96 [1] : vector<8x8xf32> to vector<8xf32>
      %594 = vector.shape_cast %593 : vector<8xf32> to vector<8x1xf32>
      %595 = vector.broadcast %594 : vector<8x1xf32> to vector<8x8xf32>
      %596 = arith.addf %595, %517 : vector<8x8xf32>
      %597 = vector.broadcast %590 : vector<1x8xf32> to vector<8x8xf32>
      %598 = arith.addf %596, %597 : vector<8x8xf32>
      %cst_97 = arith.constant dense<0xFF800000> : vector<8xf32>
      %599 = vector.multi_reduction <maximumf>, %598, %cst_97 [0] : vector<8x8xf32> to vector<8xf32>
      %600 = vector.shape_cast %599 : vector<8xf32> to vector<1x8xf32>
      %601 = vector.broadcast %600 : vector<1x8xf32> to vector<8x8xf32>
      %602 = arith.cmpf oge, %598, %601 : vector<8x8xf32>
      %cst_98 = arith.constant 8.000000e+00 : f32
      %603 = vector.broadcast %cst_98 : f32 to vector<8x8xf32>
      %604 = arith.select %602, %523, %603 : vector<8x8xi1>, vector<8x8xf32>
      %cst_99 = arith.constant dense<0x7F800000> : vector<8xf32>
      %605 = vector.multi_reduction <minimumf>, %604, %cst_99 [0] : vector<8x8xf32> to vector<8xf32>
      %606 = vector.shape_cast %605 : vector<8xf32> to vector<1x8xf32>
      %607 = arith.fptosi %606 : vector<1x8xf32> to vector<1x8xi32>
      %c4_i32 = arith.constant 4 : i32
      %608 = arith.cmpi sgt, %525, %c4_i32 : i32
      %609 = arith.select %608, %600, %588 : vector<1x8xf32>
      %610 = arith.select %608, %607, %524 : vector<1x8xi32>
      %611 = vector.extract_strided_slice %516 {offsets = [10, 0], sizes = [1, 8], strides = [1, 1]} : vector<16x8xf32> to vector<1x8xf32>
      %612 = vector.broadcast %609 : vector<1x8xf32> to vector<8x8xf32>
      %613 = arith.mulf %522, %612 : vector<8x8xf32>
      %cst_100 = arith.constant dense<0.000000e+00> : vector<8xf32>
      %614 = vector.multi_reduction <add>, %613, %cst_100 [1] : vector<8x8xf32> to vector<8xf32>
      %615 = vector.shape_cast %614 : vector<8xf32> to vector<8x1xf32>
      %616 = vector.broadcast %615 : vector<8x1xf32> to vector<8x8xf32>
      %617 = arith.addf %616, %517 : vector<8x8xf32>
      %618 = vector.broadcast %611 : vector<1x8xf32> to vector<8x8xf32>
      %619 = arith.addf %617, %618 : vector<8x8xf32>
      %cst_101 = arith.constant dense<0xFF800000> : vector<8xf32>
      %620 = vector.multi_reduction <maximumf>, %619, %cst_101 [0] : vector<8x8xf32> to vector<8xf32>
      %621 = vector.shape_cast %620 : vector<8xf32> to vector<1x8xf32>
      %622 = vector.broadcast %621 : vector<1x8xf32> to vector<8x8xf32>
      %623 = arith.cmpf oge, %619, %622 : vector<8x8xf32>
      %cst_102 = arith.constant 8.000000e+00 : f32
      %624 = vector.broadcast %cst_102 : f32 to vector<8x8xf32>
      %625 = arith.select %623, %523, %624 : vector<8x8xi1>, vector<8x8xf32>
      %cst_103 = arith.constant dense<0x7F800000> : vector<8xf32>
      %626 = vector.multi_reduction <minimumf>, %625, %cst_103 [0] : vector<8x8xf32> to vector<8xf32>
      %627 = vector.shape_cast %626 : vector<8xf32> to vector<1x8xf32>
      %628 = arith.fptosi %627 : vector<1x8xf32> to vector<1x8xi32>
      %c5_i32 = arith.constant 5 : i32
      %629 = arith.cmpi sgt, %525, %c5_i32 : i32
      %630 = arith.select %629, %621, %609 : vector<1x8xf32>
      %631 = arith.select %629, %628, %524 : vector<1x8xi32>
      %632 = vector.extract_strided_slice %516 {offsets = [12, 0], sizes = [1, 8], strides = [1, 1]} : vector<16x8xf32> to vector<1x8xf32>
      %633 = vector.broadcast %630 : vector<1x8xf32> to vector<8x8xf32>
      %634 = arith.mulf %522, %633 : vector<8x8xf32>
      %cst_104 = arith.constant dense<0.000000e+00> : vector<8xf32>
      %635 = vector.multi_reduction <add>, %634, %cst_104 [1] : vector<8x8xf32> to vector<8xf32>
      %636 = vector.shape_cast %635 : vector<8xf32> to vector<8x1xf32>
      %637 = vector.broadcast %636 : vector<8x1xf32> to vector<8x8xf32>
      %638 = arith.addf %637, %517 : vector<8x8xf32>
      %639 = vector.broadcast %632 : vector<1x8xf32> to vector<8x8xf32>
      %640 = arith.addf %638, %639 : vector<8x8xf32>
      %cst_105 = arith.constant dense<0xFF800000> : vector<8xf32>
      %641 = vector.multi_reduction <maximumf>, %640, %cst_105 [0] : vector<8x8xf32> to vector<8xf32>
      %642 = vector.shape_cast %641 : vector<8xf32> to vector<1x8xf32>
      %643 = vector.broadcast %642 : vector<1x8xf32> to vector<8x8xf32>
      %644 = arith.cmpf oge, %640, %643 : vector<8x8xf32>
      %cst_106 = arith.constant 8.000000e+00 : f32
      %645 = vector.broadcast %cst_106 : f32 to vector<8x8xf32>
      %646 = arith.select %644, %523, %645 : vector<8x8xi1>, vector<8x8xf32>
      %cst_107 = arith.constant dense<0x7F800000> : vector<8xf32>
      %647 = vector.multi_reduction <minimumf>, %646, %cst_107 [0] : vector<8x8xf32> to vector<8xf32>
      %648 = vector.shape_cast %647 : vector<8xf32> to vector<1x8xf32>
      %649 = arith.fptosi %648 : vector<1x8xf32> to vector<1x8xi32>
      %c6_i32 = arith.constant 6 : i32
      %650 = arith.cmpi sgt, %525, %c6_i32 : i32
      %651 = arith.select %650, %642, %630 : vector<1x8xf32>
      %652 = arith.select %650, %649, %524 : vector<1x8xi32>
      %653 = vector.extract_strided_slice %516 {offsets = [14, 0], sizes = [1, 8], strides = [1, 1]} : vector<16x8xf32> to vector<1x8xf32>
      %654 = vector.broadcast %651 : vector<1x8xf32> to vector<8x8xf32>
      %655 = arith.mulf %522, %654 : vector<8x8xf32>
      %cst_108 = arith.constant dense<0.000000e+00> : vector<8xf32>
      %656 = vector.multi_reduction <add>, %655, %cst_108 [1] : vector<8x8xf32> to vector<8xf32>
      %657 = vector.shape_cast %656 : vector<8xf32> to vector<8x1xf32>
      %658 = vector.broadcast %657 : vector<8x1xf32> to vector<8x8xf32>
      %659 = arith.addf %658, %517 : vector<8x8xf32>
      %660 = vector.broadcast %653 : vector<1x8xf32> to vector<8x8xf32>
      %661 = arith.addf %659, %660 : vector<8x8xf32>
      %cst_109 = arith.constant dense<0xFF800000> : vector<8xf32>
      %662 = vector.multi_reduction <maximumf>, %661, %cst_109 [0] : vector<8x8xf32> to vector<8xf32>
      %663 = vector.shape_cast %662 : vector<8xf32> to vector<1x8xf32>
      %664 = vector.broadcast %663 : vector<1x8xf32> to vector<8x8xf32>
      %665 = arith.cmpf oge, %661, %664 : vector<8x8xf32>
      %cst_110 = arith.constant 8.000000e+00 : f32
      %666 = vector.broadcast %cst_110 : f32 to vector<8x8xf32>
      %667 = arith.select %665, %523, %666 : vector<8x8xi1>, vector<8x8xf32>
      %cst_111 = arith.constant dense<0x7F800000> : vector<8xf32>
      %668 = vector.multi_reduction <minimumf>, %667, %cst_111 [0] : vector<8x8xf32> to vector<8xf32>
      %669 = vector.shape_cast %668 : vector<8xf32> to vector<1x8xf32>
      %670 = arith.fptosi %669 : vector<1x8xf32> to vector<1x8xi32>
      %c7_i32 = arith.constant 7 : i32
      %671 = arith.cmpi sgt, %525, %c7_i32 : i32
      %672 = arith.select %671, %663, %651 : vector<1x8xf32>
      %673 = arith.select %671, %670, %524 : vector<1x8xi32>
      %674 = tpu.concatenate %524, %547, %568, %589, %610, %631, %652, %673 in 0 : vector<1x8xi32>, vector<1x8xi32>, vector<1x8xi32>, vector<1x8xi32>, vector<1x8xi32>, vector<1x8xi32>, vector<1x8xi32>, vector<1x8xi32> -> vector<8x8xi32>
      %675 = vector.shape_cast %674 : vector<8x8xi32> to vector<1x8x8xi32>
      %c1 = arith.constant 1 : index
      %676 = memref.load %arg1[%c1] : memref<2xi32, #tpu.memory_space<smem>>
      %677 = vector.extract_strided_slice %516 {offsets = [1, 0], sizes = [1, 8], strides = [1, 1]} : vector<16x8xf32> to vector<1x8xf32>
      %678 = vector.extract_strided_slice %516 {offsets = [3, 0], sizes = [1, 8], strides = [1, 1]} : vector<16x8xf32> to vector<1x8xf32>
      %679 = vector.broadcast %677 : vector<1x8xf32> to vector<8x8xf32>
      %680 = arith.mulf %522, %679 : vector<8x8xf32>
      %cst_112 = arith.constant dense<0.000000e+00> : vector<8xf32>
      %681 = vector.multi_reduction <add>, %680, %cst_112 [1] : vector<8x8xf32> to vector<8xf32>
      %682 = vector.shape_cast %681 : vector<8xf32> to vector<8x1xf32>
      %683 = vector.broadcast %682 : vector<8x1xf32> to vector<8x8xf32>
      %684 = arith.addf %683, %517 : vector<8x8xf32>
      %685 = vector.broadcast %678 : vector<1x8xf32> to vector<8x8xf32>
      %686 = arith.addf %684, %685 : vector<8x8xf32>
      %cst_113 = arith.constant dense<0xFF800000> : vector<8xf32>
      %687 = vector.multi_reduction <maximumf>, %686, %cst_113 [0] : vector<8x8xf32> to vector<8xf32>
      %688 = vector.shape_cast %687 : vector<8xf32> to vector<1x8xf32>
      %689 = vector.broadcast %688 : vector<1x8xf32> to vector<8x8xf32>
      %690 = arith.cmpf oge, %686, %689 : vector<8x8xf32>
      %cst_114 = arith.constant 8.000000e+00 : f32
      %691 = vector.broadcast %cst_114 : f32 to vector<8x8xf32>
      %692 = arith.select %690, %523, %691 : vector<8x8xi1>, vector<8x8xf32>
      %cst_115 = arith.constant dense<0x7F800000> : vector<8xf32>
      %693 = vector.multi_reduction <minimumf>, %692, %cst_115 [0] : vector<8x8xf32> to vector<8xf32>
      %694 = vector.shape_cast %693 : vector<8xf32> to vector<1x8xf32>
      %695 = arith.fptosi %694 : vector<1x8xf32> to vector<1x8xi32>
      %c1_i32_116 = arith.constant 1 : i32
      %696 = arith.cmpi sgt, %676, %c1_i32_116 : i32
      %697 = arith.select %696, %688, %677 : vector<1x8xf32>
      %698 = arith.select %696, %695, %524 : vector<1x8xi32>
      %699 = vector.extract_strided_slice %516 {offsets = [5, 0], sizes = [1, 8], strides = [1, 1]} : vector<16x8xf32> to vector<1x8xf32>
      %700 = vector.broadcast %697 : vector<1x8xf32> to vector<8x8xf32>
      %701 = arith.mulf %522, %700 : vector<8x8xf32>
      %cst_117 = arith.constant dense<0.000000e+00> : vector<8xf32>
      %702 = vector.multi_reduction <add>, %701, %cst_117 [1] : vector<8x8xf32> to vector<8xf32>
      %703 = vector.shape_cast %702 : vector<8xf32> to vector<8x1xf32>
      %704 = vector.broadcast %703 : vector<8x1xf32> to vector<8x8xf32>
      %705 = arith.addf %704, %517 : vector<8x8xf32>
      %706 = vector.broadcast %699 : vector<1x8xf32> to vector<8x8xf32>
      %707 = arith.addf %705, %706 : vector<8x8xf32>
      %cst_118 = arith.constant dense<0xFF800000> : vector<8xf32>
      %708 = vector.multi_reduction <maximumf>, %707, %cst_118 [0] : vector<8x8xf32> to vector<8xf32>
      %709 = vector.shape_cast %708 : vector<8xf32> to vector<1x8xf32>
      %710 = vector.broadcast %709 : vector<1x8xf32> to vector<8x8xf32>
      %711 = arith.cmpf oge, %707, %710 : vector<8x8xf32>
      %cst_119 = arith.constant 8.000000e+00 : f32
      %712 = vector.broadcast %cst_119 : f32 to vector<8x8xf32>
      %713 = arith.select %711, %523, %712 : vector<8x8xi1>, vector<8x8xf32>
      %cst_120 = arith.constant dense<0x7F800000> : vector<8xf32>
      %714 = vector.multi_reduction <minimumf>, %713, %cst_120 [0] : vector<8x8xf32> to vector<8xf32>
      %715 = vector.shape_cast %714 : vector<8xf32> to vector<1x8xf32>
      %716 = arith.fptosi %715 : vector<1x8xf32> to vector<1x8xi32>
      %c2_i32_121 = arith.constant 2 : i32
      %717 = arith.cmpi sgt, %676, %c2_i32_121 : i32
      %718 = arith.select %717, %709, %697 : vector<1x8xf32>
      %719 = arith.select %717, %716, %524 : vector<1x8xi32>
      %720 = vector.extract_strided_slice %516 {offsets = [7, 0], sizes = [1, 8], strides = [1, 1]} : vector<16x8xf32> to vector<1x8xf32>
      %721 = vector.broadcast %718 : vector<1x8xf32> to vector<8x8xf32>
      %722 = arith.mulf %522, %721 : vector<8x8xf32>
      %cst_122 = arith.constant dense<0.000000e+00> : vector<8xf32>
      %723 = vector.multi_reduction <add>, %722, %cst_122 [1] : vector<8x8xf32> to vector<8xf32>
      %724 = vector.shape_cast %723 : vector<8xf32> to vector<8x1xf32>
      %725 = vector.broadcast %724 : vector<8x1xf32> to vector<8x8xf32>
      %726 = arith.addf %725, %517 : vector<8x8xf32>
      %727 = vector.broadcast %720 : vector<1x8xf32> to vector<8x8xf32>
      %728 = arith.addf %726, %727 : vector<8x8xf32>
      %cst_123 = arith.constant dense<0xFF800000> : vector<8xf32>
      %729 = vector.multi_reduction <maximumf>, %728, %cst_123 [0] : vector<8x8xf32> to vector<8xf32>
      %730 = vector.shape_cast %729 : vector<8xf32> to vector<1x8xf32>
      %731 = vector.broadcast %730 : vector<1x8xf32> to vector<8x8xf32>
      %732 = arith.cmpf oge, %728, %731 : vector<8x8xf32>
      %cst_124 = arith.constant 8.000000e+00 : f32
      %733 = vector.broadcast %cst_124 : f32 to vector<8x8xf32>
      %734 = arith.select %732, %523, %733 : vector<8x8xi1>, vector<8x8xf32>
      %cst_125 = arith.constant dense<0x7F800000> : vector<8xf32>
      %735 = vector.multi_reduction <minimumf>, %734, %cst_125 [0] : vector<8x8xf32> to vector<8xf32>
      %736 = vector.shape_cast %735 : vector<8xf32> to vector<1x8xf32>
      %737 = arith.fptosi %736 : vector<1x8xf32> to vector<1x8xi32>
      %c3_i32_126 = arith.constant 3 : i32
      %738 = arith.cmpi sgt, %676, %c3_i32_126 : i32
      %739 = arith.select %738, %730, %718 : vector<1x8xf32>
      %740 = arith.select %738, %737, %524 : vector<1x8xi32>
      %741 = vector.extract_strided_slice %516 {offsets = [9, 0], sizes = [1, 8], strides = [1, 1]} : vector<16x8xf32> to vector<1x8xf32>
      %742 = vector.broadcast %739 : vector<1x8xf32> to vector<8x8xf32>
      %743 = arith.mulf %522, %742 : vector<8x8xf32>
      %cst_127 = arith.constant dense<0.000000e+00> : vector<8xf32>
      %744 = vector.multi_reduction <add>, %743, %cst_127 [1] : vector<8x8xf32> to vector<8xf32>
      %745 = vector.shape_cast %744 : vector<8xf32> to vector<8x1xf32>
      %746 = vector.broadcast %745 : vector<8x1xf32> to vector<8x8xf32>
      %747 = arith.addf %746, %517 : vector<8x8xf32>
      %748 = vector.broadcast %741 : vector<1x8xf32> to vector<8x8xf32>
      %749 = arith.addf %747, %748 : vector<8x8xf32>
      %cst_128 = arith.constant dense<0xFF800000> : vector<8xf32>
      %750 = vector.multi_reduction <maximumf>, %749, %cst_128 [0] : vector<8x8xf32> to vector<8xf32>
      %751 = vector.shape_cast %750 : vector<8xf32> to vector<1x8xf32>
      %752 = vector.broadcast %751 : vector<1x8xf32> to vector<8x8xf32>
      %753 = arith.cmpf oge, %749, %752 : vector<8x8xf32>
      %cst_129 = arith.constant 8.000000e+00 : f32
      %754 = vector.broadcast %cst_129 : f32 to vector<8x8xf32>
      %755 = arith.select %753, %523, %754 : vector<8x8xi1>, vector<8x8xf32>
      %cst_130 = arith.constant dense<0x7F800000> : vector<8xf32>
      %756 = vector.multi_reduction <minimumf>, %755, %cst_130 [0] : vector<8x8xf32> to vector<8xf32>
      %757 = vector.shape_cast %756 : vector<8xf32> to vector<1x8xf32>
      %758 = arith.fptosi %757 : vector<1x8xf32> to vector<1x8xi32>
      %c4_i32_131 = arith.constant 4 : i32
      %759 = arith.cmpi sgt, %676, %c4_i32_131 : i32
      %760 = arith.select %759, %751, %739 : vector<1x8xf32>
      %761 = arith.select %759, %758, %524 : vector<1x8xi32>
      %762 = vector.extract_strided_slice %516 {offsets = [11, 0], sizes = [1, 8], strides = [1, 1]} : vector<16x8xf32> to vector<1x8xf32>
      %763 = vector.broadcast %760 : vector<1x8xf32> to vector<8x8xf32>
      %764 = arith.mulf %522, %763 : vector<8x8xf32>
      %cst_132 = arith.constant dense<0.000000e+00> : vector<8xf32>
      %765 = vector.multi_reduction <add>, %764, %cst_132 [1] : vector<8x8xf32> to vector<8xf32>
      %766 = vector.shape_cast %765 : vector<8xf32> to vector<8x1xf32>
      %767 = vector.broadcast %766 : vector<8x1xf32> to vector<8x8xf32>
      %768 = arith.addf %767, %517 : vector<8x8xf32>
      %769 = vector.broadcast %762 : vector<1x8xf32> to vector<8x8xf32>
      %770 = arith.addf %768, %769 : vector<8x8xf32>
      %cst_133 = arith.constant dense<0xFF800000> : vector<8xf32>
      %771 = vector.multi_reduction <maximumf>, %770, %cst_133 [0] : vector<8x8xf32> to vector<8xf32>
      %772 = vector.shape_cast %771 : vector<8xf32> to vector<1x8xf32>
      %773 = vector.broadcast %772 : vector<1x8xf32> to vector<8x8xf32>
      %774 = arith.cmpf oge, %770, %773 : vector<8x8xf32>
      %cst_134 = arith.constant 8.000000e+00 : f32
      %775 = vector.broadcast %cst_134 : f32 to vector<8x8xf32>
      %776 = arith.select %774, %523, %775 : vector<8x8xi1>, vector<8x8xf32>
      %cst_135 = arith.constant dense<0x7F800000> : vector<8xf32>
      %777 = vector.multi_reduction <minimumf>, %776, %cst_135 [0] : vector<8x8xf32> to vector<8xf32>
      %778 = vector.shape_cast %777 : vector<8xf32> to vector<1x8xf32>
      %779 = arith.fptosi %778 : vector<1x8xf32> to vector<1x8xi32>
      %c5_i32_136 = arith.constant 5 : i32
      %780 = arith.cmpi sgt, %676, %c5_i32_136 : i32
      %781 = arith.select %780, %772, %760 : vector<1x8xf32>
      %782 = arith.select %780, %779, %524 : vector<1x8xi32>
      %783 = vector.extract_strided_slice %516 {offsets = [13, 0], sizes = [1, 8], strides = [1, 1]} : vector<16x8xf32> to vector<1x8xf32>
      %784 = vector.broadcast %781 : vector<1x8xf32> to vector<8x8xf32>
      %785 = arith.mulf %522, %784 : vector<8x8xf32>
      %cst_137 = arith.constant dense<0.000000e+00> : vector<8xf32>
      %786 = vector.multi_reduction <add>, %785, %cst_137 [1] : vector<8x8xf32> to vector<8xf32>
      %787 = vector.shape_cast %786 : vector<8xf32> to vector<8x1xf32>
      %788 = vector.broadcast %787 : vector<8x1xf32> to vector<8x8xf32>
      %789 = arith.addf %788, %517 : vector<8x8xf32>
      %790 = vector.broadcast %783 : vector<1x8xf32> to vector<8x8xf32>
      %791 = arith.addf %789, %790 : vector<8x8xf32>
      %cst_138 = arith.constant dense<0xFF800000> : vector<8xf32>
      %792 = vector.multi_reduction <maximumf>, %791, %cst_138 [0] : vector<8x8xf32> to vector<8xf32>
      %793 = vector.shape_cast %792 : vector<8xf32> to vector<1x8xf32>
      %794 = vector.broadcast %793 : vector<1x8xf32> to vector<8x8xf32>
      %795 = arith.cmpf oge, %791, %794 : vector<8x8xf32>
      %cst_139 = arith.constant 8.000000e+00 : f32
      %796 = vector.broadcast %cst_139 : f32 to vector<8x8xf32>
      %797 = arith.select %795, %523, %796 : vector<8x8xi1>, vector<8x8xf32>
      %cst_140 = arith.constant dense<0x7F800000> : vector<8xf32>
      %798 = vector.multi_reduction <minimumf>, %797, %cst_140 [0] : vector<8x8xf32> to vector<8xf32>
      %799 = vector.shape_cast %798 : vector<8xf32> to vector<1x8xf32>
      %800 = arith.fptosi %799 : vector<1x8xf32> to vector<1x8xi32>
      %c6_i32_141 = arith.constant 6 : i32
      %801 = arith.cmpi sgt, %676, %c6_i32_141 : i32
      %802 = arith.select %801, %793, %781 : vector<1x8xf32>
      %803 = arith.select %801, %800, %524 : vector<1x8xi32>
      %804 = vector.extract_strided_slice %516 {offsets = [15, 0], sizes = [1, 8], strides = [1, 1]} : vector<16x8xf32> to vector<1x8xf32>
      %805 = vector.broadcast %802 : vector<1x8xf32> to vector<8x8xf32>
      %806 = arith.mulf %522, %805 : vector<8x8xf32>
      %cst_142 = arith.constant dense<0.000000e+00> : vector<8xf32>
      %807 = vector.multi_reduction <add>, %806, %cst_142 [1] : vector<8x8xf32> to vector<8xf32>
      %808 = vector.shape_cast %807 : vector<8xf32> to vector<8x1xf32>
      %809 = vector.broadcast %808 : vector<8x1xf32> to vector<8x8xf32>
      %810 = arith.addf %809, %517 : vector<8x8xf32>
      %811 = vector.broadcast %804 : vector<1x8xf32> to vector<8x8xf32>
      %812 = arith.addf %810, %811 : vector<8x8xf32>
      %cst_143 = arith.constant dense<0xFF800000> : vector<8xf32>
      %813 = vector.multi_reduction <maximumf>, %812, %cst_143 [0] : vector<8x8xf32> to vector<8xf32>
      %814 = vector.shape_cast %813 : vector<8xf32> to vector<1x8xf32>
      %815 = vector.broadcast %814 : vector<1x8xf32> to vector<8x8xf32>
      %816 = arith.cmpf oge, %812, %815 : vector<8x8xf32>
      %cst_144 = arith.constant 8.000000e+00 : f32
      %817 = vector.broadcast %cst_144 : f32 to vector<8x8xf32>
      %818 = arith.select %816, %523, %817 : vector<8x8xi1>, vector<8x8xf32>
      %cst_145 = arith.constant dense<0x7F800000> : vector<8xf32>
      %819 = vector.multi_reduction <minimumf>, %818, %cst_145 [0] : vector<8x8xf32> to vector<8xf32>
      %820 = vector.shape_cast %819 : vector<8xf32> to vector<1x8xf32>
      %821 = arith.fptosi %820 : vector<1x8xf32> to vector<1x8xi32>
      %c7_i32_146 = arith.constant 7 : i32
      %822 = arith.cmpi sgt, %676, %c7_i32_146 : i32
      %823 = arith.select %822, %814, %802 : vector<1x8xf32>
      %824 = arith.select %822, %821, %524 : vector<1x8xi32>
      %825 = tpu.concatenate %524, %698, %719, %740, %761, %782, %803, %824 in 0 : vector<1x8xi32>, vector<1x8xi32>, vector<1x8xi32>, vector<1x8xi32>, vector<1x8xi32>, vector<1x8xi32>, vector<1x8xi32>, vector<1x8xi32> -> vector<8x8xi32>
      %826 = vector.shape_cast %825 : vector<8x8xi32> to vector<1x8x8xi32>
      %827 = tpu.concatenate %675, %826 in 0 : vector<1x8x8xi32>, vector<1x8x8xi32> -> vector<2x8x8xi32>
      %c0_147 = arith.constant 0 : index
      %c0_148 = arith.constant 0 : index
      %c0_149 = arith.constant 0 : index
      %828 = vector.load %arg9[%c0_147, %c0_148, %c0_149] : memref<2x8x8xi32, #tpu.memory_space<vmem>>, vector<2x8x8xi32>
      tpu.vector_store %arg9[%c0_147, %c0_148, %c0_149], %827 {strides = array<i32>} : memref<2x8x8xi32, #tpu.memory_space<vmem>>, vector<2x8x8xi32>,
      %829 = tpu.concatenate %672, %823 in 0 : vector<1x8xf32>, vector<1x8xf32> -> vector<2x8xf32>
      %c0_150 = arith.constant 0 : index
      %c0_151 = arith.constant 0 : index
      %830 = vector.load %arg10[%c0_150, %c0_151] : memref<2x8xf32, #tpu.memory_space<vmem>>, vector<2x8xf32>
      tpu.vector_store %arg10[%c0_150, %c0_151], %829 {strides = array<i32>} : memref<2x8xf32, #tpu.memory_space<vmem>>, vector<2x8xf32>,
    } else {
    }
    return
  }
  func.func @transform_0(%arg0: i32, %arg1: memref<2xi32, #tpu.memory_space<smem>>) -> (i32, i32) {
    %c0_i32 = arith.constant 0 : i32
    %c0_i32_0 = arith.constant 0 : i32
    %c0_i32_1 = arith.constant 0 : i32
    return %c0_i32, %c0_i32_0 : i32, i32
  }
  func.func @transform_1(%arg0: i32, %arg1: memref<2xi32, #tpu.memory_space<smem>>) -> (i32, i32, i32) {
    %c0_i32 = arith.constant 0 : i32
    %c0_i32_0 = arith.constant 0 : i32
    %c0_i32_1 = arith.constant 0 : i32
    return %arg0, %c0_i32, %c0_i32_0 : i32, i32, i32
  }
  func.func @transform_2(%arg0: i32, %arg1: memref<2xi32, #tpu.memory_space<smem>>) -> (i32, i32, i32) {
    %c0_i32 = arith.constant 0 : i32
    %c0_i32_0 = arith.constant 0 : i32
    %c0_i32_1 = arith.constant 0 : i32
    return %arg0, %c0_i32, %c0_i32_0 : i32, i32, i32
  }
  func.func @transform_3(%arg0: i32, %arg1: memref<2xi32, #tpu.memory_space<smem>>) -> (i32, i32, i32) {
    %c0_i32 = arith.constant 0 : i32
    %c0_i32_0 = arith.constant 0 : i32
    %c0_i32_1 = arith.constant 0 : i32
    return %arg0, %c0_i32, %c0_i32_0 : i32, i32, i32
  }
  func.func @transform_4(%arg0: i32, %arg1: memref<2xi32, #tpu.memory_space<smem>>) -> (i32, i32) {
    %c0_i32 = arith.constant 0 : i32
    %c0_i32_0 = arith.constant 0 : i32
    %c0_i32_1 = arith.constant 0 : i32
    return %c0_i32, %c0_i32_0 : i32, i32
  }
  func.func @transform_5(%arg0: i32, %arg1: memref<2xi32, #tpu.memory_space<smem>>) -> (i32, i32) {
    %c0_i32 = arith.constant 0 : i32
    %c0_i32_0 = arith.constant 0 : i32
    %c0_i32_1 = arith.constant 0 : i32
    return %c0_i32, %c0_i32_0 : i32, i32
  }
  func.func @transform_6(%arg0: i32, %arg1: memref<2xi32, #tpu.memory_space<smem>>) -> (i32, i32) {
    %c0_i32 = arith.constant 0 : i32
    %c0_i32_0 = arith.constant 0 : i32
    %c0_i32_1 = arith.constant 0 : i32
    return %c0_i32, %c0_i32_0 : i32, i32
  }
  func.func @transform_7(%arg0: i32, %arg1: memref<2xi32, #tpu.memory_space<smem>>) -> (i32, i32, i32) {
    %c0_i32 = arith.constant 0 : i32
    %c0_i32_0 = arith.constant 0 : i32
    %c0_i32_1 = arith.constant 0 : i32
    %c0_i32_2 = arith.constant 0 : i32
    return %c0_i32, %c0_i32_0, %c0_i32_1 : i32, i32, i32
  }
  func.func @transform_8(%arg0: i32, %arg1: memref<2xi32, #tpu.memory_space<smem>>) -> (i32, i32) {
    %c0_i32 = arith.constant 0 : i32
    %c0_i32_0 = arith.constant 0 : i32
    %c0_i32_1 = arith.constant 0 : i32
    return %c0_i32, %c0_i32_0 : i32, i32
  }
}

</mosaic_0001>

<llo_original>
// kernel: forward.2
$region0: #{forward.2}
  #allocation0 [shape = 'u32[]', space=smem, size = 0x4, offset = 0x4, fixed_abs, tag = 'smem constant byte address 0x4 - core index']
  #allocation1 [shape = 'u32[144,128]{1,0:T(1,128)}', space=vmem, size = 0x12000, scoped, tag = 'internal scratch']
  #allocation2 [shape = 'f32[20,128]{1,0:T(8,128)}', space=vmem, size = 0x3000, scoped, tag = 'scratch operand']
  %s0 = inlined_call_operand.vmem [shape: f32[20,128], index: 0, kind: input, shape index: {}]
  %s1 = inlined_call_operand.vmem [shape: f32[80,10], index: 1, kind: input, shape index: {}]
  %s2 = inlined_call_operand.vmem [shape: f32[1,128], index: 2, kind: input, shape index: {}]
  %s3 = inlined_call_operand.vmem [shape: f32[1,128], index: 3, kind: input, shape index: {}]
  %s4 = inlined_call_operand.vmem [shape: bf16[2,128,384], index: 4, kind: input, shape index: {}]
  %s5 = inlined_call_operand.vmem [shape: f32[2,1,384], index: 5, kind: input, shape index: {}]
  %s6 = inlined_call_operand.vmem [shape: bf16[2,128,128], index: 6, kind: input, shape index: {}]
  %s7 = inlined_call_operand.vmem [shape: f32[2,1,128], index: 7, kind: input, shape index: {}]
  %s8 = inlined_call_operand.vmem [shape: f32[2,1,128], index: 8, kind: input, shape index: {}]
  %s9 = inlined_call_operand.vmem [shape: f32[2,1,128], index: 9, kind: input, shape index: {}]
  %s10 = inlined_call_operand.hbm [shape: bf16[2,128,256], index: 10, kind: input, shape index: {}]
  %s11 = inlined_call_operand.vmem [shape: f32[2,1,256], index: 11, kind: input, shape index: {}]
  %s12 = inlined_call_operand.hbm [shape: bf16[2,256,128], index: 12, kind: input, shape index: {}]
  %s13 = inlined_call_operand.vmem [shape: f32[2,1,128], index: 13, kind: input, shape index: {}]
  %s14 = inlined_call_operand.vmem [shape: f32[2,1,128], index: 14, kind: input, shape index: {}]
  %s15 = inlined_call_operand.vmem [shape: f32[2,1,128], index: 15, kind: input, shape index: {}]
  %s16 = inlined_call_operand.vmem [shape: f32[20,128], index: 16, kind: output, shape index: {}]
  %s17 = sld [smem:[#allocation0]]
  $region113: #{forward.2} parent=0
    _
  %s19 = ssub.s32 1, %s17
  %s20 = scalar_select 0, %s19, %s17
  $region1: #{forward.2} parent=0
    #allocation3 [shape = 'u8[131072]{0}', space=vmem, size = 0x20000, scoped, tag = 'input window, operand 10']
    #allocation4 [shape = 's32[2]{0}', space=sflag, size = 0x8, scoped, tag = 'scoped memory for forward.2']
    #allocation5 [shape = 'u8[131072]{0}', space=vmem, size = 0x20000, scoped, tag = 'input window, operand 12']
    #allocation6 [shape = 's32[2]{0}', space=sflag, size = 0x8, scoped, tag = 'scoped memory for forward.2']
    %21 = vsyncpa [#allocation4], 0
    %s22 = scalar_lea.sflag [#allocation4], 1
    %23 = vsyncpa %s22, 0
    %24 = vsyncpa [#allocation6], 0
    %s25 = scalar_lea.sflag [#allocation6], 1
    %26 = vsyncpa %s25, 0
    loop: start=0, step=1, limit=4
    $region2: #{forward.2} parent=1 // loop_pre_header
      _
    $region3: #{forward.2} parent=1 // loop_header
      %s28 = sphi 0, %s32
      %p29 = scmp.ge.s32.totalorder %s28, 4
      %s36 = sphi 0, %s36
      %s38 = sphi 0, %s36
      %s39 = sphi 0, %s38
      %s53 = sphi 0, %s39
      %s57 = sphi 0, %s57
      %s59 = sphi 0, %s57
      %s60 = sphi 0, %s59
      %s74 = sphi 0, %s60
      %s78 = sphi 0, %s78
      %s80 = sphi 0, %s78
      %s81 = sphi 0, %s80
      %s95 = sphi 0, %s81
      %s99 = sphi 0, %s99
      %s101 = sphi 0, %s99
      %s102 = sphi 0, %s101
      %s116 = sphi 0, %s102
      %s122 = sphi 0, %s124
      %s125 = sphi 0, %s122
      %s126 = sphi 0, %s125
      %s142 = sphi 0, %s126
      %s148 = sphi 0, %s150
      %s151 = sphi 0, %s148
      %s152 = sphi 0, %s151
      %s168 = sphi 0, %s152
      %s174 = sphi 0, %s176
      %s177 = sphi 0, %s174
      %s178 = sphi 0, %s177
      %s194 = sphi 0, %s178
      %s200 = sphi 0, %s202
      %s203 = sphi 0, %s200
      %s204 = sphi 0, %s203
      %s220 = sphi 0, %s204
      %s226 = sphi 0, %s228
      %s229 = sphi 0, %s226
      %s230 = sphi 0, %s229
      %s246 = sphi 0, %s230
      %s252 = sphi 0, %s254
      %s255 = sphi 0, %s252
      %s256 = sphi 0, %s255
      %s272 = sphi 0, %s256
      %s278 = sphi 0, %s280
      %s281 = sphi 0, %s278
      %s282 = sphi 0, %s281
      %s298 = sphi 0, %s282
      %s304 = sphi 0, %s306
      %s307 = sphi 0, %s304
      %s308 = sphi 0, %s307
      %s324 = sphi 0, %s308
      %s330 = sphi 0, %s332
      %s333 = sphi 0, %s330
      %s334 = sphi 0, %s333
      %s350 = sphi 0, %s334
      %s356 = sphi 0, %s358
      %s359 = sphi 0, %s356
      %s360 = sphi 0, %s359
      %s376 = sphi 0, %s360
      %s382 = sphi 0, %s384
      %s385 = sphi 0, %s382
      %s386 = sphi 0, %s385
      %s402 = sphi 0, %s386
      %s408 = sphi 0, %s410
      %s411 = sphi 0, %s408
      %s412 = sphi 0, %s411
      %s428 = sphi 0, %s412
      %s432 = sphi 0, %s432
      %s434 = sphi 0, %s432
      %s435 = sphi 0, %s434
      %s449 = sphi 0, %s435
    $region4: #{forward.2} parent=1 // loop_header_branch
      %31 = sbr.rel (%p29) target = $region8
    $region5: #{forward.2} parent=1 // loop_body
      %s33 = ssub.s32 %s28, 1
      %s34 = ssub.s32 %s28, 2
      %s35 = sadd.s32 %s28, 1
      %s37 = sadd.s32 %s36, 1
      %p40 = scmp.eq.s32.totalorder %s28, 1
      %p41 = scmp.ne.s32.totalorder %s36, %s38
      %p42 = scmp.eq.s32.totalorder %s28, 0
      %p43 = por %p41, %p42
      %p44 = scmp.ne.s32.totalorder %s36, %s38
      %p45 = scmp.eq.s32.totalorder %s33, 1
      %p46 = por %p44, %p45
      %p47 = scmp.ne.s32.totalorder %s38, %s39
      %p48 = scmp.eq.s32.totalorder %s33, 0
      %p49 = por %p47, %p48
      %p50 = scmp.ne.s32.totalorder %s38, %s39
      %p51 = scmp.eq.s32.totalorder %s34, 1
      %p52 = por %p50, %p51
      %p54 = scmp.ne.s32.totalorder %s39, %s53
      %p55 = scmp.eq.s32.totalorder %s34, 0
      %p56 = por %p54, %p55
      %s58 = sadd.s32 %s57, 1
      %p61 = scmp.eq.s32.totalorder %s28, 1
      %p62 = scmp.ne.s32.totalorder %s57, %s59
      %p63 = scmp.eq.s32.totalorder %s28, 0
      %p64 = por %p62, %p63
      %p65 = scmp.ne.s32.totalorder %s57, %s59
      %p66 = scmp.eq.s32.totalorder %s33, 1
      %p67 = por %p65, %p66
      %p68 = scmp.ne.s32.totalorder %s59, %s60
      %p69 = scmp.eq.s32.totalorder %s33, 0
      %p70 = por %p68, %p69
      %p71 = scmp.ne.s32.totalorder %s59, %s60
      %p72 = scmp.eq.s32.totalorder %s34, 1
      %p73 = por %p71, %p72
      %p75 = scmp.ne.s32.totalorder %s60, %s74
      %p76 = scmp.eq.s32.totalorder %s34, 0
      %p77 = por %p75, %p76
      %s79 = sadd.s32 %s78, 1
      %p82 = scmp.eq.s32.totalorder %s28, 1
      %p83 = scmp.ne.s32.totalorder %s78, %s80
      %p84 = scmp.eq.s32.totalorder %s28, 0
      %p85 = por %p83, %p84
      %p86 = scmp.ne.s32.totalorder %s78, %s80
      %p87 = scmp.eq.s32.totalorder %s33, 1
      %p88 = por %p86, %p87
      %p89 = scmp.ne.s32.totalorder %s80, %s81
      %p90 = scmp.eq.s32.totalorder %s33, 0
      %p91 = por %p89, %p90
      %p92 = scmp.ne.s32.totalorder %s80, %s81
      %p93 = scmp.eq.s32.totalorder %s34, 1
      %p94 = por %p92, %p93
      %p96 = scmp.ne.s32.totalorder %s81, %s95
      %p97 = scmp.eq.s32.totalorder %s34, 0
      %p98 = por %p96, %p97
      %s100 = sadd.s32 %s99, 1
      %p103 = scmp.eq.s32.totalorder %s28, 1
      %p104 = scmp.ne.s32.totalorder %s99, %s101
      %p105 = scmp.eq.s32.totalorder %s28, 0
      %p106 = por %p104, %p105
      %p107 = scmp.ne.s32.totalorder %s99, %s101
      %p108 = scmp.eq.s32.totalorder %s33, 1
      %p109 = por %p107, %p108
      %p110 = scmp.ne.s32.totalorder %s101, %s102
      %p111 = scmp.eq.s32.totalorder %s33, 0
      %p112 = por %p110, %p111
      %p113 = scmp.ne.s32.totalorder %s101, %s102
      %p114 = scmp.eq.s32.totalorder %s34, 1
      %p115 = por %p113, %p114
      %p117 = scmp.ne.s32.totalorder %s102, %s116
      %p118 = scmp.eq.s32.totalorder %s34, 0
      %p119 = por %p117, %p118
      %s120 = ssub.s32 %s28, %s35
      %p121 = scmp.eq.s32.totalorder %s120, 0
      %s123 = sadd.s32 %s122, 1
      %s124 = scalar_select %p121, %s122, %s123
      %p127 = pneg %p121
      %p128 = scmp.eq.s32.totalorder %s28, 1
      %p129 = por %p127, %p128
      %p130 = scmp.ne.s32.totalorder %s122, %s125
      %p131 = scmp.eq.s32.totalorder %s28, 0
      %p132 = por %p130, %p131
      %p133 = scmp.ne.s32.totalorder %s122, %s125
      %p134 = scmp.eq.s32.totalorder %s33, 1
      %p135 = por %p133, %p134
      %p136 = scmp.ne.s32.totalorder %s125, %s126
      %p137 = scmp.eq.s32.totalorder %s33, 0
      %p138 = por %p136, %p137
      %p139 = scmp.ne.s32.totalorder %s125, %s126
      %p140 = scmp.eq.s32.totalorder %s34, 1
      %p141 = por %p139, %p140
      %p143 = scmp.ne.s32.totalorder %s126, %s142
      %p144 = scmp.eq.s32.totalorder %s34, 0
      %p145 = por %p143, %p144
      %s146 = ssub.s32 %s28, %s35
      %p147 = scmp.eq.s32.totalorder %s146, 0
      %s149 = sadd.s32 %s148, 1
      %s150 = scalar_select %p147, %s148, %s149
      %p153 = pneg %p147
      %p154 = scmp.eq.s32.totalorder %s28, 1
      %p155 = por %p153, %p154
      %p156 = scmp.ne.s32.totalorder %s148, %s151
      %p157 = scmp.eq.s32.totalorder %s28, 0
      %p158 = por %p156, %p157
      %p159 = scmp.ne.s32.totalorder %s148, %s151
      %p160 = scmp.eq.s32.totalorder %s33, 1
      %p161 = por %p159, %p160
      %p162 = scmp.ne.s32.totalorder %s151, %s152
      %p163 = scmp.eq.s32.totalorder %s33, 0
      %p164 = por %p162, %p163
      %p165 = scmp.ne.s32.totalorder %s151, %s152
      %p166 = scmp.eq.s32.totalorder %s34, 1
      %p167 = por %p165, %p166
      %p169 = scmp.ne.s32.totalorder %s152, %s168
      %p170 = scmp.eq.s32.totalorder %s34, 0
      %p171 = por %p169, %p170
      %s172 = ssub.s32 %s28, %s35
      %p173 = scmp.eq.s32.totalorder %s172, 0
      %s175 = sadd.s32 %s174, 1
      %s176 = scalar_select %p173, %s174, %s175
      %p179 = pneg %p173
      %p180 = scmp.eq.s32.totalorder %s28, 1
      %p181 = por %p179, %p180
      %p182 = scmp.ne.s32.totalorder %s174, %s177
      %p183 = scmp.eq.s32.totalorder %s28, 0
      %p184 = por %p182, %p183
      %p185 = scmp.ne.s32.totalorder %s174, %s177
      %p186 = scmp.eq.s32.totalorder %s33, 1
      %p187 = por %p185, %p186
      %p188 = scmp.ne.s32.totalorder %s177, %s178
      %p189 = scmp.eq.s32.totalorder %s33, 0
      %p190 = por %p188, %p189
      %p191 = scmp.ne.s32.totalorder %s177, %s178
      %p192 = scmp.eq.s32.totalorder %s34, 1
      %p193 = por %p191, %p192
      %p195 = scmp.ne.s32.totalorder %s178, %s194
      %p196 = scmp.eq.s32.totalorder %s34, 0
      %p197 = por %p195, %p196
      %s198 = ssub.s32 %s28, %s35
      %p199 = scmp.eq.s32.totalorder %s198, 0
      %s201 = sadd.s32 %s200, 1
      %s202 = scalar_select %p199, %s200, %s201
      %p205 = pneg %p199
      %p206 = scmp.eq.s32.totalorder %s28, 1
      %p207 = por %p205, %p206
      %p208 = scmp.ne.s32.totalorder %s200, %s203
      %p209 = scmp.eq.s32.totalorder %s28, 0
      %p210 = por %p208, %p209
      %p211 = scmp.ne.s32.totalorder %s200, %s203
      %p212 = scmp.eq.s32.totalorder %s33, 1
      %p213 = por %p211, %p212
      %p214 = scmp.ne.s32.totalorder %s203, %s204
      %p215 = scmp.eq.s32.totalorder %s33, 0
      %p216 = por %p214, %p215
      %p217 = scmp.ne.s32.totalorder %s203, %s204
      %p218 = scmp.eq.s32.totalorder %s34, 1
      %p219 = por %p217, %p218
      %p221 = scmp.ne.s32.totalorder %s204, %s220
      %p222 = scmp.eq.s32.totalorder %s34, 0
      %p223 = por %p221, %p222
      %s224 = ssub.s32 %s28, %s35
      %p225 = scmp.eq.s32.totalorder %s224, 0
      %s227 = sadd.s32 %s226, 1
      %s228 = scalar_select %p225, %s226, %s227
      %p231 = pneg %p225
      %p232 = scmp.eq.s32.totalorder %s28, 1
      %p233 = por %p231, %p232
      %p234 = scmp.ne.s32.totalorder %s226, %s229
      %p235 = scmp.eq.s32.totalorder %s28, 0
      %p236 = por %p234, %p235
      %p237 = scmp.ne.s32.totalorder %s226, %s229
      %p238 = scmp.eq.s32.totalorder %s33, 1
      %p239 = por %p237, %p238
      %p240 = scmp.ne.s32.totalorder %s229, %s230
      %p241 = scmp.eq.s32.totalorder %s33, 0
      %p242 = por %p240, %p241
      %p243 = scmp.ne.s32.totalorder %s229, %s230
      %p244 = scmp.eq.s32.totalorder %s34, 1
      %p245 = por %p243, %p244
      %p247 = scmp.ne.s32.totalorder %s230, %s246
      %p248 = scmp.eq.s32.totalorder %s34, 0
      %p249 = por %p247, %p248
      %s250 = ssub.s32 %s28, %s35
      %p251 = scmp.eq.s32.totalorder %s250, 0
      %s253 = sadd.s32 %s252, 1
      %s254 = scalar_select %p251, %s252, %s253
      %p257 = pneg %p251
      %p258 = scmp.eq.s32.totalorder %s28, 1
      %p259 = por %p257, %p258
      %p260 = scmp.ne.s32.totalorder %s252, %s255
      %p261 = scmp.eq.s32.totalorder %s28, 0
      %p262 = por %p260, %p261
      %p263 = scmp.ne.s32.totalorder %s252, %s255
      %p264 = scmp.eq.s32.totalorder %s33, 1
      %p265 = por %p263, %p264
      %p266 = scmp.ne.s32.totalorder %s255, %s256
      %p267 = scmp.eq.s32.totalorder %s33, 0
      %p268 = por %p266, %p267
      %p269 = scmp.ne.s32.totalorder %s255, %s256
      %p270 = scmp.eq.s32.totalorder %s34, 1
      %p271 = por %p269, %p270
      %p273 = scmp.ne.s32.totalorder %s256, %s272
      %p274 = scmp.eq.s32.totalorder %s34, 0
      %p275 = por %p273, %p274
      %s276 = ssub.s32 %s28, %s35
      %p277 = scmp.eq.s32.totalorder %s276, 0
      %s279 = sadd.s32 %s278, 1
      %s280 = scalar_select %p277, %s278, %s279
      %p283 = pneg %p277
      %p284 = scmp.eq.s32.totalorder %s28, 1
      %p285 = por %p283, %p284
      %p286 = scmp.ne.s32.totalorder %s278, %s281
      %p287 = scmp.eq.s32.totalorder %s28, 0
      %p288 = por %p286, %p287
      %p289 = scmp.ne.s32.totalorder %s278, %s281
      %p290 = scmp.eq.s32.totalorder %s33, 1
      %p291 = por %p289, %p290
      %p292 = scmp.ne.s32.totalorder %s281, %s282
      %p293 = scmp.eq.s32.totalorder %s33, 0
      %p294 = por %p292, %p293
      %p295 = scmp.ne.s32.totalorder %s281, %s282
      %p296 = scmp.eq.s32.totalorder %s34, 1
      %p297 = por %p295, %p296
      %p299 = scmp.ne.s32.totalorder %s282, %s298
      %p300 = scmp.eq.s32.totalorder %s34, 0
      %p301 = por %p299, %p300
      %s302 = ssub.s32 %s28, %s35
      %p303 = scmp.eq.s32.totalorder %s302, 0
      %s305 = sadd.s32 %s304, 1
      %s306 = scalar_select %p303, %s304, %s305
      %p309 = pneg %p303
      %p310 = scmp.eq.s32.totalorder %s28, 1
      %p311 = por %p309, %p310
      %p312 = scmp.ne.s32.totalorder %s304, %s307
      %p313 = scmp.eq.s32.totalorder %s28, 0
      %p314 = por %p312, %p313
      %p315 = scmp.ne.s32.totalorder %s304, %s307
      %p316 = scmp.eq.s32.totalorder %s33, 1
      %p317 = por %p315, %p316
      %p318 = scmp.ne.s32.totalorder %s307, %s308
      %p319 = scmp.eq.s32.totalorder %s33, 0
      %p320 = por %p318, %p319
      %p321 = scmp.ne.s32.totalorder %s307, %s308
      %p322 = scmp.eq.s32.totalorder %s34, 1
      %p323 = por %p321, %p322
      %p325 = scmp.ne.s32.totalorder %s308, %s324
      %p326 = scmp.eq.s32.totalorder %s34, 0
      %p327 = por %p325, %p326
      %s328 = ssub.s32 %s28, %s35
      %p329 = scmp.eq.s32.totalorder %s328, 0
      %s331 = sadd.s32 %s330, 1
      %s332 = scalar_select %p329, %s330, %s331
      %p335 = pneg %p329
      %p336 = scmp.eq.s32.totalorder %s28, 1
      %p337 = por %p335, %p336
      %p338 = scmp.ne.s32.totalorder %s330, %s333
      %p339 = scmp.eq.s32.totalorder %s28, 0
      %p340 = por %p338, %p339
      %p341 = scmp.ne.s32.totalorder %s330, %s333
      %p342 = scmp.eq.s32.totalorder %s33, 1
      %p343 = por %p341, %p342
      %p344 = scmp.ne.s32.totalorder %s333, %s334
      %p345 = scmp.eq.s32.totalorder %s33, 0
      %p346 = por %p344, %p345
      %p347 = scmp.ne.s32.totalorder %s333, %s334
      %p348 = scmp.eq.s32.totalorder %s34, 1
      %p349 = por %p347, %p348
      %p351 = scmp.ne.s32.totalorder %s334, %s350
      %p352 = scmp.eq.s32.totalorder %s34, 0
      %p353 = por %p351, %p352
      %s354 = ssub.s32 %s28, %s35
      %p355 = scmp.eq.s32.totalorder %s354, 0
      %s357 = sadd.s32 %s356, 1
      %s358 = scalar_select %p355, %s356, %s357
      %p361 = pneg %p355
      %p362 = scmp.eq.s32.totalorder %s28, 1
      %p363 = por %p361, %p362
      %p364 = scmp.ne.s32.totalorder %s356, %s359
      %p365 = scmp.eq.s32.totalorder %s28, 0
      %p366 = por %p364, %p365
      %p367 = scmp.ne.s32.totalorder %s356, %s359
      %p368 = scmp.eq.s32.totalorder %s33, 1
      %p369 = por %p367, %p368
      %p370 = scmp.ne.s32.totalorder %s359, %s360
      %p371 = scmp.eq.s32.totalorder %s33, 0
      %p372 = por %p370, %p371
      %p373 = scmp.ne.s32.totalorder %s359, %s360
      %p374 = scmp.eq.s32.totalorder %s34, 1
      %p375 = por %p373, %p374
      %p377 = scmp.ne.s32.totalorder %s360, %s376
      %p378 = scmp.eq.s32.totalorder %s34, 0
      %p379 = por %p377, %p378
      %s380 = ssub.s32 %s28, %s35
      %p381 = scmp.eq.s32.totalorder %s380, 0
      %s383 = sadd.s32 %s382, 1
      %s384 = scalar_select %p381, %s382, %s383
      %p387 = pneg %p381
      %p388 = scmp.eq.s32.totalorder %s28, 1
      %p389 = por %p387, %p388
      %p390 = scmp.ne.s32.totalorder %s382, %s385
      %p391 = scmp.eq.s32.totalorder %s28, 0
      %p392 = por %p390, %p391
      %p393 = scmp.ne.s32.totalorder %s382, %s385
      %p394 = scmp.eq.s32.totalorder %s33, 1
      %p395 = por %p393, %p394
      %p396 = scmp.ne.s32.totalorder %s385, %s386
      %p397 = scmp.eq.s32.totalorder %s33, 0
      %p398 = por %p396, %p397
      %p399 = scmp.ne.s32.totalorder %s385, %s386
      %p400 = scmp.eq.s32.totalorder %s34, 1
      %p401 = por %p399, %p400
      %p403 = scmp.ne.s32.totalorder %s386, %s402
      %p404 = scmp.eq.s32.totalorder %s34, 0
      %p405 = por %p403, %p404
      %s406 = ssub.s32 %s28, %s35
      %p407 = scmp.eq.s32.totalorder %s406, 0
      %s409 = sadd.s32 %s408, 1
      %s410 = scalar_select %p407, %s408, %s409
      %p413 = pneg %p407
      %p414 = scmp.eq.s32.totalorder %s28, 1
      %p415 = por %p413, %p414
      %p416 = scmp.ne.s32.totalorder %s408, %s411
      %p417 = scmp.eq.s32.totalorder %s28, 0
      %p418 = por %p416, %p417
      %p419 = scmp.ne.s32.totalorder %s408, %s411
      %p420 = scmp.eq.s32.totalorder %s33, 1
      %p421 = por %p419, %p420
      %p422 = scmp.ne.s32.totalorder %s411, %s412
      %p423 = scmp.eq.s32.totalorder %s33, 0
      %p424 = por %p422, %p423
      %p425 = scmp.ne.s32.totalorder %s411, %s412
      %p426 = scmp.eq.s32.totalorder %s34, 1
      %p427 = por %p425, %p426
      %p429 = scmp.ne.s32.totalorder %s412, %s428
      %p430 = scmp.eq.s32.totalorder %s34, 0
      %p431 = por %p429, %p430
      %s433 = sadd.s32 %s432, 1
      %p436 = scmp.eq.s32.totalorder %s28, 1
      %p437 = scmp.ne.s32.totalorder %s432, %s434
      %p438 = scmp.eq.s32.totalorder %s28, 0
      %p439 = por %p437, %p438
      %p440 = scmp.ne.s32.totalorder %s432, %s434
      %p441 = scmp.eq.s32.totalorder %s33, 1
      %p442 = por %p440, %p441
      %p443 = scmp.ne.s32.totalorder %s434, %s435
      %p444 = scmp.eq.s32.totalorder %s33, 0
      %p445 = por %p443, %p444
      %p446 = scmp.ne.s32.totalorder %s434, %s435
      %p447 = scmp.eq.s32.totalorder %s34, 1
      %p448 = por %p446, %p447
      %p450 = scmp.ne.s32.totalorder %s435, %s449
      %p451 = scmp.eq.s32.totalorder %s34, 0
      %p452 = por %p450, %p451
      %p453 = scmp.le.s32.totalorder 1, %s28
      %p454 = scmp.lt.s32.totalorder %s28, 3
      %p455 = pnand %p453, %p454
      %p456 = pneg %p455
      // Predicated region
      $region9: #{forward.2} parent=5 // pred_check
        _
      $region10: #{forward.2} parent=5 // pred_check_branch
        %458 = sbr.rel (%p455) target = $region12
      $region11: #{forward.2} parent=5 // pred_region
        %s459 = ssub.s32 %s28, 1
        // Predicated region
        $region13: #{forward.2} parent=11 // pred_check
          %p460 = pneg %p49
        $region14: #{forward.2} parent=11 // pred_check_branch
          %462 = sbr.rel (%p460) target = $region16
        $region15: #{forward.2} parent=11 // pred_region
          _
        $region16: #{forward.2} parent=11 // pred_fallthru
          _
        // Predicated region
        $region17: #{forward.2} parent=11 // pred_check
          %p463 = pneg %p70
        $region18: #{forward.2} parent=11 // pred_check_branch
          %465 = sbr.rel (%p463) target = $region20
        $region19: #{forward.2} parent=11 // pred_region
          _
        $region20: #{forward.2} parent=11 // pred_fallthru
          _
        // Predicated region
        $region21: #{forward.2} parent=11 // pred_check
          %p466 = pneg %p91
        $region22: #{forward.2} parent=11 // pred_check_branch
          %468 = sbr.rel (%p466) target = $region24
        $region23: #{forward.2} parent=11 // pred_region
          _
        $region24: #{forward.2} parent=11 // pred_fallthru
          _
        // Predicated region
        $region25: #{forward.2} parent=11 // pred_check
          %p469 = pneg %p112
        $region26: #{forward.2} parent=11 // pred_check_branch
          %471 = sbr.rel (%p469) target = $region28
        $region27: #{forward.2} parent=11 // pred_region
          _
        $region28: #{forward.2} parent=11 // pred_fallthru
          _
      $region12: #{forward.2} parent=5 // pred_fallthru
        _
      %p472 = scmp.lt.s32.totalorder %s28, 2
      // Predicated region
      $region29: #{forward.2} parent=5 // pred_check
        %p473 = pneg %p472
      $region30: #{forward.2} parent=5 // pred_check_branch
        %475 = sbr.rel (%p473) target = $region32
      $region31: #{forward.2} parent=5 // pred_region
        // Predicated region
        $region33: #{forward.2} parent=31 // pred_check
          %p476 = pneg %p132
        $region34: #{forward.2} parent=31 // pred_check_branch
          %478 = sbr.rel (%p476) target = $region36
        $region35: #{forward.2} parent=31 // pred_region
          %p479 = scmp.lt.s32.totalorder %s28, 1
          %s480 = scalar_select %p479, %s28, 1
          %s481 = smul.addr %s480, 48
          %s482 = smul.addr %s481, 4
          %s483 = scalar_lea.vmem %s4, %s482
        $region36: #{forward.2} parent=31 // pred_fallthru
          _
        // Predicated region
        $region37: #{forward.2} parent=31 // pred_check
          %p484 = pneg %p158
        $region38: #{forward.2} parent=31 // pred_check_branch
          %486 = sbr.rel (%p484) target = $region40
        $region39: #{forward.2} parent=31 // pred_region
          %p487 = scmp.lt.s32.totalorder %s28, 1
          %s488 = scalar_select %p487, %s28, 1
          %s489 = smul.addr %s488, 3
          %s490 = scalar_lea.vmem %s5, %s489
        $region40: #{forward.2} parent=31 // pred_fallthru
          _
        // Predicated region
        $region41: #{forward.2} parent=31 // pred_check
          %p491 = pneg %p184
        $region42: #{forward.2} parent=31 // pred_check_branch
          %493 = sbr.rel (%p491) target = $region44
        $region43: #{forward.2} parent=31 // pred_region
          %p494 = scmp.lt.s32.totalorder %s28, 1
          %s495 = scalar_select %p494, %s28, 1
          %s496 = smul.addr %s495, 16
          %s497 = smul.addr %s496, 4
          %s498 = scalar_lea.vmem %s6, %s497
        $region44: #{forward.2} parent=31 // pred_fallthru
          _
        // Predicated region
        $region45: #{forward.2} parent=31 // pred_check
          %p499 = pneg %p210
        $region46: #{forward.2} parent=31 // pred_check_branch
          %501 = sbr.rel (%p499) target = $region48
        $region47: #{forward.2} parent=31 // pred_region
          %p502 = scmp.lt.s32.totalorder %s28, 1
          %s503 = scalar_select %p502, %s28, 1
          %s504 = scalar_lea.vmem %s7, %s503
        $region48: #{forward.2} parent=31 // pred_fallthru
          _
        // Predicated region
        $region49: #{forward.2} parent=31 // pred_check
          %p505 = pneg %p236
        $region50: #{forward.2} parent=31 // pred_check_branch
          %507 = sbr.rel (%p505) target = $region52
        $region51: #{forward.2} parent=31 // pred_region
          %p508 = scmp.lt.s32.totalorder %s28, 1
          %s509 = scalar_select %p508, %s28, 1
          %s510 = scalar_lea.vmem %s8, %s509
        $region52: #{forward.2} parent=31 // pred_fallthru
          _
        // Predicated region
        $region53: #{forward.2} parent=31 // pred_check
          %p511 = pneg %p262
        $region54: #{forward.2} parent=31 // pred_check_branch
          %513 = sbr.rel (%p511) target = $region56
        $region55: #{forward.2} parent=31 // pred_region
          %p514 = scmp.lt.s32.totalorder %s28, 1
          %s515 = scalar_select %p514, %s28, 1
          %s516 = scalar_lea.vmem %s9, %s515
        $region56: #{forward.2} parent=31 // pred_fallthru
          _
        // Predicated region
        $region57: #{forward.2} parent=31 // pred_check
          %p517 = pneg %p288
        $region58: #{forward.2} parent=31 // pred_check_branch
          %519 = sbr.rel (%p517) target = $region60
        $region59: #{forward.2} parent=31 // pred_region
          %s520 = sand.u32 %s278, 1
          %s521 = scalar_lea.sflag [#allocation4], %s520
          %s522 = sand.u32 %s278, 1
          %s523 = smul.addr %s522, 128
          %s524 = scalar_lea.vmem [#allocation3], %s523
          %s526 = ssub.s32 2048, 2048
          %527 = vsyncadd %s521, %s526
          %s528 = smul.addr %s28, 32
          %s529 = smul.addr %s528, 64
          %s530 = scalar_lea.hbm %s10, %s529
          %s531 = sshll.u32 %s524, 4
          %s532 = int_to_ptr.vmem [resolvable:$true] %s531
          %537 = dma.hbm_to_vmem [thread:$0]  %s530, 2048, %s532, %s521, 128, 128, 8
        $region60: #{forward.2} parent=31 // pred_fallthru
          _
        // Predicated region
        $region61: #{forward.2} parent=31 // pred_check
          %p538 = pneg %p314
        $region62: #{forward.2} parent=31 // pred_check_branch
          %540 = sbr.rel (%p538) target = $region64
        $region63: #{forward.2} parent=31 // pred_region
          %p541 = scmp.lt.s32.totalorder %s28, 1
          %s542 = scalar_select %p541, %s28, 1
          %s543 = smul.addr %s542, 2
          %s544 = scalar_lea.vmem %s11, %s543
        $region64: #{forward.2} parent=31 // pred_fallthru
          _
        // Predicated region
        $region65: #{forward.2} parent=31 // pred_check
          %p545 = pneg %p340
        $region66: #{forward.2} parent=31 // pred_check_branch
          %547 = sbr.rel (%p545) target = $region68
        $region67: #{forward.2} parent=31 // pred_region
          %s548 = sand.u32 %s330, 1
          %s549 = scalar_lea.sflag [#allocation6], %s548
          %s550 = sand.u32 %s330, 1
          %s551 = smul.addr %s550, 128
          %s552 = scalar_lea.vmem [#allocation5], %s551
          %s554 = ssub.s32 2048, 2048
          %555 = vsyncadd %s549, %s554
          %s556 = smul.addr %s28, 32
          %s557 = smul.addr %s556, 64
          %s558 = scalar_lea.hbm %s12, %s557
          %s559 = sshll.u32 %s552, 4
          %s560 = int_to_ptr.vmem [resolvable:$true] %s559
          %565 = dma.hbm_to_vmem [thread:$0]  %s558, 2048, %s560, %s549, 64, 64, 4
        $region68: #{forward.2} parent=31 // pred_fallthru
          _
        // Predicated region
        $region69: #{forward.2} parent=31 // pred_check
          %p566 = pneg %p366
        $region70: #{forward.2} parent=31 // pred_check_branch
          %568 = sbr.rel (%p566) target = $region72
        $region71: #{forward.2} parent=31 // pred_region
          %p569 = scmp.lt.s32.totalorder %s28, 1
          %s570 = scalar_select %p569, %s28, 1
          %s571 = scalar_lea.vmem %s13, %s570
        $region72: #{forward.2} parent=31 // pred_fallthru
          _
        // Predicated region
        $region73: #{forward.2} parent=31 // pred_check
          %p572 = pneg %p392
        $region74: #{forward.2} parent=31 // pred_check_branch
          %574 = sbr.rel (%p572) target = $region76
        $region75: #{forward.2} parent=31 // pred_region
          %p575 = scmp.lt.s32.totalorder %s28, 1
          %s576 = scalar_select %p575, %s28, 1
          %s577 = scalar_lea.vmem %s14, %s576
        $region76: #{forward.2} parent=31 // pred_fallthru
          _
        // Predicated region
        $region77: #{forward.2} parent=31 // pred_check
          %p578 = pneg %p418
        $region78: #{forward.2} parent=31 // pred_check_branch
          %580 = sbr.rel (%p578) target = $region80
        $region79: #{forward.2} parent=31 // pred_region
          %p581 = scmp.lt.s32.totalorder %s28, 1
          %s582 = scalar_select %p581, %s28, 1
          %s583 = scalar_lea.vmem %s15, %s582
        $region80: #{forward.2} parent=31 // pred_fallthru
          _
      $region32: #{forward.2} parent=5 // pred_fallthru
        _
      %p584 = scmp.le.s32.totalorder 1, %s28
      %p585 = scmp.lt.s32.totalorder %s28, 3
      %p586 = pnand %p584, %p585
      %p587 = pneg %p586
      // Predicated region
      $region81: #{forward.2} parent=5 // pred_check
        _
      $region82: #{forward.2} parent=5 // pred_check_branch
        %589 = sbr.rel (%p586) target = $region84
      $region83: #{forward.2} parent=5 // pred_region
        %s590 = ssub.s32 %s28, 1
        %s591 = sand.u32 %s281, 1
        %s592 = scalar_lea.sflag [#allocation4], %s591
        %s593 = sand.u32 %s281, 1
        %s594 = smul.addr %s593, 128
        %s595 = scalar_lea.vmem [#allocation3], %s594
        // Predicated region
        $region85: #{forward.2} parent=83 // pred_check
          %p596 = pneg %p294
        $region86: #{forward.2} parent=83 // pred_check_branch
          %598 = sbr.rel (%p596) target = $region88
        $region87: #{forward.2} parent=83 // pred_region
          %599 = dma.done %s592, 2048
        $region88: #{forward.2} parent=83 // pred_fallthru
          _
        %s600 = sand.u32 %s333, 1
        %s601 = scalar_lea.sflag [#allocation6], %s600
        %s602 = sand.u32 %s333, 1
        %s603 = smul.addr %s602, 128
        %s604 = scalar_lea.vmem [#allocation5], %s603
        // Predicated region
        $region89: #{forward.2} parent=83 // pred_check
          %p605 = pneg %p346
        $region90: #{forward.2} parent=83 // pred_check_branch
          %607 = sbr.rel (%p605) target = $region92
        $region91: #{forward.2} parent=83 // pred_region
          %608 = dma.done %s601, 2048
        $region92: #{forward.2} parent=83 // pred_fallthru
          _
        %p609 = pneg %p49
        %p610 = pneg %p46
        %p611 = pneg %p70
        %p612 = pneg %p67
        %p613 = pneg %p91
        %p614 = pneg %p88
        %p615 = pneg %p112
        %p616 = pneg %p109
        %p617 = scmp.lt.s32.totalorder %s33, 1
        %s618 = scalar_select %p617, %s33, 1
        %s619 = smul.addr %s618, 48
        %s620 = smul.addr %s619, 4
        %s621 = scalar_lea.vmem %s4, %s620
        %p622 = pneg %p138
        %p623 = pneg %p135
        %p624 = scmp.lt.s32.totalorder %s33, 1
        %s625 = scalar_select %p624, %s33, 1
        %s626 = smul.addr %s625, 3
        %s627 = scalar_lea.vmem %s5, %s626
        %p628 = pneg %p164
        %p629 = pneg %p161
        %p630 = scmp.lt.s32.totalorder %s33, 1
        %s631 = scalar_select %p630, %s33, 1
        %s632 = smul.addr %s631, 16
        %s633 = smul.addr %s632, 4
        %s634 = scalar_lea.vmem %s6, %s633
        %p635 = pneg %p190
        %p636 = pneg %p187
        %p637 = scmp.lt.s32.totalorder %s33, 1
        %s638 = scalar_select %p637, %s33, 1
        %s639 = scalar_lea.vmem %s7, %s638
        %p640 = pneg %p216
        %p641 = pneg %p213
        %p642 = scmp.lt.s32.totalorder %s33, 1
        %s643 = scalar_select %p642, %s33, 1
        %s644 = scalar_lea.vmem %s8, %s643
        %p645 = pneg %p242
        %p646 = pneg %p239
        %p647 = scmp.lt.s32.totalorder %s33, 1
        %s648 = scalar_select %p647, %s33, 1
        %s649 = scalar_lea.vmem %s9, %s648
        %p650 = pneg %p268
        %p651 = pneg %p265
        %s652 = sand.u32 %s281, 1
        %s653 = scalar_lea.sflag [#allocation4], %s652
        %s654 = sand.u32 %s281, 1
        %s655 = smul.addr %s654, 128
        %s656 = scalar_lea.vmem [#allocation3], %s655
        %p657 = pneg %p294
        %p658 = pneg %p291
        %p659 = scmp.lt.s32.totalorder %s33, 1
        %s660 = scalar_select %p659, %s33, 1
        %s661 = smul.addr %s660, 2
        %s662 = scalar_lea.vmem %s11, %s661
        %p663 = pneg %p320
        %p664 = pneg %p317
        %s665 = sand.u32 %s333, 1
        %s666 = scalar_lea.sflag [#allocation6], %s665
        %s667 = sand.u32 %s333, 1
        %s668 = smul.addr %s667, 128
        %s669 = scalar_lea.vmem [#allocation5], %s668
        %p670 = pneg %p346
        %p671 = pneg %p343
        %p672 = scmp.lt.s32.totalorder %s33, 1
        %s673 = scalar_select %p672, %s33, 1
        %s674 = scalar_lea.vmem %s13, %s673
        %p675 = pneg %p372
        %p676 = pneg %p369
        %p677 = scmp.lt.s32.totalorder %s33, 1
        %s678 = scalar_select %p677, %s33, 1
        %s679 = scalar_lea.vmem %s14, %s678
        %p680 = pneg %p398
        %p681 = pneg %p395
        %p682 = scmp.lt.s32.totalorder %s33, 1
        %s683 = scalar_select %p682, %s33, 1
        %s684 = scalar_lea.vmem %s15, %s683
        %p685 = pneg %p424
        %p686 = pneg %p421
        %p687 = pneg %p445
        %p688 = pneg %p442
        %p689 = scmp.lt.s32.totalorder %s33, 1
        %s690 = scalar_select %p689, %s33, 1
        %s691 = smul.addr %s690, 48
        %s692 = smul.addr %s691, 4
        %s693 = scalar_lea.vmem %s4, %s692
        %p694 = scmp.lt.s32.totalorder %s33, 1
        %s695 = scalar_select %p694, %s33, 1
        %s696 = smul.addr %s695, 3
        %s697 = scalar_lea.vmem %s5, %s696
        %p698 = scmp.lt.s32.totalorder %s33, 1
        %s699 = scalar_select %p698, %s33, 1
        %s700 = smul.addr %s699, 16
        %s701 = smul.addr %s700, 4
        %s702 = scalar_lea.vmem %s6, %s701
        %p703 = scmp.lt.s32.totalorder %s33, 1
        %s704 = scalar_select %p703, %s33, 1
        %s705 = scalar_lea.vmem %s7, %s704
        %p706 = scmp.lt.s32.totalorder %s33, 1
        %s707 = scalar_select %p706, %s33, 1
        %s708 = scalar_lea.vmem %s8, %s707
        %p709 = scmp.lt.s32.totalorder %s33, 1
        %s710 = scalar_select %p709, %s33, 1
        %s711 = scalar_lea.vmem %s9, %s710
        %p712 = scmp.lt.s32.totalorder %s33, 1
        %s713 = scalar_select %p712, %s33, 1
        %s714 = smul.addr %s713, 2
        %s715 = scalar_lea.vmem %s11, %s714
        %p716 = scmp.lt.s32.totalorder %s33, 1
        %s717 = scalar_select %p716, %s33, 1
        %s718 = scalar_lea.vmem %s13, %s717
        %p719 = scmp.lt.s32.totalorder %s33, 1
        %s720 = scalar_select %p719, %s33, 1
        %s721 = scalar_lea.vmem %s14, %s720
        %p722 = scmp.lt.s32.totalorder %s33, 1
        %s723 = scalar_select %p722, %s33, 1
        %s724 = scalar_lea.vmem %s15, %s723
        %p726 = scmp.eq.s32.totalorder %s33, 0
        // Predicated region
        $region93: #{forward.2} parent=83 // pred_check
          %p727 = pneg %p726
        $region94: #{forward.2} parent=83 // pred_check_branch
          %729 = sbr.rel (%p727) target = $region96
        $region95: #{forward.2} parent=83 // pred_region
          %v730 = vld [vmem:[%s0] sm:$0xff]
          %v731 = vld [vmem:[%s0 + $0x8] sm:$0xff]
          %v732 = vld [vmem:[%s0 + $0x10] sm:$0xf]
          %v733 = vld [vmem:[%s2] sm:$0x1]
          %v734 = vld [vmem:[%s3] sm:$0x1]
          %735 = vadd.xlane.f32.xlu0 %v730
          %v736 = vpop.xlane.xlu0 %735
          %737 = vadd.xlane.f32.xlu0 %v731
          %v738 = vpop.xlane.xlu0 %737
          %vm739 = vcmask 1043456
          %v740 = vsel %vm739, %v732, 0.0
          %741 = vadd.xlane.f32.xlu0 %v740
          %v742 = vpop.xlane.xlu0 %741
          %v743 = vrcp.pop 128.0
          %v744 = vmul.f32 %v736, %v743
          %v745 = vmul.f32 %v738, %v743
          %v746 = vmul.f32 %v742, %v743
          %v747 = vsub.f32 %v730, %v744
          %v748 = vsub.f32 %v731, %v745
          %v749 = vsub.f32 %v732, %v746
          %v750 = vmul.f32 %v747, %v747
          %v751 = vmul.f32 %v748, %v748
          %v752 = vmul.f32 %v749, %v749
          %753 = vadd.xlane.f32.xlu0 %v750
          %v754 = vpop.xlane.xlu0 %753
          %755 = vadd.xlane.f32.xlu0 %v751
          %v756 = vpop.xlane.xlu0 %755
          %v757 = vsel %vm739, %v752, 0.0
          %758 = vadd.xlane.f32.xlu0 %v757
          %v759 = vpop.xlane.xlu0 %758
          %v760 = vmul.f32 %v754, %v743
          %v761 = vmul.f32 %v756, %v743
          %v762 = vmul.f32 %v759, %v743
          %v763 = vadd.f32 %v760, 1e-12
          %v764 = vadd.f32 %v761, 1e-12
          %v765 = vadd.f32 %v762, 1e-12
          %v766 = vrsqrt.pop %v763
          %v767 = vrsqrt.pop %v764
          %v768 = vrsqrt.pop %v765
          %v769 = vmul.f32 %v747, %v766
          %v770 = vmul.f32 %v748, %v767
          %v771 = vmul.f32 %v749, %v768
          %v773 = vlaneseq
          %v774 = vshrl.u32 %v773, 7
          %v775 = vsub.s32 0, %v774
          %v776 = vrot.slane %v733, %v775
          %v778 = vmul.f32 %v769, %v776
          %v779 = vmul.f32 %v770, %v776
          %v780 = vmul.f32 %v771, %v776
          %v782 = vlaneseq
          %v783 = vshrl.u32 %v782, 7
          %v784 = vsub.s32 0, %v783
          %v785 = vrot.slane %v734, %v784
          %v787 = vadd.f32 %v778, %v785
          %v788 = vadd.f32 %v779, %v785
          %v789 = vadd.f32 %v780, %v785
          %790 = vst [vmem:[#allocation2] sm:$0xff] %v787
          %791 = vst [vmem:[#allocation2 + $0x8] sm:$0xff] %v788
          %792 = vst [vmem:[#allocation2 + $0x10] sm:$0xf] %v789
        $region96: #{forward.2} parent=83 // pred_fallthru
          _
        %v793 = vld [vmem:[#allocation2] sm:$0xff]
        %v794 = vld [vmem:[#allocation2 + $0x8] sm:$0xff]
        %v795 = vld [vmem:[#allocation2 + $0x10] sm:$0xf]
        %v796 = vpack.c.bf16 %v794, %v793
        %v797 = vpack.c.bf16 %v795, %v795
        %v798 = vld [vmem:[%s693] sm:$0xff]
        %v799 = vld [vmem:[%s693 + $0x8] sm:$0xf]
        %v800 = vld [vmem:[%s693 + $0xc] sm:$0xff]
        %v801 = vld [vmem:[%s693 + $0x14] sm:$0xf]
        %v802 = vld [vmem:[%s693 + $0x18] sm:$0xff]
        %v803 = vld [vmem:[%s693 + $0x20] sm:$0xf]
        %v804 = vld [vmem:[%s693 + $0x24] sm:$0xff]
        %v805 = vld [vmem:[%s693 + $0x2c] sm:$0xf]
        %v806 = vld [vmem:[%s693 + $0x30] sm:$0xff]
        %v807 = vld [vmem:[%s693 + $0x38] sm:$0xf]
        %v808 = vld [vmem:[%s693 + $0x3c] sm:$0xff]
        %v809 = vld [vmem:[%s693 + $0x44] sm:$0xf]
        %v810 = vld [vmem:[%s693 + $0x48] sm:$0xff]
        %v811 = vld [vmem:[%s693 + $0x50] sm:$0xf]
        %v812 = vld [vmem:[%s693 + $0x54] sm:$0xff]
        %v813 = vld [vmem:[%s693 + $0x5c] sm:$0xf]
        %v814 = vld [vmem:[%s693 + $0x60] sm:$0xff]
        %v815 = vld [vmem:[%s693 + $0x68] sm:$0xf]
        %v816 = vld [vmem:[%s693 + $0x6c] sm:$0xff]
        %v817 = vld [vmem:[%s693 + $0x74] sm:$0xf]
        %v818 = vld [vmem:[%s693 + $0x78] sm:$0xff]
        %v819 = vld [vmem:[%s693 + $0x80] sm:$0xf]
        %v820 = vld [vmem:[%s693 + $0x84] sm:$0xff]
        %v821 = vld [vmem:[%s693 + $0x8c] sm:$0xf]
        %v822 = vld [vmem:[%s693 + $0x90] sm:$0xff]
        %v823 = vld [vmem:[%s693 + $0x98] sm:$0xf]
        %v824 = vld [vmem:[%s693 + $0x9c] sm:$0xff]
        %v825 = vld [vmem:[%s693 + $0xa4] sm:$0xf]
        %v826 = vld [vmem:[%s693 + $0xa8] sm:$0xff]
        %v827 = vld [vmem:[%s693 + $0xb0] sm:$0xf]
        %v828 = vld [vmem:[%s693 + $0xb4] sm:$0xff]
        %v829 = vld [vmem:[%s693 + $0xbc] sm:$0xf]
        %v830 = vld [vmem:[%s697] sm:$0x7]
        %v832 = vlaneseq
        %v833 = vshrl.u32 %v832, 7
        %v834 = vsub.s32 0, %v833
        %v835 = vrot.slane %v830, %v834
        %v836 = vlaneseq
        %v837 = vshrl.u32 %v836, 7
        %v838 = vsub.s32 1, %v837
        %v839 = vrot.slane %v830, %v838
        %v840 = vlaneseq
        %v841 = vshrl.u32 %v840, 7
        %v842 = vsub.s32 2, %v841
        %v843 = vrot.slane %v830, %v842
        %v879 = vunpack.c.l.b16 %v798
        %v880 = vunpack.c.h.b16 %v798
        %v881 = vunpack.c.l.b16 %v799
        %v882 = vunpack.c.l.b16 %v800
        %v883 = vunpack.c.h.b16 %v800
        %v884 = vunpack.c.l.b16 %v801
        %v885 = vunpack.c.l.b16 %v802
        %v886 = vunpack.c.h.b16 %v802
        %v887 = vunpack.c.l.b16 %v803
        %v888 = vunpack.c.l.b16 %v804
        %v889 = vunpack.c.h.b16 %v804
        %v890 = vunpack.c.l.b16 %v805
        %v891 = vunpack.c.l.b16 %v806
        %v892 = vunpack.c.h.b16 %v806
        %v893 = vunpack.c.l.b16 %v807
        %v894 = vunpack.c.l.b16 %v808
        %v895 = vunpack.c.h.b16 %v808
        %v896 = vunpack.c.l.b16 %v809
        %v897 = vunpack.c.l.b16 %v810
        %v898 = vunpack.c.h.b16 %v810
        %v899 = vunpack.c.l.b16 %v811
        %v900 = vunpack.c.l.b16 %v812
        %v901 = vunpack.c.h.b16 %v812
        %v902 = vunpack.c.l.b16 %v813
        %v903 = vunpack.c.l.b16 %v814
        %v904 = vunpack.c.h.b16 %v814
        %v905 = vunpack.c.l.b16 %v815
        %v906 = vunpack.c.l.b16 %v816
        %v907 = vunpack.c.h.b16 %v816
        %v908 = vunpack.c.l.b16 %v817
        %v909 = vunpack.c.l.b16 %v818
        %v910 = vunpack.c.h.b16 %v818
        %v911 = vunpack.c.l.b16 %v819
        %v912 = vunpack.c.l.b16 %v820
        %v913 = vunpack.c.h.b16 %v820
        %v914 = vunpack.c.l.b16 %v821
        %v915 = vunpack.c.l.b16 %v822
        %v916 = vunpack.c.h.b16 %v822
        %v917 = vunpack.c.l.b16 %v823
        %v918 = vunpack.c.l.b16 %v824
        %v919 = vunpack.c.h.b16 %v824
        %v920 = vunpack.c.l.b16 %v825
        %v921 = vunpack.c.l.b16 %v826
        %v922 = vunpack.c.h.b16 %v826
        %v923 = vunpack.c.l.b16 %v827
        %v924 = vunpack.c.l.b16 %v828
        %v925 = vunpack.c.h.b16 %v828
        %v926 = vunpack.c.l.b16 %v829
        %v927 = vpack.c.b16 %v882, %v879
        %v928 = vpack.c.b16 %v883, %v880
        %v929 = vpack.c.b16 %v884, %v881
        %v930 = vpack.c.b16 %v888, %v885
        %v931 = vpack.c.b16 %v889, %v886
        %v932 = vpack.c.b16 %v890, %v887
        %v933 = vpack.c.b16 %v894, %v891
        %v934 = vpack.c.b16 %v895, %v892
        %v935 = vpack.c.b16 %v896, %v893
        %v936 = vpack.c.b16 %v900, %v897
        %v937 = vpack.c.b16 %v901, %v898
        %v938 = vpack.c.b16 %v902, %v899
        %v939 = vpack.c.b16 %v906, %v903
        %v940 = vpack.c.b16 %v907, %v904
        %v941 = vpack.c.b16 %v908, %v905
        %v942 = vpack.c.b16 %v912, %v909
        %v943 = vpack.c.b16 %v913, %v910
        %v944 = vpack.c.b16 %v914, %v911
        %v945 = vpack.c.b16 %v918, %v915
        %v946 = vpack.c.b16 %v919, %v916
        %v947 = vpack.c.b16 %v920, %v917
        %v948 = vpack.c.b16 %v924, %v921
        %v949 = vpack.c.b16 %v925, %v922
        %v950 = vpack.c.b16 %v926, %v923
        %975 = vmatprep.subr.bf16.mxu0 %v928
        %976 = vmatpush1.bf16.msra.mxu0 %v927
        %977 = vmatprep.subr.bf16.mxu0 %v931
        %978 = vmatpush1.bf16.msra.mxu0 %v930
        %979 = vmatprep.subr.bf16.mxu0 %v934
        %980 = vmatpush1.bf16.msra.mxu0 %v933
        %981 = vmatprep.subr.bf16.mxu0 %v937
        %982 = vmatpush1.bf16.msra.mxu0 %v936
        %983 = vmatprep.subr.bf16.mxu0 %v940
        %984 = vmatpush1.bf16.msra.mxu0 %v939
        %985 = vmatprep.subr.bf16.mxu0 %v943
        %986 = vmatpush1.bf16.msra.mxu0 %v942
        %987 = vmatprep.subr.bf16.mxu0 %v946
        %988 = vmatpush1.bf16.msra.mxu0 %v945
        %989 = vmatprep.subr.bf16.mxu0 %v949
        %990 = vmatpush1.bf16.msra.mxu0 %v948
        %991 = vmatprep.subr.bf16.mxu0 0
        %992 = vmatpush1.bf16.msra.mxu0 0
        %993 = vmatprep.subr.bf16.mxu0 0
        %994 = vmatpush1.bf16.msra.mxu0 0
        %995 = vmatprep.subr.bf16.mxu0 0
        %996 = vmatpush1.bf16.msra.mxu0 0
        %997 = vmatprep.subr.bf16.mxu0 0
        %998 = vmatpush1.bf16.msra.mxu0 0
        %999 = vmatprep.subr.bf16.mxu0 0
        %1000 = vmatpush1.bf16.msra.mxu0 0
        %1001 = vmatprep.subr.bf16.mxu0 0
        %1002 = vmatpush1.bf16.msra.mxu0 0
        %1003 = vmatprep.subr.bf16.mxu0 0
        %1004 = vmatpush1.bf16.msra.mxu0 0
        %1005 = vmatprep.subr.bf16.mxu0 0
        %1006 = vmatpush1.bf16.msra.mxu0 0
        %1007 = vmatprep.mubr.bf16.mxu0 0
        %1008 = vmatmul.mubr.bf16.gmra.mrb[0].mxu0 %v796
        %v1009 = vpop.f32.mrb[0].mxu0
        %v1010 = vadd.f32 %v835, %v1009
        %v1011 = vpop.f32.mrb[0].mxu0
        %v1012 = vadd.f32 %v839, %v1011
        %v1013 = vpop.f32.mrb[0].mxu0
        %v1014 = vadd.f32 %v835, %v1013
        %v1015 = vpop.f32.mrb[0].mxu0
        %v1016 = vadd.f32 %v839, %v1015
        %1017 = vmatprep.mubr.bf16.mxu0 0
        %1018 = vmatmul.mubr.bf16.gmra.mrb[0].mxu0 %v797
        %v1019 = vpop.f32.mrb[0].mxu0
        %v1020 = vadd.f32 %v835, %v1019
        %v1021 = vpop.f32.mrb[0].mxu0
        %v1022 = vadd.f32 %v839, %v1021
        %v1023 = vpop.f32.mrb[0].mxu0
        %v1024 = vpop.f32.mrb[0].mxu0
        %1025 = vdwg.mxu0
        %1026 = vmatprep.subr.bf16.mxu0 0
        %1027 = vmatpush1.bf16.msra.mxu0 %v929
        %1028 = vmatprep.subr.bf16.mxu0 0
        %1029 = vmatpush1.bf16.msra.mxu0 %v932
        %1030 = vmatprep.subr.bf16.mxu0 0
        %1031 = vmatpush1.bf16.msra.mxu0 %v935
        %1032 = vmatprep.subr.bf16.mxu0 0
        %1033 = vmatpush1.bf16.msra.mxu0 %v938
        %1034 = vmatprep.subr.bf16.mxu0 0
        %1035 = vmatpush1.bf16.msra.mxu0 %v941
        %1036 = vmatprep.subr.bf16.mxu0 0
        %1037 = vmatpush1.bf16.msra.mxu0 %v944
        %1038 = vmatprep.subr.bf16.mxu0 0
        %1039 = vmatpush1.bf16.msra.mxu0 %v947
        %1040 = vmatprep.subr.bf16.mxu0 0
        %1041 = vmatpush1.bf16.msra.mxu0 %v950
        %1042 = vmatprep.subr.bf16.mxu0 0
        %1043 = vmatpush1.bf16.msra.mxu0 0
        %1044 = vmatprep.subr.bf16.mxu0 0
        %1045 = vmatpush1.bf16.msra.mxu0 0
        %1046 = vmatprep.subr.bf16.mxu0 0
        %1047 = vmatpush1.bf16.msra.mxu0 0
        %1048 = vmatprep.subr.bf16.mxu0 0
        %1049 = vmatpush1.bf16.msra.mxu0 0
        %1050 = vmatprep.subr.bf16.mxu0 0
        %1051 = vmatpush1.bf16.msra.mxu0 0
        %1052 = vmatprep.subr.bf16.mxu0 0
        %1053 = vmatpush1.bf16.msra.mxu0 0
        %1054 = vmatprep.subr.bf16.mxu0 0
        %1055 = vmatpush1.bf16.msra.mxu0 0
        %1056 = vmatprep.subr.bf16.mxu0 0
        %1057 = vmatpush1.bf16.msra.mxu0 0
        %1058 = vmatprep.mubr.bf16.mxu0 0
        %1059 = vmatmul.mubr.bf16.gmra.mrb[0].mxu0 %v796
        %v1060 = vpop.f32.mrb[0].mxu0
        %v1061 = vadd.f32 %v843, %v1060
        %v1062 = vpop.f32.mrb[0].mxu0
        %v1063 = vpop.f32.mrb[0].mxu0
        %v1064 = vadd.f32 %v843, %v1063
        %v1065 = vpop.f32.mrb[0].mxu0
        %1066 = vmatprep.mubr.bf16.mxu0 0
        %1067 = vmatmul.mubr.bf16.gmra.mrb[0].mxu0 %v797
        %v1068 = vpop.f32.mrb[0].mxu0
        %v1069 = vadd.f32 %v843, %v1068
        %v1070 = vpop.f32.mrb[0].mxu0
        %v1071 = vpop.f32.mrb[0].mxu0
        %v1072 = vpop.f32.mrb[0].mxu0
        %1073 = vdwg.mxu0
        %v1074 = vld [vmem:[%s702] sm:$0xf]
        %v1075 = vld [vmem:[%s702 + $0x4] sm:$0xf]
        %v1076 = vld [vmem:[%s702 + $0x8] sm:$0xf]
        %v1077 = vld [vmem:[%s702 + $0xc] sm:$0xf]
        %v1078 = vld [vmem:[%s702 + $0x10] sm:$0xf]
        %v1079 = vld [vmem:[%s702 + $0x14] sm:$0xf]
        %v1080 = vld [vmem:[%s702 + $0x18] sm:$0xf]
        %v1081 = vld [vmem:[%s702 + $0x1c] sm:$0xf]
        %v1082 = vld [vmem:[%s702 + $0x20] sm:$0xf]
        %v1083 = vld [vmem:[%s702 + $0x24] sm:$0xf]
        %v1084 = vld [vmem:[%s702 + $0x28] sm:$0xf]
        %v1085 = vld [vmem:[%s702 + $0x2c] sm:$0xf]
        %v1086 = vld [vmem:[%s702 + $0x30] sm:$0xf]
        %v1087 = vld [vmem:[%s702 + $0x34] sm:$0xf]
        %v1088 = vld [vmem:[%s702 + $0x38] sm:$0xf]
        %v1089 = vld [vmem:[%s702 + $0x3c] sm:$0xf]
        %v1090 = vpack.c.bf16 %v1014, %v1010
        %v1091 = vpack.c.bf16 %v1016, %v1012
        %vm1092 = vcmask 261120
        %v1094 = vsel %vm1092, %v1090, 0
        %v1097 = vsel %vm1092, %v1091, 0
        %1099 = vmatprep.subr.bf16.mxu0 0
        %1100 = vmatpush1.bf16.xpose.msra.mxu0 %v1097
        %1101 = vmatprep.subr.bf16.mxu0 0
        %1102 = vmatpush1.bf16.xpose.msra.mxu0 0
        %1103 = vmatprep.subr.bf16.mxu0 0
        %1104 = vmatpush1.bf16.xpose.msra.mxu0 0
        %1105 = vmatprep.subr.bf16.mxu0 0
        %1106 = vmatpush1.bf16.xpose.msra.mxu0 0
        %1107 = vmatprep.subr.bf16.mxu0 0
        %1108 = vmatpush1.bf16.xpose.msra.mxu0 0
        %1109 = vmatprep.subr.bf16.mxu0 0
        %1110 = vmatpush1.bf16.xpose.msra.mxu0 0
        %1111 = vmatprep.subr.bf16.mxu0 0
        %1112 = vmatpush1.bf16.xpose.msra.mxu0 0
        %1113 = vmatprep.subr.bf16.mxu0 0
        %1114 = vmatpush1.bf16.xpose.msra.mxu0 0
        %1115 = vmatprep.subr.bf16.mxu0 0
        %1116 = vmatpush1.bf16.xpose.msra.mxu0 0
        %1117 = vmatprep.subr.bf16.mxu0 0
        %1118 = vmatpush1.bf16.xpose.msra.mxu0 0
        %1119 = vmatprep.subr.bf16.mxu0 0
        %1120 = vmatpush1.bf16.xpose.msra.mxu0 0
        %1121 = vmatprep.subr.bf16.mxu0 0
        %1122 = vmatpush1.bf16.xpose.msra.mxu0 0
        %1123 = vmatprep.subr.bf16.mxu0 0
        %1124 = vmatpush1.bf16.xpose.msra.mxu0 0
        %1125 = vmatprep.subr.bf16.mxu0 0
        %1126 = vmatpush1.bf16.xpose.msra.mxu0 0
        %1127 = vmatprep.subr.bf16.mxu0 0
        %1128 = vmatpush1.bf16.xpose.msra.mxu0 0
        %1129 = vmatprep.subr.bf16.mxu0 0
        %1130 = vmatpush1.bf16.xpose.msra.mxu0 0
        %1131 = vmatprep.mubr.bf16.mxu0 0
        %1132 = vmatmul.mubr.bf16.gmra.mrb[0].mxu0 %v1094
        %v1133 = vpop.f32.mrb[0].mxu0
        %v1134 = vadd.f32 0.0, %v1133
        %v1135 = vpop.f32.mrb[0].mxu0
        %v1136 = vpop.f32.mrb[0].mxu0
        %v1137 = vadd.f32 0.0, %v1136
        %v1138 = vpop.f32.mrb[0].mxu0
        %1139 = vdwg.mxu0
        %1141 = vrot.lane.b32.xlu0 %v1090, 96
        %v1142 = vpop.permute.xlu0 %1141
        %1144 = vrot.lane.b32.xlu0 %v1091, 96
        %v1145 = vpop.permute.xlu0 %1144
        %v1147 = vsel %vm1092, %v1142, 0
        %v1150 = vsel %vm1092, %v1145, 0
        %1152 = vmatprep.subr.bf16.mxu0 0
        %1153 = vmatpush1.bf16.xpose.msra.mxu0 %v1150
        %1154 = vmatprep.subr.bf16.mxu0 0
        %1155 = vmatpush1.bf16.xpose.msra.mxu0 0
        %1156 = vmatprep.subr.bf16.mxu0 0
        %1157 = vmatpush1.bf16.xpose.msra.mxu0 0
        %1158 = vmatprep.subr.bf16.mxu0 0
        %1159 = vmatpush1.bf16.xpose.msra.mxu0 0
        %1160 = vmatprep.subr.bf16.mxu0 0
        %1161 = vmatpush1.bf16.xpose.msra.mxu0 0
        %1162 = vmatprep.subr.bf16.mxu0 0
        %1163 = vmatpush1.bf16.xpose.msra.mxu0 0
        %1164 = vmatprep.subr.bf16.mxu0 0
        %1165 = vmatpush1.bf16.xpose.msra.mxu0 0
        %1166 = vmatprep.subr.bf16.mxu0 0
        %1167 = vmatpush1.bf16.xpose.msra.mxu0 0
        %1168 = vmatprep.subr.bf16.mxu0 0
        %1169 = vmatpush1.bf16.xpose.msra.mxu0 0
        %1170 = vmatprep.subr.bf16.mxu0 0
        %1171 = vmatpush1.bf16.xpose.msra.mxu0 0
        %1172 = vmatprep.subr.bf16.mxu0 0
        %1173 = vmatpush1.bf16.xpose.msra.mxu0 0
        %1174 = vmatprep.subr.bf16.mxu0 0
        %1175 = vmatpush1.bf16.xpose.msra.mxu0 0
        %1176 = vmatprep.subr.bf16.mxu0 0
        %1177 = vmatpush1.bf16.xpose.msra.mxu0 0
        %1178 = vmatprep.subr.bf16.mxu0 0
        %1179 = vmatpush1.bf16.xpose.msra.mxu0 0
        %1180 = vmatprep.subr.bf16.mxu0 0
        %1181 = vmatpush1.bf16.xpose.msra.mxu0 0
        %1182 = vmatprep.subr.bf16.mxu0 0
        %1183 = vmatpush1.bf16.xpose.msra.mxu0 0
        %1184 = vmatprep.mubr.bf16.mxu0 0
        %1185 = vmatmul.mubr.bf16.gmra.mrb[0].mxu0 %v1147
        %v1186 = vpop.f32.mrb[0].mxu0
        %v1187 = vadd.f32 0.0, %v1186
        %v1188 = vpop.f32.mrb[0].mxu0
        %v1189 = vpop.f32.mrb[0].mxu0
        %v1190 = vadd.f32 0.0, %v1189
        %v1191 = vpop.f32.mrb[0].mxu0
        %1192 = vdwg.mxu0
        %1193 = vrot.lane.b32.xlu0 %v1090, 64
        %v1194 = vpop.permute.xlu0 %1193
        %1195 = vrot.lane.b32.xlu0 %v1091, 64
        %v1196 = vpop.permute.xlu0 %1195
        %v1198 = vsel %vm1092, %v1194, 0
        %v1201 = vsel %vm1092, %v1196, 0
        %1203 = vmatprep.subr.bf16.mxu0 0
        %1204 = vmatpush1.bf16.xpose.msra.mxu0 %v1201
        %1205 = vmatprep.subr.bf16.mxu0 0
        %1206 = vmatpush1.bf16.xpose.msra.mxu0 0
        %1207 = vmatprep.subr.bf16.mxu0 0
        %1208 = vmatpush1.bf16.xpose.msra.mxu0 0
        %1209 = vmatprep.subr.bf16.mxu0 0
        %1210 = vmatpush1.bf16.xpose.msra.mxu0 0
        %1211 = vmatprep.subr.bf16.mxu0 0
        %1212 = vmatpush1.bf16.xpose.msra.mxu0 0
        %1213 = vmatprep.subr.bf16.mxu0 0
        %1214 = vmatpush1.bf16.xpose.msra.mxu0 0
        %1215 = vmatprep.subr.bf16.mxu0 0
        %1216 = vmatpush1.bf16.xpose.msra.mxu0 0
        %1217 = vmatprep.subr.bf16.mxu0 0
        %1218 = vmatpush1.bf16.xpose.msra.mxu0 0
        %1219 = vmatprep.subr.bf16.mxu0 0
        %1220 = vmatpush1.bf16.xpose.msra.mxu0 0
        %1221 = vmatprep.subr.bf16.mxu0 0
        %1222 = vmatpush1.bf16.xpose.msra.mxu0 0
        %1223 = vmatprep.subr.bf16.mxu0 0
        %1224 = vmatpush1.bf16.xpose.msra.mxu0 0
        %1225 = vmatprep.subr.bf16.mxu0 0
        %1226 = vmatpush1.bf16.xpose.msra.mxu0 0
        %1227 = vmatprep.subr.bf16.mxu0 0
        %1228 = vmatpush1.bf16.xpose.msra.mxu0 0
        %1229 = vmatprep.subr.bf16.mxu0 0
        %1230 = vmatpush1.bf16.xpose.msra.mxu0 0
        %1231 = vmatprep.subr.bf16.mxu0 0
        %1232 = vmatpush1.bf16.xpose.msra.mxu0 0
        %1233 = vmatprep.subr.bf16.mxu0 0
        %1234 = vmatpush1.bf16.xpose.msra.mxu0 0
        %1235 = vmatprep.mubr.bf16.mxu0 0
        %1236 = vmatmul.mubr.bf16.gmra.mrb[0].mxu0 %v1198
        %v1237 = vpop.f32.mrb[0].mxu0
        %v1238 = vadd.f32 0.0, %v1237
        %v1239 = vpop.f32.mrb[0].mxu0
        %v1240 = vpop.f32.mrb[0].mxu0
        %v1241 = vadd.f32 0.0, %v1240
        %v1242 = vpop.f32.mrb[0].mxu0
        %1243 = vdwg.mxu0
        %1244 = vrot.lane.b32.xlu0 %v1090, 32
        %v1245 = vpop.permute.xlu0 %1244
        %1246 = vrot.lane.b32.xlu0 %v1091, 32
        %v1247 = vpop.permute.xlu0 %1246
        %v1249 = vsel %vm1092, %v1245, 0
        %v1252 = vsel %vm1092, %v1247, 0
        %1254 = vmatprep.subr.bf16.mxu0 0
        %1255 = vmatpush1.bf16.xpose.msra.mxu0 %v1252
        %1256 = vmatprep.subr.bf16.mxu0 0
        %1257 = vmatpush1.bf16.xpose.msra.mxu0 0
        %1258 = vmatprep.subr.bf16.mxu0 0
        %1259 = vmatpush1.bf16.xpose.msra.mxu0 0
        %1260 = vmatprep.subr.bf16.mxu0 0
        %1261 = vmatpush1.bf16.xpose.msra.mxu0 0
        %1262 = vmatprep.subr.bf16.mxu0 0
        %1263 = vmatpush1.bf16.xpose.msra.mxu0 0
        %1264 = vmatprep.subr.bf16.mxu0 0
        %1265 = vmatpush1.bf16.xpose.msra.mxu0 0
        %1266 = vmatprep.subr.bf16.mxu0 0
        %1267 = vmatpush1.bf16.xpose.msra.mxu0 0
        %1268 = vmatprep.subr.bf16.mxu0 0
        %1269 = vmatpush1.bf16.xpose.msra.mxu0 0
        %1270 = vmatprep.subr.bf16.mxu0 0
        %1271 = vmatpush1.bf16.xpose.msra.mxu0 0
        %1272 = vmatprep.subr.bf16.mxu0 0
        %1273 = vmatpush1.bf16.xpose.msra.mxu0 0
        %1274 = vmatprep.subr.bf16.mxu0 0
        %1275 = vmatpush1.bf16.xpose.msra.mxu0 0
        %1276 = vmatprep.subr.bf16.mxu0 0
        %1277 = vmatpush1.bf16.xpose.msra.mxu0 0
        %1278 = vmatprep.subr.bf16.mxu0 0
        %1279 = vmatpush1.bf16.xpose.msra.mxu0 0
        %1280 = vmatprep.subr.bf16.mxu0 0
        %1281 = vmatpush1.bf16.xpose.msra.mxu0 0
        %1282 = vmatprep.subr.bf16.mxu0 0
        %1283 = vmatpush1.bf16.xpose.msra.mxu0 0
        %1284 = vmatprep.subr.bf16.mxu0 0
        %1285 = vmatpush1.bf16.xpose.msra.mxu0 0
        %1286 = vmatprep.mubr.bf16.mxu0 0
        %1287 = vmatmul.mubr.bf16.gmra.mrb[0].mxu0 %v1249
        %v1288 = vpop.f32.mrb[0].mxu0
        %v1289 = vadd.f32 0.0, %v1288
        %v1290 = vpop.f32.mrb[0].mxu0
        %v1291 = vpop.f32.mrb[0].mxu0
        %v1292 = vadd.f32 0.0, %v1291
        %v1293 = vpop.f32.mrb[0].mxu0
        %1294 = vdwg.mxu0
        %v1295 = vpack.c.bf16 %v1020, %v1014
        %v1296 = vpack.c.bf16 %v1022, %v1016
        %v1298 = vrot.slane %v1295, 1
        %v1300 = vrot.slane %v1296, 1
        %v1302 = vsel %vm1092, %v1298, 0
        %v1305 = vsel %vm1092, %v1300, 0
        %1307 = vmatprep.subr.bf16.mxu0 0
        %1308 = vmatpush1.bf16.xpose.msra.mxu0 %v1305
        %1309 = vmatprep.subr.bf16.mxu0 0
        %1310 = vmatpush1.bf16.xpose.msra.mxu0 0
        %1311 = vmatprep.subr.bf16.mxu0 0
        %1312 = vmatpush1.bf16.xpose.msra.mxu0 0
        %1313 = vmatprep.subr.bf16.mxu0 0
        %1314 = vmatpush1.bf16.xpose.msra.mxu0 0
        %1315 = vmatprep.subr.bf16.mxu0 0
        %1316 = vmatpush1.bf16.xpose.msra.mxu0 0
        %1317 = vmatprep.subr.bf16.mxu0 0
        %1318 = vmatpush1.bf16.xpose.msra.mxu0 0
        %1319 = vmatprep.subr.bf16.mxu0 0
        %1320 = vmatpush1.bf16.xpose.msra.mxu0 0
        %1321 = vmatprep.subr.bf16.mxu0 0
        %1322 = vmatpush1.bf16.xpose.msra.mxu0 0
        %1323 = vmatprep.subr.bf16.mxu0 0
        %1324 = vmatpush1.bf16.xpose.msra.mxu0 0
        %1325 = vmatprep.subr.bf16.mxu0 0
        %1326 = vmatpush1.bf16.xpose.msra.mxu0 0
        %1327 = vmatprep.subr.bf16.mxu0 0
        %1328 = vmatpush1.bf16.xpose.msra.mxu0 0
        %1329 = vmatprep.subr.bf16.mxu0 0
        %1330 = vmatpush1.bf16.xpose.msra.mxu0 0
        %1331 = vmatprep.subr.bf16.mxu0 0
        %1332 = vmatpush1.bf16.xpose.msra.mxu0 0
        %1333 = vmatprep.subr.bf16.mxu0 0
        %1334 = vmatpush1.bf16.xpose.msra.mxu0 0
        %1335 = vmatprep.subr.bf16.mxu0 0
        %1336 = vmatpush1.bf16.xpose.msra.mxu0 0
        %1337 = vmatprep.subr.bf16.mxu0 0
        %1338 = vmatpush1.bf16.xpose.msra.mxu0 0
        %1339 = vmatprep.mubr.bf16.mxu0 0
        %1340 = vmatmul.mubr.bf16.gmra.mrb[0].mxu0 %v1302
        %v1341 = vpop.f32.mrb[0].mxu0
        %v1342 = vadd.f32 0.0, %v1341
        %v1343 = vpop.f32.mrb[0].mxu0
        %v1344 = vpop.f32.mrb[0].mxu0
        %v1345 = vadd.f32 0.0, %v1344
        %v1346 = vpop.f32.mrb[0].mxu0
        %1347 = vdwg.mxu0
        %1348 = vrot.lane.b32.xlu0 %v1298, 96
        %v1349 = vpop.permute.xlu0 %1348
        %1350 = vrot.lane.b32.xlu0 %v1300, 96
        %v1351 = vpop.permute.xlu0 %1350
        %v1353 = vsel %vm1092, %v1349, 0
        %v1356 = vsel %vm1092, %v1351, 0
        %1358 = vmatprep.subr.bf16.mxu0 0
        %1359 = vmatpush1.bf16.xpose.msra.mxu0 %v1356
        %1360 = vmatprep.subr.bf16.mxu0 0
        %1361 = vmatpush1.bf16.xpose.msra.mxu0 0
        %1362 = vmatprep.subr.bf16.mxu0 0
        %1363 = vmatpush1.bf16.xpose.msra.mxu0 0
        %1364 = vmatprep.subr.bf16.mxu0 0
        %1365 = vmatpush1.bf16.xpose.msra.mxu0 0
        %1366 = vmatprep.subr.bf16.mxu0 0
        %1367 = vmatpush1.bf16.xpose.msra.mxu0 0
        %1368 = vmatprep.subr.bf16.mxu0 0
        %1369 = vmatpush1.bf16.xpose.msra.mxu0 0
        %1370 = vmatprep.subr.bf16.mxu0 0
        %1371 = vmatpush1.bf16.xpose.msra.mxu0 0
        %1372 = vmatprep.subr.bf16.mxu0 0
        %1373 = vmatpush1.bf16.xpose.msra.mxu0 0
        %1374 = vmatprep.subr.bf16.mxu0 0
        %1375 = vmatpush1.bf16.xpose.msra.mxu0 0
        %1376 = vmatprep.subr.bf16.mxu0 0
        %1377 = vmatpush1.bf16.xpose.msra.mxu0 0
        %1378 = vmatprep.subr.bf16.mxu0 0
        %1379 = vmatpush1.bf16.xpose.msra.mxu0 0
        %1380 = vmatprep.subr.bf16.mxu0 0
        %1381 = vmatpush1.bf16.xpose.msra.mxu0 0
        %1382 = vmatprep.subr.bf16.mxu0 0
        %1383 = vmatpush1.bf16.xpose.msra.mxu0 0
        %1384 = vmatprep.subr.bf16.mxu0 0
        %1385 = vmatpush1.bf16.xpose.msra.mxu0 0
        %1386 = vmatprep.subr.bf16.mxu0 0
        %1387 = vmatpush1.bf16.xpose.msra.mxu0 0
        %1388 = vmatprep.subr.bf16.mxu0 0
        %1389 = vmatpush1.bf16.xpose.msra.mxu0 0
        %1390 = vmatprep.mubr.bf16.mxu0 0
        %1391 = vmatmul.mubr.bf16.gmra.mrb[0].mxu0 %v1353
        %v1392 = vpop.f32.mrb[0].mxu0
        %v1393 = vadd.f32 0.0, %v1392
        %v1394 = vpop.f32.mrb[0].mxu0
        %v1395 = vpop.f32.mrb[0].mxu0
        %v1396 = vadd.f32 0.0, %v1395
        %v1397 = vpop.f32.mrb[0].mxu0
        %1398 = vdwg.mxu0
        %1399 = vrot.lane.b32.xlu0 %v1298, 64
        %v1400 = vpop.permute.xlu0 %1399
        %1401 = vrot.lane.b32.xlu0 %v1300, 64
        %v1402 = vpop.permute.xlu0 %1401
        %v1404 = vsel %vm1092, %v1400, 0
        %v1407 = vsel %vm1092, %v1402, 0
        %1409 = vmatprep.subr.bf16.mxu0 0
        %1410 = vmatpush1.bf16.xpose.msra.mxu0 %v1407
        %1411 = vmatprep.subr.bf16.mxu0 0
        %1412 = vmatpush1.bf16.xpose.msra.mxu0 0
        %1413 = vmatprep.subr.bf16.mxu0 0
        %1414 = vmatpush1.bf16.xpose.msra.mxu0 0
        %1415 = vmatprep.subr.bf16.mxu0 0
        %1416 = vmatpush1.bf16.xpose.msra.mxu0 0
        %1417 = vmatprep.subr.bf16.mxu0 0
        %1418 = vmatpush1.bf16.xpose.msra.mxu0 0
        %1419 = vmatprep.subr.bf16.mxu0 0
        %1420 = vmatpush1.bf16.xpose.msra.mxu0 0
        %1421 = vmatprep.subr.bf16.mxu0 0
        %1422 = vmatpush1.bf16.xpose.msra.mxu0 0
        %1423 = vmatprep.subr.bf16.mxu0 0
        %1424 = vmatpush1.bf16.xpose.msra.mxu0 0
        %1425 = vmatprep.subr.bf16.mxu0 0
        %1426 = vmatpush1.bf16.xpose.msra.mxu0 0
        %1427 = vmatprep.subr.bf16.mxu0 0
        %1428 = vmatpush1.bf16.xpose.msra.mxu0 0
        %1429 = vmatprep.subr.bf16.mxu0 0
        %1430 = vmatpush1.bf16.xpose.msra.mxu0 0
        %1431 = vmatprep.subr.bf16.mxu0 0
        %1432 = vmatpush1.bf16.xpose.msra.mxu0 0
        %1433 = vmatprep.subr.bf16.mxu0 0
        %1434 = vmatpush1.bf16.xpose.msra.mxu0 0
        %1435 = vmatprep.subr.bf16.mxu0 0
        %1436 = vmatpush1.bf16.xpose.msra.mxu0 0
        %1437 = vmatprep.subr.bf16.mxu0 0
        %1438 = vmatpush1.bf16.xpose.msra.mxu0 0
        %1439 = vmatprep.subr.bf16.mxu0 0
        %1440 = vmatpush1.bf16.xpose.msra.mxu0 0
        %1441 = vmatprep.mubr.bf16.mxu0 0
        %1442 = vmatmul.mubr.bf16.gmra.mrb[0].mxu0 %v1404
        %v1443 = vpop.f32.mrb[0].mxu0
        %v1444 = vadd.f32 0.0, %v1443
        %v1445 = vpop.f32.mrb[0].mxu0
        %v1446 = vpop.f32.mrb[0].mxu0
        %v1447 = vadd.f32 0.0, %v1446
        %v1448 = vpop.f32.mrb[0].mxu0
        %1449 = vdwg.mxu0
        %1450 = vrot.lane.b32.xlu0 %v1298, 32
        %v1451 = vpop.permute.xlu0 %1450
        %1452 = vrot.lane.b32.xlu0 %v1300, 32
        %v1453 = vpop.permute.xlu0 %1452
        %v1455 = vsel %vm1092, %v1451, 0
        %v1458 = vsel %vm1092, %v1453, 0
        %1460 = vmatprep.subr.bf16.mxu0 0
        %1461 = vmatpush1.bf16.xpose.msra.mxu0 %v1458
        %1462 = vmatprep.subr.bf16.mxu0 0
        %1463 = vmatpush1.bf16.xpose.msra.mxu0 0
        %1464 = vmatprep.subr.bf16.mxu0 0
        %1465 = vmatpush1.bf16.xpose.msra.mxu0 0
        %1466 = vmatprep.subr.bf16.mxu0 0
        %1467 = vmatpush1.bf16.xpose.msra.mxu0 0
        %1468 = vmatprep.subr.bf16.mxu0 0
        %1469 = vmatpush1.bf16.xpose.msra.mxu0 0
        %1470 = vmatprep.subr.bf16.mxu0 0
        %1471 = vmatpush1.bf16.xpose.msra.mxu0 0
        %1472 = vmatprep.subr.bf16.mxu0 0
        %1473 = vmatpush1.bf16.xpose.msra.mxu0 0
        %1474 = vmatprep.subr.bf16.mxu0 0
        %1475 = vmatpush1.bf16.xpose.msra.mxu0 0
        %1476 = vmatprep.subr.bf16.mxu0 0
        %1477 = vmatpush1.bf16.xpose.msra.mxu0 0
        %1478 = vmatprep.subr.bf16.mxu0 0
        %1479 = vmatpush1.bf16.xpose.msra.mxu0 0
        %1480 = vmatprep.subr.bf16.mxu0 0
        %1481 = vmatpush1.bf16.xpose.msra.mxu0 0
        %1482 = vmatprep.subr.bf16.mxu0 0
        %1483 = vmatpush1.bf16.xpose.msra.mxu0 0
        %1484 = vmatprep.subr.bf16.mxu0 0
        %1485 = vmatpush1.bf16.xpose.msra.mxu0 0
        %1486 = vmatprep.subr.bf16.mxu0 0
        %1487 = vmatpush1.bf16.xpose.msra.mxu0 0
        %1488 = vmatprep.subr.bf16.mxu0 0
        %1489 = vmatpush1.bf16.xpose.msra.mxu0 0
        %1490 = vmatprep.subr.bf16.mxu0 0
        %1491 = vmatpush1.bf16.xpose.msra.mxu0 0
        %1492 = vmatprep.mubr.bf16.mxu0 0
        %1493 = vmatmul.mubr.bf16.gmra.mrb[0].mxu0 %v1455
        %v1494 = vpop.f32.mrb[0].mxu0
        %v1495 = vadd.f32 0.0, %v1494
        %v1496 = vpop.f32.mrb[0].mxu0
        %v1497 = vpop.f32.mrb[0].mxu0
        %v1498 = vadd.f32 0.0, %v1497
        %v1499 = vpop.f32.mrb[0].mxu0
        %1500 = vdwg.mxu0
        %vm1503 = vcmask 1041408
        %v1504 = vrot.slane %v1187, 6
        %v1505 = vrot.slane %v1190, 6
        %v1506 = vsel %vm1503, %v1504, %v1505
        %vm1511 = vcmask 1043456
        %v1512 = vrot.slane %v1238, 4
        %v1513 = vrot.slane %v1241, 4
        %v1514 = vsel %vm1511, %v1512, %v1513
        %vm1519 = vcmask 1045504
        %v1520 = vrot.slane %v1289, 2
        %v1521 = vrot.slane %v1292, 2
        %v1522 = vsel %vm1519, %v1520, %v1521
        %v1527 = vrot.slane %v1393, 6
        %v1528 = vrot.slane %v1396, 6
        %v1529 = vsel %vm1503, %v1527, %v1528
        %v1534 = vrot.slane %v1444, 4
        %v1535 = vrot.slane %v1447, 4
        %v1536 = vsel %vm1511, %v1534, %v1535
        %v1541 = vrot.slane %v1495, 2
        %v1542 = vrot.slane %v1498, 2
        %v1543 = vsel %vm1519, %v1541, %v1542
        %v1546 = vsel %vm1503, %v1137, %v1504
        %v1547 = vsel %vm1511, %v1506, %v1512
        %v1548 = vsel %vm1519, %v1514, %v1520
        %v1549 = vsel %vm1503, %v1345, %v1527
        %v1550 = vsel %vm1511, %v1529, %v1534
        %v1551 = vsel %vm1519, %v1536, %v1541
        %v1552 = vld [vmem:[%s1] sm:$0xff]
        %v1553 = vld [vmem:[%s1 + $0x8] sm:$0xff]
        %v1554 = vld [vmem:[%s1 + $0x10] sm:$0xff]
        %v1555 = vld [vmem:[%s1 + $0x18] sm:$0xff]
        %v1556 = vld [vmem:[%s1 + $0x20] sm:$0xff]
        %v1557 = vld [vmem:[%s1 + $0x28] sm:$0xff]
        %v1558 = vld [vmem:[%s1 + $0x30] sm:$0xff]
        %v1559 = vld [vmem:[%s1 + $0x38] sm:$0xff]
        %v1560 = vld [vmem:[%s1 + $0x40] sm:$0xff]
        %v1561 = vld [vmem:[%s1 + $0x48] sm:$0xff]
        %v1562 = vadd.f32 %v1134, %v1552
        %v1563 = vadd.f32 %v1546, %v1553
        %v1564 = vadd.f32 %v1547, %v1554
        %v1565 = vadd.f32 %v1548, %v1555
        %v1566 = vadd.f32 %v1522, %v1556
        %v1567 = vadd.f32 %v1342, %v1557
        %v1568 = vadd.f32 %v1549, %v1558
        %v1569 = vadd.f32 %v1550, %v1559
        %v1570 = vadd.f32 %v1551, %v1560
        %v1571 = vadd.f32 %v1543, %v1561
        %vm1572 = vcmask 80896
        %v1573 = vsel %vm1572, %v1562, -inf
        %1574 = vmax.xlane.f32.xlu0 %v1573
        %v1575 = vpop.xlane.xlu0 %1574
        %v1576 = vsel %vm1572, %v1563, -inf
        %1577 = vmax.xlane.f32.xlu0 %v1576
        %v1578 = vpop.xlane.xlu0 %1577
        %v1579 = vsel %vm1572, %v1564, -inf
        %1580 = vmax.xlane.f32.xlu0 %v1579
        %v1581 = vpop.xlane.xlu0 %1580
        %v1582 = vsel %vm1572, %v1565, -inf
        %1583 = vmax.xlane.f32.xlu0 %v1582
        %v1584 = vpop.xlane.xlu0 %1583
        %v1585 = vsel %vm1572, %v1566, -inf
        %1586 = vmax.xlane.f32.xlu0 %v1585
        %v1587 = vpop.xlane.xlu0 %1586
        %v1588 = vsel %vm1572, %v1567, -inf
        %1589 = vmax.xlane.f32.xlu0 %v1588
        %v1590 = vpop.xlane.xlu0 %1589
        %v1591 = vsel %vm1572, %v1568, -inf
        %1592 = vmax.xlane.f32.xlu0 %v1591
        %v1593 = vpop.xlane.xlu0 %1592
        %v1594 = vsel %vm1572, %v1569, -inf
        %1595 = vmax.xlane.f32.xlu0 %v1594
        %v1596 = vpop.xlane.xlu0 %1595
        %v1597 = vsel %vm1572, %v1570, -inf
        %1598 = vmax.xlane.f32.xlu0 %v1597
        %v1599 = vpop.xlane.xlu0 %1598
        %v1600 = vsel %vm1572, %v1571, -inf
        %1601 = vmax.xlane.f32.xlu0 %v1600
        %v1602 = vpop.xlane.xlu0 %1601
        %v1603 = vsub.f32 %v1562, %v1575
        %v1604 = vsub.f32 %v1563, %v1578
        %v1605 = vsub.f32 %v1564, %v1581
        %v1606 = vsub.f32 %v1565, %v1584
        %v1607 = vsub.f32 %v1566, %v1587
        %v1608 = vsub.f32 %v1567, %v1590
        %v1609 = vsub.f32 %v1568, %v1593
        %v1610 = vsub.f32 %v1569, %v1596
        %v1611 = vsub.f32 %v1570, %v1599
        %v1612 = vsub.f32 %v1571, %v1602
        %v1613 = vmul.f32 %v1603, 1.442695
        %v1614 = vpow.pop %v1613
        %v1615 = vmul.f32 %v1604, 1.442695
        %v1616 = vpow.pop %v1615
        %v1617 = vmul.f32 %v1605, 1.442695
        %v1618 = vpow.pop %v1617
        %v1619 = vmul.f32 %v1606, 1.442695
        %v1620 = vpow.pop %v1619
        %v1621 = vmul.f32 %v1607, 1.442695
        %v1622 = vpow.pop %v1621
        %v1623 = vmul.f32 %v1608, 1.442695
        %v1624 = vpow.pop %v1623
        %v1625 = vmul.f32 %v1609, 1.442695
        %v1626 = vpow.pop %v1625
        %v1627 = vmul.f32 %v1610, 1.442695
        %v1628 = vpow.pop %v1627
        %v1629 = vmul.f32 %v1611, 1.442695
        %v1630 = vpow.pop %v1629
        %v1631 = vmul.f32 %v1612, 1.442695
        %v1632 = vpow.pop %v1631
        %v1633 = vsel %vm1572, %v1614, 0.0
        %1634 = vadd.xlane.f32.xlu0 %v1633
        %v1635 = vpop.xlane.xlu0 %1634
        %v1636 = vsel %vm1572, %v1616, 0.0
        %1637 = vadd.xlane.f32.xlu0 %v1636
        %v1638 = vpop.xlane.xlu0 %1637
        %v1639 = vsel %vm1572, %v1618, 0.0
        %1640 = vadd.xlane.f32.xlu0 %v1639
        %v1641 = vpop.xlane.xlu0 %1640
        %v1642 = vsel %vm1572, %v1620, 0.0
        %1643 = vadd.xlane.f32.xlu0 %v1642
        %v1644 = vpop.xlane.xlu0 %1643
        %v1645 = vsel %vm1572, %v1622, 0.0
        %1646 = vadd.xlane.f32.xlu0 %v1645
        %v1647 = vpop.xlane.xlu0 %1646
        %v1648 = vsel %vm1572, %v1624, 0.0
        %1649 = vadd.xlane.f32.xlu0 %v1648
        %v1650 = vpop.xlane.xlu0 %1649
        %v1651 = vsel %vm1572, %v1626, 0.0
        %1652 = vadd.xlane.f32.xlu0 %v1651
        %v1653 = vpop.xlane.xlu0 %1652
        %v1654 = vsel %vm1572, %v1628, 0.0
        %1655 = vadd.xlane.f32.xlu0 %v1654
        %v1656 = vpop.xlane.xlu0 %1655
        %v1657 = vsel %vm1572, %v1630, 0.0
        %1658 = vadd.xlane.f32.xlu0 %v1657
        %v1659 = vpop.xlane.xlu0 %1658
        %v1660 = vsel %vm1572, %v1632, 0.0
        %1661 = vadd.xlane.f32.xlu0 %v1660
        %v1662 = vpop.xlane.xlu0 %1661
        %v1663 = vrcp.pop %v1635
        %v1664 = vrcp.pop %v1638
        %v1665 = vrcp.pop %v1641
        %v1666 = vrcp.pop %v1644
        %v1667 = vrcp.pop %v1647
        %v1668 = vrcp.pop %v1650
        %v1669 = vrcp.pop %v1653
        %v1670 = vrcp.pop %v1656
        %v1671 = vrcp.pop %v1659
        %v1672 = vrcp.pop %v1662
        %v1673 = vmul.f32 %v1614, %v1663
        %v1674 = vmul.f32 %v1616, %v1664
        %v1675 = vmul.f32 %v1618, %v1665
        %v1676 = vmul.f32 %v1620, %v1666
        %v1677 = vmul.f32 %v1622, %v1667
        %v1678 = vmul.f32 %v1624, %v1668
        %v1679 = vmul.f32 %v1626, %v1669
        %v1680 = vmul.f32 %v1628, %v1670
        %v1681 = vmul.f32 %v1630, %v1671
        %v1682 = vmul.f32 %v1632, %v1672
        %v1683 = vpack.c.bf16 %v1674, %v1673
        %v1684 = vpack.c.bf16 %v1064, %v1061
        %v1686 = vsel %vm1572, %v1683, 0
        %vm1688 = vcmask 1044480
        %v1690 = vsel %vm1688, %v1684, 0
        %1692 = vmatprep.subr.bf16.mxu0 0
        %1693 = vmatpush1.bf16.msra.mxu0 %v1690
        %1694 = vmatprep.subr.bf16.mxu0 0
        %1695 = vmatpush1.bf16.msra.mxu0 0
        %1696 = vmatprep.subr.bf16.mxu0 0
        %1697 = vmatpush1.bf16.msra.mxu0 0
        %1698 = vmatprep.subr.bf16.mxu0 0
        %1699 = vmatpush1.bf16.msra.mxu0 0
        %1700 = vmatprep.subr.bf16.mxu0 0
        %1701 = vmatpush1.bf16.msra.mxu0 0
        %1702 = vmatprep.subr.bf16.mxu0 0
        %1703 = vmatpush1.bf16.msra.mxu0 0
        %1704 = vmatprep.subr.bf16.mxu0 0
        %1705 = vmatpush1.bf16.msra.mxu0 0
        %1706 = vmatprep.subr.bf16.mxu0 0
        %1707 = vmatpush1.bf16.msra.mxu0 0
        %1708 = vmatprep.subr.bf16.mxu0 0
        %1709 = vmatpush1.bf16.msra.mxu0 0
        %1710 = vmatprep.subr.bf16.mxu0 0
        %1711 = vmatpush1.bf16.msra.mxu0 0
        %1712 = vmatprep.subr.bf16.mxu0 0
        %1713 = vmatpush1.bf16.msra.mxu0 0
        %1714 = vmatprep.subr.bf16.mxu0 0
        %1715 = vmatpush1.bf16.msra.mxu0 0
        %1716 = vmatprep.subr.bf16.mxu0 0
        %1717 = vmatpush1.bf16.msra.mxu0 0
        %1718 = vmatprep.subr.bf16.mxu0 0
        %1719 = vmatpush1.bf16.msra.mxu0 0
        %1720 = vmatprep.subr.bf16.mxu0 0
        %1721 = vmatpush1.bf16.msra.mxu0 0
        %1722 = vmatprep.subr.bf16.mxu0 0
        %1723 = vmatpush1.bf16.msra.mxu0 0
        %1724 = vmatprep.mubr.bf16.mxu0 0
        %1725 = vmatmul.mubr.bf16.gmra.mrb[0].mxu0 %v1686
        %v1726 = vpop.f32.mrb[0].mxu0
        %v1727 = vadd.f32 0.0, %v1726
        %v1728 = vpop.f32.mrb[0].mxu0
        %v1729 = vpop.f32.mrb[0].mxu0
        %v1730 = vadd.f32 0.0, %v1729
        %v1731 = vpop.f32.mrb[0].mxu0
        %1732 = vdwg.mxu0
        %v1733 = vpack.c.bf16 %v1675, %v1674
        %v1735 = vrot.slane %v1733, 1
        %1737 = vrot.lane.b32.xlu0 %v1684, 96
        %v1738 = vpop.permute.xlu0 %1737
        %v1740 = vsel %vm1572, %v1735, 0
        %v1743 = vsel %vm1688, %v1738, 0
        %1745 = vmatprep.subr.bf16.mxu0 0
        %1746 = vmatpush1.bf16.msra.mxu0 %v1743
        %1747 = vmatprep.subr.bf16.mxu0 0
        %1748 = vmatpush1.bf16.msra.mxu0 0
        %1749 = vmatprep.subr.bf16.mxu0 0
        %1750 = vmatpush1.bf16.msra.mxu0 0
        %1751 = vmatprep.subr.bf16.mxu0 0
        %1752 = vmatpush1.bf16.msra.mxu0 0
        %1753 = vmatprep.subr.bf16.mxu0 0
        %1754 = vmatpush1.bf16.msra.mxu0 0
        %1755 = vmatprep.subr.bf16.mxu0 0
        %1756 = vmatpush1.bf16.msra.mxu0 0
        %1757 = vmatprep.subr.bf16.mxu0 0
        %1758 = vmatpush1.bf16.msra.mxu0 0
        %1759 = vmatprep.subr.bf16.mxu0 0
        %1760 = vmatpush1.bf16.msra.mxu0 0
        %1761 = vmatprep.subr.bf16.mxu0 0
        %1762 = vmatpush1.bf16.msra.mxu0 0
        %1763 = vmatprep.subr.bf16.mxu0 0
        %1764 = vmatpush1.bf16.msra.mxu0 0
        %1765 = vmatprep.subr.bf16.mxu0 0
        %1766 = vmatpush1.bf16.msra.mxu0 0
        %1767 = vmatprep.subr.bf16.mxu0 0
        %1768 = vmatpush1.bf16.msra.mxu0 0
        %1769 = vmatprep.subr.bf16.mxu0 0
        %1770 = vmatpush1.bf16.msra.mxu0 0
        %1771 = vmatprep.subr.bf16.mxu0 0
        %1772 = vmatpush1.bf16.msra.mxu0 0
        %1773 = vmatprep.subr.bf16.mxu0 0
        %1774 = vmatpush1.bf16.msra.mxu0 0
        %1775 = vmatprep.subr.bf16.mxu0 0
        %1776 = vmatpush1.bf16.msra.mxu0 0
        %1777 = vmatprep.mubr.bf16.mxu0 0
        %1778 = vmatmul.mubr.bf16.gmra.mrb[0].mxu0 %v1740
        %v1779 = vpop.f32.mrb[0].mxu0
        %v1780 = vadd.f32 0.0, %v1779
        %v1781 = vpop.f32.mrb[0].mxu0
        %v1782 = vpop.f32.mrb[0].mxu0
        %v1783 = vadd.f32 0.0, %v1782
        %v1784 = vpop.f32.mrb[0].mxu0
        %1785 = vdwg.mxu0
        %v1786 = vpack.c.bf16 %v1676, %v1675
        %v1788 = vrot.slane %v1786, 2
        %1789 = vrot.lane.b32.xlu0 %v1684, 64
        %v1790 = vpop.permute.xlu0 %1789
        %v1792 = vsel %vm1572, %v1788, 0
        %v1795 = vsel %vm1688, %v1790, 0
        %1797 = vmatprep.subr.bf16.mxu0 0
        %1798 = vmatpush1.bf16.msra.mxu0 %v1795
        %1799 = vmatprep.subr.bf16.mxu0 0
        %1800 = vmatpush1.bf16.msra.mxu0 0
        %1801 = vmatprep.subr.bf16.mxu0 0
        %1802 = vmatpush1.bf16.msra.mxu0 0
        %1803 = vmatprep.subr.bf16.mxu0 0
        %1804 = vmatpush1.bf16.msra.mxu0 0
        %1805 = vmatprep.subr.bf16.mxu0 0
        %1806 = vmatpush1.bf16.msra.mxu0 0
        %1807 = vmatprep.subr.bf16.mxu0 0
        %1808 = vmatpush1.bf16.msra.mxu0 0
        %1809 = vmatprep.subr.bf16.mxu0 0
        %1810 = vmatpush1.bf16.msra.mxu0 0
        %1811 = vmatprep.subr.bf16.mxu0 0
        %1812 = vmatpush1.bf16.msra.mxu0 0
        %1813 = vmatprep.subr.bf16.mxu0 0
        %1814 = vmatpush1.bf16.msra.mxu0 0
        %1815 = vmatprep.subr.bf16.mxu0 0
        %1816 = vmatpush1.bf16.msra.mxu0 0
        %1817 = vmatprep.subr.bf16.mxu0 0
        %1818 = vmatpush1.bf16.msra.mxu0 0
        %1819 = vmatprep.subr.bf16.mxu0 0
        %1820 = vmatpush1.bf16.msra.mxu0 0
        %1821 = vmatprep.subr.bf16.mxu0 0
        %1822 = vmatpush1.bf16.msra.mxu0 0
        %1823 = vmatprep.subr.bf16.mxu0 0
        %1824 = vmatpush1.bf16.msra.mxu0 0
        %1825 = vmatprep.subr.bf16.mxu0 0
        %1826 = vmatpush1.bf16.msra.mxu0 0
        %1827 = vmatprep.subr.bf16.mxu0 0
        %1828 = vmatpush1.bf16.msra.mxu0 0
        %1829 = vmatprep.mubr.bf16.mxu0 0
        %1830 = vmatmul.mubr.bf16.gmra.mrb[0].mxu0 %v1792
        %v1831 = vpop.f32.mrb[0].mxu0
        %v1832 = vadd.f32 0.0, %v1831
        %v1833 = vpop.f32.mrb[0].mxu0
        %v1834 = vpop.f32.mrb[0].mxu0
        %v1835 = vadd.f32 0.0, %v1834
        %v1836 = vpop.f32.mrb[0].mxu0
        %1837 = vdwg.mxu0
        %v1838 = vpack.c.bf16 %v1677, %v1676
        %v1840 = vrot.slane %v1838, 3
        %1841 = vrot.lane.b32.xlu0 %v1684, 32
        %v1842 = vpop.permute.xlu0 %1841
        %v1844 = vsel %vm1572, %v1840, 0
        %v1847 = vsel %vm1688, %v1842, 0
        %1849 = vmatprep.subr.bf16.mxu0 0
        %1850 = vmatpush1.bf16.msra.mxu0 %v1847
        %1851 = vmatprep.subr.bf16.mxu0 0
        %1852 = vmatpush1.bf16.msra.mxu0 0
        %1853 = vmatprep.subr.bf16.mxu0 0
        %1854 = vmatpush1.bf16.msra.mxu0 0
        %1855 = vmatprep.subr.bf16.mxu0 0
        %1856 = vmatpush1.bf16.msra.mxu0 0
        %1857 = vmatprep.subr.bf16.mxu0 0
        %1858 = vmatpush1.bf16.msra.mxu0 0
        %1859 = vmatprep.subr.bf16.mxu0 0
        %1860 = vmatpush1.bf16.msra.mxu0 0
        %1861 = vmatprep.subr.bf16.mxu0 0
        %1862 = vmatpush1.bf16.msra.mxu0 0
        %1863 = vmatprep.subr.bf16.mxu0 0
        %1864 = vmatpush1.bf16.msra.mxu0 0
        %1865 = vmatprep.subr.bf16.mxu0 0
        %1866 = vmatpush1.bf16.msra.mxu0 0
        %1867 = vmatprep.subr.bf16.mxu0 0
        %1868 = vmatpush1.bf16.msra.mxu0 0
        %1869 = vmatprep.subr.bf16.mxu0 0
        %1870 = vmatpush1.bf16.msra.mxu0 0
        %1871 = vmatprep.subr.bf16.mxu0 0
        %1872 = vmatpush1.bf16.msra.mxu0 0
        %1873 = vmatprep.subr.bf16.mxu0 0
        %1874 = vmatpush1.bf16.msra.mxu0 0
        %1875 = vmatprep.subr.bf16.mxu0 0
        %1876 = vmatpush1.bf16.msra.mxu0 0
        %1877 = vmatprep.subr.bf16.mxu0 0
        %1878 = vmatpush1.bf16.msra.mxu0 0
        %1879 = vmatprep.subr.bf16.mxu0 0
        %1880 = vmatpush1.bf16.msra.mxu0 0
        %1881 = vmatprep.mubr.bf16.mxu0 0
        %1882 = vmatmul.mubr.bf16.gmra.mrb[0].mxu0 %v1844
        %v1883 = vpop.f32.mrb[0].mxu0
        %v1884 = vadd.f32 0.0, %v1883
        %v1885 = vpop.f32.mrb[0].mxu0
        %v1886 = vpop.f32.mrb[0].mxu0
        %v1887 = vadd.f32 0.0, %v1886
        %v1888 = vpop.f32.mrb[0].mxu0
        %1889 = vdwg.mxu0
        %1892 = vrot.lane.b32.xlu0 %v1780, 32
        %v1893 = vpop.permute.xlu0 %1892
        %1894 = vrot.lane.b32.xlu0 %v1783, 32
        %v1895 = vpop.permute.xlu0 %1894
        %1900 = vrot.lane.b32.xlu0 %v1832, 64
        %v1901 = vpop.permute.xlu0 %1900
        %1902 = vrot.lane.b32.xlu0 %v1835, 64
        %v1903 = vpop.permute.xlu0 %1902
        %1908 = vrot.lane.b32.xlu0 %v1884, 96
        %v1909 = vpop.permute.xlu0 %1908
        %1910 = vrot.lane.b32.xlu0 %v1887, 96
        %v1911 = vpop.permute.xlu0 %1910
        %v1914 = vsel %vm1092, %v1727, %v1893
        %v1915 = vsel %vm1092, %v1730, %v1895
        %vm1916 = vcmask 523264
        %v1917 = vsel %vm1916, %v1914, %v1901
        %v1918 = vsel %vm1916, %v1915, %v1903
        %vm1919 = vcmask 785408
        %v1920 = vsel %vm1919, %v1917, %v1909
        %v1921 = vsel %vm1919, %v1918, %v1911
        %v1922 = vpack.c.bf16 %v1921, %v1920
        %v1939 = vunpack.c.l.b16 %v1074
        %v1940 = vunpack.c.l.b16 %v1075
        %v1941 = vunpack.c.l.b16 %v1076
        %v1942 = vunpack.c.l.b16 %v1077
        %v1943 = vunpack.c.l.b16 %v1078
        %v1944 = vunpack.c.l.b16 %v1079
        %v1945 = vunpack.c.l.b16 %v1080
        %v1946 = vunpack.c.l.b16 %v1081
        %v1947 = vunpack.c.l.b16 %v1082
        %v1948 = vunpack.c.l.b16 %v1083
        %v1949 = vunpack.c.l.b16 %v1084
        %v1950 = vunpack.c.l.b16 %v1085
        %v1951 = vunpack.c.l.b16 %v1086
        %v1952 = vunpack.c.l.b16 %v1087
        %v1953 = vunpack.c.l.b16 %v1088
        %v1954 = vunpack.c.l.b16 %v1089
        %v1955 = vpack.c.b16 %v1940, %v1939
        %v1956 = vpack.c.b16 %v1942, %v1941
        %v1957 = vpack.c.b16 %v1944, %v1943
        %v1958 = vpack.c.b16 %v1946, %v1945
        %v1959 = vpack.c.b16 %v1948, %v1947
        %v1960 = vpack.c.b16 %v1950, %v1949
        %v1961 = vpack.c.b16 %v1952, %v1951
        %v1962 = vpack.c.b16 %v1954, %v1953
        %1971 = vmatprep.subr.bf16.mxu0 0
        %1972 = vmatpush1.bf16.msra.mxu0 %v1955
        %1973 = vmatprep.subr.bf16.mxu0 0
        %1974 = vmatpush1.bf16.msra.mxu0 %v1956
        %1975 = vmatprep.subr.bf16.mxu0 0
        %1976 = vmatpush1.bf16.msra.mxu0 %v1957
        %1977 = vmatprep.subr.bf16.mxu0 0
        %1978 = vmatpush1.bf16.msra.mxu0 %v1958
        %1979 = vmatprep.subr.bf16.mxu0 0
        %1980 = vmatpush1.bf16.msra.mxu0 %v1959
        %1981 = vmatprep.subr.bf16.mxu0 0
        %1982 = vmatpush1.bf16.msra.mxu0 %v1960
        %1983 = vmatprep.subr.bf16.mxu0 0
        %1984 = vmatpush1.bf16.msra.mxu0 %v1961
        %1985 = vmatprep.subr.bf16.mxu0 0
        %1986 = vmatpush1.bf16.msra.mxu0 %v1962
        %1987 = vmatprep.subr.bf16.mxu0 0
        %1988 = vmatpush1.bf16.msra.mxu0 0
        %1989 = vmatprep.subr.bf16.mxu0 0
        %1990 = vmatpush1.bf16.msra.mxu0 0
        %1991 = vmatprep.subr.bf16.mxu0 0
        %1992 = vmatpush1.bf16.msra.mxu0 0
        %1993 = vmatprep.subr.bf16.mxu0 0
        %1994 = vmatpush1.bf16.msra.mxu0 0
        %1995 = vmatprep.subr.bf16.mxu0 0
        %1996 = vmatpush1.bf16.msra.mxu0 0
        %1997 = vmatprep.subr.bf16.mxu0 0
        %1998 = vmatpush1.bf16.msra.mxu0 0
        %1999 = vmatprep.subr.bf16.mxu0 0
        %2000 = vmatpush1.bf16.msra.mxu0 0
        %2001 = vmatprep.subr.bf16.mxu0 0
        %2002 = vmatpush1.bf16.msra.mxu0 0
        %2003 = vmatprep.mubr.bf16.mxu0 0
        %2004 = vmatmul.mubr.bf16.gmra.mrb[0].mxu0 %v1922
        %v2005 = vpop.f32.mrb[0].mxu0
        %v2006 = vadd.f32 0.0, %v2005
        %v2007 = vpop.f32.mrb[0].mxu0
        %v2008 = vpop.f32.mrb[0].mxu0
        %v2009 = vadd.f32 0.0, %v2008
        %v2010 = vpop.f32.mrb[0].mxu0
        %2011 = vdwg.mxu0
        %v2012 = vpack.c.bf16 %v1679, %v1678
        %v2013 = vpack.c.bf16 %v1069, %v1064
        %v2015 = vrot.slane %v2013, 1
        %v2017 = vsel %vm1572, %v2012, 0
        %v2020 = vsel %vm1688, %v2015, 0
        %2022 = vmatprep.subr.bf16.mxu0 0
        %2023 = vmatpush1.bf16.msra.mxu0 %v2020
        %2024 = vmatprep.subr.bf16.mxu0 0
        %2025 = vmatpush1.bf16.msra.mxu0 0
        %2026 = vmatprep.subr.bf16.mxu0 0
        %2027 = vmatpush1.bf16.msra.mxu0 0
        %2028 = vmatprep.subr.bf16.mxu0 0
        %2029 = vmatpush1.bf16.msra.mxu0 0
        %2030 = vmatprep.subr.bf16.mxu0 0
        %2031 = vmatpush1.bf16.msra.mxu0 0
        %2032 = vmatprep.subr.bf16.mxu0 0
        %2033 = vmatpush1.bf16.msra.mxu0 0
        %2034 = vmatprep.subr.bf16.mxu0 0
        %2035 = vmatpush1.bf16.msra.mxu0 0
        %2036 = vmatprep.subr.bf16.mxu0 0
        %2037 = vmatpush1.bf16.msra.mxu0 0
        %2038 = vmatprep.subr.bf16.mxu0 0
        %2039 = vmatpush1.bf16.msra.mxu0 0
        %2040 = vmatprep.subr.bf16.mxu0 0
        %2041 = vmatpush1.bf16.msra.mxu0 0
        %2042 = vmatprep.subr.bf16.mxu0 0
        %2043 = vmatpush1.bf16.msra.mxu0 0
        %2044 = vmatprep.subr.bf16.mxu0 0
        %2045 = vmatpush1.bf16.msra.mxu0 0
        %2046 = vmatprep.subr.bf16.mxu0 0
        %2047 = vmatpush1.bf16.msra.mxu0 0
        %2048 = vmatprep.subr.bf16.mxu0 0
        %2049 = vmatpush1.bf16.msra.mxu0 0
        %2050 = vmatprep.subr.bf16.mxu0 0
        %2051 = vmatpush1.bf16.msra.mxu0 0
        %2052 = vmatprep.subr.bf16.mxu0 0
        %2053 = vmatpush1.bf16.msra.mxu0 0
        %2054 = vmatprep.mubr.bf16.mxu0 0
        %2055 = vmatmul.mubr.bf16.gmra.mrb[0].mxu0 %v2017
        %v2056 = vpop.f32.mrb[0].mxu0
        %v2057 = vadd.f32 0.0, %v2056
        %v2058 = vpop.f32.mrb[0].mxu0
        %v2059 = vpop.f32.mrb[0].mxu0
        %v2060 = vadd.f32 0.0, %v2059
        %v2061 = vpop.f32.mrb[0].mxu0
        %2062 = vdwg.mxu0
        %v2063 = vpack.c.bf16 %v1680, %v1679
        %v2065 = vrot.slane %v2063, 1
        %2066 = vrot.lane.b32.xlu0 %v2015, 96
        %v2067 = vpop.permute.xlu0 %2066
        %v2069 = vsel %vm1572, %v2065, 0
        %v2072 = vsel %vm1688, %v2067, 0
        %2074 = vmatprep.subr.bf16.mxu0 0
        %2075 = vmatpush1.bf16.msra.mxu0 %v2072
        %2076 = vmatprep.subr.bf16.mxu0 0
        %2077 = vmatpush1.bf16.msra.mxu0 0
        %2078 = vmatprep.subr.bf16.mxu0 0
        %2079 = vmatpush1.bf16.msra.mxu0 0
        %2080 = vmatprep.subr.bf16.mxu0 0
        %2081 = vmatpush1.bf16.msra.mxu0 0
        %2082 = vmatprep.subr.bf16.mxu0 0
        %2083 = vmatpush1.bf16.msra.mxu0 0
        %2084 = vmatprep.subr.bf16.mxu0 0
        %2085 = vmatpush1.bf16.msra.mxu0 0
        %2086 = vmatprep.subr.bf16.mxu0 0
        %2087 = vmatpush1.bf16.msra.mxu0 0
        %2088 = vmatprep.subr.bf16.mxu0 0
        %2089 = vmatpush1.bf16.msra.mxu0 0
        %2090 = vmatprep.subr.bf16.mxu0 0
        %2091 = vmatpush1.bf16.msra.mxu0 0
        %2092 = vmatprep.subr.bf16.mxu0 0
        %2093 = vmatpush1.bf16.msra.mxu0 0
        %2094 = vmatprep.subr.bf16.mxu0 0
        %2095 = vmatpush1.bf16.msra.mxu0 0
        %2096 = vmatprep.subr.bf16.mxu0 0
        %2097 = vmatpush1.bf16.msra.mxu0 0
        %2098 = vmatprep.subr.bf16.mxu0 0
        %2099 = vmatpush1.bf16.msra.mxu0 0
        %2100 = vmatprep.subr.bf16.mxu0 0
        %2101 = vmatpush1.bf16.msra.mxu0 0
        %2102 = vmatprep.subr.bf16.mxu0 0
        %2103 = vmatpush1.bf16.msra.mxu0 0
        %2104 = vmatprep.subr.bf16.mxu0 0
        %2105 = vmatpush1.bf16.msra.mxu0 0
        %2106 = vmatprep.mubr.bf16.mxu0 0
        %2107 = vmatmul.mubr.bf16.gmra.mrb[0].mxu0 %v2069
        %v2108 = vpop.f32.mrb[0].mxu0
        %v2109 = vadd.f32 0.0, %v2108
        %v2110 = vpop.f32.mrb[0].mxu0
        %v2111 = vpop.f32.mrb[0].mxu0
        %v2112 = vadd.f32 0.0, %v2111
        %v2113 = vpop.f32.mrb[0].mxu0
        %2114 = vdwg.mxu0
        %v2115 = vpack.c.bf16 %v1681, %v1680
        %v2117 = vrot.slane %v2115, 2
        %2118 = vrot.lane.b32.xlu0 %v2015, 64
        %v2119 = vpop.permute.xlu0 %2118
        %v2121 = vsel %vm1572, %v2117, 0
        %v2124 = vsel %vm1688, %v2119, 0
        %2126 = vmatprep.subr.bf16.mxu0 0
        %2127 = vmatpush1.bf16.msra.mxu0 %v2124
        %2128 = vmatprep.subr.bf16.mxu0 0
        %2129 = vmatpush1.bf16.msra.mxu0 0
        %2130 = vmatprep.subr.bf16.mxu0 0
        %2131 = vmatpush1.bf16.msra.mxu0 0
        %2132 = vmatprep.subr.bf16.mxu0 0
        %2133 = vmatpush1.bf16.msra.mxu0 0
        %2134 = vmatprep.subr.bf16.mxu0 0
        %2135 = vmatpush1.bf16.msra.mxu0 0
        %2136 = vmatprep.subr.bf16.mxu0 0
        %2137 = vmatpush1.bf16.msra.mxu0 0
        %2138 = vmatprep.subr.bf16.mxu0 0
        %2139 = vmatpush1.bf16.msra.mxu0 0
        %2140 = vmatprep.subr.bf16.mxu0 0
        %2141 = vmatpush1.bf16.msra.mxu0 0
        %2142 = vmatprep.subr.bf16.mxu0 0
        %2143 = vmatpush1.bf16.msra.mxu0 0
        %2144 = vmatprep.subr.bf16.mxu0 0
        %2145 = vmatpush1.bf16.msra.mxu0 0
        %2146 = vmatprep.subr.bf16.mxu0 0
        %2147 = vmatpush1.bf16.msra.mxu0 0
        %2148 = vmatprep.subr.bf16.mxu0 0
        %2149 = vmatpush1.bf16.msra.mxu0 0
        %2150 = vmatprep.subr.bf16.mxu0 0
        %2151 = vmatpush1.bf16.msra.mxu0 0
        %2152 = vmatprep.subr.bf16.mxu0 0
        %2153 = vmatpush1.bf16.msra.mxu0 0
        %2154 = vmatprep.subr.bf16.mxu0 0
        %2155 = vmatpush1.bf16.msra.mxu0 0
        %2156 = vmatprep.subr.bf16.mxu0 0
        %2157 = vmatpush1.bf16.msra.mxu0 0
        %2158 = vmatprep.mubr.bf16.mxu0 0
        %2159 = vmatmul.mubr.bf16.gmra.mrb[0].mxu0 %v2121
        %v2160 = vpop.f32.mrb[0].mxu0
        %v2161 = vadd.f32 0.0, %v2160
        %v2162 = vpop.f32.mrb[0].mxu0
        %v2163 = vpop.f32.mrb[0].mxu0
        %v2164 = vadd.f32 0.0, %v2163
        %v2165 = vpop.f32.mrb[0].mxu0
        %2166 = vdwg.mxu0
        %v2167 = vpack.c.bf16 %v1682, %v1681
        %v2169 = vrot.slane %v2167, 3
        %2170 = vrot.lane.b32.xlu0 %v2015, 32
        %v2171 = vpop.permute.xlu0 %2170
        %v2173 = vsel %vm1572, %v2169, 0
        %v2176 = vsel %vm1688, %v2171, 0
        %2178 = vmatprep.subr.bf16.mxu0 0
        %2179 = vmatpush1.bf16.msra.mxu0 %v2176
        %2180 = vmatprep.subr.bf16.mxu0 0
        %2181 = vmatpush1.bf16.msra.mxu0 0
        %2182 = vmatprep.subr.bf16.mxu0 0
        %2183 = vmatpush1.bf16.msra.mxu0 0
        %2184 = vmatprep.subr.bf16.mxu0 0
        %2185 = vmatpush1.bf16.msra.mxu0 0
        %2186 = vmatprep.subr.bf16.mxu0 0
        %2187 = vmatpush1.bf16.msra.mxu0 0
        %2188 = vmatprep.subr.bf16.mxu0 0
        %2189 = vmatpush1.bf16.msra.mxu0 0
        %2190 = vmatprep.subr.bf16.mxu0 0
        %2191 = vmatpush1.bf16.msra.mxu0 0
        %2192 = vmatprep.subr.bf16.mxu0 0
        %2193 = vmatpush1.bf16.msra.mxu0 0
        %2194 = vmatprep.subr.bf16.mxu0 0
        %2195 = vmatpush1.bf16.msra.mxu0 0
        %2196 = vmatprep.subr.bf16.mxu0 0
        %2197 = vmatpush1.bf16.msra.mxu0 0
        %2198 = vmatprep.subr.bf16.mxu0 0
        %2199 = vmatpush1.bf16.msra.mxu0 0
        %2200 = vmatprep.subr.bf16.mxu0 0
        %2201 = vmatpush1.bf16.msra.mxu0 0
        %2202 = vmatprep.subr.bf16.mxu0 0
        %2203 = vmatpush1.bf16.msra.mxu0 0
        %2204 = vmatprep.subr.bf16.mxu0 0
        %2205 = vmatpush1.bf16.msra.mxu0 0
        %2206 = vmatprep.subr.bf16.mxu0 0
        %2207 = vmatpush1.bf16.msra.mxu0 0
        %2208 = vmatprep.subr.bf16.mxu0 0
        %2209 = vmatpush1.bf16.msra.mxu0 0
        %2210 = vmatprep.mubr.bf16.mxu0 0
        %2211 = vmatmul.mubr.bf16.gmra.mrb[0].mxu0 %v2173
        %v2212 = vpop.f32.mrb[0].mxu0
        %v2213 = vadd.f32 0.0, %v2212
        %v2214 = vpop.f32.mrb[0].mxu0
        %v2215 = vpop.f32.mrb[0].mxu0
        %v2216 = vadd.f32 0.0, %v2215
        %v2217 = vpop.f32.mrb[0].mxu0
        %2218 = vdwg.mxu0
        %2221 = vrot.lane.b32.xlu0 %v2109, 32
        %v2222 = vpop.permute.xlu0 %2221
        %2223 = vrot.lane.b32.xlu0 %v2112, 32
        %v2224 = vpop.permute.xlu0 %2223
        %2229 = vrot.lane.b32.xlu0 %v2161, 64
        %v2230 = vpop.permute.xlu0 %2229
        %2231 = vrot.lane.b32.xlu0 %v2164, 64
        %v2232 = vpop.permute.xlu0 %2231
        %2237 = vrot.lane.b32.xlu0 %v2213, 96
        %v2238 = vpop.permute.xlu0 %2237
        %2239 = vrot.lane.b32.xlu0 %v2216, 96
        %v2240 = vpop.permute.xlu0 %2239
        %v2243 = vsel %vm1092, %v2057, %v2222
        %v2244 = vsel %vm1092, %v2060, %v2224
        %v2245 = vsel %vm1916, %v2243, %v2230
        %v2246 = vsel %vm1916, %v2244, %v2232
        %v2247 = vsel %vm1919, %v2245, %v2238
        %v2248 = vsel %vm1919, %v2246, %v2240
        %v2249 = vpack.c.bf16 %v2248, %v2247
        %2250 = vmatprep.subr.bf16.mxu0 0
        %2251 = vmatpush1.bf16.msra.mxu0 %v1955
        %2252 = vmatprep.subr.bf16.mxu0 0
        %2253 = vmatpush1.bf16.msra.mxu0 %v1956
        %2254 = vmatprep.subr.bf16.mxu0 0
        %2255 = vmatpush1.bf16.msra.mxu0 %v1957
        %2256 = vmatprep.subr.bf16.mxu0 0
        %2257 = vmatpush1.bf16.msra.mxu0 %v1958
        %2258 = vmatprep.subr.bf16.mxu0 0
        %2259 = vmatpush1.bf16.msra.mxu0 %v1959
        %2260 = vmatprep.subr.bf16.mxu0 0
        %2261 = vmatpush1.bf16.msra.mxu0 %v1960
        %2262 = vmatprep.subr.bf16.mxu0 0
        %2263 = vmatpush1.bf16.msra.mxu0 %v1961
        %2264 = vmatprep.subr.bf16.mxu0 0
        %2265 = vmatpush1.bf16.msra.mxu0 %v1962
        %2266 = vmatprep.subr.bf16.mxu0 0
        %2267 = vmatpush1.bf16.msra.mxu0 0
        %2268 = vmatprep.subr.bf16.mxu0 0
        %2269 = vmatpush1.bf16.msra.mxu0 0
        %2270 = vmatprep.subr.bf16.mxu0 0
        %2271 = vmatpush1.bf16.msra.mxu0 0
        %2272 = vmatprep.subr.bf16.mxu0 0
        %2273 = vmatpush1.bf16.msra.mxu0 0
        %2274 = vmatprep.subr.bf16.mxu0 0
        %2275 = vmatpush1.bf16.msra.mxu0 0
        %2276 = vmatprep.subr.bf16.mxu0 0
        %2277 = vmatpush1.bf16.msra.mxu0 0
        %2278 = vmatprep.subr.bf16.mxu0 0
        %2279 = vmatpush1.bf16.msra.mxu0 0
        %2280 = vmatprep.subr.bf16.mxu0 0
        %2281 = vmatpush1.bf16.msra.mxu0 0
        %2282 = vmatprep.mubr.bf16.mxu0 0
        %2283 = vmatmul.mubr.bf16.gmra.mrb[0].mxu0 %v2249
        %v2284 = vpop.f32.mrb[0].mxu0
        %v2285 = vadd.f32 0.0, %v2284
        %v2286 = vpop.f32.mrb[0].mxu0
        %v2287 = vpop.f32.mrb[0].mxu0
        %v2288 = vadd.f32 0.0, %v2287
        %v2289 = vpop.f32.mrb[0].mxu0
        %2290 = vdwg.mxu0
        %v2293 = vrot.slane %v2285, 6
        %v2294 = vrot.slane %v2288, 6
        %v2295 = vsel %vm1503, %v2293, %v2294
        %v2298 = vsel %vm1503, %v2009, %v2293
        %v2299 = vld [vmem:[%s705] sm:$0x1]
        %v2301 = vlaneseq
        %v2302 = vshrl.u32 %v2301, 7
        %v2303 = vsub.s32 0, %v2302
        %v2304 = vrot.slane %v2299, %v2303
        %v2306 = vadd.f32 %v2006, %v2304
        %v2307 = vadd.f32 %v2298, %v2304
        %v2308 = vadd.f32 %v2295, %v2304
        %v2309 = vadd.f32 %v793, %v2306
        %v2310 = vadd.f32 %v794, %v2307
        %v2311 = vadd.f32 %v795, %v2308
        %v2312 = vld [vmem:[%s708] sm:$0x1]
        %v2313 = vld [vmem:[%s711] sm:$0x1]
        %2314 = vadd.xlane.f32.xlu0 %v2309
        %v2315 = vpop.xlane.xlu0 %2314
        %2316 = vadd.xlane.f32.xlu0 %v2310
        %v2317 = vpop.xlane.xlu0 %2316
        %v2318 = vsel %vm1511, %v2311, 0.0
        %2319 = vadd.xlane.f32.xlu0 %v2318
        %v2320 = vpop.xlane.xlu0 %2319
        %v2321 = vrcp.pop 128.0
        %v2322 = vmul.f32 %v2315, %v2321
        %v2323 = vmul.f32 %v2317, %v2321
        %v2324 = vmul.f32 %v2320, %v2321
        %v2325 = vsub.f32 %v2309, %v2322
        %v2326 = vsub.f32 %v2310, %v2323
        %v2327 = vsub.f32 %v2311, %v2324
        %v2328 = vmul.f32 %v2325, %v2325
        %v2329 = vmul.f32 %v2326, %v2326
        %v2330 = vmul.f32 %v2327, %v2327
        %2331 = vadd.xlane.f32.xlu0 %v2328
        %v2332 = vpop.xlane.xlu0 %2331
        %2333 = vadd.xlane.f32.xlu0 %v2329
        %v2334 = vpop.xlane.xlu0 %2333
        %v2335 = vsel %vm1511, %v2330, 0.0
        %2336 = vadd.xlane.f32.xlu0 %v2335
        %v2337 = vpop.xlane.xlu0 %2336
        %v2338 = vmul.f32 %v2332, %v2321
        %v2339 = vmul.f32 %v2334, %v2321
        %v2340 = vmul.f32 %v2337, %v2321
        %v2341 = vadd.f32 %v2338, 1e-12
        %v2342 = vadd.f32 %v2339, 1e-12
        %v2343 = vadd.f32 %v2340, 1e-12
        %v2344 = vrsqrt.pop %v2341
        %v2345 = vrsqrt.pop %v2342
        %v2346 = vrsqrt.pop %v2343
        %v2347 = vmul.f32 %v2325, %v2344
        %v2348 = vmul.f32 %v2326, %v2345
        %v2349 = vmul.f32 %v2327, %v2346
        %v2351 = vlaneseq
        %v2352 = vshrl.u32 %v2351, 7
        %v2353 = vsub.s32 0, %v2352
        %v2354 = vrot.slane %v2312, %v2353
        %v2356 = vmul.f32 %v2347, %v2354
        %v2357 = vmul.f32 %v2348, %v2354
        %v2358 = vmul.f32 %v2349, %v2354
        %v2360 = vlaneseq
        %v2361 = vshrl.u32 %v2360, 7
        %v2362 = vsub.s32 0, %v2361
        %v2363 = vrot.slane %v2313, %v2362
        %v2365 = vadd.f32 %v2356, %v2363
        %v2366 = vadd.f32 %v2357, %v2363
        %v2367 = vadd.f32 %v2358, %v2363
        %v2368 = vpack.c.bf16 %v2366, %v2365
        %v2369 = vpack.c.bf16 %v2367, %v2367
        %v2370 = vld [vmem:[%s595] sm:$0xff]
        %v2371 = vld [vmem:[%s595 + $0x8] sm:$0xff]
        %v2372 = vld [vmem:[%s595 + $0x10] sm:$0xff]
        %v2373 = vld [vmem:[%s595 + $0x18] sm:$0xff]
        %v2374 = vld [vmem:[%s595 + $0x20] sm:$0xff]
        %v2375 = vld [vmem:[%s595 + $0x28] sm:$0xff]
        %v2376 = vld [vmem:[%s595 + $0x30] sm:$0xff]
        %v2377 = vld [vmem:[%s595 + $0x38] sm:$0xff]
        %v2378 = vld [vmem:[%s595 + $0x40] sm:$0xff]
        %v2379 = vld [vmem:[%s595 + $0x48] sm:$0xff]
        %v2380 = vld [vmem:[%s595 + $0x50] sm:$0xff]
        %v2381 = vld [vmem:[%s595 + $0x58] sm:$0xff]
        %v2382 = vld [vmem:[%s595 + $0x60] sm:$0xff]
        %v2383 = vld [vmem:[%s595 + $0x68] sm:$0xff]
        %v2384 = vld [vmem:[%s595 + $0x70] sm:$0xff]
        %v2385 = vld [vmem:[%s595 + $0x78] sm:$0xff]
        %v2386 = vld [vmem:[%s715] sm:$0x3]
        %v2388 = vlaneseq
        %v2389 = vshrl.u32 %v2388, 7
        %v2390 = vsub.s32 0, %v2389
        %v2391 = vrot.slane %v2386, %v2390
        %v2392 = vlaneseq
        %v2393 = vshrl.u32 %v2392, 7
        %v2394 = vsub.s32 1, %v2393
        %v2395 = vrot.slane %v2386, %v2394
        %v2414 = vunpack.c.l.b16 %v2370
        %v2415 = vunpack.c.h.b16 %v2370
        %v2416 = vunpack.c.l.b16 %v2371
        %v2417 = vunpack.c.h.b16 %v2371
        %v2418 = vunpack.c.l.b16 %v2372
        %v2419 = vunpack.c.h.b16 %v2372
        %v2420 = vunpack.c.l.b16 %v2373
        %v2421 = vunpack.c.h.b16 %v2373
        %v2422 = vunpack.c.l.b16 %v2374
        %v2423 = vunpack.c.h.b16 %v2374
        %v2424 = vunpack.c.l.b16 %v2375
        %v2425 = vunpack.c.h.b16 %v2375
        %v2426 = vunpack.c.l.b16 %v2376
        %v2427 = vunpack.c.h.b16 %v2376
        %v2428 = vunpack.c.l.b16 %v2377
        %v2429 = vunpack.c.h.b16 %v2377
        %v2430 = vunpack.c.l.b16 %v2378
        %v2431 = vunpack.c.h.b16 %v2378
        %v2432 = vunpack.c.l.b16 %v2379
        %v2433 = vunpack.c.h.b16 %v2379
        %v2434 = vunpack.c.l.b16 %v2380
        %v2435 = vunpack.c.h.b16 %v2380
        %v2436 = vunpack.c.l.b16 %v2381
        %v2437 = vunpack.c.h.b16 %v2381
        %v2438 = vunpack.c.l.b16 %v2382
        %v2439 = vunpack.c.h.b16 %v2382
        %v2440 = vunpack.c.l.b16 %v2383
        %v2441 = vunpack.c.h.b16 %v2383
        %v2442 = vunpack.c.l.b16 %v2384
        %v2443 = vunpack.c.h.b16 %v2384
        %v2444 = vunpack.c.l.b16 %v2385
        %v2445 = vunpack.c.h.b16 %v2385
        %v2446 = vpack.c.b16 %v2416, %v2414
        %v2447 = vpack.c.b16 %v2417, %v2415
        %v2448 = vpack.c.b16 %v2420, %v2418
        %v2449 = vpack.c.b16 %v2421, %v2419
        %v2450 = vpack.c.b16 %v2424, %v2422
        %v2451 = vpack.c.b16 %v2425, %v2423
        %v2452 = vpack.c.b16 %v2428, %v2426
        %v2453 = vpack.c.b16 %v2429, %v2427
        %v2454 = vpack.c.b16 %v2432, %v2430
        %v2455 = vpack.c.b16 %v2433, %v2431
        %v2456 = vpack.c.b16 %v2436, %v2434
        %v2457 = vpack.c.b16 %v2437, %v2435
        %v2458 = vpack.c.b16 %v2440, %v2438
        %v2459 = vpack.c.b16 %v2441, %v2439
        %v2460 = vpack.c.b16 %v2444, %v2442
        %v2461 = vpack.c.b16 %v2445, %v2443
        %2478 = vmatprep.subr.bf16.mxu0 %v2447
        %2479 = vmatpush1.bf16.msra.mxu0 %v2446
        %2480 = vmatprep.subr.bf16.mxu0 %v2449
        %2481 = vmatpush1.bf16.msra.mxu0 %v2448
        %2482 = vmatprep.subr.bf16.mxu0 %v2451
        %2483 = vmatpush1.bf16.msra.mxu0 %v2450
        %2484 = vmatprep.subr.bf16.mxu0 %v2453
        %2485 = vmatpush1.bf16.msra.mxu0 %v2452
        %2486 = vmatprep.subr.bf16.mxu0 %v2455
        %2487 = vmatpush1.bf16.msra.mxu0 %v2454
        %2488 = vmatprep.subr.bf16.mxu0 %v2457
        %2489 = vmatpush1.bf16.msra.mxu0 %v2456
        %2490 = vmatprep.subr.bf16.mxu0 %v2459
        %2491 = vmatpush1.bf16.msra.mxu0 %v2458
        %2492 = vmatprep.subr.bf16.mxu0 %v2461
        %2493 = vmatpush1.bf16.msra.mxu0 %v2460
        %2494 = vmatprep.subr.bf16.mxu0 0
        %2495 = vmatpush1.bf16.msra.mxu0 0
        %2496 = vmatprep.subr.bf16.mxu0 0
        %2497 = vmatpush1.bf16.msra.mxu0 0
        %2498 = vmatprep.subr.bf16.mxu0 0
        %2499 = vmatpush1.bf16.msra.mxu0 0
        %2500 = vmatprep.subr.bf16.mxu0 0
        %2501 = vmatpush1.bf16.msra.mxu0 0
        %2502 = vmatprep.subr.bf16.mxu0 0
        %2503 = vmatpush1.bf16.msra.mxu0 0
        %2504 = vmatprep.subr.bf16.mxu0 0
        %2505 = vmatpush1.bf16.msra.mxu0 0
        %2506 = vmatprep.subr.bf16.mxu0 0
        %2507 = vmatpush1.bf16.msra.mxu0 0
        %2508 = vmatprep.subr.bf16.mxu0 0
        %2509 = vmatpush1.bf16.msra.mxu0 0
        %2510 = vmatprep.mubr.bf16.mxu0 0
        %2511 = vmatmul.mubr.bf16.gmra.mrb[0].mxu0 %v2368
        %v2512 = vpop.f32.mrb[0].mxu0
        %v2513 = vadd.f32 %v2391, %v2512
        %v2514 = vpop.f32.mrb[0].mxu0
        %v2515 = vadd.f32 %v2395, %v2514
        %v2516 = vpop.f32.mrb[0].mxu0
        %v2517 = vadd.f32 %v2391, %v2516
        %v2518 = vpop.f32.mrb[0].mxu0
        %v2519 = vadd.f32 %v2395, %v2518
        %2520 = vmatprep.mubr.bf16.mxu0 0
        %2521 = vmatmul.mubr.bf16.gmra.mrb[0].mxu0 %v2369
        %v2522 = vpop.f32.mrb[0].mxu0
        %v2523 = vadd.f32 %v2391, %v2522
        %v2524 = vpop.f32.mrb[0].mxu0
        %v2525 = vadd.f32 %v2395, %v2524
        %v2526 = vpop.f32.mrb[0].mxu0
        %v2527 = vpop.f32.mrb[0].mxu0
        %2528 = vdwg.mxu0
        %v2529 = vmul.f32 %v2513, %v2513
        %v2530 = vmul.f32 %v2515, %v2515
        %v2531 = vmul.f32 %v2517, %v2517
        %v2532 = vmul.f32 %v2519, %v2519
        %v2533 = vmul.f32 %v2523, %v2523
        %v2534 = vmul.f32 %v2525, %v2525
        %v2535 = vmul.f32 %v2513, %v2529
        %v2536 = vmul.f32 %v2515, %v2530
        %v2537 = vmul.f32 %v2517, %v2531
        %v2538 = vmul.f32 %v2519, %v2532
        %v2539 = vmul.f32 %v2523, %v2533
        %v2540 = vmul.f32 %v2525, %v2534
        %v2541 = vmul.f32 %v2535, 0.044715
        %v2542 = vmul.f32 %v2536, 0.044715
        %v2543 = vmul.f32 %v2537, 0.044715
        %v2544 = vmul.f32 %v2538, 0.044715
        %v2545 = vmul.f32 %v2539, 0.044715
        %v2546 = vmul.f32 %v2540, 0.044715
        %v2547 = vadd.f32 %v2513, %v2541
        %v2548 = vadd.f32 %v2515, %v2542
        %v2549 = vadd.f32 %v2517, %v2543
        %v2550 = vadd.f32 %v2519, %v2544
        %v2551 = vadd.f32 %v2523, %v2545
        %v2552 = vadd.f32 %v2525, %v2546
        %v2553 = vmul.f32 %v2547, 0.7978846
        %v2554 = vmul.f32 %v2548, 0.7978846
        %v2555 = vmul.f32 %v2549, 0.7978846
        %v2556 = vmul.f32 %v2550, 0.7978846
        %v2557 = vmul.f32 %v2551, 0.7978846
        %v2558 = vmul.f32 %v2552, 0.7978846
        %v2559 = vtanh.pop %v2553
        %v2560 = vtanh.pop %v2554
        %v2561 = vtanh.pop %v2555
        %v2562 = vtanh.pop %v2556
        %v2563 = vtanh.pop %v2557
        %v2564 = vtanh.pop %v2558
        %v2565 = vadd.f32 %v2559, 1.0
        %v2566 = vadd.f32 %v2560, 1.0
        %v2567 = vadd.f32 %v2561, 1.0
        %v2568 = vadd.f32 %v2562, 1.0
        %v2569 = vadd.f32 %v2563, 1.0
        %v2570 = vadd.f32 %v2564, 1.0
        %v2571 = vmul.f32 %v2565, 0.5
        %v2572 = vmul.f32 %v2566, 0.5
        %v2573 = vmul.f32 %v2567, 0.5
        %v2574 = vmul.f32 %v2568, 0.5
        %v2575 = vmul.f32 %v2569, 0.5
        %v2576 = vmul.f32 %v2570, 0.5
        %v2577 = vmul.f32 %v2513, %v2571
        %v2578 = vmul.f32 %v2515, %v2572
        %v2579 = vmul.f32 %v2517, %v2573
        %v2580 = vmul.f32 %v2519, %v2574
        %v2581 = vmul.f32 %v2523, %v2575
        %v2582 = vmul.f32 %v2525, %v2576
        %v2583 = vpack.c.bf16 %v2579, %v2577
        %v2584 = vpack.c.bf16 %v2580, %v2578
        %v2585 = vpack.c.bf16 %v2581, %v2581
        %v2586 = vpack.c.bf16 %v2582, %v2582
        %v2587 = vld [vmem:[%s604] sm:$0xf]
        %v2588 = vld [vmem:[%s604 + $0x4] sm:$0xf]
        %v2589 = vld [vmem:[%s604 + $0x8] sm:$0xf]
        %v2590 = vld [vmem:[%s604 + $0xc] sm:$0xf]
        %v2591 = vld [vmem:[%s604 + $0x10] sm:$0xf]
        %v2592 = vld [vmem:[%s604 + $0x14] sm:$0xf]
        %v2593 = vld [vmem:[%s604 + $0x18] sm:$0xf]
        %v2594 = vld [vmem:[%s604 + $0x1c] sm:$0xf]
        %v2595 = vld [vmem:[%s604 + $0x20] sm:$0xf]
        %v2596 = vld [vmem:[%s604 + $0x24] sm:$0xf]
        %v2597 = vld [vmem:[%s604 + $0x28] sm:$0xf]
        %v2598 = vld [vmem:[%s604 + $0x2c] sm:$0xf]
        %v2599 = vld [vmem:[%s604 + $0x30] sm:$0xf]
        %v2600 = vld [vmem:[%s604 + $0x34] sm:$0xf]
        %v2601 = vld [vmem:[%s604 + $0x38] sm:$0xf]
        %v2602 = vld [vmem:[%s604 + $0x3c] sm:$0xf]
        %v2603 = vld [vmem:[%s604 + $0x40] sm:$0xf]
        %v2604 = vld [vmem:[%s604 + $0x44] sm:$0xf]
        %v2605 = vld [vmem:[%s604 + $0x48] sm:$0xf]
        %v2606 = vld [vmem:[%s604 + $0x4c] sm:$0xf]
        %v2607 = vld [vmem:[%s604 + $0x50] sm:$0xf]
        %v2608 = vld [vmem:[%s604 + $0x54] sm:$0xf]
        %v2609 = vld [vmem:[%s604 + $0x58] sm:$0xf]
        %v2610 = vld [vmem:[%s604 + $0x5c] sm:$0xf]
        %v2611 = vld [vmem:[%s604 + $0x60] sm:$0xf]
        %v2612 = vld [vmem:[%s604 + $0x64] sm:$0xf]
        %v2613 = vld [vmem:[%s604 + $0x68] sm:$0xf]
        %v2614 = vld [vmem:[%s604 + $0x6c] sm:$0xf]
        %v2615 = vld [vmem:[%s604 + $0x70] sm:$0xf]
        %v2616 = vld [vmem:[%s604 + $0x74] sm:$0xf]
        %v2617 = vld [vmem:[%s604 + $0x78] sm:$0xf]
        %v2618 = vld [vmem:[%s604 + $0x7c] sm:$0xf]
        %v2619 = vld [vmem:[%s718] sm:$0x1]
        %v2621 = vlaneseq
        %v2622 = vshrl.u32 %v2621, 7
        %v2623 = vsub.s32 0, %v2622
        %v2624 = vrot.slane %v2619, %v2623
        %v2658 = vunpack.c.l.b16 %v2587
        %v2659 = vunpack.c.l.b16 %v2588
        %v2660 = vunpack.c.l.b16 %v2589
        %v2661 = vunpack.c.l.b16 %v2590
        %v2662 = vunpack.c.l.b16 %v2591
        %v2663 = vunpack.c.l.b16 %v2592
        %v2664 = vunpack.c.l.b16 %v2593
        %v2665 = vunpack.c.l.b16 %v2594
        %v2666 = vunpack.c.l.b16 %v2595
        %v2667 = vunpack.c.l.b16 %v2596
        %v2668 = vunpack.c.l.b16 %v2597
        %v2669 = vunpack.c.l.b16 %v2598
        %v2670 = vunpack.c.l.b16 %v2599
        %v2671 = vunpack.c.l.b16 %v2600
        %v2672 = vunpack.c.l.b16 %v2601
        %v2673 = vunpack.c.l.b16 %v2602
        %v2674 = vunpack.c.l.b16 %v2603
        %v2675 = vunpack.c.l.b16 %v2604
        %v2676 = vunpack.c.l.b16 %v2605
        %v2677 = vunpack.c.l.b16 %v2606
        %v2678 = vunpack.c.l.b16 %v2607
        %v2679 = vunpack.c.l.b16 %v2608
        %v2680 = vunpack.c.l.b16 %v2609
        %v2681 = vunpack.c.l.b16 %v2610
        %v2682 = vunpack.c.l.b16 %v2611
        %v2683 = vunpack.c.l.b16 %v2612
        %v2684 = vunpack.c.l.b16 %v2613
        %v2685 = vunpack.c.l.b16 %v2614
        %v2686 = vunpack.c.l.b16 %v2615
        %v2687 = vunpack.c.l.b16 %v2616
        %v2688 = vunpack.c.l.b16 %v2617
        %v2689 = vunpack.c.l.b16 %v2618
        %v2690 = vpack.c.b16 %v2659, %v2658
        %v2691 = vpack.c.b16 %v2661, %v2660
        %v2692 = vpack.c.b16 %v2663, %v2662
        %v2693 = vpack.c.b16 %v2665, %v2664
        %v2694 = vpack.c.b16 %v2667, %v2666
        %v2695 = vpack.c.b16 %v2669, %v2668
        %v2696 = vpack.c.b16 %v2671, %v2670
        %v2697 = vpack.c.b16 %v2673, %v2672
        %v2698 = vpack.c.b16 %v2675, %v2674
        %v2699 = vpack.c.b16 %v2677, %v2676
        %v2700 = vpack.c.b16 %v2679, %v2678
        %v2701 = vpack.c.b16 %v2681, %v2680
        %v2702 = vpack.c.b16 %v2683, %v2682
        %v2703 = vpack.c.b16 %v2685, %v2684
        %v2704 = vpack.c.b16 %v2687, %v2686
        %v2705 = vpack.c.b16 %v2689, %v2688
        %2722 = vmatprep.subr.bf16.mxu0 0
        %2723 = vmatpush1.bf16.msra.mxu0 %v2690
        %2724 = vmatprep.subr.bf16.mxu0 0
        %2725 = vmatpush1.bf16.msra.mxu0 %v2691
        %2726 = vmatprep.subr.bf16.mxu0 0
        %2727 = vmatpush1.bf16.msra.mxu0 %v2692
        %2728 = vmatprep.subr.bf16.mxu0 0
        %2729 = vmatpush1.bf16.msra.mxu0 %v2693
        %2730 = vmatprep.subr.bf16.mxu0 0
        %2731 = vmatpush1.bf16.msra.mxu0 %v2694
        %2732 = vmatprep.subr.bf16.mxu0 0
        %2733 = vmatpush1.bf16.msra.mxu0 %v2695
        %2734 = vmatprep.subr.bf16.mxu0 0
        %2735 = vmatpush1.bf16.msra.mxu0 %v2696
        %2736 = vmatprep.subr.bf16.mxu0 0
        %2737 = vmatpush1.bf16.msra.mxu0 %v2697
        %2738 = vmatprep.subr.bf16.mxu0 0
        %2739 = vmatpush1.bf16.msra.mxu0 %v2698
        %2740 = vmatprep.subr.bf16.mxu0 0
        %2741 = vmatpush1.bf16.msra.mxu0 %v2699
        %2742 = vmatprep.subr.bf16.mxu0 0
        %2743 = vmatpush1.bf16.msra.mxu0 %v2700
        %2744 = vmatprep.subr.bf16.mxu0 0
        %2745 = vmatpush1.bf16.msra.mxu0 %v2701
        %2746 = vmatprep.subr.bf16.mxu0 0
        %2747 = vmatpush1.bf16.msra.mxu0 %v2702
        %2748 = vmatprep.subr.bf16.mxu0 0
        %2749 = vmatpush1.bf16.msra.mxu0 %v2703
        %2750 = vmatprep.subr.bf16.mxu0 0
        %2751 = vmatpush1.bf16.msra.mxu0 %v2704
        %2752 = vmatprep.subr.bf16.mxu0 0
        %2753 = vmatpush1.bf16.msra.mxu0 %v2705
        %2754 = vmatprep.mubr.bf16.mxu0 %v2584
        %2755 = vmatmul.mubr.bf16.gmra.mrb[0].mxu0 %v2583
        %v2756 = vpop.f32.mrb[0].mxu0
        %v2757 = vadd.f32 %v2624, %v2756
        %v2758 = vpop.f32.mrb[0].mxu0
        %v2759 = vpop.f32.mrb[0].mxu0
        %v2760 = vadd.f32 %v2624, %v2759
        %v2761 = vpop.f32.mrb[0].mxu0
        %2762 = vmatprep.mubr.bf16.mxu0 %v2586
        %2763 = vmatmul.mubr.bf16.gmra.mrb[0].mxu0 %v2585
        %v2764 = vpop.f32.mrb[0].mxu0
        %v2765 = vadd.f32 %v2624, %v2764
        %v2766 = vpop.f32.mrb[0].mxu0
        %v2767 = vpop.f32.mrb[0].mxu0
        %v2768 = vpop.f32.mrb[0].mxu0
        %2769 = vdwg.mxu0
        %v2770 = vadd.f32 %v2365, %v2757
        %v2771 = vadd.f32 %v2366, %v2760
        %v2772 = vadd.f32 %v2367, %v2765
        %v2773 = vld [vmem:[%s721] sm:$0x1]
        %v2774 = vld [vmem:[%s724] sm:$0x1]
        %2775 = vadd.xlane.f32.xlu0 %v2770
        %v2776 = vpop.xlane.xlu0 %2775
        %2777 = vadd.xlane.f32.xlu0 %v2771
        %v2778 = vpop.xlane.xlu0 %2777
        %v2779 = vsel %vm1511, %v2772, 0.0
        %2780 = vadd.xlane.f32.xlu0 %v2779
        %v2781 = vpop.xlane.xlu0 %2780
        %v2782 = vmul.f32 %v2776, %v2321
        %v2783 = vmul.f32 %v2778, %v2321
        %v2784 = vmul.f32 %v2781, %v2321
        %v2785 = vsub.f32 %v2770, %v2782
        %v2786 = vsub.f32 %v2771, %v2783
        %v2787 = vsub.f32 %v2772, %v2784
        %v2788 = vmul.f32 %v2785, %v2785
        %v2789 = vmul.f32 %v2786, %v2786
        %v2790 = vmul.f32 %v2787, %v2787
        %2791 = vadd.xlane.f32.xlu0 %v2788
        %v2792 = vpop.xlane.xlu0 %2791
        %2793 = vadd.xlane.f32.xlu0 %v2789
        %v2794 = vpop.xlane.xlu0 %2793
        %v2795 = vsel %vm1511, %v2790, 0.0
        %2796 = vadd.xlane.f32.xlu0 %v2795
        %v2797 = vpop.xlane.xlu0 %2796
        %v2798 = vmul.f32 %v2792, %v2321
        %v2799 = vmul.f32 %v2794, %v2321
        %v2800 = vmul.f32 %v2797, %v2321
        %v2801 = vadd.f32 %v2798, 1e-12
        %v2802 = vadd.f32 %v2799, 1e-12
        %v2803 = vadd.f32 %v2800, 1e-12
        %v2804 = vrsqrt.pop %v2801
        %v2805 = vrsqrt.pop %v2802
        %v2806 = vrsqrt.pop %v2803
        %v2807 = vmul.f32 %v2785, %v2804
        %v2808 = vmul.f32 %v2786, %v2805
        %v2809 = vmul.f32 %v2787, %v2806
        %v2811 = vlaneseq
        %v2812 = vshrl.u32 %v2811, 7
        %v2813 = vsub.s32 0, %v2812
        %v2814 = vrot.slane %v2773, %v2813
        %v2816 = vmul.f32 %v2807, %v2814
        %v2817 = vmul.f32 %v2808, %v2814
        %v2818 = vmul.f32 %v2809, %v2814
        %v2820 = vlaneseq
        %v2821 = vshrl.u32 %v2820, 7
        %v2822 = vsub.s32 0, %v2821
        %v2823 = vrot.slane %v2774, %v2822
        %v2825 = vadd.f32 %v2816, %v2823
        %v2826 = vadd.f32 %v2817, %v2823
        %v2827 = vadd.f32 %v2818, %v2823
        %2828 = vst [vmem:[#allocation2] sm:$0xff] %v2825
        %2829 = vst [vmem:[#allocation2 + $0x8] sm:$0xff] %v2826
        %2830 = vst [vmem:[#allocation2 + $0x10] sm:$0xf] %v2827
        %p2831 = scmp.eq.s32.totalorder %s33, 1
        // Predicated region
        $region97: #{forward.2} parent=83 // pred_check
          %p2832 = pneg %p2831
        $region98: #{forward.2} parent=83 // pred_check_branch
          %2834 = sbr.rel (%p2832) target = $region100
        $region99: #{forward.2} parent=83 // pred_region
          %2835 = vst [vmem:[%s16] sm:$0xff] %v2825
          %2836 = vst [vmem:[%s16 + $0x8] sm:$0xff] %v2826
          %2837 = vst [vmem:[%s16 + $0x10] sm:$0xf] %v2827
        $region100: #{forward.2} parent=83 // pred_fallthru
          _
        // Predicated region
        $region101: #{forward.2} parent=83 // pred_check
          %p2838 = pneg %p442
        $region102: #{forward.2} parent=83 // pred_check_branch
          %2840 = sbr.rel (%p2838) target = $region104
        $region103: #{forward.2} parent=83 // pred_region
          _
        $region104: #{forward.2} parent=83 // pred_fallthru
          _
        // Predicated region
        $region105: #{forward.2} parent=83 // pred_check
          %p2841 = pneg %p442
        $region106: #{forward.2} parent=83 // pred_check_branch
          %2843 = sbr.rel (%p2841) target = $region108
        $region107: #{forward.2} parent=83 // pred_region
          _
        $region108: #{forward.2} parent=83 // pred_fallthru
          _
      $region84: #{forward.2} parent=5 // pred_fallthru
        _
      %p2844 = scmp.le.s32.totalorder 2, %s28
      // Predicated region
      $region109: #{forward.2} parent=5 // pred_check
        %p2845 = pneg %p2844
      $region110: #{forward.2} parent=5 // pred_check_branch
        %2847 = sbr.rel (%p2845) target = $region112
      $region111: #{forward.2} parent=5 // pred_region
        %s2848 = ssub.s32 %s28, 2
      $region112: #{forward.2} parent=5 // pred_fallthru
        _
    $region6: #{forward.2} parent=1 // loop_footer
      %s32 = sadd.s32 1, %s28
    $region7: #{forward.2} parent=1 // loop_footer_branch
      %27 = sbr.rel target = $region3
    $region8: #{forward.2} parent=1 // loop_exit
      _
    %2849 = vsyncpa [#allocation4], 1
    %s2850 = scalar_lea.sflag [#allocation4], 1
    %2851 = vsyncpa %s2850, 1
    %2852 = vsyncpa [#allocation6], 1
    %s2853 = scalar_lea.sflag [#allocation6], 1
    %2854 = vsyncpa %s2853, 1

// kernel: forward.3
$region0: #{forward.3}
  #allocation0 [shape = 'u32[]', space=smem, size = 0x4, offset = 0x4, fixed_abs, tag = 'smem constant byte address 0x4 - core index']
  #allocation1 [shape = 'u32[144,128]{1,0:T(1,128)}', space=vmem, size = 0x12000, scoped, tag = 'internal scratch']
  #allocation2 [shape = 'f32[16,128]{1,0:T(8,128)}', space=vmem, size = 0x2000, scoped, tag = 'scratch operand']
  #allocation3 [shape = 's32[1]{0}', space=sflag, size = 0x4, scoped, tag = 'scoped memory for forward.3']
  #allocation4 [shape = 'u8[512]{0}', space=smem, size = 0x200, scoped, tag = 'prefetched SMEM operand 0']
  %s0 = inlined_call_operand.vmem [shape: s32[2], index: 0, kind: input, shape index: {}]
  %s1 = inlined_call_operand.vmem [shape: f32[16,128], index: 1, kind: input, shape index: {}]
  %s2 = inlined_call_operand.vmem [shape: bf16[2,128,512], index: 2, kind: input, shape index: {}]
  %s3 = inlined_call_operand.vmem [shape: bf16[2,128,512], index: 3, kind: input, shape index: {}]
  %s4 = inlined_call_operand.vmem [shape: f32[2,1,512], index: 4, kind: input, shape index: {}]
  %s5 = inlined_call_operand.vmem [shape: bf16[128,8], index: 5, kind: input, shape index: {}]
  %s6 = inlined_call_operand.vmem [shape: f32[1,8], index: 6, kind: input, shape index: {}]
  %s7 = inlined_call_operand.vmem [shape: f32[8,8], index: 7, kind: input, shape index: {}]
  %s8 = inlined_call_operand.vmem [shape: s32[2,8,8], index: 8, kind: output, shape index: {0}]
  %s9 = inlined_call_operand.vmem [shape: f32[2,8], index: 9, kind: output, shape index: {1}]
  %10 = xla_tuple %s8, %s9
  %s11 = sld [smem:[#allocation0]]
  $region77: #{forward.3} parent=0
    _
  %s13 = ssub.s32 1, %s11
  %s14 = scalar_select 0, %s13, %s11
  %s15 = sshll.u32 %s0, 4
  %s16 = int_to_ptr.vmem [resolvable:$true] %s15
  %18 = dma.vmem_to_smem %s16, 16, [#allocation4], [#allocation3]
  %19 = dma.done [#allocation3], 16
  %20 = sfence
  loop: start=0, step=1, limit=4
  $region2: #{forward.3} parent=0 // loop_pre_header
    _
  $region3: #{forward.3} parent=0 // loop_header
    %s22 = sphi 0, %s26
    %p23 = scmp.ge.s32.totalorder %s22, 4
    %s30 = sphi 0, %s30
    %s32 = sphi 0, %s30
    %s33 = sphi 0, %s32
    %s47 = sphi 0, %s33
    %s53 = sphi 0, %s55
    %s56 = sphi 0, %s53
    %s57 = sphi 0, %s56
    %s73 = sphi 0, %s57
    %s79 = sphi 0, %s81
    %s82 = sphi 0, %s79
    %s83 = sphi 0, %s82
    %s99 = sphi 0, %s83
    %s105 = sphi 0, %s107
    %s108 = sphi 0, %s105
    %s109 = sphi 0, %s108
    %s125 = sphi 0, %s109
    %s129 = sphi 0, %s129
    %s131 = sphi 0, %s129
    %s132 = sphi 0, %s131
    %s146 = sphi 0, %s132
    %s150 = sphi 0, %s150
    %s152 = sphi 0, %s150
    %s153 = sphi 0, %s152
    %s167 = sphi 0, %s153
    %s171 = sphi 0, %s171
    %s173 = sphi 0, %s171
    %s174 = sphi 0, %s173
    %s188 = sphi 0, %s174
    %s192 = sphi 0, %s192
    %s194 = sphi 0, %s192
    %s195 = sphi 0, %s194
    %s209 = sphi 0, %s195
    %s213 = sphi 0, %s213
    %s215 = sphi 0, %s213
    %s216 = sphi 0, %s215
    %s230 = sphi 0, %s216
  $region4: #{forward.3} parent=0 // loop_header_branch
    %25 = sbr.rel (%p23) target = $region8
  $region5: #{forward.3} parent=0 // loop_body
    %s27 = ssub.s32 %s22, 1
    %s28 = ssub.s32 %s22, 2
    %s29 = sadd.s32 %s22, 1
    %s31 = sadd.s32 %s30, 1
    %p34 = scmp.eq.s32.totalorder %s22, 1
    %p35 = scmp.ne.s32.totalorder %s30, %s32
    %p36 = scmp.eq.s32.totalorder %s22, 0
    %p37 = por %p35, %p36
    %p38 = scmp.ne.s32.totalorder %s30, %s32
    %p39 = scmp.eq.s32.totalorder %s27, 1
    %p40 = por %p38, %p39
    %p41 = scmp.ne.s32.totalorder %s32, %s33
    %p42 = scmp.eq.s32.totalorder %s27, 0
    %p43 = por %p41, %p42
    %p44 = scmp.ne.s32.totalorder %s32, %s33
    %p45 = scmp.eq.s32.totalorder %s28, 1
    %p46 = por %p44, %p45
    %p48 = scmp.ne.s32.totalorder %s33, %s47
    %p49 = scmp.eq.s32.totalorder %s28, 0
    %p50 = por %p48, %p49
    %s51 = ssub.s32 %s22, %s29
    %p52 = scmp.eq.s32.totalorder %s51, 0
    %s54 = sadd.s32 %s53, 1
    %s55 = scalar_select %p52, %s53, %s54
    %p58 = pneg %p52
    %p59 = scmp.eq.s32.totalorder %s22, 1
    %p60 = por %p58, %p59
    %p61 = scmp.ne.s32.totalorder %s53, %s56
    %p62 = scmp.eq.s32.totalorder %s22, 0
    %p63 = por %p61, %p62
    %p64 = scmp.ne.s32.totalorder %s53, %s56
    %p65 = scmp.eq.s32.totalorder %s27, 1
    %p66 = por %p64, %p65
    %p67 = scmp.ne.s32.totalorder %s56, %s57
    %p68 = scmp.eq.s32.totalorder %s27, 0
    %p69 = por %p67, %p68
    %p70 = scmp.ne.s32.totalorder %s56, %s57
    %p71 = scmp.eq.s32.totalorder %s28, 1
    %p72 = por %p70, %p71
    %p74 = scmp.ne.s32.totalorder %s57, %s73
    %p75 = scmp.eq.s32.totalorder %s28, 0
    %p76 = por %p74, %p75
    %s77 = ssub.s32 %s22, %s29
    %p78 = scmp.eq.s32.totalorder %s77, 0
    %s80 = sadd.s32 %s79, 1
    %s81 = scalar_select %p78, %s79, %s80
    %p84 = pneg %p78
    %p85 = scmp.eq.s32.totalorder %s22, 1
    %p86 = por %p84, %p85
    %p87 = scmp.ne.s32.totalorder %s79, %s82
    %p88 = scmp.eq.s32.totalorder %s22, 0
    %p89 = por %p87, %p88
    %p90 = scmp.ne.s32.totalorder %s79, %s82
    %p91 = scmp.eq.s32.totalorder %s27, 1
    %p92 = por %p90, %p91
    %p93 = scmp.ne.s32.totalorder %s82, %s83
    %p94 = scmp.eq.s32.totalorder %s27, 0
    %p95 = por %p93, %p94
    %p96 = scmp.ne.s32.totalorder %s82, %s83
    %p97 = scmp.eq.s32.totalorder %s28, 1
    %p98 = por %p96, %p97
    %p100 = scmp.ne.s32.totalorder %s83, %s99
    %p101 = scmp.eq.s32.totalorder %s28, 0
    %p102 = por %p100, %p101
    %s103 = ssub.s32 %s22, %s29
    %p104 = scmp.eq.s32.totalorder %s103, 0
    %s106 = sadd.s32 %s105, 1
    %s107 = scalar_select %p104, %s105, %s106
    %p110 = pneg %p104
    %p111 = scmp.eq.s32.totalorder %s22, 1
    %p112 = por %p110, %p111
    %p113 = scmp.ne.s32.totalorder %s105, %s108
    %p114 = scmp.eq.s32.totalorder %s22, 0
    %p115 = por %p113, %p114
    %p116 = scmp.ne.s32.totalorder %s105, %s108
    %p117 = scmp.eq.s32.totalorder %s27, 1
    %p118 = por %p116, %p117
    %p119 = scmp.ne.s32.totalorder %s108, %s109
    %p120 = scmp.eq.s32.totalorder %s27, 0
    %p121 = por %p119, %p120
    %p122 = scmp.ne.s32.totalorder %s108, %s109
    %p123 = scmp.eq.s32.totalorder %s28, 1
    %p124 = por %p122, %p123
    %p126 = scmp.ne.s32.totalorder %s109, %s125
    %p127 = scmp.eq.s32.totalorder %s28, 0
    %p128 = por %p126, %p127
    %s130 = sadd.s32 %s129, 1
    %p133 = scmp.eq.s32.totalorder %s22, 1
    %p134 = scmp.ne.s32.totalorder %s129, %s131
    %p135 = scmp.eq.s32.totalorder %s22, 0
    %p136 = por %p134, %p135
    %p137 = scmp.ne.s32.totalorder %s129, %s131
    %p138 = scmp.eq.s32.totalorder %s27, 1
    %p139 = por %p137, %p138
    %p140 = scmp.ne.s32.totalorder %s131, %s132
    %p141 = scmp.eq.s32.totalorder %s27, 0
    %p142 = por %p140, %p141
    %p143 = scmp.ne.s32.totalorder %s131, %s132
    %p144 = scmp.eq.s32.totalorder %s28, 1
    %p145 = por %p143, %p144
    %p147 = scmp.ne.s32.totalorder %s132, %s146
    %p148 = scmp.eq.s32.totalorder %s28, 0
    %p149 = por %p147, %p148
    %s151 = sadd.s32 %s150, 1
    %p154 = scmp.eq.s32.totalorder %s22, 1
    %p155 = scmp.ne.s32.totalorder %s150, %s152
    %p156 = scmp.eq.s32.totalorder %s22, 0
    %p157 = por %p155, %p156
    %p158 = scmp.ne.s32.totalorder %s150, %s152
    %p159 = scmp.eq.s32.totalorder %s27, 1
    %p160 = por %p158, %p159
    %p161 = scmp.ne.s32.totalorder %s152, %s153
    %p162 = scmp.eq.s32.totalorder %s27, 0
    %p163 = por %p161, %p162
    %p164 = scmp.ne.s32.totalorder %s152, %s153
    %p165 = scmp.eq.s32.totalorder %s28, 1
    %p166 = por %p164, %p165
    %p168 = scmp.ne.s32.totalorder %s153, %s167
    %p169 = scmp.eq.s32.totalorder %s28, 0
    %p170 = por %p168, %p169
    %s172 = sadd.s32 %s171, 1
    %p175 = scmp.eq.s32.totalorder %s22, 1
    %p176 = scmp.ne.s32.totalorder %s171, %s173
    %p177 = scmp.eq.s32.totalorder %s22, 0
    %p178 = por %p176, %p177
    %p179 = scmp.ne.s32.totalorder %s171, %s173
    %p180 = scmp.eq.s32.totalorder %s27, 1
    %p181 = por %p179, %p180
    %p182 = scmp.ne.s32.totalorder %s173, %s174
    %p183 = scmp.eq.s32.totalorder %s27, 0
    %p184 = por %p182, %p183
    %p185 = scmp.ne.s32.totalorder %s173, %s174
    %p186 = scmp.eq.s32.totalorder %s28, 1
    %p187 = por %p185, %p186
    %p189 = scmp.ne.s32.totalorder %s174, %s188
    %p190 = scmp.eq.s32.totalorder %s28, 0
    %p191 = por %p189, %p190
    %s193 = sadd.s32 %s192, 1
    %p196 = scmp.eq.s32.totalorder %s22, 1
    %p197 = scmp.ne.s32.totalorder %s192, %s194
    %p198 = scmp.eq.s32.totalorder %s22, 0
    %p199 = por %p197, %p198
    %p200 = scmp.ne.s32.totalorder %s192, %s194
    %p201 = scmp.eq.s32.totalorder %s27, 1
    %p202 = por %p200, %p201
    %p203 = scmp.ne.s32.totalorder %s194, %s195
    %p204 = scmp.eq.s32.totalorder %s27, 0
    %p205 = por %p203, %p204
    %p206 = scmp.ne.s32.totalorder %s194, %s195
    %p207 = scmp.eq.s32.totalorder %s28, 1
    %p208 = por %p206, %p207
    %p210 = scmp.ne.s32.totalorder %s195, %s209
    %p211 = scmp.eq.s32.totalorder %s28, 0
    %p212 = por %p210, %p211
    %s214 = sadd.s32 %s213, 1
    %p217 = scmp.eq.s32.totalorder %s22, 1
    %p218 = scmp.ne.s32.totalorder %s213, %s215
    %p219 = scmp.eq.s32.totalorder %s22, 0
    %p220 = por %p218, %p219
    %p221 = scmp.ne.s32.totalorder %s213, %s215
    %p222 = scmp.eq.s32.totalorder %s27, 1
    %p223 = por %p221, %p222
    %p224 = scmp.ne.s32.totalorder %s215, %s216
    %p225 = scmp.eq.s32.totalorder %s27, 0
    %p226 = por %p224, %p225
    %p227 = scmp.ne.s32.totalorder %s215, %s216
    %p228 = scmp.eq.s32.totalorder %s28, 1
    %p229 = por %p227, %p228
    %p231 = scmp.ne.s32.totalorder %s216, %s230
    %p232 = scmp.eq.s32.totalorder %s28, 0
    %p233 = por %p231, %p232
    %p234 = scmp.le.s32.totalorder 1, %s22
    %p235 = scmp.lt.s32.totalorder %s22, 3
    %p236 = pnand %p234, %p235
    %p237 = pneg %p236
    // Predicated region
    $region9: #{forward.3} parent=5 // pred_check
      _
    $region10: #{forward.3} parent=5 // pred_check_branch
      %239 = sbr.rel (%p236) target = $region12
    $region11: #{forward.3} parent=5 // pred_region
      %s240 = ssub.s32 %s22, 1
      // Predicated region
      $region13: #{forward.3} parent=11 // pred_check
        %p241 = pneg %p43
      $region14: #{forward.3} parent=11 // pred_check_branch
        %243 = sbr.rel (%p241) target = $region16
      $region15: #{forward.3} parent=11 // pred_region
        _
      $region16: #{forward.3} parent=11 // pred_fallthru
        _
      // Predicated region
      $region17: #{forward.3} parent=11 // pred_check
        %p244 = pneg %p142
      $region18: #{forward.3} parent=11 // pred_check_branch
        %246 = sbr.rel (%p244) target = $region20
      $region19: #{forward.3} parent=11 // pred_region
        _
      $region20: #{forward.3} parent=11 // pred_fallthru
        _
      // Predicated region
      $region21: #{forward.3} parent=11 // pred_check
        %p247 = pneg %p163
      $region22: #{forward.3} parent=11 // pred_check_branch
        %249 = sbr.rel (%p247) target = $region24
      $region23: #{forward.3} parent=11 // pred_region
        _
      $region24: #{forward.3} parent=11 // pred_fallthru
        _
      // Predicated region
      $region25: #{forward.3} parent=11 // pred_check
        %p250 = pneg %p184
      $region26: #{forward.3} parent=11 // pred_check_branch
        %252 = sbr.rel (%p250) target = $region28
      $region27: #{forward.3} parent=11 // pred_region
        _
      $region28: #{forward.3} parent=11 // pred_fallthru
        _
    $region12: #{forward.3} parent=5 // pred_fallthru
      _
    %p253 = scmp.lt.s32.totalorder %s22, 2
    // Predicated region
    $region29: #{forward.3} parent=5 // pred_check
      %p254 = pneg %p253
    $region30: #{forward.3} parent=5 // pred_check_branch
      %256 = sbr.rel (%p254) target = $region32
    $region31: #{forward.3} parent=5 // pred_region
      // Predicated region
      $region33: #{forward.3} parent=31 // pred_check
        %p257 = pneg %p63
      $region34: #{forward.3} parent=31 // pred_check_branch
        %259 = sbr.rel (%p257) target = $region36
      $region35: #{forward.3} parent=31 // pred_region
        %p260 = scmp.lt.s32.totalorder %s22, 1
        %s261 = scalar_select %p260, %s22, 1
        %s262 = smul.addr %s261, 64
        %s263 = smul.addr %s262, 4
        %s264 = scalar_lea.vmem %s2, %s263
      $region36: #{forward.3} parent=31 // pred_fallthru
        _
      // Predicated region
      $region37: #{forward.3} parent=31 // pred_check
        %p265 = pneg %p89
      $region38: #{forward.3} parent=31 // pred_check_branch
        %267 = sbr.rel (%p265) target = $region40
      $region39: #{forward.3} parent=31 // pred_region
        %p268 = scmp.lt.s32.totalorder %s22, 1
        %s269 = scalar_select %p268, %s22, 1
        %s270 = smul.addr %s269, 64
        %s271 = smul.addr %s270, 4
        %s272 = scalar_lea.vmem %s3, %s271
      $region40: #{forward.3} parent=31 // pred_fallthru
        _
      // Predicated region
      $region41: #{forward.3} parent=31 // pred_check
        %p273 = pneg %p115
      $region42: #{forward.3} parent=31 // pred_check_branch
        %275 = sbr.rel (%p273) target = $region44
      $region43: #{forward.3} parent=31 // pred_region
        %p276 = scmp.lt.s32.totalorder %s22, 1
        %s277 = scalar_select %p276, %s22, 1
        %s278 = smul.addr %s277, 4
        %s279 = scalar_lea.vmem %s4, %s278
      $region44: #{forward.3} parent=31 // pred_fallthru
        _
    $region32: #{forward.3} parent=5 // pred_fallthru
      _
    %p280 = scmp.le.s32.totalorder 1, %s22
    %p281 = scmp.lt.s32.totalorder %s22, 3
    %p282 = pnand %p280, %p281
    %p283 = pneg %p282
    // Predicated region
    $region45: #{forward.3} parent=5 // pred_check
      _
    $region46: #{forward.3} parent=5 // pred_check_branch
      %285 = sbr.rel (%p282) target = $region48
    $region47: #{forward.3} parent=5 // pred_region
      %s286 = ssub.s32 %s22, 1
      %p287 = pneg %p43
      %p288 = pneg %p40
      %p289 = scmp.lt.s32.totalorder %s27, 1
      %s290 = scalar_select %p289, %s27, 1
      %s291 = smul.addr %s290, 64
      %s292 = smul.addr %s291, 4
      %s293 = scalar_lea.vmem %s2, %s292
      %p294 = pneg %p69
      %p295 = pneg %p66
      %p296 = scmp.lt.s32.totalorder %s27, 1
      %s297 = scalar_select %p296, %s27, 1
      %s298 = smul.addr %s297, 64
      %s299 = smul.addr %s298, 4
      %s300 = scalar_lea.vmem %s3, %s299
      %p301 = pneg %p95
      %p302 = pneg %p92
      %p303 = scmp.lt.s32.totalorder %s27, 1
      %s304 = scalar_select %p303, %s27, 1
      %s305 = smul.addr %s304, 4
      %s306 = scalar_lea.vmem %s4, %s305
      %p307 = pneg %p121
      %p308 = pneg %p118
      %p309 = pneg %p142
      %p310 = pneg %p139
      %p311 = pneg %p163
      %p312 = pneg %p160
      %p313 = pneg %p184
      %p314 = pneg %p181
      %p315 = pneg %p205
      %p316 = pneg %p202
      %p317 = pneg %p226
      %p318 = pneg %p223
      %p319 = scmp.lt.s32.totalorder %s27, 1
      %s320 = scalar_select %p319, %s27, 1
      %s321 = smul.addr %s320, 64
      %s322 = smul.addr %s321, 4
      %s323 = scalar_lea.vmem %s2, %s322
      %p324 = scmp.lt.s32.totalorder %s27, 1
      %s325 = scalar_select %p324, %s27, 1
      %s326 = smul.addr %s325, 64
      %s327 = smul.addr %s326, 4
      %s328 = scalar_lea.vmem %s3, %s327
      %p329 = scmp.lt.s32.totalorder %s27, 1
      %s330 = scalar_select %p329, %s27, 1
      %s331 = smul.addr %s330, 4
      %s332 = scalar_lea.vmem %s4, %s331
      %p334 = scmp.eq.s32.totalorder %s27, 0
      // Predicated region
      $region49: #{forward.3} parent=47 // pred_check
        %p335 = pneg %p334
      $region50: #{forward.3} parent=47 // pred_check_branch
        %337 = sbr.rel (%p335) target = $region52
      $region51: #{forward.3} parent=47 // pred_region
        %v338 = vld [vmem:[%s1] sm:$0xff]
        %v339 = vld [vmem:[%s1 + $0x8] sm:$0xff]
        %340 = vst [vmem:[#allocation2] sm:$0xff] %v338
        %341 = vst [vmem:[#allocation2 + $0x8] sm:$0xff] %v339
      $region52: #{forward.3} parent=47 // pred_fallthru
        _
      %v342 = vld [vmem:[#allocation2] sm:$0xff]
      %v343 = vld [vmem:[#allocation2 + $0x8] sm:$0xff]
      %v344 = vpack.c.bf16 %v343, %v342
      %v345 = vld [vmem:[%s323] sm:$0xff]
      %v346 = vld [vmem:[%s323 + $0x8] sm:$0xff]
      %v347 = vld [vmem:[%s323 + $0x10] sm:$0xff]
      %v348 = vld [vmem:[%s323 + $0x18] sm:$0xff]
      %v349 = vld [vmem:[%s323 + $0x20] sm:$0xff]
      %v350 = vld [vmem:[%s323 + $0x28] sm:$0xff]
      %v351 = vld [vmem:[%s323 + $0x30] sm:$0xff]
      %v352 = vld [vmem:[%s323 + $0x38] sm:$0xff]
      %v353 = vld [vmem:[%s323 + $0x40] sm:$0xff]
      %v354 = vld [vmem:[%s323 + $0x48] sm:$0xff]
      %v355 = vld [vmem:[%s323 + $0x50] sm:$0xff]
      %v356 = vld [vmem:[%s323 + $0x58] sm:$0xff]
      %v357 = vld [vmem:[%s323 + $0x60] sm:$0xff]
      %v358 = vld [vmem:[%s323 + $0x68] sm:$0xff]
      %v359 = vld [vmem:[%s323 + $0x70] sm:$0xff]
      %v360 = vld [vmem:[%s323 + $0x78] sm:$0xff]
      %v361 = vld [vmem:[%s323 + $0x80] sm:$0xff]
      %v362 = vld [vmem:[%s323 + $0x88] sm:$0xff]
      %v363 = vld [vmem:[%s323 + $0x90] sm:$0xff]
      %v364 = vld [vmem:[%s323 + $0x98] sm:$0xff]
      %v365 = vld [vmem:[%s323 + $0xa0] sm:$0xff]
      %v366 = vld [vmem:[%s323 + $0xa8] sm:$0xff]
      %v367 = vld [vmem:[%s323 + $0xb0] sm:$0xff]
      %v368 = vld [vmem:[%s323 + $0xb8] sm:$0xff]
      %v369 = vld [vmem:[%s323 + $0xc0] sm:$0xff]
      %v370 = vld [vmem:[%s323 + $0xc8] sm:$0xff]
      %v371 = vld [vmem:[%s323 + $0xd0] sm:$0xff]
      %v372 = vld [vmem:[%s323 + $0xd8] sm:$0xff]
      %v373 = vld [vmem:[%s323 + $0xe0] sm:$0xff]
      %v374 = vld [vmem:[%s323 + $0xe8] sm:$0xff]
      %v375 = vld [vmem:[%s323 + $0xf0] sm:$0xff]
      %v376 = vld [vmem:[%s323 + $0xf8] sm:$0xff]
      %v377 = vld [vmem:[%s332] sm:$0xf]
      %v379 = vlaneseq
      %v380 = vshrl.u32 %v379, 7
      %v381 = vsub.s32 0, %v380
      %v382 = vrot.slane %v377, %v381
      %v383 = vlaneseq
      %v384 = vshrl.u32 %v383, 7
      %v385 = vsub.s32 1, %v384
      %v386 = vrot.slane %v377, %v385
      %v387 = vlaneseq
      %v388 = vshrl.u32 %v387, 7
      %v389 = vsub.s32 2, %v388
      %v390 = vrot.slane %v377, %v389
      %v391 = vlaneseq
      %v392 = vshrl.u32 %v391, 7
      %v393 = vsub.s32 3, %v392
      %v394 = vrot.slane %v377, %v393
      %v431 = vunpack.c.l.b16 %v345
      %v432 = vunpack.c.h.b16 %v345
      %v433 = vunpack.c.l.b16 %v346
      %v434 = vunpack.c.h.b16 %v346
      %v435 = vunpack.c.l.b16 %v347
      %v436 = vunpack.c.h.b16 %v347
      %v437 = vunpack.c.l.b16 %v348
      %v438 = vunpack.c.h.b16 %v348
      %v439 = vunpack.c.l.b16 %v349
      %v440 = vunpack.c.h.b16 %v349
      %v441 = vunpack.c.l.b16 %v350
      %v442 = vunpack.c.h.b16 %v350
      %v443 = vunpack.c.l.b16 %v351
      %v444 = vunpack.c.h.b16 %v351
      %v445 = vunpack.c.l.b16 %v352
      %v446 = vunpack.c.h.b16 %v352
      %v447 = vunpack.c.l.b16 %v353
      %v448 = vunpack.c.h.b16 %v353
      %v449 = vunpack.c.l.b16 %v354
      %v450 = vunpack.c.h.b16 %v354
      %v451 = vunpack.c.l.b16 %v355
      %v452 = vunpack.c.h.b16 %v355
      %v453 = vunpack.c.l.b16 %v356
      %v454 = vunpack.c.h.b16 %v356
      %v455 = vunpack.c.l.b16 %v357
      %v456 = vunpack.c.h.b16 %v357
      %v457 = vunpack.c.l.b16 %v358
      %v458 = vunpack.c.h.b16 %v358
      %v459 = vunpack.c.l.b16 %v359
      %v460 = vunpack.c.h.b16 %v359
      %v461 = vunpack.c.l.b16 %v360
      %v462 = vunpack.c.h.b16 %v360
      %v463 = vunpack.c.l.b16 %v361
      %v464 = vunpack.c.h.b16 %v361
      %v465 = vunpack.c.l.b16 %v362
      %v466 = vunpack.c.h.b16 %v362
      %v467 = vunpack.c.l.b16 %v363
      %v468 = vunpack.c.h.b16 %v363
      %v469 = vunpack.c.l.b16 %v364
      %v470 = vunpack.c.h.b16 %v364
      %v471 = vunpack.c.l.b16 %v365
      %v472 = vunpack.c.h.b16 %v365
      %v473 = vunpack.c.l.b16 %v366
      %v474 = vunpack.c.h.b16 %v366
      %v475 = vunpack.c.l.b16 %v367
      %v476 = vunpack.c.h.b16 %v367
      %v477 = vunpack.c.l.b16 %v368
      %v478 = vunpack.c.h.b16 %v368
      %v479 = vunpack.c.l.b16 %v369
      %v480 = vunpack.c.h.b16 %v369
      %v481 = vunpack.c.l.b16 %v370
      %v482 = vunpack.c.h.b16 %v370
      %v483 = vunpack.c.l.b16 %v371
      %v484 = vunpack.c.h.b16 %v371
      %v485 = vunpack.c.l.b16 %v372
      %v486 = vunpack.c.h.b16 %v372
      %v487 = vunpack.c.l.b16 %v373
      %v488 = vunpack.c.h.b16 %v373
      %v489 = vunpack.c.l.b16 %v374
      %v490 = vunpack.c.h.b16 %v374
      %v491 = vunpack.c.l.b16 %v375
      %v492 = vunpack.c.h.b16 %v375
      %v493 = vunpack.c.l.b16 %v376
      %v494 = vunpack.c.h.b16 %v376
      %v495 = vpack.c.b16 %v435, %v431
      %v496 = vpack.c.b16 %v436, %v432
      %v497 = vpack.c.b16 %v437, %v433
      %v498 = vpack.c.b16 %v438, %v434
      %v499 = vpack.c.b16 %v443, %v439
      %v500 = vpack.c.b16 %v444, %v440
      %v501 = vpack.c.b16 %v445, %v441
      %v502 = vpack.c.b16 %v446, %v442
      %v503 = vpack.c.b16 %v451, %v447
      %v504 = vpack.c.b16 %v452, %v448
      %v505 = vpack.c.b16 %v453, %v449
      %v506 = vpack.c.b16 %v454, %v450
      %v507 = vpack.c.b16 %v459, %v455
      %v508 = vpack.c.b16 %v460, %v456
      %v509 = vpack.c.b16 %v461, %v457
      %v510 = vpack.c.b16 %v462, %v458
      %v511 = vpack.c.b16 %v467, %v463
      %v512 = vpack.c.b16 %v468, %v464
      %v513 = vpack.c.b16 %v469, %v465
      %v514 = vpack.c.b16 %v470, %v466
      %v515 = vpack.c.b16 %v475, %v471
      %v516 = vpack.c.b16 %v476, %v472
      %v517 = vpack.c.b16 %v477, %v473
      %v518 = vpack.c.b16 %v478, %v474
      %v519 = vpack.c.b16 %v483, %v479
      %v520 = vpack.c.b16 %v484, %v480
      %v521 = vpack.c.b16 %v485, %v481
      %v522 = vpack.c.b16 %v486, %v482
      %v523 = vpack.c.b16 %v491, %v487
      %v524 = vpack.c.b16 %v492, %v488
      %v525 = vpack.c.b16 %v493, %v489
      %v526 = vpack.c.b16 %v494, %v490
      %559 = vmatprep.subr.bf16.mxu0 %v496
      %560 = vmatpush1.bf16.msra.mxu0 %v495
      %561 = vmatprep.subr.bf16.mxu0 %v500
      %562 = vmatpush1.bf16.msra.mxu0 %v499
      %563 = vmatprep.subr.bf16.mxu0 %v504
      %564 = vmatpush1.bf16.msra.mxu0 %v503
      %565 = vmatprep.subr.bf16.mxu0 %v508
      %566 = vmatpush1.bf16.msra.mxu0 %v507
      %567 = vmatprep.subr.bf16.mxu0 %v512
      %568 = vmatpush1.bf16.msra.mxu0 %v511
      %569 = vmatprep.subr.bf16.mxu0 %v516
      %570 = vmatpush1.bf16.msra.mxu0 %v515
      %571 = vmatprep.subr.bf16.mxu0 %v520
      %572 = vmatpush1.bf16.msra.mxu0 %v519
      %573 = vmatprep.subr.bf16.mxu0 %v524
      %574 = vmatpush1.bf16.msra.mxu0 %v523
      %575 = vmatprep.subr.bf16.mxu0 0
      %576 = vmatpush1.bf16.msra.mxu0 0
      %577 = vmatprep.subr.bf16.mxu0 0
      %578 = vmatpush1.bf16.msra.mxu0 0
      %579 = vmatprep.subr.bf16.mxu0 0
      %580 = vmatpush1.bf16.msra.mxu0 0
      %581 = vmatprep.subr.bf16.mxu0 0
      %582 = vmatpush1.bf16.msra.mxu0 0
      %583 = vmatprep.subr.bf16.mxu0 0
      %584 = vmatpush1.bf16.msra.mxu0 0
      %585 = vmatprep.subr.bf16.mxu0 0
      %586 = vmatpush1.bf16.msra.mxu0 0
      %587 = vmatprep.subr.bf16.mxu0 0
      %588 = vmatpush1.bf16.msra.mxu0 0
      %589 = vmatprep.subr.bf16.mxu0 0
      %590 = vmatpush1.bf16.msra.mxu0 0
      %591 = vmatprep.mubr.bf16.mxu0 0
      %592 = vmatmul.mubr.bf16.gmra.mrb[0].mxu0 %v344
      %v593 = vpop.f32.mrb[0].mxu0
      %v594 = vadd.f32 %v382, %v593
      %v595 = vpop.f32.mrb[0].mxu0
      %v596 = vadd.f32 %v386, %v595
      %v597 = vpop.f32.mrb[0].mxu0
      %v598 = vadd.f32 %v382, %v597
      %v599 = vpop.f32.mrb[0].mxu0
      %v600 = vadd.f32 %v386, %v599
      %601 = vdwg.mxu0
      %602 = vmatprep.subr.bf16.mxu0 %v498
      %603 = vmatpush1.bf16.msra.mxu0 %v497
      %604 = vmatprep.subr.bf16.mxu0 %v502
      %605 = vmatpush1.bf16.msra.mxu0 %v501
      %606 = vmatprep.subr.bf16.mxu0 %v506
      %607 = vmatpush1.bf16.msra.mxu0 %v505
      %608 = vmatprep.subr.bf16.mxu0 %v510
      %609 = vmatpush1.bf16.msra.mxu0 %v509
      %610 = vmatprep.subr.bf16.mxu0 %v514
      %611 = vmatpush1.bf16.msra.mxu0 %v513
      %612 = vmatprep.subr.bf16.mxu0 %v518
      %613 = vmatpush1.bf16.msra.mxu0 %v517
      %614 = vmatprep.subr.bf16.mxu0 %v522
      %615 = vmatpush1.bf16.msra.mxu0 %v521
      %616 = vmatprep.subr.bf16.mxu0 %v526
      %617 = vmatpush1.bf16.msra.mxu0 %v525
      %618 = vmatprep.subr.bf16.mxu0 0
      %619 = vmatpush1.bf16.msra.mxu0 0
      %620 = vmatprep.subr.bf16.mxu0 0
      %621 = vmatpush1.bf16.msra.mxu0 0
      %622 = vmatprep.subr.bf16.mxu0 0
      %623 = vmatpush1.bf16.msra.mxu0 0
      %624 = vmatprep.subr.bf16.mxu0 0
      %625 = vmatpush1.bf16.msra.mxu0 0
      %626 = vmatprep.subr.bf16.mxu0 0
      %627 = vmatpush1.bf16.msra.mxu0 0
      %628 = vmatprep.subr.bf16.mxu0 0
      %629 = vmatpush1.bf16.msra.mxu0 0
      %630 = vmatprep.subr.bf16.mxu0 0
      %631 = vmatpush1.bf16.msra.mxu0 0
      %632 = vmatprep.subr.bf16.mxu0 0
      %633 = vmatpush1.bf16.msra.mxu0 0
      %634 = vmatprep.mubr.bf16.mxu0 0
      %635 = vmatmul.mubr.bf16.gmra.mrb[0].mxu0 %v344
      %v636 = vpop.f32.mrb[0].mxu0
      %v637 = vadd.f32 %v390, %v636
      %v638 = vpop.f32.mrb[0].mxu0
      %v639 = vadd.f32 %v394, %v638
      %v640 = vpop.f32.mrb[0].mxu0
      %v641 = vadd.f32 %v390, %v640
      %v642 = vpop.f32.mrb[0].mxu0
      %v643 = vadd.f32 %v394, %v642
      %644 = vdwg.mxu0
      %v645 = vld [vmem:[%s328] sm:$0xff]
      %v646 = vld [vmem:[%s328 + $0x8] sm:$0xff]
      %v647 = vld [vmem:[%s328 + $0x10] sm:$0xff]
      %v648 = vld [vmem:[%s328 + $0x18] sm:$0xff]
      %v649 = vld [vmem:[%s328 + $0x20] sm:$0xff]
      %v650 = vld [vmem:[%s328 + $0x28] sm:$0xff]
      %v651 = vld [vmem:[%s328 + $0x30] sm:$0xff]
      %v652 = vld [vmem:[%s328 + $0x38] sm:$0xff]
      %v653 = vld [vmem:[%s328 + $0x40] sm:$0xff]
      %v654 = vld [vmem:[%s328 + $0x48] sm:$0xff]
      %v655 = vld [vmem:[%s328 + $0x50] sm:$0xff]
      %v656 = vld [vmem:[%s328 + $0x58] sm:$0xff]
      %v657 = vld [vmem:[%s328 + $0x60] sm:$0xff]
      %v658 = vld [vmem:[%s328 + $0x68] sm:$0xff]
      %v659 = vld [vmem:[%s328 + $0x70] sm:$0xff]
      %v660 = vld [vmem:[%s328 + $0x78] sm:$0xff]
      %v661 = vld [vmem:[%s328 + $0x80] sm:$0xff]
      %v662 = vld [vmem:[%s328 + $0x88] sm:$0xff]
      %v663 = vld [vmem:[%s328 + $0x90] sm:$0xff]
      %v664 = vld [vmem:[%s328 + $0x98] sm:$0xff]
      %v665 = vld [vmem:[%s328 + $0xa0] sm:$0xff]
      %v666 = vld [vmem:[%s328 + $0xa8] sm:$0xff]
      %v667 = vld [vmem:[%s328 + $0xb0] sm:$0xff]
      %v668 = vld [vmem:[%s328 + $0xb8] sm:$0xff]
      %v669 = vld [vmem:[%s328 + $0xc0] sm:$0xff]
      %v670 = vld [vmem:[%s328 + $0xc8] sm:$0xff]
      %v671 = vld [vmem:[%s328 + $0xd0] sm:$0xff]
      %v672 = vld [vmem:[%s328 + $0xd8] sm:$0xff]
      %v673 = vld [vmem:[%s328 + $0xe0] sm:$0xff]
      %v674 = vld [vmem:[%s328 + $0xe8] sm:$0xff]
      %v675 = vld [vmem:[%s328 + $0xf0] sm:$0xff]
      %v676 = vld [vmem:[%s328 + $0xf8] sm:$0xff]
      %v709 = vunpack.c.l.b16 %v645
      %v710 = vunpack.c.h.b16 %v645
      %v711 = vunpack.c.l.b16 %v646
      %v712 = vunpack.c.h.b16 %v646
      %v713 = vunpack.c.l.b16 %v647
      %v714 = vunpack.c.h.b16 %v647
      %v715 = vunpack.c.l.b16 %v648
      %v716 = vunpack.c.h.b16 %v648
      %v717 = vunpack.c.l.b16 %v649
      %v718 = vunpack.c.h.b16 %v649
      %v719 = vunpack.c.l.b16 %v650
      %v720 = vunpack.c.h.b16 %v650
      %v721 = vunpack.c.l.b16 %v651
      %v722 = vunpack.c.h.b16 %v651
      %v723 = vunpack.c.l.b16 %v652
      %v724 = vunpack.c.h.b16 %v652
      %v725 = vunpack.c.l.b16 %v653
      %v726 = vunpack.c.h.b16 %v653
      %v727 = vunpack.c.l.b16 %v654
      %v728 = vunpack.c.h.b16 %v654
      %v729 = vunpack.c.l.b16 %v655
      %v730 = vunpack.c.h.b16 %v655
      %v731 = vunpack.c.l.b16 %v656
      %v732 = vunpack.c.h.b16 %v656
      %v733 = vunpack.c.l.b16 %v657
      %v734 = vunpack.c.h.b16 %v657
      %v735 = vunpack.c.l.b16 %v658
      %v736 = vunpack.c.h.b16 %v658
      %v737 = vunpack.c.l.b16 %v659
      %v738 = vunpack.c.h.b16 %v659
      %v739 = vunpack.c.l.b16 %v660
      %v740 = vunpack.c.h.b16 %v660
      %v741 = vunpack.c.l.b16 %v661
      %v742 = vunpack.c.h.b16 %v661
      %v743 = vunpack.c.l.b16 %v662
      %v744 = vunpack.c.h.b16 %v662
      %v745 = vunpack.c.l.b16 %v663
      %v746 = vunpack.c.h.b16 %v663
      %v747 = vunpack.c.l.b16 %v664
      %v748 = vunpack.c.h.b16 %v664
      %v749 = vunpack.c.l.b16 %v665
      %v750 = vunpack.c.h.b16 %v665
      %v751 = vunpack.c.l.b16 %v666
      %v752 = vunpack.c.h.b16 %v666
      %v753 = vunpack.c.l.b16 %v667
      %v754 = vunpack.c.h.b16 %v667
      %v755 = vunpack.c.l.b16 %v668
      %v756 = vunpack.c.h.b16 %v668
      %v757 = vunpack.c.l.b16 %v669
      %v758 = vunpack.c.h.b16 %v669
      %v759 = vunpack.c.l.b16 %v670
      %v760 = vunpack.c.h.b16 %v670
      %v761 = vunpack.c.l.b16 %v671
      %v762 = vunpack.c.h.b16 %v671
      %v763 = vunpack.c.l.b16 %v672
      %v764 = vunpack.c.h.b16 %v672
      %v765 = vunpack.c.l.b16 %v673
      %v766 = vunpack.c.h.b16 %v673
      %v767 = vunpack.c.l.b16 %v674
      %v768 = vunpack.c.h.b16 %v674
      %v769 = vunpack.c.l.b16 %v675
      %v770 = vunpack.c.h.b16 %v675
      %v771 = vunpack.c.l.b16 %v676
      %v772 = vunpack.c.h.b16 %v676
      %v773 = vpack.c.b16 %v713, %v709
      %v774 = vpack.c.b16 %v714, %v710
      %v775 = vpack.c.b16 %v715, %v711
      %v776 = vpack.c.b16 %v716, %v712
      %v777 = vpack.c.b16 %v721, %v717
      %v778 = vpack.c.b16 %v722, %v718
      %v779 = vpack.c.b16 %v723, %v719
      %v780 = vpack.c.b16 %v724, %v720
      %v781 = vpack.c.b16 %v729, %v725
      %v782 = vpack.c.b16 %v730, %v726
      %v783 = vpack.c.b16 %v731, %v727
      %v784 = vpack.c.b16 %v732, %v728
      %v785 = vpack.c.b16 %v737, %v733
      %v786 = vpack.c.b16 %v738, %v734
      %v787 = vpack.c.b16 %v739, %v735
      %v788 = vpack.c.b16 %v740, %v736
      %v789 = vpack.c.b16 %v745, %v741
      %v790 = vpack.c.b16 %v746, %v742
      %v791 = vpack.c.b16 %v747, %v743
      %v792 = vpack.c.b16 %v748, %v744
      %v793 = vpack.c.b16 %v753, %v749
      %v794 = vpack.c.b16 %v754, %v750
      %v795 = vpack.c.b16 %v755, %v751
      %v796 = vpack.c.b16 %v756, %v752
      %v797 = vpack.c.b16 %v761, %v757
      %v798 = vpack.c.b16 %v762, %v758
      %v799 = vpack.c.b16 %v763, %v759
      %v800 = vpack.c.b16 %v764, %v760
      %v801 = vpack.c.b16 %v769, %v765
      %v802 = vpack.c.b16 %v770, %v766
      %v803 = vpack.c.b16 %v771, %v767
      %v804 = vpack.c.b16 %v772, %v768
      %837 = vmatprep.subr.bf16.mxu0 %v774
      %838 = vmatpush1.bf16.msra.mxu0 %v773
      %839 = vmatprep.subr.bf16.mxu0 %v778
      %840 = vmatpush1.bf16.msra.mxu0 %v777
      %841 = vmatprep.subr.bf16.mxu0 %v782
      %842 = vmatpush1.bf16.msra.mxu0 %v781
      %843 = vmatprep.subr.bf16.mxu0 %v786
      %844 = vmatpush1.bf16.msra.mxu0 %v785
      %845 = vmatprep.subr.bf16.mxu0 %v790
      %846 = vmatpush1.bf16.msra.mxu0 %v789
      %847 = vmatprep.subr.bf16.mxu0 %v794
      %848 = vmatpush1.bf16.msra.mxu0 %v793
      %849 = vmatprep.subr.bf16.mxu0 %v798
      %850 = vmatpush1.bf16.msra.mxu0 %v797
      %851 = vmatprep.subr.bf16.mxu0 %v802
      %852 = vmatpush1.bf16.msra.mxu0 %v801
      %853 = vmatprep.subr.bf16.mxu0 0
      %854 = vmatpush1.bf16.msra.mxu0 0
      %855 = vmatprep.subr.bf16.mxu0 0
      %856 = vmatpush1.bf16.msra.mxu0 0
      %857 = vmatprep.subr.bf16.mxu0 0
      %858 = vmatpush1.bf16.msra.mxu0 0
      %859 = vmatprep.subr.bf16.mxu0 0
      %860 = vmatpush1.bf16.msra.mxu0 0
      %861 = vmatprep.subr.bf16.mxu0 0
      %862 = vmatpush1.bf16.msra.mxu0 0
      %863 = vmatprep.subr.bf16.mxu0 0
      %864 = vmatpush1.bf16.msra.mxu0 0
      %865 = vmatprep.subr.bf16.mxu0 0
      %866 = vmatpush1.bf16.msra.mxu0 0
      %867 = vmatprep.subr.bf16.mxu0 0
      %868 = vmatpush1.bf16.msra.mxu0 0
      %869 = vmatprep.mubr.bf16.mxu0 0
      %870 = vmatmul.mubr.bf16.gmra.mrb[0].mxu0 0
      %v871 = vpop.f32.mrb[0].mxu0
      %v872 = vadd.f32 0.0, %v871
      %v873 = vpop.f32.mrb[0].mxu0
      %v874 = vadd.f32 0.0, %v873
      %v875 = vpop.f32.mrb[0].mxu0
      %v876 = vpop.f32.mrb[0].mxu0
      %877 = vdwg.mxu0
      %878 = vmatprep.subr.bf16.mxu0 %v776
      %879 = vmatpush1.bf16.msra.mxu0 %v775
      %880 = vmatprep.subr.bf16.mxu0 %v780
      %881 = vmatpush1.bf16.msra.mxu0 %v779
      %882 = vmatprep.subr.bf16.mxu0 %v784
      %883 = vmatpush1.bf16.msra.mxu0 %v783
      %884 = vmatprep.subr.bf16.mxu0 %v788
      %885 = vmatpush1.bf16.msra.mxu0 %v787
      %886 = vmatprep.subr.bf16.mxu0 %v792
      %887 = vmatpush1.bf16.msra.mxu0 %v791
      %888 = vmatprep.subr.bf16.mxu0 %v796
      %889 = vmatpush1.bf16.msra.mxu0 %v795
      %890 = vmatprep.subr.bf16.mxu0 %v800
      %891 = vmatpush1.bf16.msra.mxu0 %v799
      %892 = vmatprep.subr.bf16.mxu0 %v804
      %893 = vmatpush1.bf16.msra.mxu0 %v803
      %894 = vmatprep.subr.bf16.mxu0 0
      %895 = vmatpush1.bf16.msra.mxu0 0
      %896 = vmatprep.subr.bf16.mxu0 0
      %897 = vmatpush1.bf16.msra.mxu0 0
      %898 = vmatprep.subr.bf16.mxu0 0
      %899 = vmatpush1.bf16.msra.mxu0 0
      %900 = vmatprep.subr.bf16.mxu0 0
      %901 = vmatpush1.bf16.msra.mxu0 0
      %902 = vmatprep.subr.bf16.mxu0 0
      %903 = vmatpush1.bf16.msra.mxu0 0
      %904 = vmatprep.subr.bf16.mxu0 0
      %905 = vmatpush1.bf16.msra.mxu0 0
      %906 = vmatprep.subr.bf16.mxu0 0
      %907 = vmatpush1.bf16.msra.mxu0 0
      %908 = vmatprep.subr.bf16.mxu0 0
      %909 = vmatpush1.bf16.msra.mxu0 0
      %910 = vmatprep.mubr.bf16.mxu0 0
      %911 = vmatmul.mubr.bf16.gmra.mrb[0].mxu0 0
      %v912 = vpop.f32.mrb[0].mxu0
      %v913 = vadd.f32 0.0, %v912
      %v914 = vpop.f32.mrb[0].mxu0
      %v915 = vadd.f32 0.0, %v914
      %v916 = vpop.f32.mrb[0].mxu0
      %v917 = vpop.f32.mrb[0].mxu0
      %918 = vdwg.mxu0
      %v919 = vadd.f32 %v594, %v872
      %v920 = vadd.f32 %v596, %v874
      %v923 = vrot.slane %v913, 2
      %v924 = vrot.slane %v915, 2
      %v927 = vadd.f32 %v641, %v923
      %v928 = vadd.f32 %v643, %v924
      %v929 = vxor.u32 %v919, 2147483648
      %v930 = vmul.f32 %v929, 1.442695
      %v931 = vpow.pop %v930
      %v932 = vadd.f32 %v931, 1.0
      %v933 = vrcp.pop %v932
      %v934 = vmul.f32 1.0, %v933
      %v935 = vtanh.pop %v920
      %v936 = vxor.u32 %v920, 2147483648
      %v937 = vmul.f32 %v936, 1.442695
      %v938 = vpow.pop %v937
      %v939 = vadd.f32 %v938, 1.0
      %v940 = vrcp.pop %v939
      %v941 = vmul.f32 1.0, %v940
      %v942 = vmul.f32 %v934, 0.0
      %v943 = vmul.f32 %v934, %v935
      %945 = vrot.lane.b32.xlu0 %v943, 64
      %v946 = vpop.permute.xlu0 %945
      %v948 = vadd.f32 %v942, %v946
      %v949 = vtanh.pop %v948
      %v950 = vmul.f32 %v941, %v949
      %v951 = vxor.u32 %v927, 2147483648
      %v952 = vmul.f32 %v951, 1.442695
      %v953 = vpow.pop %v952
      %v954 = vadd.f32 %v953, 1.0
      %v955 = vrcp.pop %v954
      %v956 = vmul.f32 1.0, %v955
      %v957 = vtanh.pop %v928
      %v958 = vxor.u32 %v928, 2147483648
      %v959 = vmul.f32 %v958, 1.442695
      %v960 = vpow.pop %v959
      %v961 = vadd.f32 %v960, 1.0
      %v962 = vrcp.pop %v961
      %v963 = vmul.f32 1.0, %v962
      %v964 = vmul.f32 %v956, 0.0
      %v965 = vmul.f32 %v956, %v957
      %967 = vrot.lane.b32.xlu0 %v965, 64
      %v968 = vpop.permute.xlu0 %967
      %v970 = vadd.f32 %v964, %v968
      %v971 = vtanh.pop %v970
      %v972 = vmul.f32 %v963, %v971
      %974 = vrot.lane.b32.xlu0 %v950, 64
      %v975 = vpop.permute.xlu0 %974
      %v978 = vrot.slane %v972, 6
      %vm980 = vcmask 523264
      %v981 = vsel %vm980, %v975, %v978
      %v982 = vpack.c.bf16 %v981, %v981
      %983 = vmatprep.subr.bf16.mxu0 %v774
      %984 = vmatpush1.bf16.msra.mxu0 %v773
      %985 = vmatprep.subr.bf16.mxu0 %v778
      %986 = vmatpush1.bf16.msra.mxu0 %v777
      %987 = vmatprep.subr.bf16.mxu0 %v782
      %988 = vmatpush1.bf16.msra.mxu0 %v781
      %989 = vmatprep.subr.bf16.mxu0 %v786
      %990 = vmatpush1.bf16.msra.mxu0 %v785
      %991 = vmatprep.subr.bf16.mxu0 %v790
      %992 = vmatpush1.bf16.msra.mxu0 %v789
      %993 = vmatprep.subr.bf16.mxu0 %v794
      %994 = vmatpush1.bf16.msra.mxu0 %v793
      %995 = vmatprep.subr.bf16.mxu0 %v798
      %996 = vmatpush1.bf16.msra.mxu0 %v797
      %997 = vmatprep.subr.bf16.mxu0 %v802
      %998 = vmatpush1.bf16.msra.mxu0 %v801
      %999 = vmatprep.subr.bf16.mxu0 0
      %1000 = vmatpush1.bf16.msra.mxu0 0
      %1001 = vmatprep.subr.bf16.mxu0 0
      %1002 = vmatpush1.bf16.msra.mxu0 0
      %1003 = vmatprep.subr.bf16.mxu0 0
      %1004 = vmatpush1.bf16.msra.mxu0 0
      %1005 = vmatprep.subr.bf16.mxu0 0
      %1006 = vmatpush1.bf16.msra.mxu0 0
      %1007 = vmatprep.subr.bf16.mxu0 0
      %1008 = vmatpush1.bf16.msra.mxu0 0
      %1009 = vmatprep.subr.bf16.mxu0 0
      %1010 = vmatpush1.bf16.msra.mxu0 0
      %1011 = vmatprep.subr.bf16.mxu0 0
      %1012 = vmatpush1.bf16.msra.mxu0 0
      %1013 = vmatprep.subr.bf16.mxu0 0
      %1014 = vmatpush1.bf16.msra.mxu0 0
      %1015 = vmatprep.mubr.bf16.mxu0 0
      %1016 = vmatmul.mubr.bf16.gmra.mrb[0].mxu0 %v982
      %v1017 = vpop.f32.mrb[0].mxu0
      %v1018 = vadd.f32 0.0, %v1017
      %v1019 = vpop.f32.mrb[0].mxu0
      %v1020 = vadd.f32 0.0, %v1019
      %v1021 = vpop.f32.mrb[0].mxu0
      %v1022 = vpop.f32.mrb[0].mxu0
      %1023 = vdwg.mxu0
      %1024 = vmatprep.subr.bf16.mxu0 %v776
      %1025 = vmatpush1.bf16.msra.mxu0 %v775
      %1026 = vmatprep.subr.bf16.mxu0 %v780
      %1027 = vmatpush1.bf16.msra.mxu0 %v779
      %1028 = vmatprep.subr.bf16.mxu0 %v784
      %1029 = vmatpush1.bf16.msra.mxu0 %v783
      %1030 = vmatprep.subr.bf16.mxu0 %v788
      %1031 = vmatpush1.bf16.msra.mxu0 %v787
      %1032 = vmatprep.subr.bf16.mxu0 %v792
      %1033 = vmatpush1.bf16.msra.mxu0 %v791
      %1034 = vmatprep.subr.bf16.mxu0 %v796
      %1035 = vmatpush1.bf16.msra.mxu0 %v795
      %1036 = vmatprep.subr.bf16.mxu0 %v800
      %1037 = vmatpush1.bf16.msra.mxu0 %v799
      %1038 = vmatprep.subr.bf16.mxu0 %v804
      %1039 = vmatpush1.bf16.msra.mxu0 %v803
      %1040 = vmatprep.subr.bf16.mxu0 0
      %1041 = vmatpush1.bf16.msra.mxu0 0
      %1042 = vmatprep.subr.bf16.mxu0 0
      %1043 = vmatpush1.bf16.msra.mxu0 0
      %1044 = vmatprep.subr.bf16.mxu0 0
      %1045 = vmatpush1.bf16.msra.mxu0 0
      %1046 = vmatprep.subr.bf16.mxu0 0
      %1047 = vmatpush1.bf16.msra.mxu0 0
      %1048 = vmatprep.subr.bf16.mxu0 0
      %1049 = vmatpush1.bf16.msra.mxu0 0
      %1050 = vmatprep.subr.bf16.mxu0 0
      %1051 = vmatpush1.bf16.msra.mxu0 0
      %1052 = vmatprep.subr.bf16.mxu0 0
      %1053 = vmatpush1.bf16.msra.mxu0 0
      %1054 = vmatprep.subr.bf16.mxu0 0
      %1055 = vmatpush1.bf16.msra.mxu0 0
      %1056 = vmatprep.mubr.bf16.mxu0 0
      %1057 = vmatmul.mubr.bf16.gmra.mrb[0].mxu0 %v982
      %v1058 = vpop.f32.mrb[0].mxu0
      %v1059 = vadd.f32 0.0, %v1058
      %v1060 = vpop.f32.mrb[0].mxu0
      %v1061 = vadd.f32 0.0, %v1060
      %v1062 = vpop.f32.mrb[0].mxu0
      %v1063 = vpop.f32.mrb[0].mxu0
      %1064 = vdwg.mxu0
      %v1067 = vrot.slane %v1018, 6
      %v1068 = vrot.slane %v1020, 6
      %v1071 = vadd.f32 %v594, %v1067
      %v1072 = vadd.f32 %v596, %v1068
      %v1075 = vrot.slane %v1059, 4
      %v1076 = vrot.slane %v1061, 4
      %v1079 = vadd.f32 %v641, %v1075
      %v1080 = vadd.f32 %v643, %v1076
      %v1081 = vxor.u32 %v1071, 2147483648
      %v1082 = vmul.f32 %v1081, 1.442695
      %v1083 = vpow.pop %v1082
      %v1084 = vadd.f32 %v1083, 1.0
      %v1085 = vrcp.pop %v1084
      %v1086 = vmul.f32 1.0, %v1085
      %v1087 = vtanh.pop %v1072
      %v1088 = vxor.u32 %v1072, 2147483648
      %v1089 = vmul.f32 %v1088, 1.442695
      %v1090 = vpow.pop %v1089
      %v1091 = vadd.f32 %v1090, 1.0
      %v1092 = vrcp.pop %v1091
      %v1093 = vmul.f32 1.0, %v1092
      %v1095 = vrot.slane %v948, 6
      %v1097 = vmul.f32 %v1086, %v1095
      %v1098 = vmul.f32 %v1086, %v1087
      %1100 = vrot.lane.b32.xlu0 %v1098, 64
      %v1101 = vpop.permute.xlu0 %1100
      %v1103 = vadd.f32 %v1097, %v1101
      %v1104 = vtanh.pop %v1103
      %v1105 = vmul.f32 %v1093, %v1104
      %v1106 = vxor.u32 %v1079, 2147483648
      %v1107 = vmul.f32 %v1106, 1.442695
      %v1108 = vpow.pop %v1107
      %v1109 = vadd.f32 %v1108, 1.0
      %v1110 = vrcp.pop %v1109
      %v1111 = vmul.f32 1.0, %v1110
      %v1112 = vtanh.pop %v1080
      %v1113 = vxor.u32 %v1080, 2147483648
      %v1114 = vmul.f32 %v1113, 1.442695
      %v1115 = vpow.pop %v1114
      %v1116 = vadd.f32 %v1115, 1.0
      %v1117 = vrcp.pop %v1116
      %v1118 = vmul.f32 1.0, %v1117
      %v1120 = vrot.slane %v970, 2
      %v1122 = vmul.f32 %v1111, %v1120
      %v1123 = vmul.f32 %v1111, %v1112
      %1125 = vrot.lane.b32.xlu0 %v1123, 64
      %v1126 = vpop.permute.xlu0 %1125
      %v1128 = vadd.f32 %v1122, %v1126
      %v1129 = vtanh.pop %v1128
      %v1130 = vmul.f32 %v1118, %v1129
      %1132 = vrot.lane.b32.xlu0 %v1105, 64
      %v1133 = vpop.permute.xlu0 %1132
      %v1136 = vrot.slane %v1130, 2
      %v1138 = vsel %vm980, %v1133, %v1136
      %v1139 = vpack.c.bf16 %v1138, %v1138
      %v1141 = vrot.slane %v1139, 1
      %1143 = vmatprep.subr.bf16.mxu0 %v774
      %1144 = vmatpush1.bf16.msra.mxu0 %v773
      %1145 = vmatprep.subr.bf16.mxu0 %v778
      %1146 = vmatpush1.bf16.msra.mxu0 %v777
      %1147 = vmatprep.subr.bf16.mxu0 %v782
      %1148 = vmatpush1.bf16.msra.mxu0 %v781
      %1149 = vmatprep.subr.bf16.mxu0 %v786
      %1150 = vmatpush1.bf16.msra.mxu0 %v785
      %1151 = vmatprep.subr.bf16.mxu0 %v790
      %1152 = vmatpush1.bf16.msra.mxu0 %v789
      %1153 = vmatprep.subr.bf16.mxu0 %v794
      %1154 = vmatpush1.bf16.msra.mxu0 %v793
      %1155 = vmatprep.subr.bf16.mxu0 %v798
      %1156 = vmatpush1.bf16.msra.mxu0 %v797
      %1157 = vmatprep.subr.bf16.mxu0 %v802
      %1158 = vmatpush1.bf16.msra.mxu0 %v801
      %1159 = vmatprep.subr.bf16.mxu0 0
      %1160 = vmatpush1.bf16.msra.mxu0 0
      %1161 = vmatprep.subr.bf16.mxu0 0
      %1162 = vmatpush1.bf16.msra.mxu0 0
      %1163 = vmatprep.subr.bf16.mxu0 0
      %1164 = vmatpush1.bf16.msra.mxu0 0
      %1165 = vmatprep.subr.bf16.mxu0 0
      %1166 = vmatpush1.bf16.msra.mxu0 0
      %1167 = vmatprep.subr.bf16.mxu0 0
      %1168 = vmatpush1.bf16.msra.mxu0 0
      %1169 = vmatprep.subr.bf16.mxu0 0
      %1170 = vmatpush1.bf16.msra.mxu0 0
      %1171 = vmatprep.subr.bf16.mxu0 0
      %1172 = vmatpush1.bf16.msra.mxu0 0
      %1173 = vmatprep.subr.bf16.mxu0 0
      %1174 = vmatpush1.bf16.msra.mxu0 0
      %1175 = vmatprep.mubr.bf16.mxu0 0
      %1176 = vmatmul.mubr.bf16.gmra.mrb[0].mxu0 %v1141
      %v1177 = vpop.f32.mrb[0].mxu0
      %v1178 = vadd.f32 0.0, %v1177
      %v1179 = vpop.f32.mrb[0].mxu0
      %v1180 = vadd.f32 0.0, %v1179
      %v1181 = vpop.f32.mrb[0].mxu0
      %v1182 = vpop.f32.mrb[0].mxu0
      %1183 = vdwg.mxu0
      %1184 = vmatprep.subr.bf16.mxu0 %v776
      %1185 = vmatpush1.bf16.msra.mxu0 %v775
      %1186 = vmatprep.subr.bf16.mxu0 %v780
      %1187 = vmatpush1.bf16.msra.mxu0 %v779
      %1188 = vmatprep.subr.bf16.mxu0 %v784
      %1189 = vmatpush1.bf16.msra.mxu0 %v783
      %1190 = vmatprep.subr.bf16.mxu0 %v788
      %1191 = vmatpush1.bf16.msra.mxu0 %v787
      %1192 = vmatprep.subr.bf16.mxu0 %v792
      %1193 = vmatpush1.bf16.msra.mxu0 %v791
      %1194 = vmatprep.subr.bf16.mxu0 %v796
      %1195 = vmatpush1.bf16.msra.mxu0 %v795
      %1196 = vmatprep.subr.bf16.mxu0 %v800
      %1197 = vmatpush1.bf16.msra.mxu0 %v799
      %1198 = vmatprep.subr.bf16.mxu0 %v804
      %1199 = vmatpush1.bf16.msra.mxu0 %v803
      %1200 = vmatprep.subr.bf16.mxu0 0
      %1201 = vmatpush1.bf16.msra.mxu0 0
      %1202 = vmatprep.subr.bf16.mxu0 0
      %1203 = vmatpush1.bf16.msra.mxu0 0
      %1204 = vmatprep.subr.bf16.mxu0 0
      %1205 = vmatpush1.bf16.msra.mxu0 0
      %1206 = vmatprep.subr.bf16.mxu0 0
      %1207 = vmatpush1.bf16.msra.mxu0 0
      %1208 = vmatprep.subr.bf16.mxu0 0
      %1209 = vmatpush1.bf16.msra.mxu0 0
      %1210 = vmatprep.subr.bf16.mxu0 0
      %1211 = vmatpush1.bf16.msra.mxu0 0
      %1212 = vmatprep.subr.bf16.mxu0 0
      %1213 = vmatpush1.bf16.msra.mxu0 0
      %1214 = vmatprep.subr.bf16.mxu0 0
      %1215 = vmatpush1.bf16.msra.mxu0 0
      %1216 = vmatprep.mubr.bf16.mxu0 0
      %1217 = vmatmul.mubr.bf16.gmra.mrb[0].mxu0 %v1141
      %v1218 = vpop.f32.mrb[0].mxu0
      %v1219 = vadd.f32 0.0, %v1218
      %v1220 = vpop.f32.mrb[0].mxu0
      %v1221 = vadd.f32 0.0, %v1220
      %v1222 = vpop.f32.mrb[0].mxu0
      %v1223 = vpop.f32.mrb[0].mxu0
      %1224 = vdwg.mxu0
      %v1227 = vrot.slane %v1178, 4
      %v1228 = vrot.slane %v1180, 4
      %v1231 = vadd.f32 %v594, %v1227
      %v1232 = vadd.f32 %v596, %v1228
      %v1235 = vrot.slane %v1219, 6
      %v1236 = vrot.slane %v1221, 6
      %v1239 = vadd.f32 %v641, %v1235
      %v1240 = vadd.f32 %v643, %v1236
      %v1241 = vxor.u32 %v1231, 2147483648
      %v1242 = vmul.f32 %v1241, 1.442695
      %v1243 = vpow.pop %v1242
      %v1244 = vadd.f32 %v1243, 1.0
      %v1245 = vrcp.pop %v1244
      %v1246 = vmul.f32 1.0, %v1245
      %v1247 = vtanh.pop %v1232
      %v1248 = vxor.u32 %v1232, 2147483648
      %v1249 = vmul.f32 %v1248, 1.442695
      %v1250 = vpow.pop %v1249
      %v1251 = vadd.f32 %v1250, 1.0
      %v1252 = vrcp.pop %v1251
      %v1253 = vmul.f32 1.0, %v1252
      %v1255 = vrot.slane %v1103, 6
      %v1257 = vmul.f32 %v1246, %v1255
      %v1258 = vmul.f32 %v1246, %v1247
      %1260 = vrot.lane.b32.xlu0 %v1258, 64
      %v1261 = vpop.permute.xlu0 %1260
      %v1263 = vadd.f32 %v1257, %v1261
      %v1264 = vtanh.pop %v1263
      %v1265 = vmul.f32 %v1253, %v1264
      %v1266 = vxor.u32 %v1239, 2147483648
      %v1267 = vmul.f32 %v1266, 1.442695
      %v1268 = vpow.pop %v1267
      %v1269 = vadd.f32 %v1268, 1.0
      %v1270 = vrcp.pop %v1269
      %v1271 = vmul.f32 1.0, %v1270
      %v1272 = vtanh.pop %v1240
      %v1273 = vxor.u32 %v1240, 2147483648
      %v1274 = vmul.f32 %v1273, 1.442695
      %v1275 = vpow.pop %v1274
      %v1276 = vadd.f32 %v1275, 1.0
      %v1277 = vrcp.pop %v1276
      %v1278 = vmul.f32 1.0, %v1277
      %v1280 = vrot.slane %v1128, 2
      %v1282 = vmul.f32 %v1271, %v1280
      %v1283 = vmul.f32 %v1271, %v1272
      %1285 = vrot.lane.b32.xlu0 %v1283, 64
      %v1286 = vpop.permute.xlu0 %1285
      %v1288 = vadd.f32 %v1282, %v1286
      %v1289 = vtanh.pop %v1288
      %v1290 = vmul.f32 %v1278, %v1289
      %1292 = vrot.lane.b32.xlu0 %v1265, 64
      %v1293 = vpop.permute.xlu0 %1292
      %v1296 = vrot.slane %v1290, 6
      %v1298 = vsel %vm980, %v1293, %v1296
      %v1299 = vpack.c.bf16 %v1298, %v1298
      %v1301 = vrot.slane %v1299, 2
      %1303 = vmatprep.subr.bf16.mxu0 %v774
      %1304 = vmatpush1.bf16.msra.mxu0 %v773
      %1305 = vmatprep.subr.bf16.mxu0 %v778
      %1306 = vmatpush1.bf16.msra.mxu0 %v777
      %1307 = vmatprep.subr.bf16.mxu0 %v782
      %1308 = vmatpush1.bf16.msra.mxu0 %v781
      %1309 = vmatprep.subr.bf16.mxu0 %v786
      %1310 = vmatpush1.bf16.msra.mxu0 %v785
      %1311 = vmatprep.subr.bf16.mxu0 %v790
      %1312 = vmatpush1.bf16.msra.mxu0 %v789
      %1313 = vmatprep.subr.bf16.mxu0 %v794
      %1314 = vmatpush1.bf16.msra.mxu0 %v793
      %1315 = vmatprep.subr.bf16.mxu0 %v798
      %1316 = vmatpush1.bf16.msra.mxu0 %v797
      %1317 = vmatprep.subr.bf16.mxu0 %v802
      %1318 = vmatpush1.bf16.msra.mxu0 %v801
      %1319 = vmatprep.subr.bf16.mxu0 0
      %1320 = vmatpush1.bf16.msra.mxu0 0
      %1321 = vmatprep.subr.bf16.mxu0 0
      %1322 = vmatpush1.bf16.msra.mxu0 0
      %1323 = vmatprep.subr.bf16.mxu0 0
      %1324 = vmatpush1.bf16.msra.mxu0 0
      %1325 = vmatprep.subr.bf16.mxu0 0
      %1326 = vmatpush1.bf16.msra.mxu0 0
      %1327 = vmatprep.subr.bf16.mxu0 0
      %1328 = vmatpush1.bf16.msra.mxu0 0
      %1329 = vmatprep.subr.bf16.mxu0 0
      %1330 = vmatpush1.bf16.msra.mxu0 0
      %1331 = vmatprep.subr.bf16.mxu0 0
      %1332 = vmatpush1.bf16.msra.mxu0 0
      %1333 = vmatprep.subr.bf16.mxu0 0
      %1334 = vmatpush1.bf16.msra.mxu0 0
      %1335 = vmatprep.mubr.bf16.mxu0 0
      %1336 = vmatmul.mubr.bf16.gmra.mrb[0].mxu0 %v1301
      %v1337 = vpop.f32.mrb[0].mxu0
      %v1338 = vadd.f32 0.0, %v1337
      %v1339 = vpop.f32.mrb[0].mxu0
      %v1340 = vadd.f32 0.0, %v1339
      %v1341 = vpop.f32.mrb[0].mxu0
      %v1342 = vpop.f32.mrb[0].mxu0
      %1343 = vdwg.mxu0
      %1344 = vmatprep.subr.bf16.mxu0 %v776
      %1345 = vmatpush1.bf16.msra.mxu0 %v775
      %1346 = vmatprep.subr.bf16.mxu0 %v780
      %1347 = vmatpush1.bf16.msra.mxu0 %v779
      %1348 = vmatprep.subr.bf16.mxu0 %v784
      %1349 = vmatpush1.bf16.msra.mxu0 %v783
      %1350 = vmatprep.subr.bf16.mxu0 %v788
      %1351 = vmatpush1.bf16.msra.mxu0 %v787
      %1352 = vmatprep.subr.bf16.mxu0 %v792
      %1353 = vmatpush1.bf16.msra.mxu0 %v791
      %1354 = vmatprep.subr.bf16.mxu0 %v796
      %1355 = vmatpush1.bf16.msra.mxu0 %v795
      %1356 = vmatprep.subr.bf16.mxu0 %v800
      %1357 = vmatpush1.bf16.msra.mxu0 %v799
      %1358 = vmatprep.subr.bf16.mxu0 %v804
      %1359 = vmatpush1.bf16.msra.mxu0 %v803
      %1360 = vmatprep.subr.bf16.mxu0 0
      %1361 = vmatpush1.bf16.msra.mxu0 0
      %1362 = vmatprep.subr.bf16.mxu0 0
      %1363 = vmatpush1.bf16.msra.mxu0 0
      %1364 = vmatprep.subr.bf16.mxu0 0
      %1365 = vmatpush1.bf16.msra.mxu0 0
      %1366 = vmatprep.subr.bf16.mxu0 0
      %1367 = vmatpush1.bf16.msra.mxu0 0
      %1368 = vmatprep.subr.bf16.mxu0 0
      %1369 = vmatpush1.bf16.msra.mxu0 0
      %1370 = vmatprep.subr.bf16.mxu0 0
      %1371 = vmatpush1.bf16.msra.mxu0 0
      %1372 = vmatprep.subr.bf16.mxu0 0
      %1373 = vmatpush1.bf16.msra.mxu0 0
      %1374 = vmatprep.subr.bf16.mxu0 0
      %1375 = vmatpush1.bf16.msra.mxu0 0
      %1376 = vmatprep.mubr.bf16.mxu0 0
      %1377 = vmatmul.mubr.bf16.gmra.mrb[0].mxu0 %v1301
      %v1378 = vpop.f32.mrb[0].mxu0
      %v1379 = vadd.f32 0.0, %v1378
      %v1380 = vpop.f32.mrb[0].mxu0
      %v1381 = vadd.f32 0.0, %v1380
      %v1382 = vpop.f32.mrb[0].mxu0
      %v1383 = vpop.f32.mrb[0].mxu0
      %1384 = vdwg.mxu0
      %v1387 = vrot.slane %v1338, 2
      %v1388 = vrot.slane %v1340, 2
      %v1391 = vadd.f32 %v594, %v1387
      %v1392 = vadd.f32 %v596, %v1388
      %v1393 = vadd.f32 %v641, %v1379
      %v1394 = vadd.f32 %v643, %v1381
      %v1395 = vxor.u32 %v1391, 2147483648
      %v1396 = vmul.f32 %v1395, 1.442695
      %v1397 = vpow.pop %v1396
      %v1398 = vadd.f32 %v1397, 1.0
      %v1399 = vrcp.pop %v1398
      %v1400 = vmul.f32 1.0, %v1399
      %v1401 = vtanh.pop %v1392
      %v1402 = vxor.u32 %v1392, 2147483648
      %v1403 = vmul.f32 %v1402, 1.442695
      %v1404 = vpow.pop %v1403
      %v1405 = vadd.f32 %v1404, 1.0
      %v1406 = vrcp.pop %v1405
      %v1407 = vmul.f32 1.0, %v1406
      %v1409 = vrot.slane %v1263, 6
      %v1411 = vmul.f32 %v1400, %v1409
      %v1412 = vmul.f32 %v1400, %v1401
      %1414 = vrot.lane.b32.xlu0 %v1412, 64
      %v1415 = vpop.permute.xlu0 %1414
      %v1417 = vadd.f32 %v1411, %v1415
      %v1418 = vtanh.pop %v1417
      %v1419 = vmul.f32 %v1407, %v1418
      %v1420 = vxor.u32 %v1393, 2147483648
      %v1421 = vmul.f32 %v1420, 1.442695
      %v1422 = vpow.pop %v1421
      %v1423 = vadd.f32 %v1422, 1.0
      %v1424 = vrcp.pop %v1423
      %v1425 = vmul.f32 1.0, %v1424
      %v1426 = vtanh.pop %v1394
      %v1427 = vxor.u32 %v1394, 2147483648
      %v1428 = vmul.f32 %v1427, 1.442695
      %v1429 = vpow.pop %v1428
      %v1430 = vadd.f32 %v1429, 1.0
      %v1431 = vrcp.pop %v1430
      %v1432 = vmul.f32 1.0, %v1431
      %v1434 = vrot.slane %v1288, 2
      %v1436 = vmul.f32 %v1425, %v1434
      %v1437 = vmul.f32 %v1425, %v1426
      %1439 = vrot.lane.b32.xlu0 %v1437, 64
      %v1440 = vpop.permute.xlu0 %1439
      %v1442 = vadd.f32 %v1436, %v1440
      %v1443 = vtanh.pop %v1442
      %v1444 = vmul.f32 %v1432, %v1443
      %1446 = vrot.lane.b32.xlu0 %v1419, 64
      %v1447 = vpop.permute.xlu0 %1446
      %v1450 = vrot.slane %v1444, 2
      %v1452 = vsel %vm980, %v1447, %v1450
      %v1453 = vpack.c.bf16 %v1452, %v1452
      %v1455 = vrot.slane %v1453, 3
      %1457 = vmatprep.subr.bf16.mxu0 %v774
      %1458 = vmatpush1.bf16.msra.mxu0 %v773
      %1459 = vmatprep.subr.bf16.mxu0 %v778
      %1460 = vmatpush1.bf16.msra.mxu0 %v777
      %1461 = vmatprep.subr.bf16.mxu0 %v782
      %1462 = vmatpush1.bf16.msra.mxu0 %v781
      %1463 = vmatprep.subr.bf16.mxu0 %v786
      %1464 = vmatpush1.bf16.msra.mxu0 %v785
      %1465 = vmatprep.subr.bf16.mxu0 %v790
      %1466 = vmatpush1.bf16.msra.mxu0 %v789
      %1467 = vmatprep.subr.bf16.mxu0 %v794
      %1468 = vmatpush1.bf16.msra.mxu0 %v793
      %1469 = vmatprep.subr.bf16.mxu0 %v798
      %1470 = vmatpush1.bf16.msra.mxu0 %v797
      %1471 = vmatprep.subr.bf16.mxu0 %v802
      %1472 = vmatpush1.bf16.msra.mxu0 %v801
      %1473 = vmatprep.subr.bf16.mxu0 0
      %1474 = vmatpush1.bf16.msra.mxu0 0
      %1475 = vmatprep.subr.bf16.mxu0 0
      %1476 = vmatpush1.bf16.msra.mxu0 0
      %1477 = vmatprep.subr.bf16.mxu0 0
      %1478 = vmatpush1.bf16.msra.mxu0 0
      %1479 = vmatprep.subr.bf16.mxu0 0
      %1480 = vmatpush1.bf16.msra.mxu0 0
      %1481 = vmatprep.subr.bf16.mxu0 0
      %1482 = vmatpush1.bf16.msra.mxu0 0
      %1483 = vmatprep.subr.bf16.mxu0 0
      %1484 = vmatpush1.bf16.msra.mxu0 0
      %1485 = vmatprep.subr.bf16.mxu0 0
      %1486 = vmatpush1.bf16.msra.mxu0 0
      %1487 = vmatprep.subr.bf16.mxu0 0
      %1488 = vmatpush1.bf16.msra.mxu0 0
      %1489 = vmatprep.mubr.bf16.mxu0 0
      %1490 = vmatmul.mubr.bf16.gmra.mrb[0].mxu0 %v1455
      %v1491 = vpop.f32.mrb[0].mxu0
      %v1492 = vadd.f32 0.0, %v1491
      %v1493 = vpop.f32.mrb[0].mxu0
      %v1494 = vadd.f32 0.0, %v1493
      %v1495 = vpop.f32.mrb[0].mxu0
      %v1496 = vpop.f32.mrb[0].mxu0
      %1497 = vdwg.mxu0
      %1498 = vmatprep.subr.bf16.mxu0 %v776
      %1499 = vmatpush1.bf16.msra.mxu0 %v775
      %1500 = vmatprep.subr.bf16.mxu0 %v780
      %1501 = vmatpush1.bf16.msra.mxu0 %v779
      %1502 = vmatprep.subr.bf16.mxu0 %v784
      %1503 = vmatpush1.bf16.msra.mxu0 %v783
      %1504 = vmatprep.subr.bf16.mxu0 %v788
      %1505 = vmatpush1.bf16.msra.mxu0 %v787
      %1506 = vmatprep.subr.bf16.mxu0 %v792
      %1507 = vmatpush1.bf16.msra.mxu0 %v791
      %1508 = vmatprep.subr.bf16.mxu0 %v796
      %1509 = vmatpush1.bf16.msra.mxu0 %v795
      %1510 = vmatprep.subr.bf16.mxu0 %v800
      %1511 = vmatpush1.bf16.msra.mxu0 %v799
      %1512 = vmatprep.subr.bf16.mxu0 %v804
      %1513 = vmatpush1.bf16.msra.mxu0 %v803
      %1514 = vmatprep.subr.bf16.mxu0 0
      %1515 = vmatpush1.bf16.msra.mxu0 0
      %1516 = vmatprep.subr.bf16.mxu0 0
      %1517 = vmatpush1.bf16.msra.mxu0 0
      %1518 = vmatprep.subr.bf16.mxu0 0
      %1519 = vmatpush1.bf16.msra.mxu0 0
      %1520 = vmatprep.subr.bf16.mxu0 0
      %1521 = vmatpush1.bf16.msra.mxu0 0
      %1522 = vmatprep.subr.bf16.mxu0 0
      %1523 = vmatpush1.bf16.msra.mxu0 0
      %1524 = vmatprep.subr.bf16.mxu0 0
      %1525 = vmatpush1.bf16.msra.mxu0 0
      %1526 = vmatprep.subr.bf16.mxu0 0
      %1527 = vmatpush1.bf16.msra.mxu0 0
      %1528 = vmatprep.subr.bf16.mxu0 0
      %1529 = vmatpush1.bf16.msra.mxu0 0
      %1530 = vmatprep.mubr.bf16.mxu0 0
      %1531 = vmatmul.mubr.bf16.gmra.mrb[0].mxu0 %v1455
      %v1532 = vpop.f32.mrb[0].mxu0
      %v1533 = vadd.f32 0.0, %v1532
      %v1534 = vpop.f32.mrb[0].mxu0
      %v1535 = vadd.f32 0.0, %v1534
      %v1536 = vpop.f32.mrb[0].mxu0
      %v1537 = vpop.f32.mrb[0].mxu0
      %1538 = vdwg.mxu0
      %v1539 = vadd.f32 %v598, %v1492
      %v1540 = vadd.f32 %v600, %v1494
      %v1543 = vrot.slane %v1533, 2
      %v1544 = vrot.slane %v1535, 2
      %v1547 = vadd.f32 %v637, %v1543
      %v1548 = vadd.f32 %v639, %v1544
      %v1549 = vxor.u32 %v1539, 2147483648
      %v1550 = vmul.f32 %v1549, 1.442695
      %v1551 = vpow.pop %v1550
      %v1552 = vadd.f32 %v1551, 1.0
      %v1553 = vrcp.pop %v1552
      %v1554 = vmul.f32 1.0, %v1553
      %v1555 = vtanh.pop %v1540
      %v1556 = vxor.u32 %v1540, 2147483648
      %v1557 = vmul.f32 %v1556, 1.442695
      %v1558 = vpow.pop %v1557
      %v1559 = vadd.f32 %v1558, 1.0
      %v1560 = vrcp.pop %v1559
      %v1561 = vmul.f32 1.0, %v1560
      %v1563 = vrot.slane %v1417, 6
      %v1565 = vmul.f32 %v1554, %v1563
      %v1566 = vmul.f32 %v1554, %v1555
      %1568 = vrot.lane.b32.xlu0 %v1566, 64
      %v1569 = vpop.permute.xlu0 %1568
      %v1571 = vadd.f32 %v1565, %v1569
      %v1572 = vtanh.pop %v1571
      %v1573 = vmul.f32 %v1561, %v1572
      %v1574 = vxor.u32 %v1547, 2147483648
      %v1575 = vmul.f32 %v1574, 1.442695
      %v1576 = vpow.pop %v1575
      %v1577 = vadd.f32 %v1576, 1.0
      %v1578 = vrcp.pop %v1577
      %v1579 = vmul.f32 1.0, %v1578
      %v1580 = vtanh.pop %v1548
      %v1581 = vxor.u32 %v1548, 2147483648
      %v1582 = vmul.f32 %v1581, 1.442695
      %v1583 = vpow.pop %v1582
      %v1584 = vadd.f32 %v1583, 1.0
      %v1585 = vrcp.pop %v1584
      %v1586 = vmul.f32 1.0, %v1585
      %v1588 = vrot.slane %v1442, 2
      %v1590 = vmul.f32 %v1579, %v1588
      %v1591 = vmul.f32 %v1579, %v1580
      %1593 = vrot.lane.b32.xlu0 %v1591, 64
      %v1594 = vpop.permute.xlu0 %1593
      %v1596 = vadd.f32 %v1590, %v1594
      %v1597 = vtanh.pop %v1596
      %v1598 = vmul.f32 %v1586, %v1597
      %1600 = vrot.lane.b32.xlu0 %v1573, 64
      %v1601 = vpop.permute.xlu0 %1600
      %v1604 = vrot.slane %v1598, 6
      %v1606 = vsel %vm980, %v1601, %v1604
      %v1607 = vpack.c.bf16 %v1606, %v1606
      %1608 = vmatprep.subr.bf16.mxu0 %v774
      %1609 = vmatpush1.bf16.msra.mxu0 %v773
      %1610 = vmatprep.subr.bf16.mxu0 %v778
      %1611 = vmatpush1.bf16.msra.mxu0 %v777
      %1612 = vmatprep.subr.bf16.mxu0 %v782
      %1613 = vmatpush1.bf16.msra.mxu0 %v781
      %1614 = vmatprep.subr.bf16.mxu0 %v786
      %1615 = vmatpush1.bf16.msra.mxu0 %v785
      %1616 = vmatprep.subr.bf16.mxu0 %v790
      %1617 = vmatpush1.bf16.msra.mxu0 %v789
      %1618 = vmatprep.subr.bf16.mxu0 %v794
      %1619 = vmatpush1.bf16.msra.mxu0 %v793
      %1620 = vmatprep.subr.bf16.mxu0 %v798
      %1621 = vmatpush1.bf16.msra.mxu0 %v797
      %1622 = vmatprep.subr.bf16.mxu0 %v802
      %1623 = vmatpush1.bf16.msra.mxu0 %v801
      %1624 = vmatprep.subr.bf16.mxu0 0
      %1625 = vmatpush1.bf16.msra.mxu0 0
      %1626 = vmatprep.subr.bf16.mxu0 0
      %1627 = vmatpush1.bf16.msra.mxu0 0
      %1628 = vmatprep.subr.bf16.mxu0 0
      %1629 = vmatpush1.bf16.msra.mxu0 0
      %1630 = vmatprep.subr.bf16.mxu0 0
      %1631 = vmatpush1.bf16.msra.mxu0 0
      %1632 = vmatprep.subr.bf16.mxu0 0
      %1633 = vmatpush1.bf16.msra.mxu0 0
      %1634 = vmatprep.subr.bf16.mxu0 0
      %1635 = vmatpush1.bf16.msra.mxu0 0
      %1636 = vmatprep.subr.bf16.mxu0 0
      %1637 = vmatpush1.bf16.msra.mxu0 0
      %1638 = vmatprep.subr.bf16.mxu0 0
      %1639 = vmatpush1.bf16.msra.mxu0 0
      %1640 = vmatprep.mubr.bf16.mxu0 0
      %1641 = vmatmul.mubr.bf16.gmra.mrb[0].mxu0 %v1607
      %v1642 = vpop.f32.mrb[0].mxu0
      %v1643 = vadd.f32 0.0, %v1642
      %v1644 = vpop.f32.mrb[0].mxu0
      %v1645 = vadd.f32 0.0, %v1644
      %v1646 = vpop.f32.mrb[0].mxu0
      %v1647 = vpop.f32.mrb[0].mxu0
      %1648 = vdwg.mxu0
      %1649 = vmatprep.subr.bf16.mxu0 %v776
      %1650 = vmatpush1.bf16.msra.mxu0 %v775
      %1651 = vmatprep.subr.bf16.mxu0 %v780
      %1652 = vmatpush1.bf16.msra.mxu0 %v779
      %1653 = vmatprep.subr.bf16.mxu0 %v784
      %1654 = vmatpush1.bf16.msra.mxu0 %v783
      %1655 = vmatprep.subr.bf16.mxu0 %v788
      %1656 = vmatpush1.bf16.msra.mxu0 %v787
      %1657 = vmatprep.subr.bf16.mxu0 %v792
      %1658 = vmatpush1.bf16.msra.mxu0 %v791
      %1659 = vmatprep.subr.bf16.mxu0 %v796
      %1660 = vmatpush1.bf16.msra.mxu0 %v795
      %1661 = vmatprep.subr.bf16.mxu0 %v800
      %1662 = vmatpush1.bf16.msra.mxu0 %v799
      %1663 = vmatprep.subr.bf16.mxu0 %v804
      %1664 = vmatpush1.bf16.msra.mxu0 %v803
      %1665 = vmatprep.subr.bf16.mxu0 0
      %1666 = vmatpush1.bf16.msra.mxu0 0
      %1667 = vmatprep.subr.bf16.mxu0 0
      %1668 = vmatpush1.bf16.msra.mxu0 0
      %1669 = vmatprep.subr.bf16.mxu0 0
      %1670 = vmatpush1.bf16.msra.mxu0 0
      %1671 = vmatprep.subr.bf16.mxu0 0
      %1672 = vmatpush1.bf16.msra.mxu0 0
      %1673 = vmatprep.subr.bf16.mxu0 0
      %1674 = vmatpush1.bf16.msra.mxu0 0
      %1675 = vmatprep.subr.bf16.mxu0 0
      %1676 = vmatpush1.bf16.msra.mxu0 0
      %1677 = vmatprep.subr.bf16.mxu0 0
      %1678 = vmatpush1.bf16.msra.mxu0 0
      %1679 = vmatprep.subr.bf16.mxu0 0
      %1680 = vmatpush1.bf16.msra.mxu0 0
      %1681 = vmatprep.mubr.bf16.mxu0 0
      %1682 = vmatmul.mubr.bf16.gmra.mrb[0].mxu0 %v1607
      %v1683 = vpop.f32.mrb[0].mxu0
      %v1684 = vadd.f32 0.0, %v1683
      %v1685 = vpop.f32.mrb[0].mxu0
      %v1686 = vadd.f32 0.0, %v1685
      %v1687 = vpop.f32.mrb[0].mxu0
      %v1688 = vpop.f32.mrb[0].mxu0
      %1689 = vdwg.mxu0
      %v1692 = vrot.slane %v1643, 6
      %v1693 = vrot.slane %v1645, 6
      %v1696 = vadd.f32 %v598, %v1692
      %v1697 = vadd.f32 %v600, %v1693
      %v1700 = vrot.slane %v1684, 4
      %v1701 = vrot.slane %v1686, 4
      %v1704 = vadd.f32 %v637, %v1700
      %v1705 = vadd.f32 %v639, %v1701
      %v1706 = vxor.u32 %v1696, 2147483648
      %v1707 = vmul.f32 %v1706, 1.442695
      %v1708 = vpow.pop %v1707
      %v1709 = vadd.f32 %v1708, 1.0
      %v1710 = vrcp.pop %v1709
      %v1711 = vmul.f32 1.0, %v1710
      %v1712 = vtanh.pop %v1697
      %v1713 = vxor.u32 %v1697, 2147483648
      %v1714 = vmul.f32 %v1713, 1.442695
      %v1715 = vpow.pop %v1714
      %v1716 = vadd.f32 %v1715, 1.0
      %v1717 = vrcp.pop %v1716
      %v1718 = vmul.f32 1.0, %v1717
      %v1720 = vrot.slane %v1571, 6
      %v1722 = vmul.f32 %v1711, %v1720
      %v1723 = vmul.f32 %v1711, %v1712
      %1725 = vrot.lane.b32.xlu0 %v1723, 64
      %v1726 = vpop.permute.xlu0 %1725
      %v1728 = vadd.f32 %v1722, %v1726
      %v1729 = vtanh.pop %v1728
      %v1730 = vmul.f32 %v1718, %v1729
      %v1731 = vxor.u32 %v1704, 2147483648
      %v1732 = vmul.f32 %v1731, 1.442695
      %v1733 = vpow.pop %v1732
      %v1734 = vadd.f32 %v1733, 1.0
      %v1735 = vrcp.pop %v1734
      %v1736 = vmul.f32 1.0, %v1735
      %v1737 = vtanh.pop %v1705
      %v1738 = vxor.u32 %v1705, 2147483648
      %v1739 = vmul.f32 %v1738, 1.442695
      %v1740 = vpow.pop %v1739
      %v1741 = vadd.f32 %v1740, 1.0
      %v1742 = vrcp.pop %v1741
      %v1743 = vmul.f32 1.0, %v1742
      %v1745 = vrot.slane %v1596, 2
      %v1747 = vmul.f32 %v1736, %v1745
      %v1748 = vmul.f32 %v1736, %v1737
      %1750 = vrot.lane.b32.xlu0 %v1748, 64
      %v1751 = vpop.permute.xlu0 %1750
      %v1753 = vadd.f32 %v1747, %v1751
      %v1754 = vtanh.pop %v1753
      %v1755 = vmul.f32 %v1743, %v1754
      %1757 = vrot.lane.b32.xlu0 %v1730, 64
      %v1758 = vpop.permute.xlu0 %1757
      %v1761 = vrot.slane %v1755, 2
      %v1763 = vsel %vm980, %v1758, %v1761
      %v1764 = vpack.c.bf16 %v1763, %v1763
      %v1766 = vrot.slane %v1764, 1
      %1768 = vmatprep.subr.bf16.mxu0 %v774
      %1769 = vmatpush1.bf16.msra.mxu0 %v773
      %1770 = vmatprep.subr.bf16.mxu0 %v778
      %1771 = vmatpush1.bf16.msra.mxu0 %v777
      %1772 = vmatprep.subr.bf16.mxu0 %v782
      %1773 = vmatpush1.bf16.msra.mxu0 %v781
      %1774 = vmatprep.subr.bf16.mxu0 %v786
      %1775 = vmatpush1.bf16.msra.mxu0 %v785
      %1776 = vmatprep.subr.bf16.mxu0 %v790
      %1777 = vmatpush1.bf16.msra.mxu0 %v789
      %1778 = vmatprep.subr.bf16.mxu0 %v794
      %1779 = vmatpush1.bf16.msra.mxu0 %v793
      %1780 = vmatprep.subr.bf16.mxu0 %v798
      %1781 = vmatpush1.bf16.msra.mxu0 %v797
      %1782 = vmatprep.subr.bf16.mxu0 %v802
      %1783 = vmatpush1.bf16.msra.mxu0 %v801
      %1784 = vmatprep.subr.bf16.mxu0 0
      %1785 = vmatpush1.bf16.msra.mxu0 0
      %1786 = vmatprep.subr.bf16.mxu0 0
      %1787 = vmatpush1.bf16.msra.mxu0 0
      %1788 = vmatprep.subr.bf16.mxu0 0
      %1789 = vmatpush1.bf16.msra.mxu0 0
      %1790 = vmatprep.subr.bf16.mxu0 0
      %1791 = vmatpush1.bf16.msra.mxu0 0
      %1792 = vmatprep.subr.bf16.mxu0 0
      %1793 = vmatpush1.bf16.msra.mxu0 0
      %1794 = vmatprep.subr.bf16.mxu0 0
      %1795 = vmatpush1.bf16.msra.mxu0 0
      %1796 = vmatprep.subr.bf16.mxu0 0
      %1797 = vmatpush1.bf16.msra.mxu0 0
      %1798 = vmatprep.subr.bf16.mxu0 0
      %1799 = vmatpush1.bf16.msra.mxu0 0
      %1800 = vmatprep.mubr.bf16.mxu0 0
      %1801 = vmatmul.mubr.bf16.gmra.mrb[0].mxu0 %v1766
      %v1802 = vpop.f32.mrb[0].mxu0
      %v1803 = vadd.f32 0.0, %v1802
      %v1804 = vpop.f32.mrb[0].mxu0
      %v1805 = vadd.f32 0.0, %v1804
      %v1806 = vpop.f32.mrb[0].mxu0
      %v1807 = vpop.f32.mrb[0].mxu0
      %1808 = vdwg.mxu0
      %1809 = vmatprep.subr.bf16.mxu0 %v776
      %1810 = vmatpush1.bf16.msra.mxu0 %v775
      %1811 = vmatprep.subr.bf16.mxu0 %v780
      %1812 = vmatpush1.bf16.msra.mxu0 %v779
      %1813 = vmatprep.subr.bf16.mxu0 %v784
      %1814 = vmatpush1.bf16.msra.mxu0 %v783
      %1815 = vmatprep.subr.bf16.mxu0 %v788
      %1816 = vmatpush1.bf16.msra.mxu0 %v787
      %1817 = vmatprep.subr.bf16.mxu0 %v792
      %1818 = vmatpush1.bf16.msra.mxu0 %v791
      %1819 = vmatprep.subr.bf16.mxu0 %v796
      %1820 = vmatpush1.bf16.msra.mxu0 %v795
      %1821 = vmatprep.subr.bf16.mxu0 %v800
      %1822 = vmatpush1.bf16.msra.mxu0 %v799
      %1823 = vmatprep.subr.bf16.mxu0 %v804
      %1824 = vmatpush1.bf16.msra.mxu0 %v803
      %1825 = vmatprep.subr.bf16.mxu0 0
      %1826 = vmatpush1.bf16.msra.mxu0 0
      %1827 = vmatprep.subr.bf16.mxu0 0
      %1828 = vmatpush1.bf16.msra.mxu0 0
      %1829 = vmatprep.subr.bf16.mxu0 0
      %1830 = vmatpush1.bf16.msra.mxu0 0
      %1831 = vmatprep.subr.bf16.mxu0 0
      %1832 = vmatpush1.bf16.msra.mxu0 0
      %1833 = vmatprep.subr.bf16.mxu0 0
      %1834 = vmatpush1.bf16.msra.mxu0 0
      %1835 = vmatprep.subr.bf16.mxu0 0
      %1836 = vmatpush1.bf16.msra.mxu0 0
      %1837 = vmatprep.subr.bf16.mxu0 0
      %1838 = vmatpush1.bf16.msra.mxu0 0
      %1839 = vmatprep.subr.bf16.mxu0 0
      %1840 = vmatpush1.bf16.msra.mxu0 0
      %1841 = vmatprep.mubr.bf16.mxu0 0
      %1842 = vmatmul.mubr.bf16.gmra.mrb[0].mxu0 %v1766
      %v1843 = vpop.f32.mrb[0].mxu0
      %v1844 = vadd.f32 0.0, %v1843
      %v1845 = vpop.f32.mrb[0].mxu0
      %v1846 = vadd.f32 0.0, %v1845
      %v1847 = vpop.f32.mrb[0].mxu0
      %v1848 = vpop.f32.mrb[0].mxu0
      %1849 = vdwg.mxu0
      %v1852 = vrot.slane %v1803, 4
      %v1853 = vrot.slane %v1805, 4
      %v1856 = vadd.f32 %v598, %v1852
      %v1857 = vadd.f32 %v600, %v1853
      %v1860 = vrot.slane %v1844, 6
      %v1861 = vrot.slane %v1846, 6
      %v1864 = vadd.f32 %v637, %v1860
      %v1865 = vadd.f32 %v639, %v1861
      %v1866 = vxor.u32 %v1856, 2147483648
      %v1867 = vmul.f32 %v1866, 1.442695
      %v1868 = vpow.pop %v1867
      %v1869 = vadd.f32 %v1868, 1.0
      %v1870 = vrcp.pop %v1869
      %v1871 = vmul.f32 1.0, %v1870
      %v1872 = vtanh.pop %v1857
      %v1873 = vxor.u32 %v1857, 2147483648
      %v1874 = vmul.f32 %v1873, 1.442695
      %v1875 = vpow.pop %v1874
      %v1876 = vadd.f32 %v1875, 1.0
      %v1877 = vrcp.pop %v1876
      %v1878 = vmul.f32 1.0, %v1877
      %v1880 = vrot.slane %v1728, 6
      %v1882 = vmul.f32 %v1871, %v1880
      %v1883 = vmul.f32 %v1871, %v1872
      %1885 = vrot.lane.b32.xlu0 %v1883, 64
      %v1886 = vpop.permute.xlu0 %1885
      %v1888 = vadd.f32 %v1882, %v1886
      %v1889 = vtanh.pop %v1888
      %v1890 = vmul.f32 %v1878, %v1889
      %v1891 = vxor.u32 %v1864, 2147483648
      %v1892 = vmul.f32 %v1891, 1.442695
      %v1893 = vpow.pop %v1892
      %v1894 = vadd.f32 %v1893, 1.0
      %v1895 = vrcp.pop %v1894
      %v1896 = vmul.f32 1.0, %v1895
      %v1897 = vtanh.pop %v1865
      %v1898 = vxor.u32 %v1865, 2147483648
      %v1899 = vmul.f32 %v1898, 1.442695
      %v1900 = vpow.pop %v1899
      %v1901 = vadd.f32 %v1900, 1.0
      %v1902 = vrcp.pop %v1901
      %v1903 = vmul.f32 1.0, %v1902
      %v1905 = vrot.slane %v1753, 2
      %v1907 = vmul.f32 %v1896, %v1905
      %v1908 = vmul.f32 %v1896, %v1897
      %1910 = vrot.lane.b32.xlu0 %v1908, 64
      %v1911 = vpop.permute.xlu0 %1910
      %v1913 = vadd.f32 %v1907, %v1911
      %v1914 = vtanh.pop %v1913
      %v1915 = vmul.f32 %v1903, %v1914
      %1917 = vrot.lane.b32.xlu0 %v1890, 64
      %v1918 = vpop.permute.xlu0 %1917
      %v1921 = vrot.slane %v1915, 6
      %v1923 = vsel %vm980, %v1918, %v1921
      %v1924 = vpack.c.bf16 %v1923, %v1923
      %v1926 = vrot.slane %v1924, 2
      %1928 = vmatprep.subr.bf16.mxu0 %v774
      %1929 = vmatpush1.bf16.msra.mxu0 %v773
      %1930 = vmatprep.subr.bf16.mxu0 %v778
      %1931 = vmatpush1.bf16.msra.mxu0 %v777
      %1932 = vmatprep.subr.bf16.mxu0 %v782
      %1933 = vmatpush1.bf16.msra.mxu0 %v781
      %1934 = vmatprep.subr.bf16.mxu0 %v786
      %1935 = vmatpush1.bf16.msra.mxu0 %v785
      %1936 = vmatprep.subr.bf16.mxu0 %v790
      %1937 = vmatpush1.bf16.msra.mxu0 %v789
      %1938 = vmatprep.subr.bf16.mxu0 %v794
      %1939 = vmatpush1.bf16.msra.mxu0 %v793
      %1940 = vmatprep.subr.bf16.mxu0 %v798
      %1941 = vmatpush1.bf16.msra.mxu0 %v797
      %1942 = vmatprep.subr.bf16.mxu0 %v802
      %1943 = vmatpush1.bf16.msra.mxu0 %v801
      %1944 = vmatprep.subr.bf16.mxu0 0
      %1945 = vmatpush1.bf16.msra.mxu0 0
      %1946 = vmatprep.subr.bf16.mxu0 0
      %1947 = vmatpush1.bf16.msra.mxu0 0
      %1948 = vmatprep.subr.bf16.mxu0 0
      %1949 = vmatpush1.bf16.msra.mxu0 0
      %1950 = vmatprep.subr.bf16.mxu0 0
      %1951 = vmatpush1.bf16.msra.mxu0 0
      %1952 = vmatprep.subr.bf16.mxu0 0
      %1953 = vmatpush1.bf16.msra.mxu0 0
      %1954 = vmatprep.subr.bf16.mxu0 0
      %1955 = vmatpush1.bf16.msra.mxu0 0
      %1956 = vmatprep.subr.bf16.mxu0 0
      %1957 = vmatpush1.bf16.msra.mxu0 0
      %1958 = vmatprep.subr.bf16.mxu0 0
      %1959 = vmatpush1.bf16.msra.mxu0 0
      %1960 = vmatprep.mubr.bf16.mxu0 0
      %1961 = vmatmul.mubr.bf16.gmra.mrb[0].mxu0 %v1926
      %v1962 = vpop.f32.mrb[0].mxu0
      %v1963 = vadd.f32 0.0, %v1962
      %v1964 = vpop.f32.mrb[0].mxu0
      %v1965 = vadd.f32 0.0, %v1964
      %v1966 = vpop.f32.mrb[0].mxu0
      %v1967 = vpop.f32.mrb[0].mxu0
      %1968 = vdwg.mxu0
      %1969 = vmatprep.subr.bf16.mxu0 %v776
      %1970 = vmatpush1.bf16.msra.mxu0 %v775
      %1971 = vmatprep.subr.bf16.mxu0 %v780
      %1972 = vmatpush1.bf16.msra.mxu0 %v779
      %1973 = vmatprep.subr.bf16.mxu0 %v784
      %1974 = vmatpush1.bf16.msra.mxu0 %v783
      %1975 = vmatprep.subr.bf16.mxu0 %v788
      %1976 = vmatpush1.bf16.msra.mxu0 %v787
      %1977 = vmatprep.subr.bf16.mxu0 %v792
      %1978 = vmatpush1.bf16.msra.mxu0 %v791
      %1979 = vmatprep.subr.bf16.mxu0 %v796
      %1980 = vmatpush1.bf16.msra.mxu0 %v795
      %1981 = vmatprep.subr.bf16.mxu0 %v800
      %1982 = vmatpush1.bf16.msra.mxu0 %v799
      %1983 = vmatprep.subr.bf16.mxu0 %v804
      %1984 = vmatpush1.bf16.msra.mxu0 %v803
      %1985 = vmatprep.subr.bf16.mxu0 0
      %1986 = vmatpush1.bf16.msra.mxu0 0
      %1987 = vmatprep.subr.bf16.mxu0 0
      %1988 = vmatpush1.bf16.msra.mxu0 0
      %1989 = vmatprep.subr.bf16.mxu0 0
      %1990 = vmatpush1.bf16.msra.mxu0 0
      %1991 = vmatprep.subr.bf16.mxu0 0
      %1992 = vmatpush1.bf16.msra.mxu0 0
      %1993 = vmatprep.subr.bf16.mxu0 0
      %1994 = vmatpush1.bf16.msra.mxu0 0
      %1995 = vmatprep.subr.bf16.mxu0 0
      %1996 = vmatpush1.bf16.msra.mxu0 0
      %1997 = vmatprep.subr.bf16.mxu0 0
      %1998 = vmatpush1.bf16.msra.mxu0 0
      %1999 = vmatprep.subr.bf16.mxu0 0
      %2000 = vmatpush1.bf16.msra.mxu0 0
      %2001 = vmatprep.mubr.bf16.mxu0 0
      %2002 = vmatmul.mubr.bf16.gmra.mrb[0].mxu0 %v1926
      %v2003 = vpop.f32.mrb[0].mxu0
      %v2004 = vadd.f32 0.0, %v2003
      %v2005 = vpop.f32.mrb[0].mxu0
      %v2006 = vadd.f32 0.0, %v2005
      %v2007 = vpop.f32.mrb[0].mxu0
      %v2008 = vpop.f32.mrb[0].mxu0
      %2009 = vdwg.mxu0
      %v2012 = vrot.slane %v1963, 2
      %v2013 = vrot.slane %v1965, 2
      %v2016 = vadd.f32 %v598, %v2012
      %v2017 = vadd.f32 %v600, %v2013
      %v2018 = vadd.f32 %v637, %v2004
      %v2019 = vadd.f32 %v639, %v2006
      %v2020 = vxor.u32 %v2016, 2147483648
      %v2021 = vmul.f32 %v2020, 1.442695
      %v2022 = vpow.pop %v2021
      %v2023 = vadd.f32 %v2022, 1.0
      %v2024 = vrcp.pop %v2023
      %v2025 = vmul.f32 1.0, %v2024
      %v2026 = vtanh.pop %v2017
      %v2027 = vxor.u32 %v2017, 2147483648
      %v2028 = vmul.f32 %v2027, 1.442695
      %v2029 = vpow.pop %v2028
      %v2030 = vadd.f32 %v2029, 1.0
      %v2031 = vrcp.pop %v2030
      %v2032 = vmul.f32 1.0, %v2031
      %v2034 = vrot.slane %v1888, 6
      %v2036 = vmul.f32 %v2025, %v2034
      %v2037 = vmul.f32 %v2025, %v2026
      %2039 = vrot.lane.b32.xlu0 %v2037, 64
      %v2040 = vpop.permute.xlu0 %2039
      %v2042 = vadd.f32 %v2036, %v2040
      %v2043 = vtanh.pop %v2042
      %v2044 = vmul.f32 %v2032, %v2043
      %v2045 = vxor.u32 %v2018, 2147483648
      %v2046 = vmul.f32 %v2045, 1.442695
      %v2047 = vpow.pop %v2046
      %v2048 = vadd.f32 %v2047, 1.0
      %v2049 = vrcp.pop %v2048
      %v2050 = vmul.f32 1.0, %v2049
      %v2051 = vtanh.pop %v2019
      %v2052 = vxor.u32 %v2019, 2147483648
      %v2053 = vmul.f32 %v2052, 1.442695
      %v2054 = vpow.pop %v2053
      %v2055 = vadd.f32 %v2054, 1.0
      %v2056 = vrcp.pop %v2055
      %v2057 = vmul.f32 1.0, %v2056
      %v2059 = vrot.slane %v1913, 2
      %v2061 = vmul.f32 %v2050, %v2059
      %v2062 = vmul.f32 %v2050, %v2051
      %2064 = vrot.lane.b32.xlu0 %v2062, 64
      %v2065 = vpop.permute.xlu0 %2064
      %v2067 = vadd.f32 %v2061, %v2065
      %v2068 = vtanh.pop %v2067
      %v2069 = vmul.f32 %v2057, %v2068
      %v2070 = vsel %vm980, %v975, %v2069
      %v2071 = vsel %vm980, %v1133, %v1915
      %v2072 = vsel %vm980, %v1293, %v1755
      %v2073 = vsel %vm980, %v1447, %v1598
      %v2074 = vsel %vm980, %v1601, %v1444
      %v2075 = vsel %vm980, %v1758, %v1290
      %v2076 = vsel %vm980, %v1918, %v1130
      %2078 = vrot.lane.b32.xlu0 %v2044, 64
      %v2079 = vpop.permute.xlu0 %2078
      %v2081 = vsel %vm980, %v2079, %v972
      %vm2082 = vcmask 1041408
      %v2083 = vsel %vm2082, %v2070, %v2071
      %vm2084 = vcmask 1043456
      %v2085 = vsel %vm2084, %v2083, %v2072
      %vm2086 = vcmask 1045504
      %v2087 = vsel %vm2086, %v2085, %v2073
      %v2088 = vsel %vm2082, %v2074, %v2075
      %v2089 = vsel %vm2084, %v2088, %v2076
      %v2090 = vsel %vm2086, %v2089, %v2081
      %2091 = vst [vmem:[#allocation2] sm:$0xff] %v2087
      %2092 = vst [vmem:[#allocation2 + $0x8] sm:$0xff] %v2090
      %p2093 = scmp.eq.s32.totalorder %s27, 1
      // Predicated region
      $region53: #{forward.3} parent=47 // pred_check
        %p2094 = pneg %p2093
      $region54: #{forward.3} parent=47 // pred_check_branch
        %2096 = sbr.rel (%p2094) target = $region56
      $region55: #{forward.3} parent=47 // pred_region
        %v2097 = vpack.c.bf16 %v2090, %v2087
        %v2098 = vld [vmem:[%s5] sm:$0xf]
        %v2099 = vld [vmem:[%s5 + $0x4] sm:$0xf]
        %v2100 = vld [vmem:[%s5 + $0x8] sm:$0xf]
        %v2101 = vld [vmem:[%s5 + $0xc] sm:$0xf]
        %v2102 = vld [vmem:[%s5 + $0x10] sm:$0xf]
        %v2103 = vld [vmem:[%s5 + $0x14] sm:$0xf]
        %v2104 = vld [vmem:[%s5 + $0x18] sm:$0xf]
        %v2105 = vld [vmem:[%s5 + $0x1c] sm:$0xf]
        %v2106 = vld [vmem:[%s5 + $0x20] sm:$0xf]
        %v2107 = vld [vmem:[%s5 + $0x24] sm:$0xf]
        %v2108 = vld [vmem:[%s5 + $0x28] sm:$0xf]
        %v2109 = vld [vmem:[%s5 + $0x2c] sm:$0xf]
        %v2110 = vld [vmem:[%s5 + $0x30] sm:$0xf]
        %v2111 = vld [vmem:[%s5 + $0x34] sm:$0xf]
        %v2112 = vld [vmem:[%s5 + $0x38] sm:$0xf]
        %v2113 = vld [vmem:[%s5 + $0x3c] sm:$0xf]
        %v2114 = vld [vmem:[%s6] sm:$0x1]
        %v2116 = vlaneseq
        %v2117 = vshrl.u32 %v2116, 7
        %v2118 = vsub.s32 0, %v2117
        %v2119 = vrot.slane %v2114, %v2118
        %v2137 = vunpack.c.l.b16 %v2098
        %v2138 = vunpack.c.l.b16 %v2099
        %v2139 = vunpack.c.l.b16 %v2100
        %v2140 = vunpack.c.l.b16 %v2101
        %v2141 = vunpack.c.l.b16 %v2102
        %v2142 = vunpack.c.l.b16 %v2103
        %v2143 = vunpack.c.l.b16 %v2104
        %v2144 = vunpack.c.l.b16 %v2105
        %v2145 = vunpack.c.l.b16 %v2106
        %v2146 = vunpack.c.l.b16 %v2107
        %v2147 = vunpack.c.l.b16 %v2108
        %v2148 = vunpack.c.l.b16 %v2109
        %v2149 = vunpack.c.l.b16 %v2110
        %v2150 = vunpack.c.l.b16 %v2111
        %v2151 = vunpack.c.l.b16 %v2112
        %v2152 = vunpack.c.l.b16 %v2113
        %v2153 = vpack.c.b16 %v2138, %v2137
        %v2154 = vpack.c.b16 %v2140, %v2139
        %v2155 = vpack.c.b16 %v2142, %v2141
        %v2156 = vpack.c.b16 %v2144, %v2143
        %v2157 = vpack.c.b16 %v2146, %v2145
        %v2158 = vpack.c.b16 %v2148, %v2147
        %v2159 = vpack.c.b16 %v2150, %v2149
        %v2160 = vpack.c.b16 %v2152, %v2151
        %2169 = vmatprep.subr.bf16.mxu0 0
        %2170 = vmatpush1.bf16.msra.mxu0 %v2153
        %2171 = vmatprep.subr.bf16.mxu0 0
        %2172 = vmatpush1.bf16.msra.mxu0 %v2154
        %2173 = vmatprep.subr.bf16.mxu0 0
        %2174 = vmatpush1.bf16.msra.mxu0 %v2155
        %2175 = vmatprep.subr.bf16.mxu0 0
        %2176 = vmatpush1.bf16.msra.mxu0 %v2156
        %2177 = vmatprep.subr.bf16.mxu0 0
        %2178 = vmatpush1.bf16.msra.mxu0 %v2157
        %2179 = vmatprep.subr.bf16.mxu0 0
        %2180 = vmatpush1.bf16.msra.mxu0 %v2158
        %2181 = vmatprep.subr.bf16.mxu0 0
        %2182 = vmatpush1.bf16.msra.mxu0 %v2159
        %2183 = vmatprep.subr.bf16.mxu0 0
        %2184 = vmatpush1.bf16.msra.mxu0 %v2160
        %2185 = vmatprep.subr.bf16.mxu0 0
        %2186 = vmatpush1.bf16.msra.mxu0 0
        %2187 = vmatprep.subr.bf16.mxu0 0
        %2188 = vmatpush1.bf16.msra.mxu0 0
        %2189 = vmatprep.subr.bf16.mxu0 0
        %2190 = vmatpush1.bf16.msra.mxu0 0
        %2191 = vmatprep.subr.bf16.mxu0 0
        %2192 = vmatpush1.bf16.msra.mxu0 0
        %2193 = vmatprep.subr.bf16.mxu0 0
        %2194 = vmatpush1.bf16.msra.mxu0 0
        %2195 = vmatprep.subr.bf16.mxu0 0
        %2196 = vmatpush1.bf16.msra.mxu0 0
        %2197 = vmatprep.subr.bf16.mxu0 0
        %2198 = vmatpush1.bf16.msra.mxu0 0
        %2199 = vmatprep.subr.bf16.mxu0 0
        %2200 = vmatpush1.bf16.msra.mxu0 0
        %2201 = vmatprep.mubr.bf16.mxu0 0
        %2202 = vmatmul.mubr.bf16.gmra.mrb[0].mxu0 %v2097
        %v2203 = vpop.f32.mrb[0].mxu0
        %v2204 = vadd.f32 %v2119, %v2203
        %v2205 = vpop.f32.mrb[0].mxu0
        %v2206 = vpop.f32.mrb[0].mxu0
        %v2207 = vadd.f32 %v2119, %v2206
        %v2208 = vpop.f32.mrb[0].mxu0
        %2209 = vdwg.mxu0
        %vm2210 = vcmask 64512
        %v2211 = vsel %vm2210, %v2204, -inf
        %2212 = vmax.xlane.f32.xlu0 %v2211
        %v2213 = vpop.xlane.xlu0 %2212
        %v2214 = vsel %vm2210, %v2207, -inf
        %2215 = vmax.xlane.f32.xlu0 %v2214
        %v2216 = vpop.xlane.xlu0 %2215
        %v2217 = vsub.f32 %v2204, %v2213
        %v2218 = vsub.f32 %v2207, %v2216
        %v2219 = vmul.f32 %v2217, 1.442695
        %v2220 = vpow.pop %v2219
        %v2221 = vmul.f32 %v2218, 1.442695
        %v2222 = vpow.pop %v2221
        %v2223 = vsel %vm2210, %v2220, 0.0
        %2224 = vadd.xlane.f32.xlu0 %v2223
        %v2225 = vpop.xlane.xlu0 %2224
        %v2226 = vsel %vm2210, %v2222, 0.0
        %2227 = vadd.xlane.f32.xlu0 %v2226
        %v2228 = vpop.xlane.xlu0 %2227
        %v2229 = vlog2.pop %v2225
        %v2230 = vmul.f32 %v2229, 0.6931472
        %v2231 = vlog2.pop %v2228
        %v2232 = vmul.f32 %v2231, 0.6931472
        %v2233 = vsub.f32 %v2217, %v2230
        %v2234 = vsub.f32 %v2218, %v2232
        %v2235 = vld [vmem:[%s7] sm:$0xff]
        %v2236 = vlaneseq
        %v2237 = vshrl.u32 %v2236, 7
        %v2238 = vlaneseq
        %v2239 = vand.u32 %v2238, 127
        %vm2240 = vcmp.eq.s32.totalorder %v2237, %v2239
        %v2241 = vsel %vm2240, 1, 0
        %v2242 = vcvt.s32.f32 %v2241
        %v2243 = vcvt.s32.f32 %v2237
        %s2244 = sld [smem:[#allocation4]]
        %v2245 = vlaneseq
        %v2246 = vshrl.u32 %v2245, 7
        %v2247 = vsub.s32 0, %v2246
        %v2248 = vrot.slane %v2233, %v2247
        %v2249 = vmul.f32 %v2242, %v2248
        %v2250 = vsel %vm2210, %v2249, 0.0
        %2251 = vadd.xlane.f32.xlu0 %v2250
        %v2252 = vpop.xlane.xlu0 %2251
        %v2253 = vadd.f32 %v2252, %v2235
        %v2254 = vlaneseq
        %v2255 = vshrl.u32 %v2254, 7
        %v2256 = vsub.s32 2, %v2255
        %v2257 = vrot.slane %v2233, %v2256
        %v2258 = vadd.f32 %v2253, %v2257
        %v2259 = vsel %vm2210, %v2258, -inf
        %v2260 = vrot.slane %v2259, 4
        %v2261 = vmax.f32 %v2259, %v2260
        %v2262 = vrot.slane %v2261, 2
        %v2263 = vmax.f32 %v2261, %v2262
        %v2264 = vrot.slane %v2263, 1
        %v2265 = vmax.f32 %v2263, %v2264
        %vm2266 = vcmp.ge.f32.partialorder %v2258, %v2265
        %v2267 = vsel %vm2266, %v2243, 8.0
        %v2268 = vsel %vm2210, %v2267, inf
        %v2269 = vrot.slane %v2268, 4
        %v2270 = vmin.f32 %v2268, %v2269
        %v2271 = vrot.slane %v2270, 2
        %v2272 = vmin.f32 %v2270, %v2271
        %v2273 = vrot.slane %v2272, 1
        %v2274 = vmin.f32 %v2272, %v2273
        %v2275 = vcvt.f32.s32.to.zero.pseudo %v2274
        %p2276 = scmp.gt.s32.totalorder %s2244, 1
        %s2277 = scalar_select %p2276, 1, 0
        %v2278 = vstv %s2277
        %vm2279 = vcmp.eq.s32.totalorder %v2278, 1
        %v2280 = vsel %vm2279, %v2265, %v2233
        %v2281 = vsel %vm2279, %v2275, %v2239
        %v2282 = vlaneseq
        %v2283 = vshrl.u32 %v2282, 7
        %v2284 = vsub.s32 0, %v2283
        %v2285 = vrot.slane %v2280, %v2284
        %v2286 = vmul.f32 %v2242, %v2285
        %v2287 = vsel %vm2210, %v2286, 0.0
        %2288 = vadd.xlane.f32.xlu0 %v2287
        %v2289 = vpop.xlane.xlu0 %2288
        %v2290 = vadd.f32 %v2289, %v2235
        %v2291 = vlaneseq
        %v2292 = vshrl.u32 %v2291, 7
        %v2293 = vsub.s32 4, %v2292
        %v2294 = vrot.slane %v2233, %v2293
        %v2295 = vadd.f32 %v2290, %v2294
        %v2296 = vsel %vm2210, %v2295, -inf
        %v2297 = vrot.slane %v2296, 4
        %v2298 = vmax.f32 %v2296, %v2297
        %v2299 = vrot.slane %v2298, 2
        %v2300 = vmax.f32 %v2298, %v2299
        %v2301 = vrot.slane %v2300, 1
        %v2302 = vmax.f32 %v2300, %v2301
        %vm2303 = vcmp.ge.f32.partialorder %v2295, %v2302
        %v2304 = vsel %vm2303, %v2243, 8.0
        %v2305 = vsel %vm2210, %v2304, inf
        %v2306 = vrot.slane %v2305, 4
        %v2307 = vmin.f32 %v2305, %v2306
        %v2308 = vrot.slane %v2307, 2
        %v2309 = vmin.f32 %v2307, %v2308
        %v2310 = vrot.slane %v2309, 1
        %v2311 = vmin.f32 %v2309, %v2310
        %v2312 = vcvt.f32.s32.to.zero.pseudo %v2311
        %p2313 = scmp.gt.s32.totalorder %s2244, 2
        %s2314 = scalar_select %p2313, 1, 0
        %v2315 = vstv %s2314
        %vm2316 = vcmp.eq.s32.totalorder %v2315, 1
        %v2317 = vsel %vm2316, %v2302, %v2280
        %v2318 = vsel %vm2316, %v2312, %v2239
        %v2319 = vlaneseq
        %v2320 = vshrl.u32 %v2319, 7
        %v2321 = vsub.s32 0, %v2320
        %v2322 = vrot.slane %v2317, %v2321
        %v2323 = vmul.f32 %v2242, %v2322
        %v2324 = vsel %vm2210, %v2323, 0.0
        %2325 = vadd.xlane.f32.xlu0 %v2324
        %v2326 = vpop.xlane.xlu0 %2325
        %v2327 = vadd.f32 %v2326, %v2235
        %v2328 = vlaneseq
        %v2329 = vshrl.u32 %v2328, 7
        %v2330 = vsub.s32 6, %v2329
        %v2331 = vrot.slane %v2233, %v2330
        %v2332 = vadd.f32 %v2327, %v2331
        %v2333 = vsel %vm2210, %v2332, -inf
        %v2334 = vrot.slane %v2333, 4
        %v2335 = vmax.f32 %v2333, %v2334
        %v2336 = vrot.slane %v2335, 2
        %v2337 = vmax.f32 %v2335, %v2336
        %v2338 = vrot.slane %v2337, 1
        %v2339 = vmax.f32 %v2337, %v2338
        %vm2340 = vcmp.ge.f32.partialorder %v2332, %v2339
        %v2341 = vsel %vm2340, %v2243, 8.0
        %v2342 = vsel %vm2210, %v2341, inf
        %v2343 = vrot.slane %v2342, 4
        %v2344 = vmin.f32 %v2342, %v2343
        %v2345 = vrot.slane %v2344, 2
        %v2346 = vmin.f32 %v2344, %v2345
        %v2347 = vrot.slane %v2346, 1
        %v2348 = vmin.f32 %v2346, %v2347
        %v2349 = vcvt.f32.s32.to.zero.pseudo %v2348
        %p2350 = scmp.gt.s32.totalorder %s2244, 3
        %s2351 = scalar_select %p2350, 1, 0
        %v2352 = vstv %s2351
        %vm2353 = vcmp.eq.s32.totalorder %v2352, 1
        %v2354 = vsel %vm2353, %v2339, %v2317
        %v2355 = vsel %vm2353, %v2349, %v2239
        %v2356 = vlaneseq
        %v2357 = vshrl.u32 %v2356, 7
        %v2358 = vsub.s32 0, %v2357
        %v2359 = vrot.slane %v2354, %v2358
        %v2360 = vmul.f32 %v2242, %v2359
        %v2361 = vsel %vm2210, %v2360, 0.0
        %2362 = vadd.xlane.f32.xlu0 %v2361
        %v2363 = vpop.xlane.xlu0 %2362
        %v2364 = vadd.f32 %v2363, %v2235
        %v2365 = vlaneseq
        %v2366 = vshrl.u32 %v2365, 7
        %v2367 = vsub.s32 0, %v2366
        %v2368 = vrot.slane %v2234, %v2367
        %v2369 = vadd.f32 %v2364, %v2368
        %v2370 = vsel %vm2210, %v2369, -inf
        %v2371 = vrot.slane %v2370, 4
        %v2372 = vmax.f32 %v2370, %v2371
        %v2373 = vrot.slane %v2372, 2
        %v2374 = vmax.f32 %v2372, %v2373
        %v2375 = vrot.slane %v2374, 1
        %v2376 = vmax.f32 %v2374, %v2375
        %vm2377 = vcmp.ge.f32.partialorder %v2369, %v2376
        %v2378 = vsel %vm2377, %v2243, 8.0
        %v2379 = vsel %vm2210, %v2378, inf
        %v2380 = vrot.slane %v2379, 4
        %v2381 = vmin.f32 %v2379, %v2380
        %v2382 = vrot.slane %v2381, 2
        %v2383 = vmin.f32 %v2381, %v2382
        %v2384 = vrot.slane %v2383, 1
        %v2385 = vmin.f32 %v2383, %v2384
        %v2386 = vcvt.f32.s32.to.zero.pseudo %v2385
        %p2387 = scmp.gt.s32.totalorder %s2244, 4
        %s2388 = scalar_select %p2387, 1, 0
        %v2389 = vstv %s2388
        %vm2390 = vcmp.eq.s32.totalorder %v2389, 1
        %v2391 = vsel %vm2390, %v2376, %v2354
        %v2392 = vsel %vm2390, %v2386, %v2239
        %v2393 = vlaneseq
        %v2394 = vshrl.u32 %v2393, 7
        %v2395 = vsub.s32 0, %v2394
        %v2396 = vrot.slane %v2391, %v2395
        %v2397 = vmul.f32 %v2242, %v2396
        %v2398 = vsel %vm2210, %v2397, 0.0
        %2399 = vadd.xlane.f32.xlu0 %v2398
        %v2400 = vpop.xlane.xlu0 %2399
        %v2401 = vadd.f32 %v2400, %v2235
        %v2402 = vlaneseq
        %v2403 = vshrl.u32 %v2402, 7
        %v2404 = vsub.s32 2, %v2403
        %v2405 = vrot.slane %v2234, %v2404
        %v2406 = vadd.f32 %v2401, %v2405
        %v2407 = vsel %vm2210, %v2406, -inf
        %v2408 = vrot.slane %v2407, 4
        %v2409 = vmax.f32 %v2407, %v2408
        %v2410 = vrot.slane %v2409, 2
        %v2411 = vmax.f32 %v2409, %v2410
        %v2412 = vrot.slane %v2411, 1
        %v2413 = vmax.f32 %v2411, %v2412
        %vm2414 = vcmp.ge.f32.partialorder %v2406, %v2413
        %v2415 = vsel %vm2414, %v2243, 8.0
        %v2416 = vsel %vm2210, %v2415, inf
        %v2417 = vrot.slane %v2416, 4
        %v2418 = vmin.f32 %v2416, %v2417
        %v2419 = vrot.slane %v2418, 2
        %v2420 = vmin.f32 %v2418, %v2419
        %v2421 = vrot.slane %v2420, 1
        %v2422 = vmin.f32 %v2420, %v2421
        %v2423 = vcvt.f32.s32.to.zero.pseudo %v2422
        %p2424 = scmp.gt.s32.totalorder %s2244, 5
        %s2425 = scalar_select %p2424, 1, 0
        %v2426 = vstv %s2425
        %vm2427 = vcmp.eq.s32.totalorder %v2426, 1
        %v2428 = vsel %vm2427, %v2413, %v2391
        %v2429 = vsel %vm2427, %v2423, %v2239
        %v2430 = vlaneseq
        %v2431 = vshrl.u32 %v2430, 7
        %v2432 = vsub.s32 0, %v2431
        %v2433 = vrot.slane %v2428, %v2432
        %v2434 = vmul.f32 %v2242, %v2433
        %v2435 = vsel %vm2210, %v2434, 0.0
        %2436 = vadd.xlane.f32.xlu0 %v2435
        %v2437 = vpop.xlane.xlu0 %2436
        %v2438 = vadd.f32 %v2437, %v2235
        %v2439 = vlaneseq
        %v2440 = vshrl.u32 %v2439, 7
        %v2441 = vsub.s32 4, %v2440
        %v2442 = vrot.slane %v2234, %v2441
        %v2443 = vadd.f32 %v2438, %v2442
        %v2444 = vsel %vm2210, %v2443, -inf
        %v2445 = vrot.slane %v2444, 4
        %v2446 = vmax.f32 %v2444, %v2445
        %v2447 = vrot.slane %v2446, 2
        %v2448 = vmax.f32 %v2446, %v2447
        %v2449 = vrot.slane %v2448, 1
        %v2450 = vmax.f32 %v2448, %v2449
        %vm2451 = vcmp.ge.f32.partialorder %v2443, %v2450
        %v2452 = vsel %vm2451, %v2243, 8.0
        %v2453 = vsel %vm2210, %v2452, inf
        %v2454 = vrot.slane %v2453, 4
        %v2455 = vmin.f32 %v2453, %v2454
        %v2456 = vrot.slane %v2455, 2
        %v2457 = vmin.f32 %v2455, %v2456
        %v2458 = vrot.slane %v2457, 1
        %v2459 = vmin.f32 %v2457, %v2458
        %v2460 = vcvt.f32.s32.to.zero.pseudo %v2459
        %p2461 = scmp.gt.s32.totalorder %s2244, 6
        %s2462 = scalar_select %p2461, 1, 0
        %v2463 = vstv %s2462
        %vm2464 = vcmp.eq.s32.totalorder %v2463, 1
        %v2465 = vsel %vm2464, %v2450, %v2428
        %v2466 = vsel %vm2464, %v2460, %v2239
        %v2467 = vlaneseq
        %v2468 = vshrl.u32 %v2467, 7
        %v2469 = vsub.s32 0, %v2468
        %v2470 = vrot.slane %v2465, %v2469
        %v2471 = vmul.f32 %v2242, %v2470
        %v2472 = vsel %vm2210, %v2471, 0.0
        %2473 = vadd.xlane.f32.xlu0 %v2472
        %v2474 = vpop.xlane.xlu0 %2473
        %v2475 = vadd.f32 %v2474, %v2235
        %v2476 = vlaneseq
        %v2477 = vshrl.u32 %v2476, 7
        %v2478 = vsub.s32 6, %v2477
        %v2479 = vrot.slane %v2234, %v2478
        %v2480 = vadd.f32 %v2475, %v2479
        %v2481 = vsel %vm2210, %v2480, -inf
        %v2482 = vrot.slane %v2481, 4
        %v2483 = vmax.f32 %v2481, %v2482
        %v2484 = vrot.slane %v2483, 2
        %v2485 = vmax.f32 %v2483, %v2484
        %v2486 = vrot.slane %v2485, 1
        %v2487 = vmax.f32 %v2485, %v2486
        %vm2488 = vcmp.ge.f32.partialorder %v2480, %v2487
        %v2489 = vsel %vm2488, %v2243, 8.0
        %v2490 = vsel %vm2210, %v2489, inf
        %v2491 = vrot.slane %v2490, 4
        %v2492 = vmin.f32 %v2490, %v2491
        %v2493 = vrot.slane %v2492, 2
        %v2494 = vmin.f32 %v2492, %v2493
        %v2495 = vrot.slane %v2494, 1
        %v2496 = vmin.f32 %v2494, %v2495
        %v2497 = vcvt.f32.s32.to.zero.pseudo %v2496
        %p2498 = scmp.gt.s32.totalorder %s2244, 7
        %s2499 = scalar_select %p2498, 1, 0
        %v2500 = vstv %s2499
        %vm2501 = vcmp.eq.s32.totalorder %v2500, 1
        %v2502 = vsel %vm2501, %v2487, %v2465
        %v2503 = vsel %vm2501, %v2497, %v2239
        %vm2504 = vcmask 1040384
        %v2505 = vsel %vm2504, %v2239, %v2281
        %v2506 = vsel %vm2082, %v2505, %v2318
        %vm2507 = vcmask 1042432
        %v2508 = vsel %vm2507, %v2506, %v2355
        %v2509 = vsel %vm2084, %v2508, %v2392
        %vm2510 = vcmask 1044480
        %v2511 = vsel %vm2510, %v2509, %v2429
        %v2512 = vsel %vm2086, %v2511, %v2466
        %vm2513 = vcmask 1046528
        %v2514 = vsel %vm2513, %v2512, %v2503
        %s2515 = sld [smem:[#allocation4 + $0x1]]
        %v2516 = vlaneseq
        %v2517 = vshrl.u32 %v2516, 7
        %v2518 = vsub.s32 1, %v2517
        %v2519 = vrot.slane %v2233, %v2518
        %v2520 = vmul.f32 %v2242, %v2519
        %v2521 = vsel %vm2210, %v2520, 0.0
        %2522 = vadd.xlane.f32.xlu0 %v2521
        %v2523 = vpop.xlane.xlu0 %2522
        %v2524 = vadd.f32 %v2523, %v2235
        %v2525 = vlaneseq
        %v2526 = vshrl.u32 %v2525, 7
        %v2527 = vsub.s32 3, %v2526
        %v2528 = vrot.slane %v2233, %v2527
        %v2529 = vadd.f32 %v2524, %v2528
        %v2530 = vsel %vm2210, %v2529, -inf
        %v2531 = vrot.slane %v2530, 4
        %v2532 = vmax.f32 %v2530, %v2531
        %v2533 = vrot.slane %v2532, 2
        %v2534 = vmax.f32 %v2532, %v2533
        %v2535 = vrot.slane %v2534, 1
        %v2536 = vmax.f32 %v2534, %v2535
        %vm2537 = vcmp.ge.f32.partialorder %v2529, %v2536
        %v2538 = vsel %vm2537, %v2243, 8.0
        %v2539 = vsel %vm2210, %v2538, inf
        %v2540 = vrot.slane %v2539, 4
        %v2541 = vmin.f32 %v2539, %v2540
        %v2542 = vrot.slane %v2541, 2
        %v2543 = vmin.f32 %v2541, %v2542
        %v2544 = vrot.slane %v2543, 1
        %v2545 = vmin.f32 %v2543, %v2544
        %v2546 = vcvt.f32.s32.to.zero.pseudo %v2545
        %p2547 = scmp.gt.s32.totalorder %s2515, 1
        %s2548 = scalar_select %p2547, 1, 0
        %v2549 = vstv %s2548
        %vm2550 = vcmp.eq.s32.totalorder %v2549, 1
        %v2551 = vsel %vm2550, %v2536, %v2233
        %v2552 = vsel %vm2550, %v2546, %v2239
        %v2553 = vlaneseq
        %v2554 = vshrl.u32 %v2553, 7
        %v2555 = vsub.s32 1, %v2554
        %v2556 = vrot.slane %v2551, %v2555
        %v2557 = vmul.f32 %v2242, %v2556
        %v2558 = vsel %vm2210, %v2557, 0.0
        %2559 = vadd.xlane.f32.xlu0 %v2558
        %v2560 = vpop.xlane.xlu0 %2559
        %v2561 = vadd.f32 %v2560, %v2235
        %v2562 = vlaneseq
        %v2563 = vshrl.u32 %v2562, 7
        %v2564 = vsub.s32 5, %v2563
        %v2565 = vrot.slane %v2233, %v2564
        %v2566 = vadd.f32 %v2561, %v2565
        %v2567 = vsel %vm2210, %v2566, -inf
        %v2568 = vrot.slane %v2567, 4
        %v2569 = vmax.f32 %v2567, %v2568
        %v2570 = vrot.slane %v2569, 2
        %v2571 = vmax.f32 %v2569, %v2570
        %v2572 = vrot.slane %v2571, 1
        %v2573 = vmax.f32 %v2571, %v2572
        %vm2574 = vcmp.ge.f32.partialorder %v2566, %v2573
        %v2575 = vsel %vm2574, %v2243, 8.0
        %v2576 = vsel %vm2210, %v2575, inf
        %v2577 = vrot.slane %v2576, 4
        %v2578 = vmin.f32 %v2576, %v2577
        %v2579 = vrot.slane %v2578, 2
        %v2580 = vmin.f32 %v2578, %v2579
        %v2581 = vrot.slane %v2580, 1
        %v2582 = vmin.f32 %v2580, %v2581
        %v2583 = vcvt.f32.s32.to.zero.pseudo %v2582
        %p2584 = scmp.gt.s32.totalorder %s2515, 2
        %s2585 = scalar_select %p2584, 1, 0
        %v2586 = vstv %s2585
        %vm2587 = vcmp.eq.s32.totalorder %v2586, 1
        %v2588 = vsel %vm2587, %v2573, %v2551
        %v2589 = vsel %vm2587, %v2583, %v2239
        %v2590 = vlaneseq
        %v2591 = vshrl.u32 %v2590, 7
        %v2592 = vsub.s32 1, %v2591
        %v2593 = vrot.slane %v2588, %v2592
        %v2594 = vmul.f32 %v2242, %v2593
        %v2595 = vsel %vm2210, %v2594, 0.0
        %2596 = vadd.xlane.f32.xlu0 %v2595
        %v2597 = vpop.xlane.xlu0 %2596
        %v2598 = vadd.f32 %v2597, %v2235
        %v2599 = vlaneseq
        %v2600 = vshrl.u32 %v2599, 7
        %v2601 = vsub.s32 7, %v2600
        %v2602 = vrot.slane %v2233, %v2601
        %v2603 = vadd.f32 %v2598, %v2602
        %v2604 = vsel %vm2210, %v2603, -inf
        %v2605 = vrot.slane %v2604, 4
        %v2606 = vmax.f32 %v2604, %v2605
        %v2607 = vrot.slane %v2606, 2
        %v2608 = vmax.f32 %v2606, %v2607
        %v2609 = vrot.slane %v2608, 1
        %v2610 = vmax.f32 %v2608, %v2609
        %vm2611 = vcmp.ge.f32.partialorder %v2603, %v2610
        %v2612 = vsel %vm2611, %v2243, 8.0
        %v2613 = vsel %vm2210, %v2612, inf
        %v2614 = vrot.slane %v2613, 4
        %v2615 = vmin.f32 %v2613, %v2614
        %v2616 = vrot.slane %v2615, 2
        %v2617 = vmin.f32 %v2615, %v2616
        %v2618 = vrot.slane %v2617, 1
        %v2619 = vmin.f32 %v2617, %v2618
        %v2620 = vcvt.f32.s32.to.zero.pseudo %v2619
        %p2621 = scmp.gt.s32.totalorder %s2515, 3
        %s2622 = scalar_select %p2621, 1, 0
        %v2623 = vstv %s2622
        %vm2624 = vcmp.eq.s32.totalorder %v2623, 1
        %v2625 = vsel %vm2624, %v2610, %v2588
        %v2626 = vsel %vm2624, %v2620, %v2239
        %v2627 = vlaneseq
        %v2628 = vshrl.u32 %v2627, 7
        %v2629 = vsub.s32 1, %v2628
        %v2630 = vrot.slane %v2625, %v2629
        %v2631 = vmul.f32 %v2242, %v2630
        %v2632 = vsel %vm2210, %v2631, 0.0
        %2633 = vadd.xlane.f32.xlu0 %v2632
        %v2634 = vpop.xlane.xlu0 %2633
        %v2635 = vadd.f32 %v2634, %v2235
        %v2636 = vlaneseq
        %v2637 = vshrl.u32 %v2636, 7
        %v2638 = vsub.s32 1, %v2637
        %v2639 = vrot.slane %v2234, %v2638
        %v2640 = vadd.f32 %v2635, %v2639
        %v2641 = vsel %vm2210, %v2640, -inf
        %v2642 = vrot.slane %v2641, 4
        %v2643 = vmax.f32 %v2641, %v2642
        %v2644 = vrot.slane %v2643, 2
        %v2645 = vmax.f32 %v2643, %v2644
        %v2646 = vrot.slane %v2645, 1
        %v2647 = vmax.f32 %v2645, %v2646
        %vm2648 = vcmp.ge.f32.partialorder %v2640, %v2647
        %v2649 = vsel %vm2648, %v2243, 8.0
        %v2650 = vsel %vm2210, %v2649, inf
        %v2651 = vrot.slane %v2650, 4
        %v2652 = vmin.f32 %v2650, %v2651
        %v2653 = vrot.slane %v2652, 2
        %v2654 = vmin.f32 %v2652, %v2653
        %v2655 = vrot.slane %v2654, 1
        %v2656 = vmin.f32 %v2654, %v2655
        %v2657 = vcvt.f32.s32.to.zero.pseudo %v2656
        %p2658 = scmp.gt.s32.totalorder %s2515, 4
        %s2659 = scalar_select %p2658, 1, 0
        %v2660 = vstv %s2659
        %vm2661 = vcmp.eq.s32.totalorder %v2660, 1
        %v2662 = vsel %vm2661, %v2647, %v2625
        %v2663 = vsel %vm2661, %v2657, %v2239
        %v2664 = vlaneseq
        %v2665 = vshrl.u32 %v2664, 7
        %v2666 = vsub.s32 1, %v2665
        %v2667 = vrot.slane %v2662, %v2666
        %v2668 = vmul.f32 %v2242, %v2667
        %v2669 = vsel %vm2210, %v2668, 0.0
        %2670 = vadd.xlane.f32.xlu0 %v2669
        %v2671 = vpop.xlane.xlu0 %2670
        %v2672 = vadd.f32 %v2671, %v2235
        %v2673 = vlaneseq
        %v2674 = vshrl.u32 %v2673, 7
        %v2675 = vsub.s32 3, %v2674
        %v2676 = vrot.slane %v2234, %v2675
        %v2677 = vadd.f32 %v2672, %v2676
        %v2678 = vsel %vm2210, %v2677, -inf
        %v2679 = vrot.slane %v2678, 4
        %v2680 = vmax.f32 %v2678, %v2679
        %v2681 = vrot.slane %v2680, 2
        %v2682 = vmax.f32 %v2680, %v2681
        %v2683 = vrot.slane %v2682, 1
        %v2684 = vmax.f32 %v2682, %v2683
        %vm2685 = vcmp.ge.f32.partialorder %v2677, %v2684
        %v2686 = vsel %vm2685, %v2243, 8.0
        %v2687 = vsel %vm2210, %v2686, inf
        %v2688 = vrot.slane %v2687, 4
        %v2689 = vmin.f32 %v2687, %v2688
        %v2690 = vrot.slane %v2689, 2
        %v2691 = vmin.f32 %v2689, %v2690
        %v2692 = vrot.slane %v2691, 1
        %v2693 = vmin.f32 %v2691, %v2692
        %v2694 = vcvt.f32.s32.to.zero.pseudo %v2693
        %p2695 = scmp.gt.s32.totalorder %s2515, 5
        %s2696 = scalar_select %p2695, 1, 0
        %v2697 = vstv %s2696
        %vm2698 = vcmp.eq.s32.totalorder %v2697, 1
        %v2699 = vsel %vm2698, %v2684, %v2662
        %v2700 = vsel %vm2698, %v2694, %v2239
        %v2701 = vlaneseq
        %v2702 = vshrl.u32 %v2701, 7
        %v2703 = vsub.s32 1, %v2702
        %v2704 = vrot.slane %v2699, %v2703
        %v2705 = vmul.f32 %v2242, %v2704
        %v2706 = vsel %vm2210, %v2705, 0.0
        %2707 = vadd.xlane.f32.xlu0 %v2706
        %v2708 = vpop.xlane.xlu0 %2707
        %v2709 = vadd.f32 %v2708, %v2235
        %v2710 = vlaneseq
        %v2711 = vshrl.u32 %v2710, 7
        %v2712 = vsub.s32 5, %v2711
        %v2713 = vrot.slane %v2234, %v2712
        %v2714 = vadd.f32 %v2709, %v2713
        %v2715 = vsel %vm2210, %v2714, -inf
        %v2716 = vrot.slane %v2715, 4
        %v2717 = vmax.f32 %v2715, %v2716
        %v2718 = vrot.slane %v2717, 2
        %v2719 = vmax.f32 %v2717, %v2718
        %v2720 = vrot.slane %v2719, 1
        %v2721 = vmax.f32 %v2719, %v2720
        %vm2722 = vcmp.ge.f32.partialorder %v2714, %v2721
        %v2723 = vsel %vm2722, %v2243, 8.0
        %v2724 = vsel %vm2210, %v2723, inf
        %v2725 = vrot.slane %v2724, 4
        %v2726 = vmin.f32 %v2724, %v2725
        %v2727 = vrot.slane %v2726, 2
        %v2728 = vmin.f32 %v2726, %v2727
        %v2729 = vrot.slane %v2728, 1
        %v2730 = vmin.f32 %v2728, %v2729
        %v2731 = vcvt.f32.s32.to.zero.pseudo %v2730
        %p2732 = scmp.gt.s32.totalorder %s2515, 6
        %s2733 = scalar_select %p2732, 1, 0
        %v2734 = vstv %s2733
        %vm2735 = vcmp.eq.s32.totalorder %v2734, 1
        %v2736 = vsel %vm2735, %v2721, %v2699
        %v2737 = vsel %vm2735, %v2731, %v2239
        %v2738 = vlaneseq
        %v2739 = vshrl.u32 %v2738, 7
        %v2740 = vsub.s32 1, %v2739
        %v2741 = vrot.slane %v2736, %v2740
        %v2742 = vmul.f32 %v2242, %v2741
        %v2743 = vsel %vm2210, %v2742, 0.0
        %2744 = vadd.xlane.f32.xlu0 %v2743
        %v2745 = vpop.xlane.xlu0 %2744
        %v2746 = vadd.f32 %v2745, %v2235
        %v2747 = vlaneseq
        %v2748 = vshrl.u32 %v2747, 7
        %v2749 = vsub.s32 7, %v2748
        %v2750 = vrot.slane %v2234, %v2749
        %v2751 = vadd.f32 %v2746, %v2750
        %v2752 = vsel %vm2210, %v2751, -inf
        %v2753 = vrot.slane %v2752, 4
        %v2754 = vmax.f32 %v2752, %v2753
        %v2755 = vrot.slane %v2754, 2
        %v2756 = vmax.f32 %v2754, %v2755
        %v2757 = vrot.slane %v2756, 1
        %v2758 = vmax.f32 %v2756, %v2757
        %vm2759 = vcmp.ge.f32.partialorder %v2751, %v2758
        %v2760 = vsel %vm2759, %v2243, 8.0
        %v2761 = vsel %vm2210, %v2760, inf
        %v2762 = vrot.slane %v2761, 4
        %v2763 = vmin.f32 %v2761, %v2762
        %v2764 = vrot.slane %v2763, 2
        %v2765 = vmin.f32 %v2763, %v2764
        %v2766 = vrot.slane %v2765, 1
        %v2767 = vmin.f32 %v2765, %v2766
        %v2768 = vcvt.f32.s32.to.zero.pseudo %v2767
        %p2769 = scmp.gt.s32.totalorder %s2515, 7
        %s2770 = scalar_select %p2769, 1, 0
        %v2771 = vstv %s2770
        %vm2772 = vcmp.eq.s32.totalorder %v2771, 1
        %v2773 = vsel %vm2772, %v2758, %v2736
        %v2774 = vsel %vm2772, %v2768, %v2239
        %v2775 = vsel %vm2504, %v2239, %v2552
        %v2776 = vsel %vm2082, %v2775, %v2589
        %v2777 = vsel %vm2507, %v2776, %v2626
        %v2778 = vsel %vm2084, %v2777, %v2663
        %v2779 = vsel %vm2510, %v2778, %v2700
        %v2780 = vsel %vm2086, %v2779, %v2737
        %v2781 = vsel %vm2513, %v2780, %v2774
        %2782 = vst.msk [vmem:[%s8] sm:$0xff] %vm2210, %v2514
        %2783 = vst.msk [vmem:[%s8 + $0x8] sm:$0xff] %vm2210, %v2781
        %v2784 = vsel %vm2504, %v2502, %v2773
        %vm2785 = vcmask 58368
        %2786 = vst.msk [vmem:[%s9] sm:$0x3] %vm2785, %v2784
      $region56: #{forward.3} parent=47 // pred_fallthru
        _
      // Predicated region
      $region57: #{forward.3} parent=47 // pred_check
        %p2787 = pneg %p202
      $region58: #{forward.3} parent=47 // pred_check_branch
        %2789 = sbr.rel (%p2787) target = $region60
      $region59: #{forward.3} parent=47 // pred_region
        _
      $region60: #{forward.3} parent=47 // pred_fallthru
        _
      // Predicated region
      $region61: #{forward.3} parent=47 // pred_check
        %p2790 = pneg %p223
      $region62: #{forward.3} parent=47 // pred_check_branch
        %2792 = sbr.rel (%p2790) target = $region64
      $region63: #{forward.3} parent=47 // pred_region
        _
      $region64: #{forward.3} parent=47 // pred_fallthru
        _
      // Predicated region
      $region65: #{forward.3} parent=47 // pred_check
        %p2793 = pneg %p202
      $region66: #{forward.3} parent=47 // pred_check_branch
        %2795 = sbr.rel (%p2793) target = $region68
      $region67: #{forward.3} parent=47 // pred_region
        _
      $region68: #{forward.3} parent=47 // pred_fallthru
        _
      // Predicated region
      $region69: #{forward.3} parent=47 // pred_check
        %p2796 = pneg %p223
      $region70: #{forward.3} parent=47 // pred_check_branch
        %2798 = sbr.rel (%p2796) target = $region72
      $region71: #{forward.3} parent=47 // pred_region
        _
      $region72: #{forward.3} parent=47 // pred_fallthru
        _
    $region48: #{forward.3} parent=5 // pred_fallthru
      _
    %p2799 = scmp.le.s32.totalorder 2, %s22
    // Predicated region
    $region73: #{forward.3} parent=5 // pred_check
      %p2800 = pneg %p2799
    $region74: #{forward.3} parent=5 // pred_check_branch
      %2802 = sbr.rel (%p2800) target = $region76
    $region75: #{forward.3} parent=5 // pred_region
      %s2803 = ssub.s32 %s22, 2
    $region76: #{forward.3} parent=5 // pred_fallthru
      _
  $region6: #{forward.3} parent=0 // loop_footer
    %s26 = sadd.s32 1, %s22
  $region7: #{forward.3} parent=0 // loop_footer_branch
    %21 = sbr.rel target = $region3
  $region8: #{forward.3} parent=0 // loop_exit
    _

</llo_original>
